<compile_context>
chip_gen: v6e
topology: v6e:2x2x1
jax: 0.10.0
libtpu: 0.0.40
codegen_flags: <defaults>
</compile_context>

<pallas_src>
import functools

import jax
import jax.numpy as jnp
from jax.experimental import pallas as pl
from jax.experimental.pallas import tpu as pltpu

# ---------------- model hyper-parameters (small, ViT-like) ----------------
IMG = 32          # spatial size
CH = 3            # input channels
PS = 8            # patch size
D = 128           # hidden dim
HEADS = 4
HEAD_DIM = D // HEADS
MLP = 4 * D       # MLP hidden dim
LAYERS = 2
NUM_CLASSES = 2   # binary real/fake classifier
P = (IMG // PS) * (IMG // PS)    # number of patches (16)
S = P + 1                        # real sequence length (+CLS) = 17
S_PAD = 32                       # padded sequence length (bf16 pack + BM=128)
KP = CH * PS * PS                # flattened patch dim = 192
KP_PAD = 256                     # padded contraction dim (2 full MXU K passes)
LANE = 128                       # lane-dense classifier output width
BBLK = 4                         # batch elements per grid step -> BM = 128
                                 # (use 8 -> BM=256 on v6e/v7x at larger batch)
BM = BBLK * S_PAD                # matmul M dimension per grid step
LN_EPS = 1e-6

# ---------------- packed weight-slab layout (static row offsets) -----------
# bf16 matmul-weight slab, shape (WMAT_ROWS, 512)
PW_OFF = 0                        # patch_w: rows [0, 256), cols [:D]
CW_OFF = PW_OFF + KP_PAD          # clf_w:   rows [256, 384), cols [:LANE]
LW_OFF = CW_OFF + D               # per-layer blocks start at 384
LW_ROWS = 3 * D + MLP             # wqkv(128) + wo(128) + w1(128) + w2(512)
WMAT_ROWS = LW_OFF + LAYERS * LW_ROWS
WMAT_COLS = max(3 * D, MLP)       # 512

# f32 LN/bias/base slab, shape (WVEC_ROWS, 512)
BASE_OFF = 0                      # rows [0, S_PAD): CLS+pos-emb(+patch bias) slab
LNF_G_ROW = S_PAD
LNF_B_ROW = S_PAD + 1
CLFB_ROW = S_PAD + 2
LVEC_OFF = S_PAD + 3              # per-layer vectors: 8 rows each
LVEC_ROWS = 8                     # ln1_g, ln1_b, bqkv, bo, ln2_g, ln2_b, b1, b2
WVEC_ROWS = LVEC_OFF + LAYERS * LVEC_ROWS
WVEC_COLS = max(3 * D, MLP)       # 512


# ------------------------------ kernel helpers ------------------------------
def _layer_norm(x, gamma, beta):
    mu = jnp.mean(x, axis=-1, keepdims=True)
    var = jnp.mean((x - mu) ** 2, axis=-1, keepdims=True)
    return (x - mu) * jax.lax.rsqrt(var + LN_EPS) * gamma + beta


# ------------------------------ fused kernel ------------------------------
def _fused_vit_kernel(patches_ref, wmat_ref, wvec_ref, out_ref, *, return_feature):
    bf16 = jnp.bfloat16
    f32 = jnp.float32

    # ---- patch projection straight into the padded token slab -------------
    # rows per batch element: 0 = CLS slot (zero pixels), 1..P = patches,
    # P+1..S_PAD-1 = zero padding.  K padded to 256 with zeros.
    patches = patches_ref[...].reshape(BM, KP_PAD).astype(bf16)
    patch_w = wmat_ref[PW_OFF:PW_OFF + KP_PAD, :D]
    tok = jnp.dot(patches, patch_w, preferred_element_type=f32)
    # base = CLS token + pos-emb (+ patch bias on patch rows), zeros on padding
    base = wvec_ref[BASE_OFF:BASE_OFF + S_PAD, :D]
    h = tok.reshape(BBLK, S_PAD, D) + base[None, :, :]

    # key-padding mask (True on the S real tokens)
    key_valid = jax.lax.broadcasted_iota(jnp.int32, (1, 1, S_PAD), 2) < S
    scale = 1.0 / (HEAD_DIM ** 0.5)

    for l in range(LAYERS):                                  # static unroll
        lrow = LW_OFF + l * LW_ROWS
        vrow = LVEC_OFF + l * LVEC_ROWS
        wqkv = wmat_ref[lrow:lrow + D, :3 * D]               # (D, 3D) bf16
        wo = wmat_ref[lrow + D:lrow + 2 * D, :D]             # (D, D)  bf16
        w1 = wmat_ref[lrow + 2 * D:lrow + 3 * D, :MLP]       # (D, MLP) bf16
        w2 = wmat_ref[lrow + 3 * D:lrow + 3 * D + MLP, :D]   # (MLP, D) bf16
        ln1_g = wvec_ref[vrow + 0:vrow + 1, :D]
        ln1_b = wvec_ref[vrow + 1:vrow + 2, :D]
        bqkv = wvec_ref[vrow + 2:vrow + 3, :3 * D]
        bo = wvec_ref[vrow + 3:vrow + 4, :D]
        ln2_g = wvec_ref[vrow + 4:vrow + 5, :D]
        ln2_b = wvec_ref[vrow + 5:vrow + 6, :D]
        b1 = wvec_ref[vrow + 6:vrow + 7, :MLP]
        b2 = wvec_ref[vrow + 7:vrow + 8, :D]

        x2 = h.reshape(BM, D)                                # fold batch into M

        # ---- attention: one fused QKV matmul, per-head score/context ------
        xn = _layer_norm(x2, ln1_g, ln1_b)                   # f32
        qkv = jnp.dot(xn.astype(bf16), wqkv,
                      preferred_element_type=f32) + bqkv     # (BM, 3D) f32
        qkv3 = qkv.reshape(BBLK, S_PAD, 3 * D)
        ctx_heads = []
        for hd in range(HEADS):                              # 4 small matmuls,
            q_h = qkv3[:, :, hd * HEAD_DIM:(hd + 1) * HEAD_DIM]   # batched over BBLK
            k_h = qkv3[:, :, D + hd * HEAD_DIM:D + (hd + 1) * HEAD_DIM]
            v_h = qkv3[:, :, 2 * D + hd * HEAD_DIM:2 * D + (hd + 1) * HEAD_DIM]
            scores = jnp.einsum("bqc,bkc->bqk", q_h.astype(bf16), k_h.astype(bf16),
                                preferred_element_type=f32) * scale
            scores = jnp.where(key_valid, scores, -1e30)     # mask padded keys (f32)
            probs = jax.nn.softmax(scores, axis=-1)          # f32
            ctx_heads.append(jnp.einsum("bqk,bkc->bqc", probs.astype(bf16),
                                        v_h.astype(bf16),
                                        preferred_element_type=f32))
        # head-concatenated context -> single full-width output projection
        ctx = jnp.concatenate(ctx_heads, axis=-1).reshape(BM, D)
        attn = jnp.dot(ctx.astype(bf16), wo, preferred_element_type=f32) + bo
        x2 = x2 + attn                                       # residual (f32)

        # ---- MLP -----------------------------------------------------------
        xn2 = _layer_norm(x2, ln2_g, ln2_b)
        h1 = jnp.dot(xn2.astype(bf16), w1, preferred_element_type=f32) + b1
        # TODO(synk): HF ViT uses exact (erf) GELU; tanh approximation kept
        # for guaranteed Mosaic lowering.
        h1 = jax.nn.gelu(h1, approximate=True)
        mlp = jnp.dot(h1.astype(bf16), w2, preferred_element_type=f32) + b2
        x2 = x2 + mlp                                        # residual
        h = x2.reshape(BBLK, S_PAD, D)

    lnf_g = wvec_ref[LNF_G_ROW:LNF_G_ROW + 1, :D]
    lnf_b = wvec_ref[LNF_B_ROW:LNF_B_ROW + 1, :D]
    if return_feature:
        hf = _layer_norm(h.reshape(BM, D), lnf_g, lnf_b)
        out_ref[...] = hf.reshape(BBLK, S_PAD, D)
    else:
        clf_w = wmat_ref[CW_OFF:CW_OFF + D, :LANE]
        clf_b = wvec_ref[CLFB_ROW:CLFB_ROW + 1, :LANE]
        cls = h[:, 0, :]                                     # (BBLK, D)
        cls_n = _layer_norm(cls, lnf_g, lnf_b)
        logits = jnp.dot(cls_n.astype(bf16), clf_w,
                         preferred_element_type=f32) + clf_b
        out_ref[...] = logits.reshape(BBLK, 1, LANE)         # lane-dense store


# ------------------------------ pallas wrapper ------------------------------
@functools.partial(jax.jit, static_argnames=("return_feature",))
def vit_contrastive_forward(kparams, x, return_feature=False):
    """x: [B, C, H, W] float32 (NCHW, like the PyTorch module)."""
    b = x.shape[0]

    # patch extraction (Conv2d stride=PS equivalent) + padded token layout
    gh = IMG // PS
    patches = (x.reshape(b, CH, gh, PS, gh, PS)
                 .transpose(0, 2, 4, 1, 3, 5)
                 .reshape(b, P, KP))
    # row 0 = CLS slot (zeros), rows 1..P = patches, rows P+1..S_PAD-1 = pad;
    # contraction dim padded 192 -> 256.
    patches = jnp.pad(patches, ((0, 0), (1, S_PAD - 1 - P), (0, KP_PAD - KP)))
    # pad batch to a multiple of BBLK (extra rows are dead work, sliced off)
    b_pad = -(-b // BBLK) * BBLK
    if b_pad != b:
        patches = jnp.pad(patches, ((0, b_pad - b), (0, 0), (0, 0)))

    wmat, wvec = kparams["wmat"], kparams["wvec"]
    in_specs = [
        pl.BlockSpec((BBLK, S_PAD, KP_PAD), lambda i: (i, 0, 0)),
        pl.BlockSpec(wmat.shape, lambda i: (0, 0)),   # weight slabs: constant block
        pl.BlockSpec(wvec.shape, lambda i: (0, 0)),
    ]

    if return_feature:
        out_shape = jax.ShapeDtypeStruct((b_pad, S_PAD, D), jnp.float32)
        out_specs = pl.BlockSpec((BBLK, S_PAD, D), lambda i: (i, 0, 0))
    else:
        out_shape = jax.ShapeDtypeStruct((b_pad, 1, LANE), jnp.float32)
        out_specs = pl.BlockSpec((BBLK, 1, LANE), lambda i: (i, 0, 0))

    out = pl.pallas_call(
        functools.partial(_fused_vit_kernel, return_feature=return_feature),
        out_shape=out_shape,
        grid=(b_pad // BBLK,),
        in_specs=in_specs,
        out_specs=out_specs,
        compiler_params=pltpu.CompilerParams(
            dimension_semantics=("parallel",),
            vmem_limit_bytes=32 * 1024 * 1024,
        ),
    )(patches, wmat, wvec)

    if return_feature:
        return out[:b, :S, :]
    logits = out[:b, 0, :NUM_CLASSES]
    return jnp.argmax(logits, axis=-1).astype(jnp.int32)


# ------------------------------ parameter init ------------------------------
def init_params(key):
    """Logical (PyTorch-like) synthetic weights."""
    def nrm(k, shape, scale=0.02):
        return scale * jax.random.normal(k, shape, dtype=jnp.float32)

    keys = jax.random.split(key, 8 + LAYERS)
    params = {
        "patch_w": nrm(keys[0], (KP, D)),
        "patch_b": jnp.zeros((1, D), jnp.float32),
        "cls_token": nrm(keys[1], (1, 1, D)),
        "pos_emb": nrm(keys[2], (1, S, D)),
        "ln_f_g": jnp.ones((1, D), jnp.float32),
        "ln_f_b": jnp.zeros((1, D), jnp.float32),
        "clf_w": nrm(keys[3], (D, NUM_CLASSES)),
        "clf_b": jnp.zeros((1, NUM_CLASSES), jnp.float32),
        "layers": [],
    }
    for l in range(LAYERS):
        lk = jax.random.split(keys[8 + l], 6)
        params["layers"].append({
            "ln1_g": jnp.ones((1, D), jnp.float32),
            "ln1_b": jnp.zeros((1, D), jnp.float32),
            "wqkv": nrm(lk[0], (D, 3 * D)),
            "bqkv": jnp.zeros((1, 3 * D), jnp.float32),
            "wo": nrm(lk[1], (D, D)),
            "bo": jnp.zeros((1, D), jnp.float32),
            "ln2_g": jnp.ones((1, D), jnp.float32),
            "ln2_b": jnp.zeros((1, D), jnp.float32),
            "w1": nrm(lk[2], (D, MLP)),
            "b1": jnp.zeros((1, MLP), jnp.float32),
            "w2": nrm(lk[3], (MLP, D)),
            "b2": jnp.zeros((1, D), jnp.float32),
        })
    return params


def pack_params(p):
    """Re-layout the logical weights into the two fused-kernel weight slabs."""
    wmat = jnp.zeros((WMAT_ROWS, WMAT_COLS), jnp.float32)
    wvec = jnp.zeros((WVEC_ROWS, WVEC_COLS), jnp.float32)

    # patch projection weight (contraction dim zero-padded 192 -> 256)
    pw = jnp.zeros((KP_PAD, D), jnp.float32).at[:KP].set(p["patch_w"])
    wmat = wmat.at[PW_OFF:PW_OFF + KP_PAD, :D].set(pw)

    # lane-dense classifier head (pad 2 -> 128 output columns, zeros)
    cw = jnp.zeros((D, LANE), jnp.float32).at[:, :NUM_CLASSES].set(p["clf_w"])
    wmat = wmat.at[CW_OFF:CW_OFF + D, :LANE].set(cw)

    for l, lp in enumerate(p["layers"]):
        r = LW_OFF + l * LW_ROWS
        wmat = wmat.at[r:r + D, :3 * D].set(lp["wqkv"])
        wmat = wmat.at[r + D:r + 2 * D, :D].set(lp["wo"])
        wmat = wmat.at[r + 2 * D:r + 3 * D, :MLP].set(lp["w1"])
        wmat = wmat.at[r + 3 * D:r + 3 * D + MLP, :D].set(lp["w2"])

        v = LVEC_OFF + l * LVEC_ROWS
        wvec = wvec.at[v + 0, :D].set(lp["ln1_g"][0])
        wvec = wvec.at[v + 1, :D].set(lp["ln1_b"][0])
        wvec = wvec.at[v + 2, :3 * D].set(lp["bqkv"][0])
        wvec = wvec.at[v + 3, :D].set(lp["bo"][0])
        wvec = wvec.at[v + 4, :D].set(lp["ln2_g"][0])
        wvec = wvec.at[v + 5, :D].set(lp["ln2_b"][0])
        wvec = wvec.at[v + 6, :MLP].set(lp["b1"][0])
        wvec = wvec.at[v + 7, :D].set(lp["b2"][0])

    # CLS token + positional embedding (+ patch bias on patch rows), padded.
    base = jnp.zeros((S_PAD, D), jnp.float32)
    base = base.at[0].set(p["cls_token"][0, 0] + p["pos_emb"][0, 0])
    base = base.at[1:P + 1].set(p["pos_emb"][0, 1:] + p["patch_b"][0][None, :])
    wvec = wvec.at[BASE_OFF:BASE_OFF + S_PAD, :D].set(base)

    wvec = wvec.at[LNF_G_ROW, :D].set(p["ln_f_g"][0])
    wvec = wvec.at[LNF_B_ROW, :D].set(p["ln_f_b"][0])
    clf_b = jnp.zeros((LANE,), jnp.float32).at[:NUM_CLASSES].set(p["clf_b"][0])
    wvec = wvec.at[CLFB_ROW, :LANE].set(clf_b)

    return {"wmat": wmat.astype(jnp.bfloat16), "wvec": wvec}


# ------------------------------ main ------------------------------
if __name__ == "__main__":
    key = jax.random.PRNGKey(0)
    pkey, xkey = jax.random.split(key)
    params = init_params(pkey)
    kparams = pack_params(params)

    batch = 2
    x = jax.random.normal(xkey, (batch, CH, IMG, IMG), dtype=jnp.float32)

    preds = vit_contrastive_forward(kparams, x)
    preds = jax.block_until_ready(preds)
    assert preds.shape == (batch,)
    print("KERNEL_OK")
</pallas_src>

<mosaic_0001>
module attributes {stable_mosaic.version = 11 : i64} {
  func.func @_fused_vit_kernel(%arg0: i32, %arg1: memref<4x32x256xf32, #tpu.memory_space<vmem>>, %arg2: memref<2176x512xbf16, #tpu.memory_space<vmem>>, %arg3: memref<51x512xf32, #tpu.memory_space<vmem>>, %arg4: memref<4x1x128xf32, #tpu.memory_space<vmem>>) attributes {dimension_semantics = [#tpu.dimension_semantics<parallel>], iteration_bounds = array<i64: 1>, scalar_prefetch = 0 : i64, scratch_operands = 0 : i64, tpu.core_type = #tpu.core_type<tc>, window_params = [{transform_indices = @transform_0, window_bounds = array<i64: 4, 32, 256>}, {pipeline_mode = #tpu.pipeline_mode<synchronous>, transform_indices = @transform_1, window_bounds = array<i64: 2176, 512>}, {pipeline_mode = #tpu.pipeline_mode<synchronous>, transform_indices = @transform_2, window_bounds = array<i64: 51, 512>}, {transform_indices = @transform_3, window_bounds = array<i64: 4, 1, 128>}]} {
    %c0 = arith.constant 0 : index
    %c0_0 = arith.constant 0 : index
    %c0_1 = arith.constant 0 : index
    %0 = vector.load %arg1[%c0, %c0_0, %c0_1] : memref<4x32x256xf32, #tpu.memory_space<vmem>>, vector<4x32x256xf32>
    %1 = vector.shape_cast %0 : vector<4x32x256xf32> to vector<128x256xf32>
    %2 = arith.truncf %1 : vector<128x256xf32> to vector<128x256xbf16>
    %c0_2 = arith.constant 0 : index
    %c0_3 = arith.constant 0 : index
    %3 = vector.load %arg2[%c0_2, %c0_3] : memref<2176x512xbf16, #tpu.memory_space<vmem>>, vector<256x128xbf16>
    %cst = arith.constant dense<0.000000e+00> : vector<128x128xf32>
    %4 = tpu.matmul %2, %3, %cst {dimension_numbers = #tpu.dot_dimension_numbers<[1], [0], [0], [1], [0, 0, 1, 1], [], []>} : vector<128x256xbf16>, vector<256x128xbf16>, vector<128x128xf32> -> vector<128x128xf32>
    %c0_4 = arith.constant 0 : index
    %c0_5 = arith.constant 0 : index
    %5 = vector.load %arg3[%c0_4, %c0_5] : memref<51x512xf32, #tpu.memory_space<vmem>>, vector<32x128xf32>
    %6 = vector.shape_cast %4 : vector<128x128xf32> to vector<4x32x128xf32>
    %7 = vector.shape_cast %5 : vector<32x128xf32> to vector<1x32x128xf32>
    %8 = vector.broadcast %7 : vector<1x32x128xf32> to vector<4x32x128xf32>
    %9 = arith.addf %6, %8 : vector<4x32x128xf32>
    %10 = tpu.iota {dimensions = array<i32: 2>} : vector<1x1x32xi32>
    %c17_i32 = arith.constant 17 : i32
    %11 = vector.broadcast %c17_i32 : i32 to vector<1x1x32xi32>
    %12 = arith.cmpi slt, %10, %11 : vector<1x1x32xi32>
    %c384 = arith.constant 384 : index
    %c0_6 = arith.constant 0 : index
    %13 = vector.load %arg2[%c384, %c0_6] : memref<2176x512xbf16, #tpu.memory_space<vmem>>, vector<128x384xbf16>
    %c512 = arith.constant 512 : index
    %c0_7 = arith.constant 0 : index
    %14 = vector.load %arg2[%c512, %c0_7] : memref<2176x512xbf16, #tpu.memory_space<vmem>>, vector<128x128xbf16>
    %c640 = arith.constant 640 : index
    %c0_8 = arith.constant 0 : index
    %15 = vector.load %arg2[%c640, %c0_8] : memref<2176x512xbf16, #tpu.memory_space<vmem>>, vector<128x512xbf16>
    %c768 = arith.constant 768 : index
    %c0_9 = arith.constant 0 : index
    %16 = vector.load %arg2[%c768, %c0_9] : memref<2176x512xbf16, #tpu.memory_space<vmem>>, vector<512x128xbf16>
    %c35 = arith.constant 35 : index
    %c0_10 = arith.constant 0 : index
    %17 = vector.load %arg3[%c35, %c0_10] : memref<51x512xf32, #tpu.memory_space<vmem>>, vector<1x128xf32>
    %c36 = arith.constant 36 : index
    %c0_11 = arith.constant 0 : index
    %18 = vector.load %arg3[%c36, %c0_11] : memref<51x512xf32, #tpu.memory_space<vmem>>, vector<1x128xf32>
    %c37 = arith.constant 37 : index
    %c0_12 = arith.constant 0 : index
    %19 = vector.load %arg3[%c37, %c0_12] : memref<51x512xf32, #tpu.memory_space<vmem>>, vector<1x384xf32>
    %c38 = arith.constant 38 : index
    %c0_13 = arith.constant 0 : index
    %20 = vector.load %arg3[%c38, %c0_13] : memref<51x512xf32, #tpu.memory_space<vmem>>, vector<1x128xf32>
    %c39 = arith.constant 39 : index
    %c0_14 = arith.constant 0 : index
    %21 = vector.load %arg3[%c39, %c0_14] : memref<51x512xf32, #tpu.memory_space<vmem>>, vector<1x128xf32>
    %c40 = arith.constant 40 : index
    %c0_15 = arith.constant 0 : index
    %22 = vector.load %arg3[%c40, %c0_15] : memref<51x512xf32, #tpu.memory_space<vmem>>, vector<1x128xf32>
    %c41 = arith.constant 41 : index
    %c0_16 = arith.constant 0 : index
    %23 = vector.load %arg3[%c41, %c0_16] : memref<51x512xf32, #tpu.memory_space<vmem>>, vector<1x512xf32>
    %c42 = arith.constant 42 : index
    %c0_17 = arith.constant 0 : index
    %24 = vector.load %arg3[%c42, %c0_17] : memref<51x512xf32, #tpu.memory_space<vmem>>, vector<1x128xf32>
    %25 = vector.shape_cast %9 : vector<4x32x128xf32> to vector<128x128xf32>
    %cst_18 = arith.constant dense<0.000000e+00> : vector<128xf32>
    %26 = vector.multi_reduction <add>, %25, %cst_18 [1] : vector<128x128xf32> to vector<128xf32>
    %27 = vector.shape_cast %26 : vector<128xf32> to vector<128x1xf32>
    %cst_19 = arith.constant 1.280000e+02 : f32
    %28 = vector.broadcast %cst_19 : f32 to vector<128x1xf32>
    %29 = arith.divf %27, %28 : vector<128x1xf32>
    %30 = vector.broadcast %29 : vector<128x1xf32> to vector<128x128xf32>
    %31 = arith.subf %25, %30 : vector<128x128xf32>
    %32 = arith.mulf %31, %31 : vector<128x128xf32>
    %cst_20 = arith.constant dense<0.000000e+00> : vector<128xf32>
    %33 = vector.multi_reduction <add>, %32, %cst_20 [1] : vector<128x128xf32> to vector<128xf32>
    %34 = vector.shape_cast %33 : vector<128xf32> to vector<128x1xf32>
    %cst_21 = arith.constant 1.280000e+02 : f32
    %35 = vector.broadcast %cst_21 : f32 to vector<128x1xf32>
    %36 = arith.divf %34, %35 : vector<128x1xf32>
    %37 = vector.broadcast %29 : vector<128x1xf32> to vector<128x128xf32>
    %38 = arith.subf %25, %37 : vector<128x128xf32>
    %cst_22 = arith.constant 9.99999997E-7 : f32
    %39 = vector.broadcast %cst_22 : f32 to vector<128x1xf32>
    %40 = arith.addf %36, %39 : vector<128x1xf32>
    %41 = math.rsqrt %40 : vector<128x1xf32>
    %42 = vector.broadcast %41 : vector<128x1xf32> to vector<128x128xf32>
    %43 = arith.mulf %38, %42 : vector<128x128xf32>
    %44 = vector.broadcast %17 : vector<1x128xf32> to vector<128x128xf32>
    %45 = arith.mulf %43, %44 : vector<128x128xf32>
    %46 = vector.broadcast %18 : vector<1x128xf32> to vector<128x128xf32>
    %47 = arith.addf %45, %46 : vector<128x128xf32>
    %48 = arith.truncf %47 : vector<128x128xf32> to vector<128x128xbf16>
    %cst_23 = arith.constant dense<0.000000e+00> : vector<128x384xf32>
    %49 = tpu.matmul %48, %13, %cst_23 {dimension_numbers = #tpu.dot_dimension_numbers<[1], [0], [0], [1], [0, 0, 1, 1], [], []>} : vector<128x128xbf16>, vector<128x384xbf16>, vector<128x384xf32> -> vector<128x384xf32>
    %50 = vector.broadcast %19 : vector<1x384xf32> to vector<128x384xf32>
    %51 = arith.addf %49, %50 : vector<128x384xf32>
    %52 = vector.shape_cast %51 : vector<128x384xf32> to vector<4x32x384xf32>
    %53 = vector.extract_strided_slice %52 {offsets = [0, 0, 0], sizes = [4, 32, 32], strides = [1, 1, 1]} : vector<4x32x384xf32> to vector<4x32x32xf32>
    %54 = vector.extract_strided_slice %52 {offsets = [0, 0, 128], sizes = [4, 32, 32], strides = [1, 1, 1]} : vector<4x32x384xf32> to vector<4x32x32xf32>
    %55 = vector.extract_strided_slice %52 {offsets = [0, 0, 256], sizes = [4, 32, 32], strides = [1, 1, 1]} : vector<4x32x384xf32> to vector<4x32x32xf32>
    %56 = arith.truncf %53 : vector<4x32x32xf32> to vector<4x32x32xbf16>
    %57 = arith.truncf %54 : vector<4x32x32xf32> to vector<4x32x32xbf16>
    "tpu.trace_start"() <{level = 10 : i32, message = "bqc,bkc->bqk"}> : () -> ()
    %cst_24 = arith.constant dense<0.000000e+00> : vector<4x32x32xf32>
    %58 = tpu.matmul %56, %57, %cst_24 {dimension_numbers = #tpu.dot_dimension_numbers<[2], [2], [1], [1], [0, 0, 0, 1, 1, 1], [0], [0]>} : vector<4x32x32xbf16>, vector<4x32x32xbf16>, vector<4x32x32xf32> -> vector<4x32x32xf32>
    "tpu.trace_stop"() : () -> ()
    %cst_25 = arith.constant 0.176776692 : f32
    %59 = vector.broadcast %cst_25 : f32 to vector<4x32x32xf32>
    %60 = arith.mulf %58, %59 : vector<4x32x32xf32>
    %cst_26 = arith.constant -1.000000e+30 : f32
    %61 = vector.shape_cast %12 : vector<1x1x32xi1> to vector<1x1x32xi1>
    %62 = vector.broadcast %61 : vector<1x1x32xi1> to vector<4x32x32xi1>
    %63 = vector.broadcast %cst_26 : f32 to vector<4x32x32xf32>
    %64 = arith.select %62, %60, %63 : vector<4x32x32xi1>, vector<4x32x32xf32>
    %cst_27 = arith.constant dense<0xFF800000> : vector<4x32xf32>
    %65 = vector.multi_reduction <maximumf>, %64, %cst_27 [2] : vector<4x32x32xf32> to vector<4x32xf32>
    %cst_28 = arith.constant 0xFF800000 : f32
    %66 = vector.broadcast %cst_28 : f32 to vector<4x32xf32>
    %67 = arith.maximumf %66, %65 : vector<4x32xf32>
    %68 = vector.shape_cast %67 : vector<4x32xf32> to vector<4x32x1xf32>
    %69 = vector.broadcast %68 : vector<4x32x1xf32> to vector<4x32x32xf32>
    %70 = arith.subf %64, %69 : vector<4x32x32xf32>
    %71 = math.exp %70 : vector<4x32x32xf32>
    %cst_29 = arith.constant dense<0.000000e+00> : vector<4x32xf32>
    %72 = vector.multi_reduction <add>, %71, %cst_29 [2] : vector<4x32x32xf32> to vector<4x32xf32>
    %73 = vector.shape_cast %72 : vector<4x32xf32> to vector<4x32x1xf32>
    %74 = vector.broadcast %73 : vector<4x32x1xf32> to vector<4x32x32xf32>
    %75 = arith.divf %71, %74 : vector<4x32x32xf32>
    %76 = arith.truncf %75 : vector<4x32x32xf32> to vector<4x32x32xbf16>
    %77 = arith.truncf %55 : vector<4x32x32xf32> to vector<4x32x32xbf16>
    "tpu.trace_start"() <{level = 10 : i32, message = "bqk,bkc->bqc"}> : () -> ()
    %cst_30 = arith.constant dense<0.000000e+00> : vector<4x32x32xf32>
    %78 = tpu.matmul %76, %77, %cst_30 {dimension_numbers = #tpu.dot_dimension_numbers<[2], [1], [1], [2], [0, 0, 0, 1, 1, 2], [0], [0]>} : vector<4x32x32xbf16>, vector<4x32x32xbf16>, vector<4x32x32xf32> -> vector<4x32x32xf32>
    "tpu.trace_stop"() : () -> ()
    %79 = vector.extract_strided_slice %52 {offsets = [0, 0, 32], sizes = [4, 32, 32], strides = [1, 1, 1]} : vector<4x32x384xf32> to vector<4x32x32xf32>
    %80 = vector.extract_strided_slice %52 {offsets = [0, 0, 160], sizes = [4, 32, 32], strides = [1, 1, 1]} : vector<4x32x384xf32> to vector<4x32x32xf32>
    %81 = vector.extract_strided_slice %52 {offsets = [0, 0, 288], sizes = [4, 32, 32], strides = [1, 1, 1]} : vector<4x32x384xf32> to vector<4x32x32xf32>
    %82 = arith.truncf %79 : vector<4x32x32xf32> to vector<4x32x32xbf16>
    %83 = arith.truncf %80 : vector<4x32x32xf32> to vector<4x32x32xbf16>
    "tpu.trace_start"() <{level = 10 : i32, message = "bqc,bkc->bqk"}> : () -> ()
    %cst_31 = arith.constant dense<0.000000e+00> : vector<4x32x32xf32>
    %84 = tpu.matmul %82, %83, %cst_31 {dimension_numbers = #tpu.dot_dimension_numbers<[2], [2], [1], [1], [0, 0, 0, 1, 1, 1], [0], [0]>} : vector<4x32x32xbf16>, vector<4x32x32xbf16>, vector<4x32x32xf32> -> vector<4x32x32xf32>
    "tpu.trace_stop"() : () -> ()
    %cst_32 = arith.constant 0.176776692 : f32
    %85 = vector.broadcast %cst_32 : f32 to vector<4x32x32xf32>
    %86 = arith.mulf %84, %85 : vector<4x32x32xf32>
    %cst_33 = arith.constant -1.000000e+30 : f32
    %87 = vector.shape_cast %12 : vector<1x1x32xi1> to vector<1x1x32xi1>
    %88 = vector.broadcast %87 : vector<1x1x32xi1> to vector<4x32x32xi1>
    %89 = vector.broadcast %cst_33 : f32 to vector<4x32x32xf32>
    %90 = arith.select %88, %86, %89 : vector<4x32x32xi1>, vector<4x32x32xf32>
    %cst_34 = arith.constant dense<0xFF800000> : vector<4x32xf32>
    %91 = vector.multi_reduction <maximumf>, %90, %cst_34 [2] : vector<4x32x32xf32> to vector<4x32xf32>
    %cst_35 = arith.constant 0xFF800000 : f32
    %92 = vector.broadcast %cst_35 : f32 to vector<4x32xf32>
    %93 = arith.maximumf %92, %91 : vector<4x32xf32>
    %94 = vector.shape_cast %93 : vector<4x32xf32> to vector<4x32x1xf32>
    %95 = vector.broadcast %94 : vector<4x32x1xf32> to vector<4x32x32xf32>
    %96 = arith.subf %90, %95 : vector<4x32x32xf32>
    %97 = math.exp %96 : vector<4x32x32xf32>
    %cst_36 = arith.constant dense<0.000000e+00> : vector<4x32xf32>
    %98 = vector.multi_reduction <add>, %97, %cst_36 [2] : vector<4x32x32xf32> to vector<4x32xf32>
    %99 = vector.shape_cast %98 : vector<4x32xf32> to vector<4x32x1xf32>
    %100 = vector.broadcast %99 : vector<4x32x1xf32> to vector<4x32x32xf32>
    %101 = arith.divf %97, %100 : vector<4x32x32xf32>
    %102 = arith.truncf %101 : vector<4x32x32xf32> to vector<4x32x32xbf16>
    %103 = arith.truncf %81 : vector<4x32x32xf32> to vector<4x32x32xbf16>
    "tpu.trace_start"() <{level = 10 : i32, message = "bqk,bkc->bqc"}> : () -> ()
    %cst_37 = arith.constant dense<0.000000e+00> : vector<4x32x32xf32>
    %104 = tpu.matmul %102, %103, %cst_37 {dimension_numbers = #tpu.dot_dimension_numbers<[2], [1], [1], [2], [0, 0, 0, 1, 1, 2], [0], [0]>} : vector<4x32x32xbf16>, vector<4x32x32xbf16>, vector<4x32x32xf32> -> vector<4x32x32xf32>
    "tpu.trace_stop"() : () -> ()
    %105 = vector.extract_strided_slice %52 {offsets = [0, 0, 64], sizes = [4, 32, 32], strides = [1, 1, 1]} : vector<4x32x384xf32> to vector<4x32x32xf32>
    %106 = vector.extract_strided_slice %52 {offsets = [0, 0, 192], sizes = [4, 32, 32], strides = [1, 1, 1]} : vector<4x32x384xf32> to vector<4x32x32xf32>
    %107 = vector.extract_strided_slice %52 {offsets = [0, 0, 320], sizes = [4, 32, 32], strides = [1, 1, 1]} : vector<4x32x384xf32> to vector<4x32x32xf32>
    %108 = arith.truncf %105 : vector<4x32x32xf32> to vector<4x32x32xbf16>
    %109 = arith.truncf %106 : vector<4x32x32xf32> to vector<4x32x32xbf16>
    "tpu.trace_start"() <{level = 10 : i32, message = "bqc,bkc->bqk"}> : () -> ()
    %cst_38 = arith.constant dense<0.000000e+00> : vector<4x32x32xf32>
    %110 = tpu.matmul %108, %109, %cst_38 {dimension_numbers = #tpu.dot_dimension_numbers<[2], [2], [1], [1], [0, 0, 0, 1, 1, 1], [0], [0]>} : vector<4x32x32xbf16>, vector<4x32x32xbf16>, vector<4x32x32xf32> -> vector<4x32x32xf32>
    "tpu.trace_stop"() : () -> ()
    %cst_39 = arith.constant 0.176776692 : f32
    %111 = vector.broadcast %cst_39 : f32 to vector<4x32x32xf32>
    %112 = arith.mulf %110, %111 : vector<4x32x32xf32>
    %cst_40 = arith.constant -1.000000e+30 : f32
    %113 = vector.shape_cast %12 : vector<1x1x32xi1> to vector<1x1x32xi1>
    %114 = vector.broadcast %113 : vector<1x1x32xi1> to vector<4x32x32xi1>
    %115 = vector.broadcast %cst_40 : f32 to vector<4x32x32xf32>
    %116 = arith.select %114, %112, %115 : vector<4x32x32xi1>, vector<4x32x32xf32>
    %cst_41 = arith.constant dense<0xFF800000> : vector<4x32xf32>
    %117 = vector.multi_reduction <maximumf>, %116, %cst_41 [2] : vector<4x32x32xf32> to vector<4x32xf32>
    %cst_42 = arith.constant 0xFF800000 : f32
    %118 = vector.broadcast %cst_42 : f32 to vector<4x32xf32>
    %119 = arith.maximumf %118, %117 : vector<4x32xf32>
    %120 = vector.shape_cast %119 : vector<4x32xf32> to vector<4x32x1xf32>
    %121 = vector.broadcast %120 : vector<4x32x1xf32> to vector<4x32x32xf32>
    %122 = arith.subf %116, %121 : vector<4x32x32xf32>
    %123 = math.exp %122 : vector<4x32x32xf32>
    %cst_43 = arith.constant dense<0.000000e+00> : vector<4x32xf32>
    %124 = vector.multi_reduction <add>, %123, %cst_43 [2] : vector<4x32x32xf32> to vector<4x32xf32>
    %125 = vector.shape_cast %124 : vector<4x32xf32> to vector<4x32x1xf32>
    %126 = vector.broadcast %125 : vector<4x32x1xf32> to vector<4x32x32xf32>
    %127 = arith.divf %123, %126 : vector<4x32x32xf32>
    %128 = arith.truncf %127 : vector<4x32x32xf32> to vector<4x32x32xbf16>
    %129 = arith.truncf %107 : vector<4x32x32xf32> to vector<4x32x32xbf16>
    "tpu.trace_start"() <{level = 10 : i32, message = "bqk,bkc->bqc"}> : () -> ()
    %cst_44 = arith.constant dense<0.000000e+00> : vector<4x32x32xf32>
    %130 = tpu.matmul %128, %129, %cst_44 {dimension_numbers = #tpu.dot_dimension_numbers<[2], [1], [1], [2], [0, 0, 0, 1, 1, 2], [0], [0]>} : vector<4x32x32xbf16>, vector<4x32x32xbf16>, vector<4x32x32xf32> -> vector<4x32x32xf32>
    "tpu.trace_stop"() : () -> ()
    %131 = vector.extract_strided_slice %52 {offsets = [0, 0, 96], sizes = [4, 32, 32], strides = [1, 1, 1]} : vector<4x32x384xf32> to vector<4x32x32xf32>
    %132 = vector.extract_strided_slice %52 {offsets = [0, 0, 224], sizes = [4, 32, 32], strides = [1, 1, 1]} : vector<4x32x384xf32> to vector<4x32x32xf32>
    %133 = vector.extract_strided_slice %52 {offsets = [0, 0, 352], sizes = [4, 32, 32], strides = [1, 1, 1]} : vector<4x32x384xf32> to vector<4x32x32xf32>
    %134 = arith.truncf %131 : vector<4x32x32xf32> to vector<4x32x32xbf16>
    %135 = arith.truncf %132 : vector<4x32x32xf32> to vector<4x32x32xbf16>
    "tpu.trace_start"() <{level = 10 : i32, message = "bqc,bkc->bqk"}> : () -> ()
    %cst_45 = arith.constant dense<0.000000e+00> : vector<4x32x32xf32>
    %136 = tpu.matmul %134, %135, %cst_45 {dimension_numbers = #tpu.dot_dimension_numbers<[2], [2], [1], [1], [0, 0, 0, 1, 1, 1], [0], [0]>} : vector<4x32x32xbf16>, vector<4x32x32xbf16>, vector<4x32x32xf32> -> vector<4x32x32xf32>
    "tpu.trace_stop"() : () -> ()
    %cst_46 = arith.constant 0.176776692 : f32
    %137 = vector.broadcast %cst_46 : f32 to vector<4x32x32xf32>
    %138 = arith.mulf %136, %137 : vector<4x32x32xf32>
    %cst_47 = arith.constant -1.000000e+30 : f32
    %139 = vector.shape_cast %12 : vector<1x1x32xi1> to vector<1x1x32xi1>
    %140 = vector.broadcast %139 : vector<1x1x32xi1> to vector<4x32x32xi1>
    %141 = vector.broadcast %cst_47 : f32 to vector<4x32x32xf32>
    %142 = arith.select %140, %138, %141 : vector<4x32x32xi1>, vector<4x32x32xf32>
    %cst_48 = arith.constant dense<0xFF800000> : vector<4x32xf32>
    %143 = vector.multi_reduction <maximumf>, %142, %cst_48 [2] : vector<4x32x32xf32> to vector<4x32xf32>
    %cst_49 = arith.constant 0xFF800000 : f32
    %144 = vector.broadcast %cst_49 : f32 to vector<4x32xf32>
    %145 = arith.maximumf %144, %143 : vector<4x32xf32>
    %146 = vector.shape_cast %145 : vector<4x32xf32> to vector<4x32x1xf32>
    %147 = vector.broadcast %146 : vector<4x32x1xf32> to vector<4x32x32xf32>
    %148 = arith.subf %142, %147 : vector<4x32x32xf32>
    %149 = math.exp %148 : vector<4x32x32xf32>
    %cst_50 = arith.constant dense<0.000000e+00> : vector<4x32xf32>
    %150 = vector.multi_reduction <add>, %149, %cst_50 [2] : vector<4x32x32xf32> to vector<4x32xf32>
    %151 = vector.shape_cast %150 : vector<4x32xf32> to vector<4x32x1xf32>
    %152 = vector.broadcast %151 : vector<4x32x1xf32> to vector<4x32x32xf32>
    %153 = arith.divf %149, %152 : vector<4x32x32xf32>
    %154 = arith.truncf %153 : vector<4x32x32xf32> to vector<4x32x32xbf16>
    %155 = arith.truncf %133 : vector<4x32x32xf32> to vector<4x32x32xbf16>
    "tpu.trace_start"() <{level = 10 : i32, message = "bqk,bkc->bqc"}> : () -> ()
    %cst_51 = arith.constant dense<0.000000e+00> : vector<4x32x32xf32>
    %156 = tpu.matmul %154, %155, %cst_51 {dimension_numbers = #tpu.dot_dimension_numbers<[2], [1], [1], [2], [0, 0, 0, 1, 1, 2], [0], [0]>} : vector<4x32x32xbf16>, vector<4x32x32xbf16>, vector<4x32x32xf32> -> vector<4x32x32xf32>
    "tpu.trace_stop"() : () -> ()
    %157 = tpu.concatenate %78, %104, %130, %156 in 2 : vector<4x32x32xf32>, vector<4x32x32xf32>, vector<4x32x32xf32>, vector<4x32x32xf32> -> vector<4x32x128xf32>
    %158 = vector.shape_cast %157 : vector<4x32x128xf32> to vector<128x128xf32>
    %159 = arith.truncf %158 : vector<128x128xf32> to vector<128x128xbf16>
    %cst_52 = arith.constant dense<0.000000e+00> : vector<128x128xf32>
    %160 = tpu.matmul %159, %14, %cst_52 {dimension_numbers = #tpu.dot_dimension_numbers<[1], [0], [0], [1], [0, 0, 1, 1], [], []>} : vector<128x128xbf16>, vector<128x128xbf16>, vector<128x128xf32> -> vector<128x128xf32>
    %161 = vector.broadcast %20 : vector<1x128xf32> to vector<128x128xf32>
    %162 = arith.addf %160, %161 : vector<128x128xf32>
    %163 = arith.addf %25, %162 : vector<128x128xf32>
    %cst_53 = arith.constant dense<0.000000e+00> : vector<128xf32>
    %164 = vector.multi_reduction <add>, %163, %cst_53 [1] : vector<128x128xf32> to vector<128xf32>
    %165 = vector.shape_cast %164 : vector<128xf32> to vector<128x1xf32>
    %cst_54 = arith.constant 1.280000e+02 : f32
    %166 = vector.broadcast %cst_54 : f32 to vector<128x1xf32>
    %167 = arith.divf %165, %166 : vector<128x1xf32>
    %168 = vector.broadcast %167 : vector<128x1xf32> to vector<128x128xf32>
    %169 = arith.subf %163, %168 : vector<128x128xf32>
    %170 = arith.mulf %169, %169 : vector<128x128xf32>
    %cst_55 = arith.constant dense<0.000000e+00> : vector<128xf32>
    %171 = vector.multi_reduction <add>, %170, %cst_55 [1] : vector<128x128xf32> to vector<128xf32>
    %172 = vector.shape_cast %171 : vector<128xf32> to vector<128x1xf32>
    %cst_56 = arith.constant 1.280000e+02 : f32
    %173 = vector.broadcast %cst_56 : f32 to vector<128x1xf32>
    %174 = arith.divf %172, %173 : vector<128x1xf32>
    %175 = vector.broadcast %167 : vector<128x1xf32> to vector<128x128xf32>
    %176 = arith.subf %163, %175 : vector<128x128xf32>
    %cst_57 = arith.constant 9.99999997E-7 : f32
    %177 = vector.broadcast %cst_57 : f32 to vector<128x1xf32>
    %178 = arith.addf %174, %177 : vector<128x1xf32>
    %179 = math.rsqrt %178 : vector<128x1xf32>
    %180 = vector.broadcast %179 : vector<128x1xf32> to vector<128x128xf32>
    %181 = arith.mulf %176, %180 : vector<128x128xf32>
    %182 = vector.broadcast %21 : vector<1x128xf32> to vector<128x128xf32>
    %183 = arith.mulf %181, %182 : vector<128x128xf32>
    %184 = vector.broadcast %22 : vector<1x128xf32> to vector<128x128xf32>
    %185 = arith.addf %183, %184 : vector<128x128xf32>
    %186 = arith.truncf %185 : vector<128x128xf32> to vector<128x128xbf16>
    %cst_58 = arith.constant dense<0.000000e+00> : vector<128x512xf32>
    %187 = tpu.matmul %186, %15, %cst_58 {dimension_numbers = #tpu.dot_dimension_numbers<[1], [0], [0], [1], [0, 0, 1, 1], [], []>} : vector<128x128xbf16>, vector<128x512xbf16>, vector<128x512xf32> -> vector<128x512xf32>
    %188 = vector.broadcast %23 : vector<1x512xf32> to vector<128x512xf32>
    %189 = arith.addf %187, %188 : vector<128x512xf32>
    %190 = arith.mulf %189, %189 : vector<128x512xf32>
    %191 = arith.mulf %189, %190 : vector<128x512xf32>
    %cst_59 = arith.constant 4.471500e-02 : f32
    %192 = vector.broadcast %cst_59 : f32 to vector<128x512xf32>
    %193 = arith.mulf %192, %191 : vector<128x512xf32>
    %194 = arith.addf %189, %193 : vector<128x512xf32>
    %cst_60 = arith.constant 0.797884583 : f32
    %195 = vector.broadcast %cst_60 : f32 to vector<128x512xf32>
    %196 = arith.mulf %195, %194 : vector<128x512xf32>
    %197 = math.tanh %196 : vector<128x512xf32>
    %cst_61 = arith.constant 1.000000e+00 : f32
    %198 = vector.broadcast %cst_61 : f32 to vector<128x512xf32>
    %199 = arith.addf %198, %197 : vector<128x512xf32>
    %cst_62 = arith.constant 5.000000e-01 : f32
    %200 = vector.broadcast %cst_62 : f32 to vector<128x512xf32>
    %201 = arith.mulf %200, %199 : vector<128x512xf32>
    %202 = arith.mulf %189, %201 : vector<128x512xf32>
    %203 = arith.truncf %202 : vector<128x512xf32> to vector<128x512xbf16>
    %cst_63 = arith.constant dense<0.000000e+00> : vector<128x128xf32>
    %204 = tpu.matmul %203, %16, %cst_63 {dimension_numbers = #tpu.dot_dimension_numbers<[1], [0], [0], [1], [0, 0, 1, 1], [], []>} : vector<128x512xbf16>, vector<512x128xbf16>, vector<128x128xf32> -> vector<128x128xf32>
    %205 = vector.broadcast %24 : vector<1x128xf32> to vector<128x128xf32>
    %206 = arith.addf %204, %205 : vector<128x128xf32>
    %207 = arith.addf %163, %206 : vector<128x128xf32>
    %208 = vector.shape_cast %207 : vector<128x128xf32> to vector<4x32x128xf32>
    %c1280 = arith.constant 1280 : index
    %c0_64 = arith.constant 0 : index
    %209 = vector.load %arg2[%c1280, %c0_64] : memref<2176x512xbf16, #tpu.memory_space<vmem>>, vector<128x384xbf16>
    %c1408 = arith.constant 1408 : index
    %c0_65 = arith.constant 0 : index
    %210 = vector.load %arg2[%c1408, %c0_65] : memref<2176x512xbf16, #tpu.memory_space<vmem>>, vector<128x128xbf16>
    %c1536 = arith.constant 1536 : index
    %c0_66 = arith.constant 0 : index
    %211 = vector.load %arg2[%c1536, %c0_66] : memref<2176x512xbf16, #tpu.memory_space<vmem>>, vector<128x512xbf16>
    %c1664 = arith.constant 1664 : index
    %c0_67 = arith.constant 0 : index
    %212 = vector.load %arg2[%c1664, %c0_67] : memref<2176x512xbf16, #tpu.memory_space<vmem>>, vector<512x128xbf16>
    %c43 = arith.constant 43 : index
    %c0_68 = arith.constant 0 : index
    %213 = vector.load %arg3[%c43, %c0_68] : memref<51x512xf32, #tpu.memory_space<vmem>>, vector<1x128xf32>
    %c44 = arith.constant 44 : index
    %c0_69 = arith.constant 0 : index
    %214 = vector.load %arg3[%c44, %c0_69] : memref<51x512xf32, #tpu.memory_space<vmem>>, vector<1x128xf32>
    %c45 = arith.constant 45 : index
    %c0_70 = arith.constant 0 : index
    %215 = vector.load %arg3[%c45, %c0_70] : memref<51x512xf32, #tpu.memory_space<vmem>>, vector<1x384xf32>
    %c46 = arith.constant 46 : index
    %c0_71 = arith.constant 0 : index
    %216 = vector.load %arg3[%c46, %c0_71] : memref<51x512xf32, #tpu.memory_space<vmem>>, vector<1x128xf32>
    %c47 = arith.constant 47 : index
    %c0_72 = arith.constant 0 : index
    %217 = vector.load %arg3[%c47, %c0_72] : memref<51x512xf32, #tpu.memory_space<vmem>>, vector<1x128xf32>
    %c48 = arith.constant 48 : index
    %c0_73 = arith.constant 0 : index
    %218 = vector.load %arg3[%c48, %c0_73] : memref<51x512xf32, #tpu.memory_space<vmem>>, vector<1x128xf32>
    %c49 = arith.constant 49 : index
    %c0_74 = arith.constant 0 : index
    %219 = vector.load %arg3[%c49, %c0_74] : memref<51x512xf32, #tpu.memory_space<vmem>>, vector<1x512xf32>
    %c50 = arith.constant 50 : index
    %c0_75 = arith.constant 0 : index
    %220 = vector.load %arg3[%c50, %c0_75] : memref<51x512xf32, #tpu.memory_space<vmem>>, vector<1x128xf32>
    %221 = vector.shape_cast %208 : vector<4x32x128xf32> to vector<128x128xf32>
    %cst_76 = arith.constant dense<0.000000e+00> : vector<128xf32>
    %222 = vector.multi_reduction <add>, %221, %cst_76 [1] : vector<128x128xf32> to vector<128xf32>
    %223 = vector.shape_cast %222 : vector<128xf32> to vector<128x1xf32>
    %cst_77 = arith.constant 1.280000e+02 : f32
    %224 = vector.broadcast %cst_77 : f32 to vector<128x1xf32>
    %225 = arith.divf %223, %224 : vector<128x1xf32>
    %226 = vector.broadcast %225 : vector<128x1xf32> to vector<128x128xf32>
    %227 = arith.subf %221, %226 : vector<128x128xf32>
    %228 = arith.mulf %227, %227 : vector<128x128xf32>
    %cst_78 = arith.constant dense<0.000000e+00> : vector<128xf32>
    %229 = vector.multi_reduction <add>, %228, %cst_78 [1] : vector<128x128xf32> to vector<128xf32>
    %230 = vector.shape_cast %229 : vector<128xf32> to vector<128x1xf32>
    %cst_79 = arith.constant 1.280000e+02 : f32
    %231 = vector.broadcast %cst_79 : f32 to vector<128x1xf32>
    %232 = arith.divf %230, %231 : vector<128x1xf32>
    %233 = vector.broadcast %225 : vector<128x1xf32> to vector<128x128xf32>
    %234 = arith.subf %221, %233 : vector<128x128xf32>
    %cst_80 = arith.constant 9.99999997E-7 : f32
    %235 = vector.broadcast %cst_80 : f32 to vector<128x1xf32>
    %236 = arith.addf %232, %235 : vector<128x1xf32>
    %237 = math.rsqrt %236 : vector<128x1xf32>
    %238 = vector.broadcast %237 : vector<128x1xf32> to vector<128x128xf32>
    %239 = arith.mulf %234, %238 : vector<128x128xf32>
    %240 = vector.broadcast %213 : vector<1x128xf32> to vector<128x128xf32>
    %241 = arith.mulf %239, %240 : vector<128x128xf32>
    %242 = vector.broadcast %214 : vector<1x128xf32> to vector<128x128xf32>
    %243 = arith.addf %241, %242 : vector<128x128xf32>
    %244 = arith.truncf %243 : vector<128x128xf32> to vector<128x128xbf16>
    %cst_81 = arith.constant dense<0.000000e+00> : vector<128x384xf32>
    %245 = tpu.matmul %244, %209, %cst_81 {dimension_numbers = #tpu.dot_dimension_numbers<[1], [0], [0], [1], [0, 0, 1, 1], [], []>} : vector<128x128xbf16>, vector<128x384xbf16>, vector<128x384xf32> -> vector<128x384xf32>
    %246 = vector.broadcast %215 : vector<1x384xf32> to vector<128x384xf32>
    %247 = arith.addf %245, %246 : vector<128x384xf32>
    %248 = vector.shape_cast %247 : vector<128x384xf32> to vector<4x32x384xf32>
    %249 = vector.extract_strided_slice %248 {offsets = [0, 0, 0], sizes = [4, 32, 32], strides = [1, 1, 1]} : vector<4x32x384xf32> to vector<4x32x32xf32>
    %250 = vector.extract_strided_slice %248 {offsets = [0, 0, 128], sizes = [4, 32, 32], strides = [1, 1, 1]} : vector<4x32x384xf32> to vector<4x32x32xf32>
    %251 = vector.extract_strided_slice %248 {offsets = [0, 0, 256], sizes = [4, 32, 32], strides = [1, 1, 1]} : vector<4x32x384xf32> to vector<4x32x32xf32>
    %252 = arith.truncf %249 : vector<4x32x32xf32> to vector<4x32x32xbf16>
    %253 = arith.truncf %250 : vector<4x32x32xf32> to vector<4x32x32xbf16>
    "tpu.trace_start"() <{level = 10 : i32, message = "bqc,bkc->bqk"}> : () -> ()
    %cst_82 = arith.constant dense<0.000000e+00> : vector<4x32x32xf32>
    %254 = tpu.matmul %252, %253, %cst_82 {dimension_numbers = #tpu.dot_dimension_numbers<[2], [2], [1], [1], [0, 0, 0, 1, 1, 1], [0], [0]>} : vector<4x32x32xbf16>, vector<4x32x32xbf16>, vector<4x32x32xf32> -> vector<4x32x32xf32>
    "tpu.trace_stop"() : () -> ()
    %cst_83 = arith.constant 0.176776692 : f32
    %255 = vector.broadcast %cst_83 : f32 to vector<4x32x32xf32>
    %256 = arith.mulf %254, %255 : vector<4x32x32xf32>
    %cst_84 = arith.constant -1.000000e+30 : f32
    %257 = vector.shape_cast %12 : vector<1x1x32xi1> to vector<1x1x32xi1>
    %258 = vector.broadcast %257 : vector<1x1x32xi1> to vector<4x32x32xi1>
    %259 = vector.broadcast %cst_84 : f32 to vector<4x32x32xf32>
    %260 = arith.select %258, %256, %259 : vector<4x32x32xi1>, vector<4x32x32xf32>
    %cst_85 = arith.constant dense<0xFF800000> : vector<4x32xf32>
    %261 = vector.multi_reduction <maximumf>, %260, %cst_85 [2] : vector<4x32x32xf32> to vector<4x32xf32>
    %cst_86 = arith.constant 0xFF800000 : f32
    %262 = vector.broadcast %cst_86 : f32 to vector<4x32xf32>
    %263 = arith.maximumf %262, %261 : vector<4x32xf32>
    %264 = vector.shape_cast %263 : vector<4x32xf32> to vector<4x32x1xf32>
    %265 = vector.broadcast %264 : vector<4x32x1xf32> to vector<4x32x32xf32>
    %266 = arith.subf %260, %265 : vector<4x32x32xf32>
    %267 = math.exp %266 : vector<4x32x32xf32>
    %cst_87 = arith.constant dense<0.000000e+00> : vector<4x32xf32>
    %268 = vector.multi_reduction <add>, %267, %cst_87 [2] : vector<4x32x32xf32> to vector<4x32xf32>
    %269 = vector.shape_cast %268 : vector<4x32xf32> to vector<4x32x1xf32>
    %270 = vector.broadcast %269 : vector<4x32x1xf32> to vector<4x32x32xf32>
    %271 = arith.divf %267, %270 : vector<4x32x32xf32>
    %272 = arith.truncf %271 : vector<4x32x32xf32> to vector<4x32x32xbf16>
    %273 = arith.truncf %251 : vector<4x32x32xf32> to vector<4x32x32xbf16>
    "tpu.trace_start"() <{level = 10 : i32, message = "bqk,bkc->bqc"}> : () -> ()
    %cst_88 = arith.constant dense<0.000000e+00> : vector<4x32x32xf32>
    %274 = tpu.matmul %272, %273, %cst_88 {dimension_numbers = #tpu.dot_dimension_numbers<[2], [1], [1], [2], [0, 0, 0, 1, 1, 2], [0], [0]>} : vector<4x32x32xbf16>, vector<4x32x32xbf16>, vector<4x32x32xf32> -> vector<4x32x32xf32>
    "tpu.trace_stop"() : () -> ()
    %275 = vector.extract_strided_slice %248 {offsets = [0, 0, 32], sizes = [4, 32, 32], strides = [1, 1, 1]} : vector<4x32x384xf32> to vector<4x32x32xf32>
    %276 = vector.extract_strided_slice %248 {offsets = [0, 0, 160], sizes = [4, 32, 32], strides = [1, 1, 1]} : vector<4x32x384xf32> to vector<4x32x32xf32>
    %277 = vector.extract_strided_slice %248 {offsets = [0, 0, 288], sizes = [4, 32, 32], strides = [1, 1, 1]} : vector<4x32x384xf32> to vector<4x32x32xf32>
    %278 = arith.truncf %275 : vector<4x32x32xf32> to vector<4x32x32xbf16>
    %279 = arith.truncf %276 : vector<4x32x32xf32> to vector<4x32x32xbf16>
    "tpu.trace_start"() <{level = 10 : i32, message = "bqc,bkc->bqk"}> : () -> ()
    %cst_89 = arith.constant dense<0.000000e+00> : vector<4x32x32xf32>
    %280 = tpu.matmul %278, %279, %cst_89 {dimension_numbers = #tpu.dot_dimension_numbers<[2], [2], [1], [1], [0, 0, 0, 1, 1, 1], [0], [0]>} : vector<4x32x32xbf16>, vector<4x32x32xbf16>, vector<4x32x32xf32> -> vector<4x32x32xf32>
    "tpu.trace_stop"() : () -> ()
    %cst_90 = arith.constant 0.176776692 : f32
    %281 = vector.broadcast %cst_90 : f32 to vector<4x32x32xf32>
    %282 = arith.mulf %280, %281 : vector<4x32x32xf32>
    %cst_91 = arith.constant -1.000000e+30 : f32
    %283 = vector.shape_cast %12 : vector<1x1x32xi1> to vector<1x1x32xi1>
    %284 = vector.broadcast %283 : vector<1x1x32xi1> to vector<4x32x32xi1>
    %285 = vector.broadcast %cst_91 : f32 to vector<4x32x32xf32>
    %286 = arith.select %284, %282, %285 : vector<4x32x32xi1>, vector<4x32x32xf32>
    %cst_92 = arith.constant dense<0xFF800000> : vector<4x32xf32>
    %287 = vector.multi_reduction <maximumf>, %286, %cst_92 [2] : vector<4x32x32xf32> to vector<4x32xf32>
    %cst_93 = arith.constant 0xFF800000 : f32
    %288 = vector.broadcast %cst_93 : f32 to vector<4x32xf32>
    %289 = arith.maximumf %288, %287 : vector<4x32xf32>
    %290 = vector.shape_cast %289 : vector<4x32xf32> to vector<4x32x1xf32>
    %291 = vector.broadcast %290 : vector<4x32x1xf32> to vector<4x32x32xf32>
    %292 = arith.subf %286, %291 : vector<4x32x32xf32>
    %293 = math.exp %292 : vector<4x32x32xf32>
    %cst_94 = arith.constant dense<0.000000e+00> : vector<4x32xf32>
    %294 = vector.multi_reduction <add>, %293, %cst_94 [2] : vector<4x32x32xf32> to vector<4x32xf32>
    %295 = vector.shape_cast %294 : vector<4x32xf32> to vector<4x32x1xf32>
    %296 = vector.broadcast %295 : vector<4x32x1xf32> to vector<4x32x32xf32>
    %297 = arith.divf %293, %296 : vector<4x32x32xf32>
    %298 = arith.truncf %297 : vector<4x32x32xf32> to vector<4x32x32xbf16>
    %299 = arith.truncf %277 : vector<4x32x32xf32> to vector<4x32x32xbf16>
    "tpu.trace_start"() <{level = 10 : i32, message = "bqk,bkc->bqc"}> : () -> ()
    %cst_95 = arith.constant dense<0.000000e+00> : vector<4x32x32xf32>
    %300 = tpu.matmul %298, %299, %cst_95 {dimension_numbers = #tpu.dot_dimension_numbers<[2], [1], [1], [2], [0, 0, 0, 1, 1, 2], [0], [0]>} : vector<4x32x32xbf16>, vector<4x32x32xbf16>, vector<4x32x32xf32> -> vector<4x32x32xf32>
    "tpu.trace_stop"() : () -> ()
    %301 = vector.extract_strided_slice %248 {offsets = [0, 0, 64], sizes = [4, 32, 32], strides = [1, 1, 1]} : vector<4x32x384xf32> to vector<4x32x32xf32>
    %302 = vector.extract_strided_slice %248 {offsets = [0, 0, 192], sizes = [4, 32, 32], strides = [1, 1, 1]} : vector<4x32x384xf32> to vector<4x32x32xf32>
    %303 = vector.extract_strided_slice %248 {offsets = [0, 0, 320], sizes = [4, 32, 32], strides = [1, 1, 1]} : vector<4x32x384xf32> to vector<4x32x32xf32>
    %304 = arith.truncf %301 : vector<4x32x32xf32> to vector<4x32x32xbf16>
    %305 = arith.truncf %302 : vector<4x32x32xf32> to vector<4x32x32xbf16>
    "tpu.trace_start"() <{level = 10 : i32, message = "bqc,bkc->bqk"}> : () -> ()
    %cst_96 = arith.constant dense<0.000000e+00> : vector<4x32x32xf32>
    %306 = tpu.matmul %304, %305, %cst_96 {dimension_numbers = #tpu.dot_dimension_numbers<[2], [2], [1], [1], [0, 0, 0, 1, 1, 1], [0], [0]>} : vector<4x32x32xbf16>, vector<4x32x32xbf16>, vector<4x32x32xf32> -> vector<4x32x32xf32>
    "tpu.trace_stop"() : () -> ()
    %cst_97 = arith.constant 0.176776692 : f32
    %307 = vector.broadcast %cst_97 : f32 to vector<4x32x32xf32>
    %308 = arith.mulf %306, %307 : vector<4x32x32xf32>
    %cst_98 = arith.constant -1.000000e+30 : f32
    %309 = vector.shape_cast %12 : vector<1x1x32xi1> to vector<1x1x32xi1>
    %310 = vector.broadcast %309 : vector<1x1x32xi1> to vector<4x32x32xi1>
    %311 = vector.broadcast %cst_98 : f32 to vector<4x32x32xf32>
    %312 = arith.select %310, %308, %311 : vector<4x32x32xi1>, vector<4x32x32xf32>
    %cst_99 = arith.constant dense<0xFF800000> : vector<4x32xf32>
    %313 = vector.multi_reduction <maximumf>, %312, %cst_99 [2] : vector<4x32x32xf32> to vector<4x32xf32>
    %cst_100 = arith.constant 0xFF800000 : f32
    %314 = vector.broadcast %cst_100 : f32 to vector<4x32xf32>
    %315 = arith.maximumf %314, %313 : vector<4x32xf32>
    %316 = vector.shape_cast %315 : vector<4x32xf32> to vector<4x32x1xf32>
    %317 = vector.broadcast %316 : vector<4x32x1xf32> to vector<4x32x32xf32>
    %318 = arith.subf %312, %317 : vector<4x32x32xf32>
    %319 = math.exp %318 : vector<4x32x32xf32>
    %cst_101 = arith.constant dense<0.000000e+00> : vector<4x32xf32>
    %320 = vector.multi_reduction <add>, %319, %cst_101 [2] : vector<4x32x32xf32> to vector<4x32xf32>
    %321 = vector.shape_cast %320 : vector<4x32xf32> to vector<4x32x1xf32>
    %322 = vector.broadcast %321 : vector<4x32x1xf32> to vector<4x32x32xf32>
    %323 = arith.divf %319, %322 : vector<4x32x32xf32>
    %324 = arith.truncf %323 : vector<4x32x32xf32> to vector<4x32x32xbf16>
    %325 = arith.truncf %303 : vector<4x32x32xf32> to vector<4x32x32xbf16>
    "tpu.trace_start"() <{level = 10 : i32, message = "bqk,bkc->bqc"}> : () -> ()
    %cst_102 = arith.constant dense<0.000000e+00> : vector<4x32x32xf32>
    %326 = tpu.matmul %324, %325, %cst_102 {dimension_numbers = #tpu.dot_dimension_numbers<[2], [1], [1], [2], [0, 0, 0, 1, 1, 2], [0], [0]>} : vector<4x32x32xbf16>, vector<4x32x32xbf16>, vector<4x32x32xf32> -> vector<4x32x32xf32>
    "tpu.trace_stop"() : () -> ()
    %327 = vector.extract_strided_slice %248 {offsets = [0, 0, 96], sizes = [4, 32, 32], strides = [1, 1, 1]} : vector<4x32x384xf32> to vector<4x32x32xf32>
    %328 = vector.extract_strided_slice %248 {offsets = [0, 0, 224], sizes = [4, 32, 32], strides = [1, 1, 1]} : vector<4x32x384xf32> to vector<4x32x32xf32>
    %329 = vector.extract_strided_slice %248 {offsets = [0, 0, 352], sizes = [4, 32, 32], strides = [1, 1, 1]} : vector<4x32x384xf32> to vector<4x32x32xf32>
    %330 = arith.truncf %327 : vector<4x32x32xf32> to vector<4x32x32xbf16>
    %331 = arith.truncf %328 : vector<4x32x32xf32> to vector<4x32x32xbf16>
    "tpu.trace_start"() <{level = 10 : i32, message = "bqc,bkc->bqk"}> : () -> ()
    %cst_103 = arith.constant dense<0.000000e+00> : vector<4x32x32xf32>
    %332 = tpu.matmul %330, %331, %cst_103 {dimension_numbers = #tpu.dot_dimension_numbers<[2], [2], [1], [1], [0, 0, 0, 1, 1, 1], [0], [0]>} : vector<4x32x32xbf16>, vector<4x32x32xbf16>, vector<4x32x32xf32> -> vector<4x32x32xf32>
    "tpu.trace_stop"() : () -> ()
    %cst_104 = arith.constant 0.176776692 : f32
    %333 = vector.broadcast %cst_104 : f32 to vector<4x32x32xf32>
    %334 = arith.mulf %332, %333 : vector<4x32x32xf32>
    %cst_105 = arith.constant -1.000000e+30 : f32
    %335 = vector.shape_cast %12 : vector<1x1x32xi1> to vector<1x1x32xi1>
    %336 = vector.broadcast %335 : vector<1x1x32xi1> to vector<4x32x32xi1>
    %337 = vector.broadcast %cst_105 : f32 to vector<4x32x32xf32>
    %338 = arith.select %336, %334, %337 : vector<4x32x32xi1>, vector<4x32x32xf32>
    %cst_106 = arith.constant dense<0xFF800000> : vector<4x32xf32>
    %339 = vector.multi_reduction <maximumf>, %338, %cst_106 [2] : vector<4x32x32xf32> to vector<4x32xf32>
    %cst_107 = arith.constant 0xFF800000 : f32
    %340 = vector.broadcast %cst_107 : f32 to vector<4x32xf32>
    %341 = arith.maximumf %340, %339 : vector<4x32xf32>
    %342 = vector.shape_cast %341 : vector<4x32xf32> to vector<4x32x1xf32>
    %343 = vector.broadcast %342 : vector<4x32x1xf32> to vector<4x32x32xf32>
    %344 = arith.subf %338, %343 : vector<4x32x32xf32>
    %345 = math.exp %344 : vector<4x32x32xf32>
    %cst_108 = arith.constant dense<0.000000e+00> : vector<4x32xf32>
    %346 = vector.multi_reduction <add>, %345, %cst_108 [2] : vector<4x32x32xf32> to vector<4x32xf32>
    %347 = vector.shape_cast %346 : vector<4x32xf32> to vector<4x32x1xf32>
    %348 = vector.broadcast %347 : vector<4x32x1xf32> to vector<4x32x32xf32>
    %349 = arith.divf %345, %348 : vector<4x32x32xf32>
    %350 = arith.truncf %349 : vector<4x32x32xf32> to vector<4x32x32xbf16>
    %351 = arith.truncf %329 : vector<4x32x32xf32> to vector<4x32x32xbf16>
    "tpu.trace_start"() <{level = 10 : i32, message = "bqk,bkc->bqc"}> : () -> ()
    %cst_109 = arith.constant dense<0.000000e+00> : vector<4x32x32xf32>
    %352 = tpu.matmul %350, %351, %cst_109 {dimension_numbers = #tpu.dot_dimension_numbers<[2], [1], [1], [2], [0, 0, 0, 1, 1, 2], [0], [0]>} : vector<4x32x32xbf16>, vector<4x32x32xbf16>, vector<4x32x32xf32> -> vector<4x32x32xf32>
    "tpu.trace_stop"() : () -> ()
    %353 = tpu.concatenate %274, %300, %326, %352 in 2 : vector<4x32x32xf32>, vector<4x32x32xf32>, vector<4x32x32xf32>, vector<4x32x32xf32> -> vector<4x32x128xf32>
    %354 = vector.shape_cast %353 : vector<4x32x128xf32> to vector<128x128xf32>
    %355 = arith.truncf %354 : vector<128x128xf32> to vector<128x128xbf16>
    %cst_110 = arith.constant dense<0.000000e+00> : vector<128x128xf32>
    %356 = tpu.matmul %355, %210, %cst_110 {dimension_numbers = #tpu.dot_dimension_numbers<[1], [0], [0], [1], [0, 0, 1, 1], [], []>} : vector<128x128xbf16>, vector<128x128xbf16>, vector<128x128xf32> -> vector<128x128xf32>
    %357 = vector.broadcast %216 : vector<1x128xf32> to vector<128x128xf32>
    %358 = arith.addf %356, %357 : vector<128x128xf32>
    %359 = arith.addf %221, %358 : vector<128x128xf32>
    %cst_111 = arith.constant dense<0.000000e+00> : vector<128xf32>
    %360 = vector.multi_reduction <add>, %359, %cst_111 [1] : vector<128x128xf32> to vector<128xf32>
    %361 = vector.shape_cast %360 : vector<128xf32> to vector<128x1xf32>
    %cst_112 = arith.constant 1.280000e+02 : f32
    %362 = vector.broadcast %cst_112 : f32 to vector<128x1xf32>
    %363 = arith.divf %361, %362 : vector<128x1xf32>
    %364 = vector.broadcast %363 : vector<128x1xf32> to vector<128x128xf32>
    %365 = arith.subf %359, %364 : vector<128x128xf32>
    %366 = arith.mulf %365, %365 : vector<128x128xf32>
    %cst_113 = arith.constant dense<0.000000e+00> : vector<128xf32>
    %367 = vector.multi_reduction <add>, %366, %cst_113 [1] : vector<128x128xf32> to vector<128xf32>
    %368 = vector.shape_cast %367 : vector<128xf32> to vector<128x1xf32>
    %cst_114 = arith.constant 1.280000e+02 : f32
    %369 = vector.broadcast %cst_114 : f32 to vector<128x1xf32>
    %370 = arith.divf %368, %369 : vector<128x1xf32>
    %371 = vector.broadcast %363 : vector<128x1xf32> to vector<128x128xf32>
    %372 = arith.subf %359, %371 : vector<128x128xf32>
    %cst_115 = arith.constant 9.99999997E-7 : f32
    %373 = vector.broadcast %cst_115 : f32 to vector<128x1xf32>
    %374 = arith.addf %370, %373 : vector<128x1xf32>
    %375 = math.rsqrt %374 : vector<128x1xf32>
    %376 = vector.broadcast %375 : vector<128x1xf32> to vector<128x128xf32>
    %377 = arith.mulf %372, %376 : vector<128x128xf32>
    %378 = vector.broadcast %217 : vector<1x128xf32> to vector<128x128xf32>
    %379 = arith.mulf %377, %378 : vector<128x128xf32>
    %380 = vector.broadcast %218 : vector<1x128xf32> to vector<128x128xf32>
    %381 = arith.addf %379, %380 : vector<128x128xf32>
    %382 = arith.truncf %381 : vector<128x128xf32> to vector<128x128xbf16>
    %cst_116 = arith.constant dense<0.000000e+00> : vector<128x512xf32>
    %383 = tpu.matmul %382, %211, %cst_116 {dimension_numbers = #tpu.dot_dimension_numbers<[1], [0], [0], [1], [0, 0, 1, 1], [], []>} : vector<128x128xbf16>, vector<128x512xbf16>, vector<128x512xf32> -> vector<128x512xf32>
    %384 = vector.broadcast %219 : vector<1x512xf32> to vector<128x512xf32>
    %385 = arith.addf %383, %384 : vector<128x512xf32>
    %386 = arith.mulf %385, %385 : vector<128x512xf32>
    %387 = arith.mulf %385, %386 : vector<128x512xf32>
    %cst_117 = arith.constant 4.471500e-02 : f32
    %388 = vector.broadcast %cst_117 : f32 to vector<128x512xf32>
    %389 = arith.mulf %388, %387 : vector<128x512xf32>
    %390 = arith.addf %385, %389 : vector<128x512xf32>
    %cst_118 = arith.constant 0.797884583 : f32
    %391 = vector.broadcast %cst_118 : f32 to vector<128x512xf32>
    %392 = arith.mulf %391, %390 : vector<128x512xf32>
    %393 = math.tanh %392 : vector<128x512xf32>
    %cst_119 = arith.constant 1.000000e+00 : f32
    %394 = vector.broadcast %cst_119 : f32 to vector<128x512xf32>
    %395 = arith.addf %394, %393 : vector<128x512xf32>
    %cst_120 = arith.constant 5.000000e-01 : f32
    %396 = vector.broadcast %cst_120 : f32 to vector<128x512xf32>
    %397 = arith.mulf %396, %395 : vector<128x512xf32>
    %398 = arith.mulf %385, %397 : vector<128x512xf32>
    %399 = arith.truncf %398 : vector<128x512xf32> to vector<128x512xbf16>
    %cst_121 = arith.constant dense<0.000000e+00> : vector<128x128xf32>
    %400 = tpu.matmul %399, %212, %cst_121 {dimension_numbers = #tpu.dot_dimension_numbers<[1], [0], [0], [1], [0, 0, 1, 1], [], []>} : vector<128x512xbf16>, vector<512x128xbf16>, vector<128x128xf32> -> vector<128x128xf32>
    %401 = vector.broadcast %220 : vector<1x128xf32> to vector<128x128xf32>
    %402 = arith.addf %400, %401 : vector<128x128xf32>
    %403 = arith.addf %359, %402 : vector<128x128xf32>
    %404 = vector.shape_cast %403 : vector<128x128xf32> to vector<4x32x128xf32>
    %c32 = arith.constant 32 : index
    %c0_122 = arith.constant 0 : index
    %405 = vector.load %arg3[%c32, %c0_122] : memref<51x512xf32, #tpu.memory_space<vmem>>, vector<1x128xf32>
    %c33 = arith.constant 33 : index
    %c0_123 = arith.constant 0 : index
    %406 = vector.load %arg3[%c33, %c0_123] : memref<51x512xf32, #tpu.memory_space<vmem>>, vector<1x128xf32>
    %c256 = arith.constant 256 : index
    %c0_124 = arith.constant 0 : index
    %407 = vector.load %arg2[%c256, %c0_124] : memref<2176x512xbf16, #tpu.memory_space<vmem>>, vector<128x128xbf16>
    %c34 = arith.constant 34 : index
    %c0_125 = arith.constant 0 : index
    %408 = vector.load %arg3[%c34, %c0_125] : memref<51x512xf32, #tpu.memory_space<vmem>>, vector<1x128xf32>
    %409 = vector.extract_strided_slice %404 {offsets = [0, 0, 0], sizes = [4, 1, 128], strides = [1, 1, 1]} : vector<4x32x128xf32> to vector<4x1x128xf32>
    %410 = vector.shape_cast %409 : vector<4x1x128xf32> to vector<4x128xf32>
    %cst_126 = arith.constant dense<0.000000e+00> : vector<4xf32>
    %411 = vector.multi_reduction <add>, %410, %cst_126 [1] : vector<4x128xf32> to vector<4xf32>
    %412 = vector.shape_cast %411 : vector<4xf32> to vector<4x1xf32>
    %cst_127 = arith.constant 1.280000e+02 : f32
    %413 = vector.broadcast %cst_127 : f32 to vector<4x1xf32>
    %414 = arith.divf %412, %413 : vector<4x1xf32>
    %415 = vector.broadcast %414 : vector<4x1xf32> to vector<4x128xf32>
    %416 = arith.subf %410, %415 : vector<4x128xf32>
    %417 = arith.mulf %416, %416 : vector<4x128xf32>
    %cst_128 = arith.constant dense<0.000000e+00> : vector<4xf32>
    %418 = vector.multi_reduction <add>, %417, %cst_128 [1] : vector<4x128xf32> to vector<4xf32>
    %419 = vector.shape_cast %418 : vector<4xf32> to vector<4x1xf32>
    %cst_129 = arith.constant 1.280000e+02 : f32
    %420 = vector.broadcast %cst_129 : f32 to vector<4x1xf32>
    %421 = arith.divf %419, %420 : vector<4x1xf32>
    %422 = vector.broadcast %414 : vector<4x1xf32> to vector<4x128xf32>
    %423 = arith.subf %410, %422 : vector<4x128xf32>
    %cst_130 = arith.constant 9.99999997E-7 : f32
    %424 = vector.broadcast %cst_130 : f32 to vector<4x1xf32>
    %425 = arith.addf %421, %424 : vector<4x1xf32>
    %426 = math.rsqrt %425 : vector<4x1xf32>
    %427 = vector.broadcast %426 : vector<4x1xf32> to vector<4x128xf32>
    %428 = arith.mulf %423, %427 : vector<4x128xf32>
    %429 = vector.broadcast %405 : vector<1x128xf32> to vector<4x128xf32>
    %430 = arith.mulf %428, %429 : vector<4x128xf32>
    %431 = vector.broadcast %406 : vector<1x128xf32> to vector<4x128xf32>
    %432 = arith.addf %430, %431 : vector<4x128xf32>
    %433 = arith.truncf %432 : vector<4x128xf32> to vector<4x128xbf16>
    %cst_131 = arith.constant dense<0.000000e+00> : vector<4x128xf32>
    %434 = tpu.matmul %433, %407, %cst_131 {dimension_numbers = #tpu.dot_dimension_numbers<[1], [0], [0], [1], [0, 0, 1, 1], [], []>} : vector<4x128xbf16>, vector<128x128xbf16>, vector<4x128xf32> -> vector<4x128xf32>
    %435 = vector.broadcast %408 : vector<1x128xf32> to vector<4x128xf32>
    %436 = arith.addf %434, %435 : vector<4x128xf32>
    %437 = vector.shape_cast %436 : vector<4x128xf32> to vector<4x1x128xf32>
    %c0_132 = arith.constant 0 : index
    %c0_133 = arith.constant 0 : index
    %c0_134 = arith.constant 0 : index
    %438 = vector.load %arg4[%c0_132, %c0_133, %c0_134] : memref<4x1x128xf32, #tpu.memory_space<vmem>>, vector<4x1x128xf32>
    tpu.vector_store %arg4[%c0_132, %c0_133, %c0_134], %437 {strides = array<i32>} : memref<4x1x128xf32, #tpu.memory_space<vmem>>, vector<4x1x128xf32>,
    return
  }
  func.func @transform_0(%arg0: i32) -> (i32, i32, i32) {
    %c0_i32 = arith.constant 0 : i32
    %c0_i32_0 = arith.constant 0 : i32
    %c0_i32_1 = arith.constant 0 : i32
    return %arg0, %c0_i32, %c0_i32_0 : i32, i32, i32
  }
  func.func @transform_1(%arg0: i32) -> (i32, i32) {
    %c0_i32 = arith.constant 0 : i32
    %c0_i32_0 = arith.constant 0 : i32
    %c0_i32_1 = arith.constant 0 : i32
    return %c0_i32, %c0_i32_0 : i32, i32
  }
  func.func @transform_2(%arg0: i32) -> (i32, i32) {
    %c0_i32 = arith.constant 0 : i32
    %c0_i32_0 = arith.constant 0 : i32
    %c0_i32_1 = arith.constant 0 : i32
    return %c0_i32, %c0_i32_0 : i32, i32
  }
  func.func @transform_3(%arg0: i32) -> (i32, i32, i32) {
    %c0_i32 = arith.constant 0 : i32
    %c0_i32_0 = arith.constant 0 : i32
    %c0_i32_1 = arith.constant 0 : i32
    return %arg0, %c0_i32, %c0_i32_0 : i32, i32, i32
  }
}

</mosaic_0001>

<llo_original>
// kernel: vit_contrastive_forward.1
$region0: #{vit_contrastive_forward.1}
  #allocation0 [shape = 'u32[]', space=smem, size = 0x4, offset = 0x4, fixed_abs, tag = 'smem constant byte address 0x4 - core index']
  #allocation1 [shape = 'u32[144,128]{1,0:T(1,128)}', space=vmem, size = 0x12000, scoped, tag = 'internal scratch']
  %s0 = inlined_call_operand.vmem [shape: f32[4,32,256], index: 0, kind: input, shape index: {}]
  %s1 = inlined_call_operand.hbm [shape: bf16[2176,512], index: 1, kind: input, shape index: {}]
  %s2 = inlined_call_operand.hbm [shape: f32[51,512], index: 2, kind: input, shape index: {}]
  %s3 = inlined_call_operand.vmem [shape: f32[4,1,128], index: 3, kind: output, shape index: {}]
  %s4 = sld [smem:[#allocation0]]
  $region30: #{vit_contrastive_forward.1} parent=0
    _
  %s6 = ssub.s32 1, %s4
  %s7 = scalar_select 0, %s6, %s4
  $region1: #{vit_contrastive_forward.1} parent=0
    #allocation2 [shape = 'u8[2228224]{0}', space=vmem, size = 0x220000, scoped, tag = 'input window, operand 1, single buffered']
    #allocation3 [shape = 's32[1]{0}', space=sflag, size = 0x4, scoped, tag = 'scoped memory for vit_contrastive_forward.1']
    #allocation4 [shape = 'u8[114688]{0}', space=vmem, size = 0x1c000, scoped, tag = 'input window, operand 2, single buffered']
    #allocation5 [shape = 's32[1]{0}', space=sflag, size = 0x4, scoped, tag = 'scoped memory for vit_contrastive_forward.1']
    %8 = vsyncpa [#allocation3], 0
    %9 = vsyncpa [#allocation5], 0
    // Predicated region
    $region2: #{vit_contrastive_forward.1} parent=1 // pred_check
      _
    $region3: #{vit_contrastive_forward.1} parent=1 // pred_check_branch
      %11 = sbr.rel (0) target = $region5
    $region4: #{vit_contrastive_forward.1} parent=1 // pred_region
      _
    $region5: #{vit_contrastive_forward.1} parent=1 // pred_fallthru
      _
    // Predicated region
    $region6: #{vit_contrastive_forward.1} parent=1 // pred_check
      _
    $region7: #{vit_contrastive_forward.1} parent=1 // pred_check_branch
      %13 = sbr.rel (0) target = $region9
    $region8: #{vit_contrastive_forward.1} parent=1 // pred_region
      %s15 = ssub.s32 69632, 69632
      %16 = vsyncadd [#allocation3], %s15
      %s17 = sshll.u32 [#allocation2], 4
      %s18 = int_to_ptr.vmem [resolvable:$true] %s17
      %23 = dma.hbm_to_vmem [thread:$0]  %s1, 69632, %s18, [#allocation3], 256, 256, 16
    $region9: #{vit_contrastive_forward.1} parent=1 // pred_fallthru
      _
    // Predicated region
    $region10: #{vit_contrastive_forward.1} parent=1 // pred_check
      _
    $region11: #{vit_contrastive_forward.1} parent=1 // pred_check_branch
      %25 = sbr.rel (0) target = $region13
    $region12: #{vit_contrastive_forward.1} parent=1 // pred_region
      %s27 = ssub.s32 3584, 3584
      %28 = vsyncadd [#allocation5], %s27
      %s29 = sshll.u32 [#allocation4], 4
      %s30 = int_to_ptr.vmem [resolvable:$true] %s29
      %35 = dma.hbm_to_vmem [thread:$0]  %s2, 3584, %s30, [#allocation5], 512, 512, 32
    $region13: #{vit_contrastive_forward.1} parent=1 // pred_fallthru
      _
    // Predicated region
    $region14: #{vit_contrastive_forward.1} parent=1 // pred_check
      _
    $region15: #{vit_contrastive_forward.1} parent=1 // pred_check_branch
      %37 = sbr.rel (0) target = $region17
    $region16: #{vit_contrastive_forward.1} parent=1 // pred_region
      %38 = dma.done [#allocation3], 69632
    $region17: #{vit_contrastive_forward.1} parent=1 // pred_fallthru
      _
    // Predicated region
    $region18: #{vit_contrastive_forward.1} parent=1 // pred_check
      _
    $region19: #{vit_contrastive_forward.1} parent=1 // pred_check_branch
      %40 = sbr.rel (0) target = $region21
    $region20: #{vit_contrastive_forward.1} parent=1 // pred_region
      %41 = dma.done [#allocation5], 3584
    $region21: #{vit_contrastive_forward.1} parent=1 // pred_fallthru
      _
    %v43 = vld [vmem:[%s0] sm:$0xff]
    %v44 = vld [vmem:[%s0 + $0x8] sm:$0xff]
    %v45 = vld [vmem:[%s0 + $0x10] sm:$0xff]
    %v46 = vld [vmem:[%s0 + $0x18] sm:$0xff]
    %v47 = vld [vmem:[%s0 + $0x20] sm:$0xff]
    %v48 = vld [vmem:[%s0 + $0x28] sm:$0xff]
    %v49 = vld [vmem:[%s0 + $0x30] sm:$0xff]
    %v50 = vld [vmem:[%s0 + $0x38] sm:$0xff]
    %v51 = vld [vmem:[%s0 + $0x40] sm:$0xff]
    %v52 = vld [vmem:[%s0 + $0x48] sm:$0xff]
    %v53 = vld [vmem:[%s0 + $0x50] sm:$0xff]
    %v54 = vld [vmem:[%s0 + $0x58] sm:$0xff]
    %v55 = vld [vmem:[%s0 + $0x60] sm:$0xff]
    %v56 = vld [vmem:[%s0 + $0x68] sm:$0xff]
    %v57 = vld [vmem:[%s0 + $0x70] sm:$0xff]
    %v58 = vld [vmem:[%s0 + $0x78] sm:$0xff]
    %v59 = vld [vmem:[%s0 + $0x80] sm:$0xff]
    %v60 = vld [vmem:[%s0 + $0x88] sm:$0xff]
    %v61 = vld [vmem:[%s0 + $0x90] sm:$0xff]
    %v62 = vld [vmem:[%s0 + $0x98] sm:$0xff]
    %v63 = vld [vmem:[%s0 + $0xa0] sm:$0xff]
    %v64 = vld [vmem:[%s0 + $0xa8] sm:$0xff]
    %v65 = vld [vmem:[%s0 + $0xb0] sm:$0xff]
    %v66 = vld [vmem:[%s0 + $0xb8] sm:$0xff]
    %v67 = vld [vmem:[%s0 + $0xc0] sm:$0xff]
    %v68 = vld [vmem:[%s0 + $0xc8] sm:$0xff]
    %v69 = vld [vmem:[%s0 + $0xd0] sm:$0xff]
    %v70 = vld [vmem:[%s0 + $0xd8] sm:$0xff]
    %v71 = vld [vmem:[%s0 + $0xe0] sm:$0xff]
    %v72 = vld [vmem:[%s0 + $0xe8] sm:$0xff]
    %v73 = vld [vmem:[%s0 + $0xf0] sm:$0xff]
    %v74 = vld [vmem:[%s0 + $0xf8] sm:$0xff]
    %v75 = vpack.c.bf16 %v45, %v43
    %v76 = vpack.c.bf16 %v46, %v44
    %v77 = vpack.c.bf16 %v49, %v47
    %v78 = vpack.c.bf16 %v50, %v48
    %v79 = vpack.c.bf16 %v53, %v51
    %v80 = vpack.c.bf16 %v54, %v52
    %v81 = vpack.c.bf16 %v57, %v55
    %v82 = vpack.c.bf16 %v58, %v56
    %v83 = vpack.c.bf16 %v61, %v59
    %v84 = vpack.c.bf16 %v62, %v60
    %v85 = vpack.c.bf16 %v65, %v63
    %v86 = vpack.c.bf16 %v66, %v64
    %v87 = vpack.c.bf16 %v69, %v67
    %v88 = vpack.c.bf16 %v70, %v68
    %v89 = vpack.c.bf16 %v73, %v71
    %v90 = vpack.c.bf16 %v74, %v72
    %v91 = vld [vmem:[#allocation2] sm:$0xf]
    %v92 = vld [vmem:[#allocation2 + $0x10] sm:$0xf]
    %v93 = vld [vmem:[#allocation2 + $0x20] sm:$0xf]
    %v94 = vld [vmem:[#allocation2 + $0x30] sm:$0xf]
    %v95 = vld [vmem:[#allocation2 + $0x40] sm:$0xf]
    %v96 = vld [vmem:[#allocation2 + $0x50] sm:$0xf]
    %v97 = vld [vmem:[#allocation2 + $0x60] sm:$0xf]
    %v98 = vld [vmem:[#allocation2 + $0x70] sm:$0xf]
    %v99 = vld [vmem:[#allocation2 + $0x80] sm:$0xf]
    %v100 = vld [vmem:[#allocation2 + $0x90] sm:$0xf]
    %v101 = vld [vmem:[#allocation2 + $0xa0] sm:$0xf]
    %v102 = vld [vmem:[#allocation2 + $0xb0] sm:$0xf]
    %v103 = vld [vmem:[#allocation2 + $0xc0] sm:$0xf]
    %v104 = vld [vmem:[#allocation2 + $0xd0] sm:$0xf]
    %v105 = vld [vmem:[#allocation2 + $0xe0] sm:$0xf]
    %v106 = vld [vmem:[#allocation2 + $0xf0] sm:$0xf]
    %v107 = vld [vmem:[#allocation2 + $0x100] sm:$0xf]
    %v108 = vld [vmem:[#allocation2 + $0x110] sm:$0xf]
    %v109 = vld [vmem:[#allocation2 + $0x120] sm:$0xf]
    %v110 = vld [vmem:[#allocation2 + $0x130] sm:$0xf]
    %v111 = vld [vmem:[#allocation2 + $0x140] sm:$0xf]
    %v112 = vld [vmem:[#allocation2 + $0x150] sm:$0xf]
    %v113 = vld [vmem:[#allocation2 + $0x160] sm:$0xf]
    %v114 = vld [vmem:[#allocation2 + $0x170] sm:$0xf]
    %v115 = vld [vmem:[#allocation2 + $0x180] sm:$0xf]
    %v116 = vld [vmem:[#allocation2 + $0x190] sm:$0xf]
    %v117 = vld [vmem:[#allocation2 + $0x1a0] sm:$0xf]
    %v118 = vld [vmem:[#allocation2 + $0x1b0] sm:$0xf]
    %v119 = vld [vmem:[#allocation2 + $0x1c0] sm:$0xf]
    %v120 = vld [vmem:[#allocation2 + $0x1d0] sm:$0xf]
    %v121 = vld [vmem:[#allocation2 + $0x1e0] sm:$0xf]
    %v122 = vld [vmem:[#allocation2 + $0x1f0] sm:$0xf]
    %v155 = vunpack.c.l.b16 %v91
    %v156 = vunpack.c.l.b16 %v92
    %v157 = vunpack.c.l.b16 %v93
    %v158 = vunpack.c.l.b16 %v94
    %v159 = vunpack.c.l.b16 %v95
    %v160 = vunpack.c.l.b16 %v96
    %v161 = vunpack.c.l.b16 %v97
    %v162 = vunpack.c.l.b16 %v98
    %v163 = vunpack.c.l.b16 %v99
    %v164 = vunpack.c.l.b16 %v100
    %v165 = vunpack.c.l.b16 %v101
    %v166 = vunpack.c.l.b16 %v102
    %v167 = vunpack.c.l.b16 %v103
    %v168 = vunpack.c.l.b16 %v104
    %v169 = vunpack.c.l.b16 %v105
    %v170 = vunpack.c.l.b16 %v106
    %v171 = vunpack.c.l.b16 %v107
    %v172 = vunpack.c.l.b16 %v108
    %v173 = vunpack.c.l.b16 %v109
    %v174 = vunpack.c.l.b16 %v110
    %v175 = vunpack.c.l.b16 %v111
    %v176 = vunpack.c.l.b16 %v112
    %v177 = vunpack.c.l.b16 %v113
    %v178 = vunpack.c.l.b16 %v114
    %v179 = vunpack.c.l.b16 %v115
    %v180 = vunpack.c.l.b16 %v116
    %v181 = vunpack.c.l.b16 %v117
    %v182 = vunpack.c.l.b16 %v118
    %v183 = vunpack.c.l.b16 %v119
    %v184 = vunpack.c.l.b16 %v120
    %v185 = vunpack.c.l.b16 %v121
    %v186 = vunpack.c.l.b16 %v122
    %v187 = vpack.c.b16 %v156, %v155
    %v188 = vpack.c.b16 %v158, %v157
    %v189 = vpack.c.b16 %v160, %v159
    %v190 = vpack.c.b16 %v162, %v161
    %v191 = vpack.c.b16 %v164, %v163
    %v192 = vpack.c.b16 %v166, %v165
    %v193 = vpack.c.b16 %v168, %v167
    %v194 = vpack.c.b16 %v170, %v169
    %v195 = vpack.c.b16 %v172, %v171
    %v196 = vpack.c.b16 %v174, %v173
    %v197 = vpack.c.b16 %v176, %v175
    %v198 = vpack.c.b16 %v178, %v177
    %v199 = vpack.c.b16 %v180, %v179
    %v200 = vpack.c.b16 %v182, %v181
    %v201 = vpack.c.b16 %v184, %v183
    %v202 = vpack.c.b16 %v186, %v185
    %219 = vmatprep.subr.bf16.mxu0 0
    %220 = vmatpush1.bf16.msra.mxu0 %v194
    %221 = vmatprep.subr.bf16.mxu0 0
    %222 = vmatpush1.bf16.msra.mxu0 %v193
    %223 = vmatprep.subr.bf16.mxu0 0
    %224 = vmatpush1.bf16.msra.mxu0 %v192
    %225 = vmatprep.subr.bf16.mxu0 0
    %226 = vmatpush1.bf16.msra.mxu0 %v191
    %227 = vmatprep.subr.bf16.mxu0 0
    %228 = vmatpush1.bf16.msra.mxu0 %v190
    %229 = vmatprep.subr.bf16.mxu0 0
    %230 = vmatpush1.bf16.msra.mxu0 %v189
    %231 = vmatprep.subr.bf16.mxu0 0
    %232 = vmatpush1.bf16.msra.mxu0 %v188
    %233 = vmatprep.subr.bf16.mxu0 0
    %234 = vmatpush1.bf16.msra.mxu0 %v187
    %235 = vmatprep.subr.bf16.mxu0 0
    %236 = vmatpush2.bf16.msra.mxu0 %v202
    %237 = vmatprep.subr.bf16.mxu0 0
    %238 = vmatpush2.bf16.msra.mxu0 %v201
    %239 = vmatprep.subr.bf16.mxu0 0
    %240 = vmatpush2.bf16.msra.mxu0 %v200
    %241 = vmatprep.subr.bf16.mxu0 0
    %242 = vmatpush2.bf16.msra.mxu0 %v199
    %243 = vmatprep.subr.bf16.mxu0 0
    %244 = vmatpush2.bf16.msra.mxu0 %v198
    %245 = vmatprep.subr.bf16.mxu0 0
    %246 = vmatpush2.bf16.msra.mxu0 %v197
    %247 = vmatprep.subr.bf16.mxu0 0
    %248 = vmatpush2.bf16.msra.mxu0 %v196
    %249 = vmatprep.subr.bf16.mxu0 0
    %250 = vmatpush2.bf16.msra.mxu0 %v195
    %251 = vmatprep.mubr.bf16.mxu0 %v76
    %252 = vmatmul.mubr.bf16.gmra.mxu0 %v75
    %v253 = vpop.f32.mrf.mxu0
    %v254 = vadd.f32 0.0, %v253
    %v255 = vpop.f32.mrf.mxu0
    %v256 = vpop.f32.mrf.mxu0
    %v257 = vadd.f32 0.0, %v256
    %v258 = vpop.f32.mrf.mxu0
    %259 = vmatprep.mubr.bf16.mxu0 %v78
    %260 = vmatmul.mubr.bf16.gmra.mxu0 %v77
    %v261 = vpop.f32.mrf.mxu0
    %v262 = vadd.f32 0.0, %v261
    %v263 = vpop.f32.mrf.mxu0
    %v264 = vpop.f32.mrf.mxu0
    %v265 = vadd.f32 0.0, %v264
    %v266 = vpop.f32.mrf.mxu0
    %267 = vmatprep.mubr.bf16.mxu0 %v80
    %268 = vmatmul.mubr.bf16.gmra.mxu0 %v79
    %v269 = vpop.f32.mrf.mxu0
    %v270 = vadd.f32 0.0, %v269
    %v271 = vpop.f32.mrf.mxu0
    %v272 = vpop.f32.mrf.mxu0
    %v273 = vadd.f32 0.0, %v272
    %v274 = vpop.f32.mrf.mxu0
    %275 = vmatprep.mubr.bf16.mxu0 %v82
    %276 = vmatmul.mubr.bf16.gmra.mxu0 %v81
    %v277 = vpop.f32.mrf.mxu0
    %v278 = vadd.f32 0.0, %v277
    %v279 = vpop.f32.mrf.mxu0
    %v280 = vpop.f32.mrf.mxu0
    %v281 = vadd.f32 0.0, %v280
    %v282 = vpop.f32.mrf.mxu0
    %283 = vmatprep.mubr.bf16.mxu0 %v84
    %284 = vmatmul.mubr.bf16.gmra.mxu0 %v83
    %v285 = vpop.f32.mrf.mxu0
    %v286 = vadd.f32 0.0, %v285
    %v287 = vpop.f32.mrf.mxu0
    %v288 = vpop.f32.mrf.mxu0
    %v289 = vadd.f32 0.0, %v288
    %v290 = vpop.f32.mrf.mxu0
    %291 = vmatprep.mubr.bf16.mxu0 %v86
    %292 = vmatmul.mubr.bf16.gmra.mxu0 %v85
    %v293 = vpop.f32.mrf.mxu0
    %v294 = vadd.f32 0.0, %v293
    %v295 = vpop.f32.mrf.mxu0
    %v296 = vpop.f32.mrf.mxu0
    %v297 = vadd.f32 0.0, %v296
    %v298 = vpop.f32.mrf.mxu0
    %299 = vmatprep.mubr.bf16.mxu0 %v88
    %300 = vmatmul.mubr.bf16.gmra.mxu0 %v87
    %v301 = vpop.f32.mrf.mxu0
    %v302 = vadd.f32 0.0, %v301
    %v303 = vpop.f32.mrf.mxu0
    %v304 = vpop.f32.mrf.mxu0
    %v305 = vadd.f32 0.0, %v304
    %v306 = vpop.f32.mrf.mxu0
    %307 = vmatprep.mubr.bf16.mxu0 %v90
    %308 = vmatmul.mubr.bf16.gmra.mxu0 %v89
    %v309 = vpop.f32.mrf.mxu0
    %v310 = vadd.f32 0.0, %v309
    %v311 = vpop.f32.mrf.mxu0
    %v312 = vpop.f32.mrf.mxu0
    %v313 = vadd.f32 0.0, %v312
    %v314 = vpop.f32.mrf.mxu0
    %315 = vdwg.mxu0
    %v316 = vld [vmem:[#allocation4] sm:$0xff]
    %v317 = vld [vmem:[#allocation4 + $0x20] sm:$0xff]
    %v318 = vld [vmem:[#allocation4 + $0x40] sm:$0xff]
    %v319 = vld [vmem:[#allocation4 + $0x60] sm:$0xff]
    %v320 = vadd.f32 %v254, %v316
    %v321 = vadd.f32 %v257, %v317
    %v322 = vadd.f32 %v262, %v318
    %v323 = vadd.f32 %v265, %v319
    %v324 = vadd.f32 %v270, %v316
    %v325 = vadd.f32 %v273, %v317
    %v326 = vadd.f32 %v278, %v318
    %v327 = vadd.f32 %v281, %v319
    %v328 = vadd.f32 %v286, %v316
    %v329 = vadd.f32 %v289, %v317
    %v330 = vadd.f32 %v294, %v318
    %v331 = vadd.f32 %v297, %v319
    %v332 = vadd.f32 %v302, %v316
    %v333 = vadd.f32 %v305, %v317
    %v334 = vadd.f32 %v310, %v318
    %v335 = vadd.f32 %v313, %v319
    %v336 = vlaneseq
    %v337 = vand.u32 %v336, 127
    %vm338 = vcmp.lt.s32.totalorder %v337, 17
    %v339 = vld [vmem:[#allocation2 + $0x300] sm:$0xff]
    %v340 = vld [vmem:[#allocation2 + $0x308] sm:$0xf]
    %v341 = vld [vmem:[#allocation2 + $0x310] sm:$0xff]
    %v342 = vld [vmem:[#allocation2 + $0x318] sm:$0xf]
    %v343 = vld [vmem:[#allocation2 + $0x320] sm:$0xff]
    %v344 = vld [vmem:[#allocation2 + $0x328] sm:$0xf]
    %v345 = vld [vmem:[#allocation2 + $0x330] sm:$0xff]
    %v346 = vld [vmem:[#allocation2 + $0x338] sm:$0xf]
    %v347 = vld [vmem:[#allocation2 + $0x340] sm:$0xff]
    %v348 = vld [vmem:[#allocation2 + $0x348] sm:$0xf]
    %v349 = vld [vmem:[#allocation2 + $0x350] sm:$0xff]
    %v350 = vld [vmem:[#allocation2 + $0x358] sm:$0xf]
    %v351 = vld [vmem:[#allocation2 + $0x360] sm:$0xff]
    %v352 = vld [vmem:[#allocation2 + $0x368] sm:$0xf]
    %v353 = vld [vmem:[#allocation2 + $0x370] sm:$0xff]
    %v354 = vld [vmem:[#allocation2 + $0x378] sm:$0xf]
    %v355 = vld [vmem:[#allocation2 + $0x380] sm:$0xff]
    %v356 = vld [vmem:[#allocation2 + $0x388] sm:$0xf]
    %v357 = vld [vmem:[#allocation2 + $0x390] sm:$0xff]
    %v358 = vld [vmem:[#allocation2 + $0x398] sm:$0xf]
    %v359 = vld [vmem:[#allocation2 + $0x3a0] sm:$0xff]
    %v360 = vld [vmem:[#allocation2 + $0x3a8] sm:$0xf]
    %v361 = vld [vmem:[#allocation2 + $0x3b0] sm:$0xff]
    %v362 = vld [vmem:[#allocation2 + $0x3b8] sm:$0xf]
    %v363 = vld [vmem:[#allocation2 + $0x3c0] sm:$0xff]
    %v364 = vld [vmem:[#allocation2 + $0x3c8] sm:$0xf]
    %v365 = vld [vmem:[#allocation2 + $0x3d0] sm:$0xff]
    %v366 = vld [vmem:[#allocation2 + $0x3d8] sm:$0xf]
    %v367 = vld [vmem:[#allocation2 + $0x3e0] sm:$0xff]
    %v368 = vld [vmem:[#allocation2 + $0x3e8] sm:$0xf]
    %v369 = vld [vmem:[#allocation2 + $0x3f0] sm:$0xff]
    %v370 = vld [vmem:[#allocation2 + $0x3f8] sm:$0xf]
    %v371 = vld [vmem:[#allocation2 + $0x400] sm:$0xf]
    %v372 = vld [vmem:[#allocation2 + $0x410] sm:$0xf]
    %v373 = vld [vmem:[#allocation2 + $0x420] sm:$0xf]
    %v374 = vld [vmem:[#allocation2 + $0x430] sm:$0xf]
    %v375 = vld [vmem:[#allocation2 + $0x440] sm:$0xf]
    %v376 = vld [vmem:[#allocation2 + $0x450] sm:$0xf]
    %v377 = vld [vmem:[#allocation2 + $0x460] sm:$0xf]
    %v378 = vld [vmem:[#allocation2 + $0x470] sm:$0xf]
    %v379 = vld [vmem:[#allocation2 + $0x480] sm:$0xf]
    %v380 = vld [vmem:[#allocation2 + $0x490] sm:$0xf]
    %v381 = vld [vmem:[#allocation2 + $0x4a0] sm:$0xf]
    %v382 = vld [vmem:[#allocation2 + $0x4b0] sm:$0xf]
    %v383 = vld [vmem:[#allocation2 + $0x4c0] sm:$0xf]
    %v384 = vld [vmem:[#allocation2 + $0x4d0] sm:$0xf]
    %v385 = vld [vmem:[#allocation2 + $0x4e0] sm:$0xf]
    %v386 = vld [vmem:[#allocation2 + $0x4f0] sm:$0xf]
    %v387 = vld [vmem:[#allocation2 + $0x500] sm:$0xff]
    %v388 = vld [vmem:[#allocation2 + $0x508] sm:$0xff]
    %v389 = vld [vmem:[#allocation2 + $0x510] sm:$0xff]
    %v390 = vld [vmem:[#allocation2 + $0x518] sm:$0xff]
    %v391 = vld [vmem:[#allocation2 + $0x520] sm:$0xff]
    %v392 = vld [vmem:[#allocation2 + $0x528] sm:$0xff]
    %v393 = vld [vmem:[#allocation2 + $0x530] sm:$0xff]
    %v394 = vld [vmem:[#allocation2 + $0x538] sm:$0xff]
    %v395 = vld [vmem:[#allocation2 + $0x540] sm:$0xff]
    %v396 = vld [vmem:[#allocation2 + $0x548] sm:$0xff]
    %v397 = vld [vmem:[#allocation2 + $0x550] sm:$0xff]
    %v398 = vld [vmem:[#allocation2 + $0x558] sm:$0xff]
    %v399 = vld [vmem:[#allocation2 + $0x560] sm:$0xff]
    %v400 = vld [vmem:[#allocation2 + $0x568] sm:$0xff]
    %v401 = vld [vmem:[#allocation2 + $0x570] sm:$0xff]
    %v402 = vld [vmem:[#allocation2 + $0x578] sm:$0xff]
    %v403 = vld [vmem:[#allocation2 + $0x580] sm:$0xff]
    %v404 = vld [vmem:[#allocation2 + $0x588] sm:$0xff]
    %v405 = vld [vmem:[#allocation2 + $0x590] sm:$0xff]
    %v406 = vld [vmem:[#allocation2 + $0x598] sm:$0xff]
    %v407 = vld [vmem:[#allocation2 + $0x5a0] sm:$0xff]
    %v408 = vld [vmem:[#allocation2 + $0x5a8] sm:$0xff]
    %v409 = vld [vmem:[#allocation2 + $0x5b0] sm:$0xff]
    %v410 = vld [vmem:[#allocation2 + $0x5b8] sm:$0xff]
    %v411 = vld [vmem:[#allocation2 + $0x5c0] sm:$0xff]
    %v412 = vld [vmem:[#allocation2 + $0x5c8] sm:$0xff]
    %v413 = vld [vmem:[#allocation2 + $0x5d0] sm:$0xff]
    %v414 = vld [vmem:[#allocation2 + $0x5d8] sm:$0xff]
    %v415 = vld [vmem:[#allocation2 + $0x5e0] sm:$0xff]
    %v416 = vld [vmem:[#allocation2 + $0x5e8] sm:$0xff]
    %v417 = vld [vmem:[#allocation2 + $0x5f0] sm:$0xff]
    %v418 = vld [vmem:[#allocation2 + $0x5f8] sm:$0xff]
    %v419 = vld [vmem:[#allocation2 + $0x600] sm:$0xf]
    %v420 = vld [vmem:[#allocation2 + $0x610] sm:$0xf]
    %v421 = vld [vmem:[#allocation2 + $0x620] sm:$0xf]
    %v422 = vld [vmem:[#allocation2 + $0x630] sm:$0xf]
    %v423 = vld [vmem:[#allocation2 + $0x640] sm:$0xf]
    %v424 = vld [vmem:[#allocation2 + $0x650] sm:$0xf]
    %v425 = vld [vmem:[#allocation2 + $0x660] sm:$0xf]
    %v426 = vld [vmem:[#allocation2 + $0x670] sm:$0xf]
    %v427 = vld [vmem:[#allocation2 + $0x680] sm:$0xf]
    %v428 = vld [vmem:[#allocation2 + $0x690] sm:$0xf]
    %v429 = vld [vmem:[#allocation2 + $0x6a0] sm:$0xf]
    %v430 = vld [vmem:[#allocation2 + $0x6b0] sm:$0xf]
    %v431 = vld [vmem:[#allocation2 + $0x6c0] sm:$0xf]
    %v432 = vld [vmem:[#allocation2 + $0x6d0] sm:$0xf]
    %v433 = vld [vmem:[#allocation2 + $0x6e0] sm:$0xf]
    %v434 = vld [vmem:[#allocation2 + $0x6f0] sm:$0xf]
    %v435 = vld [vmem:[#allocation2 + $0x700] sm:$0xf]
    %v436 = vld [vmem:[#allocation2 + $0x710] sm:$0xf]
    %v437 = vld [vmem:[#allocation2 + $0x720] sm:$0xf]
    %v438 = vld [vmem:[#allocation2 + $0x730] sm:$0xf]
    %v439 = vld [vmem:[#allocation2 + $0x740] sm:$0xf]
    %v440 = vld [vmem:[#allocation2 + $0x750] sm:$0xf]
    %v441 = vld [vmem:[#allocation2 + $0x760] sm:$0xf]
    %v442 = vld [vmem:[#allocation2 + $0x770] sm:$0xf]
    %v443 = vld [vmem:[#allocation2 + $0x780] sm:$0xf]
    %v444 = vld [vmem:[#allocation2 + $0x790] sm:$0xf]
    %v445 = vld [vmem:[#allocation2 + $0x7a0] sm:$0xf]
    %v446 = vld [vmem:[#allocation2 + $0x7b0] sm:$0xf]
    %v447 = vld [vmem:[#allocation2 + $0x7c0] sm:$0xf]
    %v448 = vld [vmem:[#allocation2 + $0x7d0] sm:$0xf]
    %v449 = vld [vmem:[#allocation2 + $0x7e0] sm:$0xf]
    %v450 = vld [vmem:[#allocation2 + $0x7f0] sm:$0xf]
    %v451 = vld [vmem:[#allocation2 + $0x800] sm:$0xf]
    %v452 = vld [vmem:[#allocation2 + $0x810] sm:$0xf]
    %v453 = vld [vmem:[#allocation2 + $0x820] sm:$0xf]
    %v454 = vld [vmem:[#allocation2 + $0x830] sm:$0xf]
    %v455 = vld [vmem:[#allocation2 + $0x840] sm:$0xf]
    %v456 = vld [vmem:[#allocation2 + $0x850] sm:$0xf]
    %v457 = vld [vmem:[#allocation2 + $0x860] sm:$0xf]
    %v458 = vld [vmem:[#allocation2 + $0x870] sm:$0xf]
    %v459 = vld [vmem:[#allocation2 + $0x880] sm:$0xf]
    %v460 = vld [vmem:[#allocation2 + $0x890] sm:$0xf]
    %v461 = vld [vmem:[#allocation2 + $0x8a0] sm:$0xf]
    %v462 = vld [vmem:[#allocation2 + $0x8b0] sm:$0xf]
    %v463 = vld [vmem:[#allocation2 + $0x8c0] sm:$0xf]
    %v464 = vld [vmem:[#allocation2 + $0x8d0] sm:$0xf]
    %v465 = vld [vmem:[#allocation2 + $0x8e0] sm:$0xf]
    %v466 = vld [vmem:[#allocation2 + $0x8f0] sm:$0xf]
    %v467 = vld [vmem:[#allocation2 + $0x900] sm:$0xf]
    %v468 = vld [vmem:[#allocation2 + $0x910] sm:$0xf]
    %v469 = vld [vmem:[#allocation2 + $0x920] sm:$0xf]
    %v470 = vld [vmem:[#allocation2 + $0x930] sm:$0xf]
    %v471 = vld [vmem:[#allocation2 + $0x940] sm:$0xf]
    %v472 = vld [vmem:[#allocation2 + $0x950] sm:$0xf]
    %v473 = vld [vmem:[#allocation2 + $0x960] sm:$0xf]
    %v474 = vld [vmem:[#allocation2 + $0x970] sm:$0xf]
    %v475 = vld [vmem:[#allocation2 + $0x980] sm:$0xf]
    %v476 = vld [vmem:[#allocation2 + $0x990] sm:$0xf]
    %v477 = vld [vmem:[#allocation2 + $0x9a0] sm:$0xf]
    %v478 = vld [vmem:[#allocation2 + $0x9b0] sm:$0xf]
    %v479 = vld [vmem:[#allocation2 + $0x9c0] sm:$0xf]
    %v480 = vld [vmem:[#allocation2 + $0x9d0] sm:$0xf]
    %v481 = vld [vmem:[#allocation2 + $0x9e0] sm:$0xf]
    %v482 = vld [vmem:[#allocation2 + $0x9f0] sm:$0xf]
    %v483 = vld [vmem:[#allocation4 + $0x83] ss:$0 sm:$0xff]
    %v484 = vld [vmem:[#allocation4 + $0x84] ss:$0 sm:$0xff]
    %s485 = scalar_lea.vmem [#allocation4], 133
    %v486 = vld [vmem:[%s485] ss:$8 sm:$0x7]
    %v487 = vld [vmem:[#allocation4 + $0x86] ss:$0 sm:$0xff]
    %v488 = vld [vmem:[#allocation4 + $0x87] ss:$0 sm:$0xff]
    %v489 = vld [vmem:[#allocation4 + $0xa0] ss:$0 sm:$0xff]
    %s490 = scalar_lea.vmem [#allocation4], 161
    %v491 = vld [vmem:[%s490] ss:$8 sm:$0xf]
    %v492 = vld [vmem:[#allocation4 + $0xa2] ss:$0 sm:$0xff]
    %493 = vadd.xlane.f32.xlu0 %v320
    %v494 = vpop.xlane.xlu0 %493
    %495 = vadd.xlane.f32.xlu0 %v321
    %v496 = vpop.xlane.xlu0 %495
    %497 = vadd.xlane.f32.xlu0 %v322
    %v498 = vpop.xlane.xlu0 %497
    %499 = vadd.xlane.f32.xlu0 %v323
    %v500 = vpop.xlane.xlu0 %499
    %501 = vadd.xlane.f32.xlu0 %v324
    %v502 = vpop.xlane.xlu0 %501
    %503 = vadd.xlane.f32.xlu0 %v325
    %v504 = vpop.xlane.xlu0 %503
    %505 = vadd.xlane.f32.xlu0 %v326
    %v506 = vpop.xlane.xlu0 %505
    %507 = vadd.xlane.f32.xlu0 %v327
    %v508 = vpop.xlane.xlu0 %507
    %509 = vadd.xlane.f32.xlu0 %v328
    %v510 = vpop.xlane.xlu0 %509
    %511 = vadd.xlane.f32.xlu0 %v329
    %v512 = vpop.xlane.xlu0 %511
    %513 = vadd.xlane.f32.xlu0 %v330
    %v514 = vpop.xlane.xlu0 %513
    %515 = vadd.xlane.f32.xlu0 %v331
    %v516 = vpop.xlane.xlu0 %515
    %517 = vadd.xlane.f32.xlu0 %v332
    %v518 = vpop.xlane.xlu0 %517
    %519 = vadd.xlane.f32.xlu0 %v333
    %v520 = vpop.xlane.xlu0 %519
    %521 = vadd.xlane.f32.xlu0 %v334
    %v522 = vpop.xlane.xlu0 %521
    %523 = vadd.xlane.f32.xlu0 %v335
    %v524 = vpop.xlane.xlu0 %523
    %v525 = vrcp.pop 128.0
    %v526 = vmul.f32 %v494, %v525
    %v527 = vmul.f32 %v496, %v525
    %v528 = vmul.f32 %v498, %v525
    %v529 = vmul.f32 %v500, %v525
    %v530 = vmul.f32 %v502, %v525
    %v531 = vmul.f32 %v504, %v525
    %v532 = vmul.f32 %v506, %v525
    %v533 = vmul.f32 %v508, %v525
    %v534 = vmul.f32 %v510, %v525
    %v535 = vmul.f32 %v512, %v525
    %v536 = vmul.f32 %v514, %v525
    %v537 = vmul.f32 %v516, %v525
    %v538 = vmul.f32 %v518, %v525
    %v539 = vmul.f32 %v520, %v525
    %v540 = vmul.f32 %v522, %v525
    %v541 = vmul.f32 %v524, %v525
    %v542 = vsub.f32 %v320, %v526
    %v543 = vsub.f32 %v321, %v527
    %v544 = vsub.f32 %v322, %v528
    %v545 = vsub.f32 %v323, %v529
    %v546 = vsub.f32 %v324, %v530
    %v547 = vsub.f32 %v325, %v531
    %v548 = vsub.f32 %v326, %v532
    %v549 = vsub.f32 %v327, %v533
    %v550 = vsub.f32 %v328, %v534
    %v551 = vsub.f32 %v329, %v535
    %v552 = vsub.f32 %v330, %v536
    %v553 = vsub.f32 %v331, %v537
    %v554 = vsub.f32 %v332, %v538
    %v555 = vsub.f32 %v333, %v539
    %v556 = vsub.f32 %v334, %v540
    %v557 = vsub.f32 %v335, %v541
    %v558 = vmul.f32 %v542, %v542
    %v559 = vmul.f32 %v543, %v543
    %v560 = vmul.f32 %v544, %v544
    %v561 = vmul.f32 %v545, %v545
    %v562 = vmul.f32 %v546, %v546
    %v563 = vmul.f32 %v547, %v547
    %v564 = vmul.f32 %v548, %v548
    %v565 = vmul.f32 %v549, %v549
    %v566 = vmul.f32 %v550, %v550
    %v567 = vmul.f32 %v551, %v551
    %v568 = vmul.f32 %v552, %v552
    %v569 = vmul.f32 %v553, %v553
    %v570 = vmul.f32 %v554, %v554
    %v571 = vmul.f32 %v555, %v555
    %v572 = vmul.f32 %v556, %v556
    %v573 = vmul.f32 %v557, %v557
    %574 = vadd.xlane.f32.xlu0 %v558
    %v575 = vpop.xlane.xlu0 %574
    %576 = vadd.xlane.f32.xlu0 %v559
    %v577 = vpop.xlane.xlu0 %576
    %578 = vadd.xlane.f32.xlu0 %v560
    %v579 = vpop.xlane.xlu0 %578
    %580 = vadd.xlane.f32.xlu0 %v561
    %v581 = vpop.xlane.xlu0 %580
    %582 = vadd.xlane.f32.xlu0 %v562
    %v583 = vpop.xlane.xlu0 %582
    %584 = vadd.xlane.f32.xlu0 %v563
    %v585 = vpop.xlane.xlu0 %584
    %586 = vadd.xlane.f32.xlu0 %v564
    %v587 = vpop.xlane.xlu0 %586
    %588 = vadd.xlane.f32.xlu0 %v565
    %v589 = vpop.xlane.xlu0 %588
    %590 = vadd.xlane.f32.xlu0 %v566
    %v591 = vpop.xlane.xlu0 %590
    %592 = vadd.xlane.f32.xlu0 %v567
    %v593 = vpop.xlane.xlu0 %592
    %594 = vadd.xlane.f32.xlu0 %v568
    %v595 = vpop.xlane.xlu0 %594
    %596 = vadd.xlane.f32.xlu0 %v569
    %v597 = vpop.xlane.xlu0 %596
    %598 = vadd.xlane.f32.xlu0 %v570
    %v599 = vpop.xlane.xlu0 %598
    %600 = vadd.xlane.f32.xlu0 %v571
    %v601 = vpop.xlane.xlu0 %600
    %602 = vadd.xlane.f32.xlu0 %v572
    %v603 = vpop.xlane.xlu0 %602
    %604 = vadd.xlane.f32.xlu0 %v573
    %v605 = vpop.xlane.xlu0 %604
    %v606 = vmul.f32 %v575, %v525
    %v607 = vmul.f32 %v577, %v525
    %v608 = vmul.f32 %v579, %v525
    %v609 = vmul.f32 %v581, %v525
    %v610 = vmul.f32 %v583, %v525
    %v611 = vmul.f32 %v585, %v525
    %v612 = vmul.f32 %v587, %v525
    %v613 = vmul.f32 %v589, %v525
    %v614 = vmul.f32 %v591, %v525
    %v615 = vmul.f32 %v593, %v525
    %v616 = vmul.f32 %v595, %v525
    %v617 = vmul.f32 %v597, %v525
    %v618 = vmul.f32 %v599, %v525
    %v619 = vmul.f32 %v601, %v525
    %v620 = vmul.f32 %v603, %v525
    %v621 = vmul.f32 %v605, %v525
    %v622 = vadd.f32 %v606, 1e-06
    %v623 = vadd.f32 %v607, 1e-06
    %v624 = vadd.f32 %v608, 1e-06
    %v625 = vadd.f32 %v609, 1e-06
    %v626 = vadd.f32 %v610, 1e-06
    %v627 = vadd.f32 %v611, 1e-06
    %v628 = vadd.f32 %v612, 1e-06
    %v629 = vadd.f32 %v613, 1e-06
    %v630 = vadd.f32 %v614, 1e-06
    %v631 = vadd.f32 %v615, 1e-06
    %v632 = vadd.f32 %v616, 1e-06
    %v633 = vadd.f32 %v617, 1e-06
    %v634 = vadd.f32 %v618, 1e-06
    %v635 = vadd.f32 %v619, 1e-06
    %v636 = vadd.f32 %v620, 1e-06
    %v637 = vadd.f32 %v621, 1e-06
    %v638 = vrsqrt.pop %v622
    %v639 = vrsqrt.pop %v623
    %v640 = vrsqrt.pop %v624
    %v641 = vrsqrt.pop %v625
    %v642 = vrsqrt.pop %v626
    %v643 = vrsqrt.pop %v627
    %v644 = vrsqrt.pop %v628
    %v645 = vrsqrt.pop %v629
    %v646 = vrsqrt.pop %v630
    %v647 = vrsqrt.pop %v631
    %v648 = vrsqrt.pop %v632
    %v649 = vrsqrt.pop %v633
    %v650 = vrsqrt.pop %v634
    %v651 = vrsqrt.pop %v635
    %v652 = vrsqrt.pop %v636
    %v653 = vrsqrt.pop %v637
    %v654 = vmul.f32 %v542, %v638
    %v655 = vmul.f32 %v543, %v639
    %v656 = vmul.f32 %v544, %v640
    %v657 = vmul.f32 %v545, %v641
    %v658 = vmul.f32 %v546, %v642
    %v659 = vmul.f32 %v547, %v643
    %v660 = vmul.f32 %v548, %v644
    %v661 = vmul.f32 %v549, %v645
    %v662 = vmul.f32 %v550, %v646
    %v663 = vmul.f32 %v551, %v647
    %v664 = vmul.f32 %v552, %v648
    %v665 = vmul.f32 %v553, %v649
    %v666 = vmul.f32 %v554, %v650
    %v667 = vmul.f32 %v555, %v651
    %v668 = vmul.f32 %v556, %v652
    %v669 = vmul.f32 %v557, %v653
    %v670 = vmul.f32 %v654, %v483
    %v671 = vmul.f32 %v655, %v483
    %v672 = vmul.f32 %v656, %v483
    %v673 = vmul.f32 %v657, %v483
    %v674 = vmul.f32 %v658, %v483
    %v675 = vmul.f32 %v659, %v483
    %v676 = vmul.f32 %v660, %v483
    %v677 = vmul.f32 %v661, %v483
    %v678 = vmul.f32 %v662, %v483
    %v679 = vmul.f32 %v663, %v483
    %v680 = vmul.f32 %v664, %v483
    %v681 = vmul.f32 %v665, %v483
    %v682 = vmul.f32 %v666, %v483
    %v683 = vmul.f32 %v667, %v483
    %v684 = vmul.f32 %v668, %v483
    %v685 = vmul.f32 %v669, %v483
    %v686 = vadd.f32 %v670, %v484
    %v687 = vadd.f32 %v671, %v484
    %v688 = vadd.f32 %v672, %v484
    %v689 = vadd.f32 %v673, %v484
    %v690 = vadd.f32 %v674, %v484
    %v691 = vadd.f32 %v675, %v484
    %v692 = vadd.f32 %v676, %v484
    %v693 = vadd.f32 %v677, %v484
    %v694 = vadd.f32 %v678, %v484
    %v695 = vadd.f32 %v679, %v484
    %v696 = vadd.f32 %v680, %v484
    %v697 = vadd.f32 %v681, %v484
    %v698 = vadd.f32 %v682, %v484
    %v699 = vadd.f32 %v683, %v484
    %v700 = vadd.f32 %v684, %v484
    %v701 = vadd.f32 %v685, %v484
    %v702 = vpack.c.bf16 %v687, %v686
    %v703 = vpack.c.bf16 %v689, %v688
    %v704 = vpack.c.bf16 %v691, %v690
    %v705 = vpack.c.bf16 %v693, %v692
    %v706 = vpack.c.bf16 %v695, %v694
    %v707 = vpack.c.bf16 %v697, %v696
    %v708 = vpack.c.bf16 %v699, %v698
    %v709 = vpack.c.bf16 %v701, %v700
    %v711 = vlaneseq
    %v712 = vshrl.u32 %v711, 7
    %v713 = vsub.s32 0, %v712
    %v714 = vrot.slane %v486, %v713
    %v715 = vlaneseq
    %v716 = vshrl.u32 %v715, 7
    %v717 = vsub.s32 1, %v716
    %v718 = vrot.slane %v486, %v717
    %v719 = vlaneseq
    %v720 = vshrl.u32 %v719, 7
    %v721 = vsub.s32 2, %v720
    %v722 = vrot.slane %v486, %v721
    %v758 = vunpack.c.l.b16 %v339
    %v759 = vunpack.c.h.b16 %v339
    %v760 = vunpack.c.l.b16 %v340
    %v761 = vunpack.c.l.b16 %v341
    %v762 = vunpack.c.h.b16 %v341
    %v763 = vunpack.c.l.b16 %v342
    %v764 = vunpack.c.l.b16 %v343
    %v765 = vunpack.c.h.b16 %v343
    %v766 = vunpack.c.l.b16 %v344
    %v767 = vunpack.c.l.b16 %v345
    %v768 = vunpack.c.h.b16 %v345
    %v769 = vunpack.c.l.b16 %v346
    %v770 = vunpack.c.l.b16 %v347
    %v771 = vunpack.c.h.b16 %v347
    %v772 = vunpack.c.l.b16 %v348
    %v773 = vunpack.c.l.b16 %v349
    %v774 = vunpack.c.h.b16 %v349
    %v775 = vunpack.c.l.b16 %v350
    %v776 = vunpack.c.l.b16 %v351
    %v777 = vunpack.c.h.b16 %v351
    %v778 = vunpack.c.l.b16 %v352
    %v779 = vunpack.c.l.b16 %v353
    %v780 = vunpack.c.h.b16 %v353
    %v781 = vunpack.c.l.b16 %v354
    %v782 = vunpack.c.l.b16 %v355
    %v783 = vunpack.c.h.b16 %v355
    %v784 = vunpack.c.l.b16 %v356
    %v785 = vunpack.c.l.b16 %v357
    %v786 = vunpack.c.h.b16 %v357
    %v787 = vunpack.c.l.b16 %v358
    %v788 = vunpack.c.l.b16 %v359
    %v789 = vunpack.c.h.b16 %v359
    %v790 = vunpack.c.l.b16 %v360
    %v791 = vunpack.c.l.b16 %v361
    %v792 = vunpack.c.h.b16 %v361
    %v793 = vunpack.c.l.b16 %v362
    %v794 = vunpack.c.l.b16 %v363
    %v795 = vunpack.c.h.b16 %v363
    %v796 = vunpack.c.l.b16 %v364
    %v797 = vunpack.c.l.b16 %v365
    %v798 = vunpack.c.h.b16 %v365
    %v799 = vunpack.c.l.b16 %v366
    %v800 = vunpack.c.l.b16 %v367
    %v801 = vunpack.c.h.b16 %v367
    %v802 = vunpack.c.l.b16 %v368
    %v803 = vunpack.c.l.b16 %v369
    %v804 = vunpack.c.h.b16 %v369
    %v805 = vunpack.c.l.b16 %v370
    %v806 = vpack.c.b16 %v761, %v758
    %v807 = vpack.c.b16 %v762, %v759
    %v808 = vpack.c.b16 %v763, %v760
    %v809 = vpack.c.b16 %v767, %v764
    %v810 = vpack.c.b16 %v768, %v765
    %v811 = vpack.c.b16 %v769, %v766
    %v812 = vpack.c.b16 %v773, %v770
    %v813 = vpack.c.b16 %v774, %v771
    %v814 = vpack.c.b16 %v775, %v772
    %v815 = vpack.c.b16 %v779, %v776
    %v816 = vpack.c.b16 %v780, %v777
    %v817 = vpack.c.b16 %v781, %v778
    %v818 = vpack.c.b16 %v785, %v782
    %v819 = vpack.c.b16 %v786, %v783
    %v820 = vpack.c.b16 %v787, %v784
    %v821 = vpack.c.b16 %v791, %v788
    %v822 = vpack.c.b16 %v792, %v789
    %v823 = vpack.c.b16 %v793, %v790
    %v824 = vpack.c.b16 %v797, %v794
    %v825 = vpack.c.b16 %v798, %v795
    %v826 = vpack.c.b16 %v799, %v796
    %v827 = vpack.c.b16 %v803, %v800
    %v828 = vpack.c.b16 %v804, %v801
    %v829 = vpack.c.b16 %v805, %v802
    %854 = vmatprep.subr.bf16.mxu0 %v828
    %855 = vmatpush1.bf16.msra.mxu0 %v827
    %856 = vmatprep.subr.bf16.mxu0 %v825
    %857 = vmatpush1.bf16.msra.mxu0 %v824
    %858 = vmatprep.subr.bf16.mxu0 %v822
    %859 = vmatpush1.bf16.msra.mxu0 %v821
    %860 = vmatprep.subr.bf16.mxu0 %v819
    %861 = vmatpush1.bf16.msra.mxu0 %v818
    %862 = vmatprep.subr.bf16.mxu0 %v816
    %863 = vmatpush1.bf16.msra.mxu0 %v815
    %864 = vmatprep.subr.bf16.mxu0 %v813
    %865 = vmatpush1.bf16.msra.mxu0 %v812
    %866 = vmatprep.subr.bf16.mxu0 %v810
    %867 = vmatpush1.bf16.msra.mxu0 %v809
    %868 = vmatprep.subr.bf16.mxu0 %v807
    %869 = vmatpush1.bf16.msra.mxu0 %v806
    %870 = vmatprep.subr.bf16.mxu0 0
    %871 = vmatpush2.bf16.msra.mxu0 0
    %872 = vmatprep.subr.bf16.mxu0 0
    %873 = vmatpush2.bf16.msra.mxu0 0
    %874 = vmatprep.subr.bf16.mxu0 0
    %875 = vmatpush2.bf16.msra.mxu0 0
    %876 = vmatprep.subr.bf16.mxu0 0
    %877 = vmatpush2.bf16.msra.mxu0 0
    %878 = vmatprep.subr.bf16.mxu0 0
    %879 = vmatpush2.bf16.msra.mxu0 0
    %880 = vmatprep.subr.bf16.mxu0 0
    %881 = vmatpush2.bf16.msra.mxu0 0
    %882 = vmatprep.subr.bf16.mxu0 0
    %883 = vmatpush2.bf16.msra.mxu0 0
    %884 = vmatprep.subr.bf16.mxu0 0
    %885 = vmatpush2.bf16.msra.mxu0 0
    %886 = vmatprep.mubr.bf16.mxu0 0
    %887 = vmatmul.mubr.bf16.gmra.mxu0 %v702
    %v888 = vpop.f32.mrf.mxu0
    %v889 = vadd.f32 %v714, %v888
    %v890 = vpop.f32.mrf.mxu0
    %v891 = vadd.f32 %v718, %v890
    %v892 = vpop.f32.mrf.mxu0
    %v893 = vadd.f32 %v714, %v892
    %v894 = vpop.f32.mrf.mxu0
    %v895 = vadd.f32 %v718, %v894
    %896 = vmatprep.mubr.bf16.mxu0 0
    %897 = vmatmul.mubr.bf16.gmra.mxu0 %v703
    %v898 = vpop.f32.mrf.mxu0
    %v899 = vadd.f32 %v714, %v898
    %v900 = vpop.f32.mrf.mxu0
    %v901 = vadd.f32 %v718, %v900
    %v902 = vpop.f32.mrf.mxu0
    %v903 = vadd.f32 %v714, %v902
    %v904 = vpop.f32.mrf.mxu0
    %v905 = vadd.f32 %v718, %v904
    %906 = vmatprep.mubr.bf16.mxu0 0
    %907 = vmatmul.mubr.bf16.gmra.mxu0 %v704
    %v908 = vpop.f32.mrf.mxu0
    %v909 = vadd.f32 %v714, %v908
    %v910 = vpop.f32.mrf.mxu0
    %v911 = vadd.f32 %v718, %v910
    %v912 = vpop.f32.mrf.mxu0
    %v913 = vadd.f32 %v714, %v912
    %v914 = vpop.f32.mrf.mxu0
    %v915 = vadd.f32 %v718, %v914
    %916 = vmatprep.mubr.bf16.mxu0 0
    %917 = vmatmul.mubr.bf16.gmra.mxu0 %v705
    %v918 = vpop.f32.mrf.mxu0
    %v919 = vadd.f32 %v714, %v918
    %v920 = vpop.f32.mrf.mxu0
    %v921 = vadd.f32 %v718, %v920
    %v922 = vpop.f32.mrf.mxu0
    %v923 = vadd.f32 %v714, %v922
    %v924 = vpop.f32.mrf.mxu0
    %v925 = vadd.f32 %v718, %v924
    %926 = vmatprep.mubr.bf16.mxu0 0
    %927 = vmatmul.mubr.bf16.gmra.mxu0 %v706
    %v928 = vpop.f32.mrf.mxu0
    %v929 = vadd.f32 %v714, %v928
    %v930 = vpop.f32.mrf.mxu0
    %v931 = vadd.f32 %v718, %v930
    %v932 = vpop.f32.mrf.mxu0
    %v933 = vadd.f32 %v714, %v932
    %v934 = vpop.f32.mrf.mxu0
    %v935 = vadd.f32 %v718, %v934
    %936 = vmatprep.mubr.bf16.mxu0 0
    %937 = vmatmul.mubr.bf16.gmra.mxu0 %v707
    %v938 = vpop.f32.mrf.mxu0
    %v939 = vadd.f32 %v714, %v938
    %v940 = vpop.f32.mrf.mxu0
    %v941 = vadd.f32 %v718, %v940
    %v942 = vpop.f32.mrf.mxu0
    %v943 = vadd.f32 %v714, %v942
    %v944 = vpop.f32.mrf.mxu0
    %v945 = vadd.f32 %v718, %v944
    %946 = vmatprep.mubr.bf16.mxu0 0
    %947 = vmatmul.mubr.bf16.gmra.mxu0 %v708
    %v948 = vpop.f32.mrf.mxu0
    %v949 = vadd.f32 %v714, %v948
    %v950 = vpop.f32.mrf.mxu0
    %v951 = vadd.f32 %v718, %v950
    %v952 = vpop.f32.mrf.mxu0
    %v953 = vadd.f32 %v714, %v952
    %v954 = vpop.f32.mrf.mxu0
    %v955 = vadd.f32 %v718, %v954
    %956 = vmatprep.mubr.bf16.mxu0 0
    %957 = vmatmul.mubr.bf16.gmra.mxu0 %v709
    %v958 = vpop.f32.mrf.mxu0
    %v959 = vadd.f32 %v714, %v958
    %v960 = vpop.f32.mrf.mxu0
    %v961 = vadd.f32 %v718, %v960
    %v962 = vpop.f32.mrf.mxu0
    %v963 = vadd.f32 %v714, %v962
    %v964 = vpop.f32.mrf.mxu0
    %v965 = vadd.f32 %v718, %v964
    %966 = vdwg.mxu0
    %967 = vmatprep.subr.bf16.mxu0 0
    %968 = vmatpush1.bf16.msra.mxu0 %v829
    %969 = vmatprep.subr.bf16.mxu0 0
    %970 = vmatpush1.bf16.msra.mxu0 %v826
    %971 = vmatprep.subr.bf16.mxu0 0
    %972 = vmatpush1.bf16.msra.mxu0 %v823
    %973 = vmatprep.subr.bf16.mxu0 0
    %974 = vmatpush1.bf16.msra.mxu0 %v820
    %975 = vmatprep.subr.bf16.mxu0 0
    %976 = vmatpush1.bf16.msra.mxu0 %v817
    %977 = vmatprep.subr.bf16.mxu0 0
    %978 = vmatpush1.bf16.msra.mxu0 %v814
    %979 = vmatprep.subr.bf16.mxu0 0
    %980 = vmatpush1.bf16.msra.mxu0 %v811
    %981 = vmatprep.subr.bf16.mxu0 0
    %982 = vmatpush1.bf16.msra.mxu0 %v808
    %983 = vmatprep.subr.bf16.mxu0 0
    %984 = vmatpush2.bf16.msra.mxu0 0
    %985 = vmatprep.subr.bf16.mxu0 0
    %986 = vmatpush2.bf16.msra.mxu0 0
    %987 = vmatprep.subr.bf16.mxu0 0
    %988 = vmatpush2.bf16.msra.mxu0 0
    %989 = vmatprep.subr.bf16.mxu0 0
    %990 = vmatpush2.bf16.msra.mxu0 0
    %991 = vmatprep.subr.bf16.mxu0 0
    %992 = vmatpush2.bf16.msra.mxu0 0
    %993 = vmatprep.subr.bf16.mxu0 0
    %994 = vmatpush2.bf16.msra.mxu0 0
    %995 = vmatprep.subr.bf16.mxu0 0
    %996 = vmatpush2.bf16.msra.mxu0 0
    %997 = vmatprep.subr.bf16.mxu0 0
    %998 = vmatpush2.bf16.msra.mxu0 0
    %999 = vmatprep.mubr.bf16.mxu0 0
    %1000 = vmatmul.mubr.bf16.gmra.mxu0 %v702
    %v1001 = vpop.f32.mrf.mxu0
    %v1002 = vadd.f32 %v722, %v1001
    %v1003 = vpop.f32.mrf.mxu0
    %v1004 = vpop.f32.mrf.mxu0
    %v1005 = vadd.f32 %v722, %v1004
    %v1006 = vpop.f32.mrf.mxu0
    %1007 = vmatprep.mubr.bf16.mxu0 0
    %1008 = vmatmul.mubr.bf16.gmra.mxu0 %v703
    %v1009 = vpop.f32.mrf.mxu0
    %v1010 = vadd.f32 %v722, %v1009
    %v1011 = vpop.f32.mrf.mxu0
    %v1012 = vpop.f32.mrf.mxu0
    %v1013 = vadd.f32 %v722, %v1012
    %v1014 = vpop.f32.mrf.mxu0
    %1015 = vmatprep.mubr.bf16.mxu0 0
    %1016 = vmatmul.mubr.bf16.gmra.mxu0 %v704
    %v1017 = vpop.f32.mrf.mxu0
    %v1018 = vadd.f32 %v722, %v1017
    %v1019 = vpop.f32.mrf.mxu0
    %v1020 = vpop.f32.mrf.mxu0
    %v1021 = vadd.f32 %v722, %v1020
    %v1022 = vpop.f32.mrf.mxu0
    %1023 = vmatprep.mubr.bf16.mxu0 0
    %1024 = vmatmul.mubr.bf16.gmra.mxu0 %v705
    %v1025 = vpop.f32.mrf.mxu0
    %v1026 = vadd.f32 %v722, %v1025
    %v1027 = vpop.f32.mrf.mxu0
    %v1028 = vpop.f32.mrf.mxu0
    %v1029 = vadd.f32 %v722, %v1028
    %v1030 = vpop.f32.mrf.mxu0
    %1031 = vmatprep.mubr.bf16.mxu0 0
    %1032 = vmatmul.mubr.bf16.gmra.mxu0 %v706
    %v1033 = vpop.f32.mrf.mxu0
    %v1034 = vadd.f32 %v722, %v1033
    %v1035 = vpop.f32.mrf.mxu0
    %v1036 = vpop.f32.mrf.mxu0
    %v1037 = vadd.f32 %v722, %v1036
    %v1038 = vpop.f32.mrf.mxu0
    %1039 = vmatprep.mubr.bf16.mxu0 0
    %1040 = vmatmul.mubr.bf16.gmra.mxu0 %v707
    %v1041 = vpop.f32.mrf.mxu0
    %v1042 = vadd.f32 %v722, %v1041
    %v1043 = vpop.f32.mrf.mxu0
    %v1044 = vpop.f32.mrf.mxu0
    %v1045 = vadd.f32 %v722, %v1044
    %v1046 = vpop.f32.mrf.mxu0
    %1047 = vmatprep.mubr.bf16.mxu0 0
    %1048 = vmatmul.mubr.bf16.gmra.mxu0 %v708
    %v1049 = vpop.f32.mrf.mxu0
    %v1050 = vadd.f32 %v722, %v1049
    %v1051 = vpop.f32.mrf.mxu0
    %v1052 = vpop.f32.mrf.mxu0
    %v1053 = vadd.f32 %v722, %v1052
    %v1054 = vpop.f32.mrf.mxu0
    %1055 = vmatprep.mubr.bf16.mxu0 0
    %1056 = vmatmul.mubr.bf16.gmra.mxu0 %v709
    %v1057 = vpop.f32.mrf.mxu0
    %v1058 = vadd.f32 %v722, %v1057
    %v1059 = vpop.f32.mrf.mxu0
    %v1060 = vpop.f32.mrf.mxu0
    %v1061 = vadd.f32 %v722, %v1060
    %v1062 = vpop.f32.mrf.mxu0
    %1063 = vdwg.mxu0
    %v1064 = vpack.c.bf16 %v893, %v889
    %v1065 = vpack.c.bf16 %v903, %v899
    %v1066 = vpack.c.bf16 %v913, %v909
    %v1067 = vpack.c.bf16 %v923, %v919
    %v1068 = vpack.c.bf16 %v933, %v929
    %v1069 = vpack.c.bf16 %v943, %v939
    %v1070 = vpack.c.bf16 %v953, %v949
    %v1071 = vpack.c.bf16 %v963, %v959
    %v1072 = vpack.c.bf16 %v895, %v891
    %v1073 = vpack.c.bf16 %v905, %v901
    %v1074 = vpack.c.bf16 %v915, %v911
    %v1075 = vpack.c.bf16 %v925, %v921
    %v1076 = vpack.c.bf16 %v935, %v931
    %v1077 = vpack.c.bf16 %v945, %v941
    %v1078 = vpack.c.bf16 %v955, %v951
    %v1079 = vpack.c.bf16 %v965, %v961
    %vm1080 = vcmask 261120
    %v1082 = vsel %vm1080, %v1064, 0
    %v1085 = vsel %vm1080, %v1065, 0
    %v1088 = vsel %vm1080, %v1072, 0
    %v1091 = vsel %vm1080, %v1073, 0
    %1093 = vmatprep.subr.bf16.mxu0 0
    %1094 = vmatpush1.bf16.xpose.msra.mxu0 0
    %1095 = vmatprep.subr.bf16.mxu0 0
    %1096 = vmatpush1.bf16.xpose.msra.mxu0 0
    %1097 = vmatprep.subr.bf16.mxu0 0
    %1098 = vmatpush1.bf16.xpose.msra.mxu0 0
    %1099 = vmatprep.subr.bf16.mxu0 0
    %1100 = vmatpush1.bf16.xpose.msra.mxu0 0
    %1101 = vmatprep.subr.bf16.mxu0 0
    %1102 = vmatpush1.bf16.xpose.msra.mxu0 0
    %1103 = vmatprep.subr.bf16.mxu0 0
    %1104 = vmatpush1.bf16.xpose.msra.mxu0 0
    %1105 = vmatprep.subr.bf16.mxu0 0
    %1106 = vmatpush1.bf16.xpose.msra.mxu0 %v1091
    %1107 = vmatprep.subr.bf16.mxu0 0
    %1108 = vmatpush1.bf16.xpose.msra.mxu0 %v1088
    %1109 = vmatprep.subr.bf16.mxu0 0
    %1110 = vmatpush2.bf16.xpose.msra.mxu0 0
    %1111 = vmatprep.subr.bf16.mxu0 0
    %1112 = vmatpush2.bf16.xpose.msra.mxu0 0
    %1113 = vmatprep.subr.bf16.mxu0 0
    %1114 = vmatpush2.bf16.xpose.msra.mxu0 0
    %1115 = vmatprep.subr.bf16.mxu0 0
    %1116 = vmatpush2.bf16.xpose.msra.mxu0 0
    %1117 = vmatprep.subr.bf16.mxu0 0
    %1118 = vmatpush2.bf16.xpose.msra.mxu0 0
    %1119 = vmatprep.subr.bf16.mxu0 0
    %1120 = vmatpush2.bf16.xpose.msra.mxu0 0
    %1121 = vmatprep.subr.bf16.mxu0 0
    %1122 = vmatpush2.bf16.xpose.msra.mxu0 0
    %1123 = vmatprep.subr.bf16.mxu0 0
    %1124 = vmatpush2.bf16.xpose.msra.mxu0 0
    %1125 = vmatprep.mubr.bf16.mxu0 0
    %1126 = vmatmul.mubr.bf16.gmra.mxu0 %v1082
    %v1127 = vpop.f32.mrf.mxu0
    %v1128 = vadd.f32 0.0, %v1127
    %v1129 = vpop.f32.mrf.mxu0
    %v1130 = vpop.f32.mrf.mxu0
    %v1131 = vadd.f32 0.0, %v1130
    %v1132 = vpop.f32.mrf.mxu0
    %1133 = vmatprep.mubr.bf16.mxu0 0
    %1134 = vmatmul.mubr.bf16.gmra.mxu0 %v1085
    %v1135 = vpop.f32.mrf.mxu0
    %v1136 = vadd.f32 0.0, %v1135
    %v1137 = vpop.f32.mrf.mxu0
    %v1138 = vpop.f32.mrf.mxu0
    %v1139 = vadd.f32 0.0, %v1138
    %v1140 = vpop.f32.mrf.mxu0
    %1141 = vdwg.mxu0
    %v1143 = vsel %vm1080, %v1066, 0
    %v1146 = vsel %vm1080, %v1067, 0
    %v1149 = vsel %vm1080, %v1074, 0
    %v1152 = vsel %vm1080, %v1075, 0
    %1154 = vmatprep.subr.bf16.mxu0 0
    %1155 = vmatpush1.bf16.xpose.msra.mxu0 0
    %1156 = vmatprep.subr.bf16.mxu0 0
    %1157 = vmatpush1.bf16.xpose.msra.mxu0 0
    %1158 = vmatprep.subr.bf16.mxu0 0
    %1159 = vmatpush1.bf16.xpose.msra.mxu0 0
    %1160 = vmatprep.subr.bf16.mxu0 0
    %1161 = vmatpush1.bf16.xpose.msra.mxu0 0
    %1162 = vmatprep.subr.bf16.mxu0 0
    %1163 = vmatpush1.bf16.xpose.msra.mxu0 0
    %1164 = vmatprep.subr.bf16.mxu0 0
    %1165 = vmatpush1.bf16.xpose.msra.mxu0 0
    %1166 = vmatprep.subr.bf16.mxu0 0
    %1167 = vmatpush1.bf16.xpose.msra.mxu0 %v1152
    %1168 = vmatprep.subr.bf16.mxu0 0
    %1169 = vmatpush1.bf16.xpose.msra.mxu0 %v1149
    %1170 = vmatprep.subr.bf16.mxu0 0
    %1171 = vmatpush2.bf16.xpose.msra.mxu0 0
    %1172 = vmatprep.subr.bf16.mxu0 0
    %1173 = vmatpush2.bf16.xpose.msra.mxu0 0
    %1174 = vmatprep.subr.bf16.mxu0 0
    %1175 = vmatpush2.bf16.xpose.msra.mxu0 0
    %1176 = vmatprep.subr.bf16.mxu0 0
    %1177 = vmatpush2.bf16.xpose.msra.mxu0 0
    %1178 = vmatprep.subr.bf16.mxu0 0
    %1179 = vmatpush2.bf16.xpose.msra.mxu0 0
    %1180 = vmatprep.subr.bf16.mxu0 0
    %1181 = vmatpush2.bf16.xpose.msra.mxu0 0
    %1182 = vmatprep.subr.bf16.mxu0 0
    %1183 = vmatpush2.bf16.xpose.msra.mxu0 0
    %1184 = vmatprep.subr.bf16.mxu0 0
    %1185 = vmatpush2.bf16.xpose.msra.mxu0 0
    %1186 = vmatprep.mubr.bf16.mxu0 0
    %1187 = vmatmul.mubr.bf16.gmra.mxu0 %v1143
    %v1188 = vpop.f32.mrf.mxu0
    %v1189 = vadd.f32 0.0, %v1188
    %v1190 = vpop.f32.mrf.mxu0
    %v1191 = vpop.f32.mrf.mxu0
    %v1192 = vadd.f32 0.0, %v1191
    %v1193 = vpop.f32.mrf.mxu0
    %1194 = vmatprep.mubr.bf16.mxu0 0
    %1195 = vmatmul.mubr.bf16.gmra.mxu0 %v1146
    %v1196 = vpop.f32.mrf.mxu0
    %v1197 = vadd.f32 0.0, %v1196
    %v1198 = vpop.f32.mrf.mxu0
    %v1199 = vpop.f32.mrf.mxu0
    %v1200 = vadd.f32 0.0, %v1199
    %v1201 = vpop.f32.mrf.mxu0
    %1202 = vdwg.mxu0
    %v1204 = vsel %vm1080, %v1068, 0
    %v1207 = vsel %vm1080, %v1069, 0
    %v1210 = vsel %vm1080, %v1076, 0
    %v1213 = vsel %vm1080, %v1077, 0
    %1215 = vmatprep.subr.bf16.mxu0 0
    %1216 = vmatpush1.bf16.xpose.msra.mxu0 0
    %1217 = vmatprep.subr.bf16.mxu0 0
    %1218 = vmatpush1.bf16.xpose.msra.mxu0 0
    %1219 = vmatprep.subr.bf16.mxu0 0
    %1220 = vmatpush1.bf16.xpose.msra.mxu0 0
    %1221 = vmatprep.subr.bf16.mxu0 0
    %1222 = vmatpush1.bf16.xpose.msra.mxu0 0
    %1223 = vmatprep.subr.bf16.mxu0 0
    %1224 = vmatpush1.bf16.xpose.msra.mxu0 0
    %1225 = vmatprep.subr.bf16.mxu0 0
    %1226 = vmatpush1.bf16.xpose.msra.mxu0 0
    %1227 = vmatprep.subr.bf16.mxu0 0
    %1228 = vmatpush1.bf16.xpose.msra.mxu0 %v1213
    %1229 = vmatprep.subr.bf16.mxu0 0
    %1230 = vmatpush1.bf16.xpose.msra.mxu0 %v1210
    %1231 = vmatprep.subr.bf16.mxu0 0
    %1232 = vmatpush2.bf16.xpose.msra.mxu0 0
    %1233 = vmatprep.subr.bf16.mxu0 0
    %1234 = vmatpush2.bf16.xpose.msra.mxu0 0
    %1235 = vmatprep.subr.bf16.mxu0 0
    %1236 = vmatpush2.bf16.xpose.msra.mxu0 0
    %1237 = vmatprep.subr.bf16.mxu0 0
    %1238 = vmatpush2.bf16.xpose.msra.mxu0 0
    %1239 = vmatprep.subr.bf16.mxu0 0
    %1240 = vmatpush2.bf16.xpose.msra.mxu0 0
    %1241 = vmatprep.subr.bf16.mxu0 0
    %1242 = vmatpush2.bf16.xpose.msra.mxu0 0
    %1243 = vmatprep.subr.bf16.mxu0 0
    %1244 = vmatpush2.bf16.xpose.msra.mxu0 0
    %1245 = vmatprep.subr.bf16.mxu0 0
    %1246 = vmatpush2.bf16.xpose.msra.mxu0 0
    %1247 = vmatprep.mubr.bf16.mxu0 0
    %1248 = vmatmul.mubr.bf16.gmra.mxu0 %v1204
    %v1249 = vpop.f32.mrf.mxu0
    %v1250 = vadd.f32 0.0, %v1249
    %v1251 = vpop.f32.mrf.mxu0
    %v1252 = vpop.f32.mrf.mxu0
    %v1253 = vadd.f32 0.0, %v1252
    %v1254 = vpop.f32.mrf.mxu0
    %1255 = vmatprep.mubr.bf16.mxu0 0
    %1256 = vmatmul.mubr.bf16.gmra.mxu0 %v1207
    %v1257 = vpop.f32.mrf.mxu0
    %v1258 = vadd.f32 0.0, %v1257
    %v1259 = vpop.f32.mrf.mxu0
    %v1260 = vpop.f32.mrf.mxu0
    %v1261 = vadd.f32 0.0, %v1260
    %v1262 = vpop.f32.mrf.mxu0
    %1263 = vdwg.mxu0
    %v1265 = vsel %vm1080, %v1070, 0
    %v1268 = vsel %vm1080, %v1071, 0
    %v1271 = vsel %vm1080, %v1078, 0
    %v1274 = vsel %vm1080, %v1079, 0
    %1276 = vmatprep.subr.bf16.mxu0 0
    %1277 = vmatpush1.bf16.xpose.msra.mxu0 0
    %1278 = vmatprep.subr.bf16.mxu0 0
    %1279 = vmatpush1.bf16.xpose.msra.mxu0 0
    %1280 = vmatprep.subr.bf16.mxu0 0
    %1281 = vmatpush1.bf16.xpose.msra.mxu0 0
    %1282 = vmatprep.subr.bf16.mxu0 0
    %1283 = vmatpush1.bf16.xpose.msra.mxu0 0
    %1284 = vmatprep.subr.bf16.mxu0 0
    %1285 = vmatpush1.bf16.xpose.msra.mxu0 0
    %1286 = vmatprep.subr.bf16.mxu0 0
    %1287 = vmatpush1.bf16.xpose.msra.mxu0 0
    %1288 = vmatprep.subr.bf16.mxu0 0
    %1289 = vmatpush1.bf16.xpose.msra.mxu0 %v1274
    %1290 = vmatprep.subr.bf16.mxu0 0
    %1291 = vmatpush1.bf16.xpose.msra.mxu0 %v1271
    %1292 = vmatprep.subr.bf16.mxu0 0
    %1293 = vmatpush2.bf16.xpose.msra.mxu0 0
    %1294 = vmatprep.subr.bf16.mxu0 0
    %1295 = vmatpush2.bf16.xpose.msra.mxu0 0
    %1296 = vmatprep.subr.bf16.mxu0 0
    %1297 = vmatpush2.bf16.xpose.msra.mxu0 0
    %1298 = vmatprep.subr.bf16.mxu0 0
    %1299 = vmatpush2.bf16.xpose.msra.mxu0 0
    %1300 = vmatprep.subr.bf16.mxu0 0
    %1301 = vmatpush2.bf16.xpose.msra.mxu0 0
    %1302 = vmatprep.subr.bf16.mxu0 0
    %1303 = vmatpush2.bf16.xpose.msra.mxu0 0
    %1304 = vmatprep.subr.bf16.mxu0 0
    %1305 = vmatpush2.bf16.xpose.msra.mxu0 0
    %1306 = vmatprep.subr.bf16.mxu0 0
    %1307 = vmatpush2.bf16.xpose.msra.mxu0 0
    %1308 = vmatprep.mubr.bf16.mxu0 0
    %1309 = vmatmul.mubr.bf16.gmra.mxu0 %v1265
    %v1310 = vpop.f32.mrf.mxu0
    %v1311 = vadd.f32 0.0, %v1310
    %v1312 = vpop.f32.mrf.mxu0
    %v1313 = vpop.f32.mrf.mxu0
    %v1314 = vadd.f32 0.0, %v1313
    %v1315 = vpop.f32.mrf.mxu0
    %1316 = vmatprep.mubr.bf16.mxu0 0
    %1317 = vmatmul.mubr.bf16.gmra.mxu0 %v1268
    %v1318 = vpop.f32.mrf.mxu0
    %v1319 = vadd.f32 0.0, %v1318
    %v1320 = vpop.f32.mrf.mxu0
    %v1321 = vpop.f32.mrf.mxu0
    %v1322 = vadd.f32 0.0, %v1321
    %v1323 = vpop.f32.mrf.mxu0
    %1324 = vdwg.mxu0
    %v1325 = vmul.f32 %v1128, 0.17677669
    %v1326 = vmul.f32 %v1131, 0.17677669
    %v1327 = vmul.f32 %v1136, 0.17677669
    %v1328 = vmul.f32 %v1139, 0.17677669
    %v1329 = vmul.f32 %v1189, 0.17677669
    %v1330 = vmul.f32 %v1192, 0.17677669
    %v1331 = vmul.f32 %v1197, 0.17677669
    %v1332 = vmul.f32 %v1200, 0.17677669
    %v1333 = vmul.f32 %v1250, 0.17677669
    %v1334 = vmul.f32 %v1253, 0.17677669
    %v1335 = vmul.f32 %v1258, 0.17677669
    %v1336 = vmul.f32 %v1261, 0.17677669
    %v1337 = vmul.f32 %v1311, 0.17677669
    %v1338 = vmul.f32 %v1314, 0.17677669
    %v1339 = vmul.f32 %v1319, 0.17677669
    %v1340 = vmul.f32 %v1322, 0.17677669
    %v1341 = vsel %vm338, 1, 0
    %vm1342 = vcmp.eq.s32.totalorder %v1341, 1
    %v1343 = vsel %vm1342, %v1325, -1e+30
    %v1344 = vsel %vm1342, %v1326, -1e+30
    %v1345 = vsel %vm1342, %v1327, -1e+30
    %v1346 = vsel %vm1342, %v1328, -1e+30
    %v1347 = vsel %vm1342, %v1329, -1e+30
    %v1348 = vsel %vm1342, %v1330, -1e+30
    %v1349 = vsel %vm1342, %v1331, -1e+30
    %v1350 = vsel %vm1342, %v1332, -1e+30
    %v1351 = vsel %vm1342, %v1333, -1e+30
    %v1352 = vsel %vm1342, %v1334, -1e+30
    %v1353 = vsel %vm1342, %v1335, -1e+30
    %v1354 = vsel %vm1342, %v1336, -1e+30
    %v1355 = vsel %vm1342, %v1337, -1e+30
    %v1356 = vsel %vm1342, %v1338, -1e+30
    %v1357 = vsel %vm1342, %v1339, -1e+30
    %v1358 = vsel %vm1342, %v1340, -1e+30
    %v1359 = vsel %vm1080, %v1343, -inf
    %1360 = vmax.xlane.f32.xlu0 %v1359
    %v1361 = vpop.xlane.xlu0 %1360
    %v1362 = vsel %vm1080, %v1344, -inf
    %1363 = vmax.xlane.f32.xlu0 %v1362
    %v1364 = vpop.xlane.xlu0 %1363
    %v1365 = vsel %vm1080, %v1345, -inf
    %1366 = vmax.xlane.f32.xlu0 %v1365
    %v1367 = vpop.xlane.xlu0 %1366
    %v1368 = vsel %vm1080, %v1346, -inf
    %1369 = vmax.xlane.f32.xlu0 %v1368
    %v1370 = vpop.xlane.xlu0 %1369
    %v1371 = vsel %vm1080, %v1347, -inf
    %1372 = vmax.xlane.f32.xlu0 %v1371
    %v1373 = vpop.xlane.xlu0 %1372
    %v1374 = vsel %vm1080, %v1348, -inf
    %1375 = vmax.xlane.f32.xlu0 %v1374
    %v1376 = vpop.xlane.xlu0 %1375
    %v1377 = vsel %vm1080, %v1349, -inf
    %1378 = vmax.xlane.f32.xlu0 %v1377
    %v1379 = vpop.xlane.xlu0 %1378
    %v1380 = vsel %vm1080, %v1350, -inf
    %1381 = vmax.xlane.f32.xlu0 %v1380
    %v1382 = vpop.xlane.xlu0 %1381
    %v1383 = vsel %vm1080, %v1351, -inf
    %1384 = vmax.xlane.f32.xlu0 %v1383
    %v1385 = vpop.xlane.xlu0 %1384
    %v1386 = vsel %vm1080, %v1352, -inf
    %1387 = vmax.xlane.f32.xlu0 %v1386
    %v1388 = vpop.xlane.xlu0 %1387
    %v1389 = vsel %vm1080, %v1353, -inf
    %1390 = vmax.xlane.f32.xlu0 %v1389
    %v1391 = vpop.xlane.xlu0 %1390
    %v1392 = vsel %vm1080, %v1354, -inf
    %1393 = vmax.xlane.f32.xlu0 %v1392
    %v1394 = vpop.xlane.xlu0 %1393
    %v1395 = vsel %vm1080, %v1355, -inf
    %1396 = vmax.xlane.f32.xlu0 %v1395
    %v1397 = vpop.xlane.xlu0 %1396
    %v1398 = vsel %vm1080, %v1356, -inf
    %1399 = vmax.xlane.f32.xlu0 %v1398
    %v1400 = vpop.xlane.xlu0 %1399
    %v1401 = vsel %vm1080, %v1357, -inf
    %1402 = vmax.xlane.f32.xlu0 %v1401
    %v1403 = vpop.xlane.xlu0 %1402
    %v1404 = vsel %vm1080, %v1358, -inf
    %1405 = vmax.xlane.f32.xlu0 %v1404
    %v1406 = vpop.xlane.xlu0 %1405
    %v1407 = vsub.f32 %v1343, %v1361
    %v1408 = vsub.f32 %v1344, %v1364
    %v1409 = vsub.f32 %v1345, %v1367
    %v1410 = vsub.f32 %v1346, %v1370
    %v1411 = vsub.f32 %v1347, %v1373
    %v1412 = vsub.f32 %v1348, %v1376
    %v1413 = vsub.f32 %v1349, %v1379
    %v1414 = vsub.f32 %v1350, %v1382
    %v1415 = vsub.f32 %v1351, %v1385
    %v1416 = vsub.f32 %v1352, %v1388
    %v1417 = vsub.f32 %v1353, %v1391
    %v1418 = vsub.f32 %v1354, %v1394
    %v1419 = vsub.f32 %v1355, %v1397
    %v1420 = vsub.f32 %v1356, %v1400
    %v1421 = vsub.f32 %v1357, %v1403
    %v1422 = vsub.f32 %v1358, %v1406
    %v1423 = vmul.f32 %v1407, 1.442695
    %v1424 = vpow.pop %v1423
    %v1425 = vmul.f32 %v1408, 1.442695
    %v1426 = vpow.pop %v1425
    %v1427 = vmul.f32 %v1409, 1.442695
    %v1428 = vpow.pop %v1427
    %v1429 = vmul.f32 %v1410, 1.442695
    %v1430 = vpow.pop %v1429
    %v1431 = vmul.f32 %v1411, 1.442695
    %v1432 = vpow.pop %v1431
    %v1433 = vmul.f32 %v1412, 1.442695
    %v1434 = vpow.pop %v1433
    %v1435 = vmul.f32 %v1413, 1.442695
    %v1436 = vpow.pop %v1435
    %v1437 = vmul.f32 %v1414, 1.442695
    %v1438 = vpow.pop %v1437
    %v1439 = vmul.f32 %v1415, 1.442695
    %v1440 = vpow.pop %v1439
    %v1441 = vmul.f32 %v1416, 1.442695
    %v1442 = vpow.pop %v1441
    %v1443 = vmul.f32 %v1417, 1.442695
    %v1444 = vpow.pop %v1443
    %v1445 = vmul.f32 %v1418, 1.442695
    %v1446 = vpow.pop %v1445
    %v1447 = vmul.f32 %v1419, 1.442695
    %v1448 = vpow.pop %v1447
    %v1449 = vmul.f32 %v1420, 1.442695
    %v1450 = vpow.pop %v1449
    %v1451 = vmul.f32 %v1421, 1.442695
    %v1452 = vpow.pop %v1451
    %v1453 = vmul.f32 %v1422, 1.442695
    %v1454 = vpow.pop %v1453
    %v1455 = vsel %vm1080, %v1424, 0.0
    %1456 = vadd.xlane.f32.xlu0 %v1455
    %v1457 = vpop.xlane.xlu0 %1456
    %v1458 = vsel %vm1080, %v1426, 0.0
    %1459 = vadd.xlane.f32.xlu0 %v1458
    %v1460 = vpop.xlane.xlu0 %1459
    %v1461 = vsel %vm1080, %v1428, 0.0
    %1462 = vadd.xlane.f32.xlu0 %v1461
    %v1463 = vpop.xlane.xlu0 %1462
    %v1464 = vsel %vm1080, %v1430, 0.0
    %1465 = vadd.xlane.f32.xlu0 %v1464
    %v1466 = vpop.xlane.xlu0 %1465
    %v1467 = vsel %vm1080, %v1432, 0.0
    %1468 = vadd.xlane.f32.xlu0 %v1467
    %v1469 = vpop.xlane.xlu0 %1468
    %v1470 = vsel %vm1080, %v1434, 0.0
    %1471 = vadd.xlane.f32.xlu0 %v1470
    %v1472 = vpop.xlane.xlu0 %1471
    %v1473 = vsel %vm1080, %v1436, 0.0
    %1474 = vadd.xlane.f32.xlu0 %v1473
    %v1475 = vpop.xlane.xlu0 %1474
    %v1476 = vsel %vm1080, %v1438, 0.0
    %1477 = vadd.xlane.f32.xlu0 %v1476
    %v1478 = vpop.xlane.xlu0 %1477
    %v1479 = vsel %vm1080, %v1440, 0.0
    %1480 = vadd.xlane.f32.xlu0 %v1479
    %v1481 = vpop.xlane.xlu0 %1480
    %v1482 = vsel %vm1080, %v1442, 0.0
    %1483 = vadd.xlane.f32.xlu0 %v1482
    %v1484 = vpop.xlane.xlu0 %1483
    %v1485 = vsel %vm1080, %v1444, 0.0
    %1486 = vadd.xlane.f32.xlu0 %v1485
    %v1487 = vpop.xlane.xlu0 %1486
    %v1488 = vsel %vm1080, %v1446, 0.0
    %1489 = vadd.xlane.f32.xlu0 %v1488
    %v1490 = vpop.xlane.xlu0 %1489
    %v1491 = vsel %vm1080, %v1448, 0.0
    %1492 = vadd.xlane.f32.xlu0 %v1491
    %v1493 = vpop.xlane.xlu0 %1492
    %v1494 = vsel %vm1080, %v1450, 0.0
    %1495 = vadd.xlane.f32.xlu0 %v1494
    %v1496 = vpop.xlane.xlu0 %1495
    %v1497 = vsel %vm1080, %v1452, 0.0
    %1498 = vadd.xlane.f32.xlu0 %v1497
    %v1499 = vpop.xlane.xlu0 %1498
    %v1500 = vsel %vm1080, %v1454, 0.0
    %1501 = vadd.xlane.f32.xlu0 %v1500
    %v1502 = vpop.xlane.xlu0 %1501
    %v1503 = vrcp.pop %v1457
    %v1504 = vmul.f32 %v1424, %v1503
    %v1505 = vrcp.pop %v1460
    %v1506 = vmul.f32 %v1426, %v1505
    %v1507 = vrcp.pop %v1463
    %v1508 = vmul.f32 %v1428, %v1507
    %v1509 = vrcp.pop %v1466
    %v1510 = vmul.f32 %v1430, %v1509
    %v1511 = vrcp.pop %v1469
    %v1512 = vmul.f32 %v1432, %v1511
    %v1513 = vrcp.pop %v1472
    %v1514 = vmul.f32 %v1434, %v1513
    %v1515 = vrcp.pop %v1475
    %v1516 = vmul.f32 %v1436, %v1515
    %v1517 = vrcp.pop %v1478
    %v1518 = vmul.f32 %v1438, %v1517
    %v1519 = vrcp.pop %v1481
    %v1520 = vmul.f32 %v1440, %v1519
    %v1521 = vrcp.pop %v1484
    %v1522 = vmul.f32 %v1442, %v1521
    %v1523 = vrcp.pop %v1487
    %v1524 = vmul.f32 %v1444, %v1523
    %v1525 = vrcp.pop %v1490
    %v1526 = vmul.f32 %v1446, %v1525
    %v1527 = vrcp.pop %v1493
    %v1528 = vmul.f32 %v1448, %v1527
    %v1529 = vrcp.pop %v1496
    %v1530 = vmul.f32 %v1450, %v1529
    %v1531 = vrcp.pop %v1499
    %v1532 = vmul.f32 %v1452, %v1531
    %v1533 = vrcp.pop %v1502
    %v1534 = vmul.f32 %v1454, %v1533
    %v1535 = vpack.c.bf16 %v1506, %v1504
    %v1536 = vpack.c.bf16 %v1510, %v1508
    %v1537 = vpack.c.bf16 %v1514, %v1512
    %v1538 = vpack.c.bf16 %v1518, %v1516
    %v1539 = vpack.c.bf16 %v1522, %v1520
    %v1540 = vpack.c.bf16 %v1526, %v1524
    %v1541 = vpack.c.bf16 %v1530, %v1528
    %v1542 = vpack.c.bf16 %v1534, %v1532
    %v1543 = vpack.c.bf16 %v1005, %v1002
    %v1544 = vpack.c.bf16 %v1013, %v1010
    %v1545 = vpack.c.bf16 %v1021, %v1018
    %v1546 = vpack.c.bf16 %v1029, %v1026
    %v1547 = vpack.c.bf16 %v1037, %v1034
    %v1548 = vpack.c.bf16 %v1045, %v1042
    %v1549 = vpack.c.bf16 %v1053, %v1050
    %v1550 = vpack.c.bf16 %v1061, %v1058
    %v1552 = vsel %vm1080, %v1535, 0
    %v1555 = vsel %vm1080, %v1536, 0
    %1557 = vmatprep.subr.bf16.mxu0 0
    %1558 = vmatpush1.bf16.msra.mxu0 0
    %1559 = vmatprep.subr.bf16.mxu0 0
    %1560 = vmatpush1.bf16.msra.mxu0 0
    %1561 = vmatprep.subr.bf16.mxu0 0
    %1562 = vmatpush1.bf16.msra.mxu0 0
    %1563 = vmatprep.subr.bf16.mxu0 0
    %1564 = vmatpush1.bf16.msra.mxu0 0
    %1565 = vmatprep.subr.bf16.mxu0 0
    %1566 = vmatpush1.bf16.msra.mxu0 0
    %1567 = vmatprep.subr.bf16.mxu0 0
    %1568 = vmatpush1.bf16.msra.mxu0 0
    %1569 = vmatprep.subr.bf16.mxu0 0
    %1570 = vmatpush1.bf16.msra.mxu0 %v1544
    %1571 = vmatprep.subr.bf16.mxu0 0
    %1572 = vmatpush1.bf16.msra.mxu0 %v1543
    %1573 = vmatprep.subr.bf16.mxu0 0
    %1574 = vmatpush2.bf16.msra.mxu0 0
    %1575 = vmatprep.subr.bf16.mxu0 0
    %1576 = vmatpush2.bf16.msra.mxu0 0
    %1577 = vmatprep.subr.bf16.mxu0 0
    %1578 = vmatpush2.bf16.msra.mxu0 0
    %1579 = vmatprep.subr.bf16.mxu0 0
    %1580 = vmatpush2.bf16.msra.mxu0 0
    %1581 = vmatprep.subr.bf16.mxu0 0
    %1582 = vmatpush2.bf16.msra.mxu0 0
    %1583 = vmatprep.subr.bf16.mxu0 0
    %1584 = vmatpush2.bf16.msra.mxu0 0
    %1585 = vmatprep.subr.bf16.mxu0 0
    %1586 = vmatpush2.bf16.msra.mxu0 0
    %1587 = vmatprep.subr.bf16.mxu0 0
    %1588 = vmatpush2.bf16.msra.mxu0 0
    %1589 = vmatprep.mubr.bf16.mxu0 0
    %1590 = vmatmul.mubr.bf16.gmra.mxu0 %v1552
    %v1591 = vpop.f32.mrf.mxu0
    %v1592 = vadd.f32 0.0, %v1591
    %v1593 = vpop.f32.mrf.mxu0
    %v1594 = vpop.f32.mrf.mxu0
    %v1595 = vadd.f32 0.0, %v1594
    %v1596 = vpop.f32.mrf.mxu0
    %1597 = vmatprep.mubr.bf16.mxu0 0
    %1598 = vmatmul.mubr.bf16.gmra.mxu0 %v1555
    %v1599 = vpop.f32.mrf.mxu0
    %v1600 = vadd.f32 0.0, %v1599
    %v1601 = vpop.f32.mrf.mxu0
    %v1602 = vpop.f32.mrf.mxu0
    %v1603 = vadd.f32 0.0, %v1602
    %v1604 = vpop.f32.mrf.mxu0
    %1605 = vdwg.mxu0
    %v1607 = vsel %vm1080, %v1537, 0
    %v1610 = vsel %vm1080, %v1538, 0
    %1612 = vmatprep.subr.bf16.mxu0 0
    %1613 = vmatpush1.bf16.msra.mxu0 0
    %1614 = vmatprep.subr.bf16.mxu0 0
    %1615 = vmatpush1.bf16.msra.mxu0 0
    %1616 = vmatprep.subr.bf16.mxu0 0
    %1617 = vmatpush1.bf16.msra.mxu0 0
    %1618 = vmatprep.subr.bf16.mxu0 0
    %1619 = vmatpush1.bf16.msra.mxu0 0
    %1620 = vmatprep.subr.bf16.mxu0 0
    %1621 = vmatpush1.bf16.msra.mxu0 0
    %1622 = vmatprep.subr.bf16.mxu0 0
    %1623 = vmatpush1.bf16.msra.mxu0 0
    %1624 = vmatprep.subr.bf16.mxu0 0
    %1625 = vmatpush1.bf16.msra.mxu0 %v1546
    %1626 = vmatprep.subr.bf16.mxu0 0
    %1627 = vmatpush1.bf16.msra.mxu0 %v1545
    %1628 = vmatprep.subr.bf16.mxu0 0
    %1629 = vmatpush2.bf16.msra.mxu0 0
    %1630 = vmatprep.subr.bf16.mxu0 0
    %1631 = vmatpush2.bf16.msra.mxu0 0
    %1632 = vmatprep.subr.bf16.mxu0 0
    %1633 = vmatpush2.bf16.msra.mxu0 0
    %1634 = vmatprep.subr.bf16.mxu0 0
    %1635 = vmatpush2.bf16.msra.mxu0 0
    %1636 = vmatprep.subr.bf16.mxu0 0
    %1637 = vmatpush2.bf16.msra.mxu0 0
    %1638 = vmatprep.subr.bf16.mxu0 0
    %1639 = vmatpush2.bf16.msra.mxu0 0
    %1640 = vmatprep.subr.bf16.mxu0 0
    %1641 = vmatpush2.bf16.msra.mxu0 0
    %1642 = vmatprep.subr.bf16.mxu0 0
    %1643 = vmatpush2.bf16.msra.mxu0 0
    %1644 = vmatprep.mubr.bf16.mxu0 0
    %1645 = vmatmul.mubr.bf16.gmra.mxu0 %v1607
    %v1646 = vpop.f32.mrf.mxu0
    %v1647 = vadd.f32 0.0, %v1646
    %v1648 = vpop.f32.mrf.mxu0
    %v1649 = vpop.f32.mrf.mxu0
    %v1650 = vadd.f32 0.0, %v1649
    %v1651 = vpop.f32.mrf.mxu0
    %1652 = vmatprep.mubr.bf16.mxu0 0
    %1653 = vmatmul.mubr.bf16.gmra.mxu0 %v1610
    %v1654 = vpop.f32.mrf.mxu0
    %v1655 = vadd.f32 0.0, %v1654
    %v1656 = vpop.f32.mrf.mxu0
    %v1657 = vpop.f32.mrf.mxu0
    %v1658 = vadd.f32 0.0, %v1657
    %v1659 = vpop.f32.mrf.mxu0
    %1660 = vdwg.mxu0
    %v1662 = vsel %vm1080, %v1539, 0
    %v1665 = vsel %vm1080, %v1540, 0
    %1667 = vmatprep.subr.bf16.mxu0 0
    %1668 = vmatpush1.bf16.msra.mxu0 0
    %1669 = vmatprep.subr.bf16.mxu0 0
    %1670 = vmatpush1.bf16.msra.mxu0 0
    %1671 = vmatprep.subr.bf16.mxu0 0
    %1672 = vmatpush1.bf16.msra.mxu0 0
    %1673 = vmatprep.subr.bf16.mxu0 0
    %1674 = vmatpush1.bf16.msra.mxu0 0
    %1675 = vmatprep.subr.bf16.mxu0 0
    %1676 = vmatpush1.bf16.msra.mxu0 0
    %1677 = vmatprep.subr.bf16.mxu0 0
    %1678 = vmatpush1.bf16.msra.mxu0 0
    %1679 = vmatprep.subr.bf16.mxu0 0
    %1680 = vmatpush1.bf16.msra.mxu0 %v1548
    %1681 = vmatprep.subr.bf16.mxu0 0
    %1682 = vmatpush1.bf16.msra.mxu0 %v1547
    %1683 = vmatprep.subr.bf16.mxu0 0
    %1684 = vmatpush2.bf16.msra.mxu0 0
    %1685 = vmatprep.subr.bf16.mxu0 0
    %1686 = vmatpush2.bf16.msra.mxu0 0
    %1687 = vmatprep.subr.bf16.mxu0 0
    %1688 = vmatpush2.bf16.msra.mxu0 0
    %1689 = vmatprep.subr.bf16.mxu0 0
    %1690 = vmatpush2.bf16.msra.mxu0 0
    %1691 = vmatprep.subr.bf16.mxu0 0
    %1692 = vmatpush2.bf16.msra.mxu0 0
    %1693 = vmatprep.subr.bf16.mxu0 0
    %1694 = vmatpush2.bf16.msra.mxu0 0
    %1695 = vmatprep.subr.bf16.mxu0 0
    %1696 = vmatpush2.bf16.msra.mxu0 0
    %1697 = vmatprep.subr.bf16.mxu0 0
    %1698 = vmatpush2.bf16.msra.mxu0 0
    %1699 = vmatprep.mubr.bf16.mxu0 0
    %1700 = vmatmul.mubr.bf16.gmra.mxu0 %v1662
    %v1701 = vpop.f32.mrf.mxu0
    %v1702 = vadd.f32 0.0, %v1701
    %v1703 = vpop.f32.mrf.mxu0
    %v1704 = vpop.f32.mrf.mxu0
    %v1705 = vadd.f32 0.0, %v1704
    %v1706 = vpop.f32.mrf.mxu0
    %1707 = vmatprep.mubr.bf16.mxu0 0
    %1708 = vmatmul.mubr.bf16.gmra.mxu0 %v1665
    %v1709 = vpop.f32.mrf.mxu0
    %v1710 = vadd.f32 0.0, %v1709
    %v1711 = vpop.f32.mrf.mxu0
    %v1712 = vpop.f32.mrf.mxu0
    %v1713 = vadd.f32 0.0, %v1712
    %v1714 = vpop.f32.mrf.mxu0
    %1715 = vdwg.mxu0
    %v1717 = vsel %vm1080, %v1541, 0
    %v1720 = vsel %vm1080, %v1542, 0
    %1722 = vmatprep.subr.bf16.mxu0 0
    %1723 = vmatpush1.bf16.msra.mxu0 0
    %1724 = vmatprep.subr.bf16.mxu0 0
    %1725 = vmatpush1.bf16.msra.mxu0 0
    %1726 = vmatprep.subr.bf16.mxu0 0
    %1727 = vmatpush1.bf16.msra.mxu0 0
    %1728 = vmatprep.subr.bf16.mxu0 0
    %1729 = vmatpush1.bf16.msra.mxu0 0
    %1730 = vmatprep.subr.bf16.mxu0 0
    %1731 = vmatpush1.bf16.msra.mxu0 0
    %1732 = vmatprep.subr.bf16.mxu0 0
    %1733 = vmatpush1.bf16.msra.mxu0 0
    %1734 = vmatprep.subr.bf16.mxu0 0
    %1735 = vmatpush1.bf16.msra.mxu0 %v1550
    %1736 = vmatprep.subr.bf16.mxu0 0
    %1737 = vmatpush1.bf16.msra.mxu0 %v1549
    %1738 = vmatprep.subr.bf16.mxu0 0
    %1739 = vmatpush2.bf16.msra.mxu0 0
    %1740 = vmatprep.subr.bf16.mxu0 0
    %1741 = vmatpush2.bf16.msra.mxu0 0
    %1742 = vmatprep.subr.bf16.mxu0 0
    %1743 = vmatpush2.bf16.msra.mxu0 0
    %1744 = vmatprep.subr.bf16.mxu0 0
    %1745 = vmatpush2.bf16.msra.mxu0 0
    %1746 = vmatprep.subr.bf16.mxu0 0
    %1747 = vmatpush2.bf16.msra.mxu0 0
    %1748 = vmatprep.subr.bf16.mxu0 0
    %1749 = vmatpush2.bf16.msra.mxu0 0
    %1750 = vmatprep.subr.bf16.mxu0 0
    %1751 = vmatpush2.bf16.msra.mxu0 0
    %1752 = vmatprep.subr.bf16.mxu0 0
    %1753 = vmatpush2.bf16.msra.mxu0 0
    %1754 = vmatprep.mubr.bf16.mxu0 0
    %1755 = vmatmul.mubr.bf16.gmra.mxu0 %v1717
    %v1756 = vpop.f32.mrf.mxu0
    %v1757 = vadd.f32 0.0, %v1756
    %v1758 = vpop.f32.mrf.mxu0
    %v1759 = vpop.f32.mrf.mxu0
    %v1760 = vadd.f32 0.0, %v1759
    %v1761 = vpop.f32.mrf.mxu0
    %1762 = vmatprep.mubr.bf16.mxu0 0
    %1763 = vmatmul.mubr.bf16.gmra.mxu0 %v1720
    %v1764 = vpop.f32.mrf.mxu0
    %v1765 = vadd.f32 0.0, %v1764
    %v1766 = vpop.f32.mrf.mxu0
    %v1767 = vpop.f32.mrf.mxu0
    %v1768 = vadd.f32 0.0, %v1767
    %v1769 = vpop.f32.mrf.mxu0
    %1770 = vdwg.mxu0
    %1773 = vrot.lane.b32.xlu0 %v1064, 96
    %v1774 = vpop.permute.xlu0 %1773
    %1775 = vrot.lane.b32.xlu0 %v1065, 96
    %v1776 = vpop.permute.xlu0 %1775
    %1779 = vrot.lane.b32.xlu0 %v1072, 96
    %v1780 = vpop.permute.xlu0 %1779
    %1781 = vrot.lane.b32.xlu0 %v1073, 96
    %v1782 = vpop.permute.xlu0 %1781
    %v1784 = vsel %vm1080, %v1774, 0
    %v1787 = vsel %vm1080, %v1776, 0
    %v1790 = vsel %vm1080, %v1780, 0
    %v1793 = vsel %vm1080, %v1782, 0
    %1795 = vmatprep.subr.bf16.mxu0 0
    %1796 = vmatpush1.bf16.xpose.msra.mxu0 0
    %1797 = vmatprep.subr.bf16.mxu0 0
    %1798 = vmatpush1.bf16.xpose.msra.mxu0 0
    %1799 = vmatprep.subr.bf16.mxu0 0
    %1800 = vmatpush1.bf16.xpose.msra.mxu0 0
    %1801 = vmatprep.subr.bf16.mxu0 0
    %1802 = vmatpush1.bf16.xpose.msra.mxu0 0
    %1803 = vmatprep.subr.bf16.mxu0 0
    %1804 = vmatpush1.bf16.xpose.msra.mxu0 0
    %1805 = vmatprep.subr.bf16.mxu0 0
    %1806 = vmatpush1.bf16.xpose.msra.mxu0 0
    %1807 = vmatprep.subr.bf16.mxu0 0
    %1808 = vmatpush1.bf16.xpose.msra.mxu0 %v1793
    %1809 = vmatprep.subr.bf16.mxu0 0
    %1810 = vmatpush1.bf16.xpose.msra.mxu0 %v1790
    %1811 = vmatprep.subr.bf16.mxu0 0
    %1812 = vmatpush2.bf16.xpose.msra.mxu0 0
    %1813 = vmatprep.subr.bf16.mxu0 0
    %1814 = vmatpush2.bf16.xpose.msra.mxu0 0
    %1815 = vmatprep.subr.bf16.mxu0 0
    %1816 = vmatpush2.bf16.xpose.msra.mxu0 0
    %1817 = vmatprep.subr.bf16.mxu0 0
    %1818 = vmatpush2.bf16.xpose.msra.mxu0 0
    %1819 = vmatprep.subr.bf16.mxu0 0
    %1820 = vmatpush2.bf16.xpose.msra.mxu0 0
    %1821 = vmatprep.subr.bf16.mxu0 0
    %1822 = vmatpush2.bf16.xpose.msra.mxu0 0
    %1823 = vmatprep.subr.bf16.mxu0 0
    %1824 = vmatpush2.bf16.xpose.msra.mxu0 0
    %1825 = vmatprep.subr.bf16.mxu0 0
    %1826 = vmatpush2.bf16.xpose.msra.mxu0 0
    %1827 = vmatprep.mubr.bf16.mxu0 0
    %1828 = vmatmul.mubr.bf16.gmra.mxu0 %v1784
    %v1829 = vpop.f32.mrf.mxu0
    %v1830 = vadd.f32 0.0, %v1829
    %v1831 = vpop.f32.mrf.mxu0
    %v1832 = vpop.f32.mrf.mxu0
    %v1833 = vadd.f32 0.0, %v1832
    %v1834 = vpop.f32.mrf.mxu0
    %1835 = vmatprep.mubr.bf16.mxu0 0
    %1836 = vmatmul.mubr.bf16.gmra.mxu0 %v1787
    %v1837 = vpop.f32.mrf.mxu0
    %v1838 = vadd.f32 0.0, %v1837
    %v1839 = vpop.f32.mrf.mxu0
    %v1840 = vpop.f32.mrf.mxu0
    %v1841 = vadd.f32 0.0, %v1840
    %v1842 = vpop.f32.mrf.mxu0
    %1843 = vdwg.mxu0
    %1846 = vrot.lane.b32.xlu0 %v1066, 96
    %v1847 = vpop.permute.xlu0 %1846
    %1848 = vrot.lane.b32.xlu0 %v1067, 96
    %v1849 = vpop.permute.xlu0 %1848
    %1852 = vrot.lane.b32.xlu0 %v1074, 96
    %v1853 = vpop.permute.xlu0 %1852
    %1854 = vrot.lane.b32.xlu0 %v1075, 96
    %v1855 = vpop.permute.xlu0 %1854
    %v1857 = vsel %vm1080, %v1847, 0
    %v1860 = vsel %vm1080, %v1849, 0
    %v1863 = vsel %vm1080, %v1853, 0
    %v1866 = vsel %vm1080, %v1855, 0
    %1868 = vmatprep.subr.bf16.mxu0 0
    %1869 = vmatpush1.bf16.xpose.msra.mxu0 0
    %1870 = vmatprep.subr.bf16.mxu0 0
    %1871 = vmatpush1.bf16.xpose.msra.mxu0 0
    %1872 = vmatprep.subr.bf16.mxu0 0
    %1873 = vmatpush1.bf16.xpose.msra.mxu0 0
    %1874 = vmatprep.subr.bf16.mxu0 0
    %1875 = vmatpush1.bf16.xpose.msra.mxu0 0
    %1876 = vmatprep.subr.bf16.mxu0 0
    %1877 = vmatpush1.bf16.xpose.msra.mxu0 0
    %1878 = vmatprep.subr.bf16.mxu0 0
    %1879 = vmatpush1.bf16.xpose.msra.mxu0 0
    %1880 = vmatprep.subr.bf16.mxu0 0
    %1881 = vmatpush1.bf16.xpose.msra.mxu0 %v1866
    %1882 = vmatprep.subr.bf16.mxu0 0
    %1883 = vmatpush1.bf16.xpose.msra.mxu0 %v1863
    %1884 = vmatprep.subr.bf16.mxu0 0
    %1885 = vmatpush2.bf16.xpose.msra.mxu0 0
    %1886 = vmatprep.subr.bf16.mxu0 0
    %1887 = vmatpush2.bf16.xpose.msra.mxu0 0
    %1888 = vmatprep.subr.bf16.mxu0 0
    %1889 = vmatpush2.bf16.xpose.msra.mxu0 0
    %1890 = vmatprep.subr.bf16.mxu0 0
    %1891 = vmatpush2.bf16.xpose.msra.mxu0 0
    %1892 = vmatprep.subr.bf16.mxu0 0
    %1893 = vmatpush2.bf16.xpose.msra.mxu0 0
    %1894 = vmatprep.subr.bf16.mxu0 0
    %1895 = vmatpush2.bf16.xpose.msra.mxu0 0
    %1896 = vmatprep.subr.bf16.mxu0 0
    %1897 = vmatpush2.bf16.xpose.msra.mxu0 0
    %1898 = vmatprep.subr.bf16.mxu0 0
    %1899 = vmatpush2.bf16.xpose.msra.mxu0 0
    %1900 = vmatprep.mubr.bf16.mxu0 0
    %1901 = vmatmul.mubr.bf16.gmra.mxu0 %v1857
    %v1902 = vpop.f32.mrf.mxu0
    %v1903 = vadd.f32 0.0, %v1902
    %v1904 = vpop.f32.mrf.mxu0
    %v1905 = vpop.f32.mrf.mxu0
    %v1906 = vadd.f32 0.0, %v1905
    %v1907 = vpop.f32.mrf.mxu0
    %1908 = vmatprep.mubr.bf16.mxu0 0
    %1909 = vmatmul.mubr.bf16.gmra.mxu0 %v1860
    %v1910 = vpop.f32.mrf.mxu0
    %v1911 = vadd.f32 0.0, %v1910
    %v1912 = vpop.f32.mrf.mxu0
    %v1913 = vpop.f32.mrf.mxu0
    %v1914 = vadd.f32 0.0, %v1913
    %v1915 = vpop.f32.mrf.mxu0
    %1916 = vdwg.mxu0
    %1919 = vrot.lane.b32.xlu0 %v1068, 96
    %v1920 = vpop.permute.xlu0 %1919
    %1921 = vrot.lane.b32.xlu0 %v1069, 96
    %v1922 = vpop.permute.xlu0 %1921
    %1925 = vrot.lane.b32.xlu0 %v1076, 96
    %v1926 = vpop.permute.xlu0 %1925
    %1927 = vrot.lane.b32.xlu0 %v1077, 96
    %v1928 = vpop.permute.xlu0 %1927
    %v1930 = vsel %vm1080, %v1920, 0
    %v1933 = vsel %vm1080, %v1922, 0
    %v1936 = vsel %vm1080, %v1926, 0
    %v1939 = vsel %vm1080, %v1928, 0
    %1941 = vmatprep.subr.bf16.mxu0 0
    %1942 = vmatpush1.bf16.xpose.msra.mxu0 0
    %1943 = vmatprep.subr.bf16.mxu0 0
    %1944 = vmatpush1.bf16.xpose.msra.mxu0 0
    %1945 = vmatprep.subr.bf16.mxu0 0
    %1946 = vmatpush1.bf16.xpose.msra.mxu0 0
    %1947 = vmatprep.subr.bf16.mxu0 0
    %1948 = vmatpush1.bf16.xpose.msra.mxu0 0
    %1949 = vmatprep.subr.bf16.mxu0 0
    %1950 = vmatpush1.bf16.xpose.msra.mxu0 0
    %1951 = vmatprep.subr.bf16.mxu0 0
    %1952 = vmatpush1.bf16.xpose.msra.mxu0 0
    %1953 = vmatprep.subr.bf16.mxu0 0
    %1954 = vmatpush1.bf16.xpose.msra.mxu0 %v1939
    %1955 = vmatprep.subr.bf16.mxu0 0
    %1956 = vmatpush1.bf16.xpose.msra.mxu0 %v1936
    %1957 = vmatprep.subr.bf16.mxu0 0
    %1958 = vmatpush2.bf16.xpose.msra.mxu0 0
    %1959 = vmatprep.subr.bf16.mxu0 0
    %1960 = vmatpush2.bf16.xpose.msra.mxu0 0
    %1961 = vmatprep.subr.bf16.mxu0 0
    %1962 = vmatpush2.bf16.xpose.msra.mxu0 0
    %1963 = vmatprep.subr.bf16.mxu0 0
    %1964 = vmatpush2.bf16.xpose.msra.mxu0 0
    %1965 = vmatprep.subr.bf16.mxu0 0
    %1966 = vmatpush2.bf16.xpose.msra.mxu0 0
    %1967 = vmatprep.subr.bf16.mxu0 0
    %1968 = vmatpush2.bf16.xpose.msra.mxu0 0
    %1969 = vmatprep.subr.bf16.mxu0 0
    %1970 = vmatpush2.bf16.xpose.msra.mxu0 0
    %1971 = vmatprep.subr.bf16.mxu0 0
    %1972 = vmatpush2.bf16.xpose.msra.mxu0 0
    %1973 = vmatprep.mubr.bf16.mxu0 0
    %1974 = vmatmul.mubr.bf16.gmra.mxu0 %v1930
    %v1975 = vpop.f32.mrf.mxu0
    %v1976 = vadd.f32 0.0, %v1975
    %v1977 = vpop.f32.mrf.mxu0
    %v1978 = vpop.f32.mrf.mxu0
    %v1979 = vadd.f32 0.0, %v1978
    %v1980 = vpop.f32.mrf.mxu0
    %1981 = vmatprep.mubr.bf16.mxu0 0
    %1982 = vmatmul.mubr.bf16.gmra.mxu0 %v1933
    %v1983 = vpop.f32.mrf.mxu0
    %v1984 = vadd.f32 0.0, %v1983
    %v1985 = vpop.f32.mrf.mxu0
    %v1986 = vpop.f32.mrf.mxu0
    %v1987 = vadd.f32 0.0, %v1986
    %v1988 = vpop.f32.mrf.mxu0
    %1989 = vdwg.mxu0
    %1992 = vrot.lane.b32.xlu0 %v1070, 96
    %v1993 = vpop.permute.xlu0 %1992
    %1994 = vrot.lane.b32.xlu0 %v1071, 96
    %v1995 = vpop.permute.xlu0 %1994
    %1998 = vrot.lane.b32.xlu0 %v1078, 96
    %v1999 = vpop.permute.xlu0 %1998
    %2000 = vrot.lane.b32.xlu0 %v1079, 96
    %v2001 = vpop.permute.xlu0 %2000
    %v2003 = vsel %vm1080, %v1993, 0
    %v2006 = vsel %vm1080, %v1995, 0
    %v2009 = vsel %vm1080, %v1999, 0
    %v2012 = vsel %vm1080, %v2001, 0
    %2014 = vmatprep.subr.bf16.mxu0 0
    %2015 = vmatpush1.bf16.xpose.msra.mxu0 0
    %2016 = vmatprep.subr.bf16.mxu0 0
    %2017 = vmatpush1.bf16.xpose.msra.mxu0 0
    %2018 = vmatprep.subr.bf16.mxu0 0
    %2019 = vmatpush1.bf16.xpose.msra.mxu0 0
    %2020 = vmatprep.subr.bf16.mxu0 0
    %2021 = vmatpush1.bf16.xpose.msra.mxu0 0
    %2022 = vmatprep.subr.bf16.mxu0 0
    %2023 = vmatpush1.bf16.xpose.msra.mxu0 0
    %2024 = vmatprep.subr.bf16.mxu0 0
    %2025 = vmatpush1.bf16.xpose.msra.mxu0 0
    %2026 = vmatprep.subr.bf16.mxu0 0
    %2027 = vmatpush1.bf16.xpose.msra.mxu0 %v2012
    %2028 = vmatprep.subr.bf16.mxu0 0
    %2029 = vmatpush1.bf16.xpose.msra.mxu0 %v2009
    %2030 = vmatprep.subr.bf16.mxu0 0
    %2031 = vmatpush2.bf16.xpose.msra.mxu0 0
    %2032 = vmatprep.subr.bf16.mxu0 0
    %2033 = vmatpush2.bf16.xpose.msra.mxu0 0
    %2034 = vmatprep.subr.bf16.mxu0 0
    %2035 = vmatpush2.bf16.xpose.msra.mxu0 0
    %2036 = vmatprep.subr.bf16.mxu0 0
    %2037 = vmatpush2.bf16.xpose.msra.mxu0 0
    %2038 = vmatprep.subr.bf16.mxu0 0
    %2039 = vmatpush2.bf16.xpose.msra.mxu0 0
    %2040 = vmatprep.subr.bf16.mxu0 0
    %2041 = vmatpush2.bf16.xpose.msra.mxu0 0
    %2042 = vmatprep.subr.bf16.mxu0 0
    %2043 = vmatpush2.bf16.xpose.msra.mxu0 0
    %2044 = vmatprep.subr.bf16.mxu0 0
    %2045 = vmatpush2.bf16.xpose.msra.mxu0 0
    %2046 = vmatprep.mubr.bf16.mxu0 0
    %2047 = vmatmul.mubr.bf16.gmra.mxu0 %v2003
    %v2048 = vpop.f32.mrf.mxu0
    %v2049 = vadd.f32 0.0, %v2048
    %v2050 = vpop.f32.mrf.mxu0
    %v2051 = vpop.f32.mrf.mxu0
    %v2052 = vadd.f32 0.0, %v2051
    %v2053 = vpop.f32.mrf.mxu0
    %2054 = vmatprep.mubr.bf16.mxu0 0
    %2055 = vmatmul.mubr.bf16.gmra.mxu0 %v2006
    %v2056 = vpop.f32.mrf.mxu0
    %v2057 = vadd.f32 0.0, %v2056
    %v2058 = vpop.f32.mrf.mxu0
    %v2059 = vpop.f32.mrf.mxu0
    %v2060 = vadd.f32 0.0, %v2059
    %v2061 = vpop.f32.mrf.mxu0
    %2062 = vdwg.mxu0
    %v2063 = vmul.f32 %v1830, 0.17677669
    %v2064 = vmul.f32 %v1833, 0.17677669
    %v2065 = vmul.f32 %v1838, 0.17677669
    %v2066 = vmul.f32 %v1841, 0.17677669
    %v2067 = vmul.f32 %v1903, 0.17677669
    %v2068 = vmul.f32 %v1906, 0.17677669
    %v2069 = vmul.f32 %v1911, 0.17677669
    %v2070 = vmul.f32 %v1914, 0.17677669
    %v2071 = vmul.f32 %v1976, 0.17677669
    %v2072 = vmul.f32 %v1979, 0.17677669
    %v2073 = vmul.f32 %v1984, 0.17677669
    %v2074 = vmul.f32 %v1987, 0.17677669
    %v2075 = vmul.f32 %v2049, 0.17677669
    %v2076 = vmul.f32 %v2052, 0.17677669
    %v2077 = vmul.f32 %v2057, 0.17677669
    %v2078 = vmul.f32 %v2060, 0.17677669
    %v2079 = vsel %vm1342, %v2063, -1e+30
    %v2080 = vsel %vm1342, %v2064, -1e+30
    %v2081 = vsel %vm1342, %v2065, -1e+30
    %v2082 = vsel %vm1342, %v2066, -1e+30
    %v2083 = vsel %vm1342, %v2067, -1e+30
    %v2084 = vsel %vm1342, %v2068, -1e+30
    %v2085 = vsel %vm1342, %v2069, -1e+30
    %v2086 = vsel %vm1342, %v2070, -1e+30
    %v2087 = vsel %vm1342, %v2071, -1e+30
    %v2088 = vsel %vm1342, %v2072, -1e+30
    %v2089 = vsel %vm1342, %v2073, -1e+30
    %v2090 = vsel %vm1342, %v2074, -1e+30
    %v2091 = vsel %vm1342, %v2075, -1e+30
    %v2092 = vsel %vm1342, %v2076, -1e+30
    %v2093 = vsel %vm1342, %v2077, -1e+30
    %v2094 = vsel %vm1342, %v2078, -1e+30
    %v2095 = vsel %vm1080, %v2079, -inf
    %2096 = vmax.xlane.f32.xlu0 %v2095
    %v2097 = vpop.xlane.xlu0 %2096
    %v2098 = vsel %vm1080, %v2080, -inf
    %2099 = vmax.xlane.f32.xlu0 %v2098
    %v2100 = vpop.xlane.xlu0 %2099
    %v2101 = vsel %vm1080, %v2081, -inf
    %2102 = vmax.xlane.f32.xlu0 %v2101
    %v2103 = vpop.xlane.xlu0 %2102
    %v2104 = vsel %vm1080, %v2082, -inf
    %2105 = vmax.xlane.f32.xlu0 %v2104
    %v2106 = vpop.xlane.xlu0 %2105
    %v2107 = vsel %vm1080, %v2083, -inf
    %2108 = vmax.xlane.f32.xlu0 %v2107
    %v2109 = vpop.xlane.xlu0 %2108
    %v2110 = vsel %vm1080, %v2084, -inf
    %2111 = vmax.xlane.f32.xlu0 %v2110
    %v2112 = vpop.xlane.xlu0 %2111
    %v2113 = vsel %vm1080, %v2085, -inf
    %2114 = vmax.xlane.f32.xlu0 %v2113
    %v2115 = vpop.xlane.xlu0 %2114
    %v2116 = vsel %vm1080, %v2086, -inf
    %2117 = vmax.xlane.f32.xlu0 %v2116
    %v2118 = vpop.xlane.xlu0 %2117
    %v2119 = vsel %vm1080, %v2087, -inf
    %2120 = vmax.xlane.f32.xlu0 %v2119
    %v2121 = vpop.xlane.xlu0 %2120
    %v2122 = vsel %vm1080, %v2088, -inf
    %2123 = vmax.xlane.f32.xlu0 %v2122
    %v2124 = vpop.xlane.xlu0 %2123
    %v2125 = vsel %vm1080, %v2089, -inf
    %2126 = vmax.xlane.f32.xlu0 %v2125
    %v2127 = vpop.xlane.xlu0 %2126
    %v2128 = vsel %vm1080, %v2090, -inf
    %2129 = vmax.xlane.f32.xlu0 %v2128
    %v2130 = vpop.xlane.xlu0 %2129
    %v2131 = vsel %vm1080, %v2091, -inf
    %2132 = vmax.xlane.f32.xlu0 %v2131
    %v2133 = vpop.xlane.xlu0 %2132
    %v2134 = vsel %vm1080, %v2092, -inf
    %2135 = vmax.xlane.f32.xlu0 %v2134
    %v2136 = vpop.xlane.xlu0 %2135
    %v2137 = vsel %vm1080, %v2093, -inf
    %2138 = vmax.xlane.f32.xlu0 %v2137
    %v2139 = vpop.xlane.xlu0 %2138
    %v2140 = vsel %vm1080, %v2094, -inf
    %2141 = vmax.xlane.f32.xlu0 %v2140
    %v2142 = vpop.xlane.xlu0 %2141
    %v2143 = vsub.f32 %v2079, %v2097
    %v2144 = vsub.f32 %v2080, %v2100
    %v2145 = vsub.f32 %v2081, %v2103
    %v2146 = vsub.f32 %v2082, %v2106
    %v2147 = vsub.f32 %v2083, %v2109
    %v2148 = vsub.f32 %v2084, %v2112
    %v2149 = vsub.f32 %v2085, %v2115
    %v2150 = vsub.f32 %v2086, %v2118
    %v2151 = vsub.f32 %v2087, %v2121
    %v2152 = vsub.f32 %v2088, %v2124
    %v2153 = vsub.f32 %v2089, %v2127
    %v2154 = vsub.f32 %v2090, %v2130
    %v2155 = vsub.f32 %v2091, %v2133
    %v2156 = vsub.f32 %v2092, %v2136
    %v2157 = vsub.f32 %v2093, %v2139
    %v2158 = vsub.f32 %v2094, %v2142
    %v2159 = vmul.f32 %v2143, 1.442695
    %v2160 = vpow.pop %v2159
    %v2161 = vmul.f32 %v2144, 1.442695
    %v2162 = vpow.pop %v2161
    %v2163 = vmul.f32 %v2145, 1.442695
    %v2164 = vpow.pop %v2163
    %v2165 = vmul.f32 %v2146, 1.442695
    %v2166 = vpow.pop %v2165
    %v2167 = vmul.f32 %v2147, 1.442695
    %v2168 = vpow.pop %v2167
    %v2169 = vmul.f32 %v2148, 1.442695
    %v2170 = vpow.pop %v2169
    %v2171 = vmul.f32 %v2149, 1.442695
    %v2172 = vpow.pop %v2171
    %v2173 = vmul.f32 %v2150, 1.442695
    %v2174 = vpow.pop %v2173
    %v2175 = vmul.f32 %v2151, 1.442695
    %v2176 = vpow.pop %v2175
    %v2177 = vmul.f32 %v2152, 1.442695
    %v2178 = vpow.pop %v2177
    %v2179 = vmul.f32 %v2153, 1.442695
    %v2180 = vpow.pop %v2179
    %v2181 = vmul.f32 %v2154, 1.442695
    %v2182 = vpow.pop %v2181
    %v2183 = vmul.f32 %v2155, 1.442695
    %v2184 = vpow.pop %v2183
    %v2185 = vmul.f32 %v2156, 1.442695
    %v2186 = vpow.pop %v2185
    %v2187 = vmul.f32 %v2157, 1.442695
    %v2188 = vpow.pop %v2187
    %v2189 = vmul.f32 %v2158, 1.442695
    %v2190 = vpow.pop %v2189
    %v2191 = vsel %vm1080, %v2160, 0.0
    %2192 = vadd.xlane.f32.xlu0 %v2191
    %v2193 = vpop.xlane.xlu0 %2192
    %v2194 = vsel %vm1080, %v2162, 0.0
    %2195 = vadd.xlane.f32.xlu0 %v2194
    %v2196 = vpop.xlane.xlu0 %2195
    %v2197 = vsel %vm1080, %v2164, 0.0
    %2198 = vadd.xlane.f32.xlu0 %v2197
    %v2199 = vpop.xlane.xlu0 %2198
    %v2200 = vsel %vm1080, %v2166, 0.0
    %2201 = vadd.xlane.f32.xlu0 %v2200
    %v2202 = vpop.xlane.xlu0 %2201
    %v2203 = vsel %vm1080, %v2168, 0.0
    %2204 = vadd.xlane.f32.xlu0 %v2203
    %v2205 = vpop.xlane.xlu0 %2204
    %v2206 = vsel %vm1080, %v2170, 0.0
    %2207 = vadd.xlane.f32.xlu0 %v2206
    %v2208 = vpop.xlane.xlu0 %2207
    %v2209 = vsel %vm1080, %v2172, 0.0
    %2210 = vadd.xlane.f32.xlu0 %v2209
    %v2211 = vpop.xlane.xlu0 %2210
    %v2212 = vsel %vm1080, %v2174, 0.0
    %2213 = vadd.xlane.f32.xlu0 %v2212
    %v2214 = vpop.xlane.xlu0 %2213
    %v2215 = vsel %vm1080, %v2176, 0.0
    %2216 = vadd.xlane.f32.xlu0 %v2215
    %v2217 = vpop.xlane.xlu0 %2216
    %v2218 = vsel %vm1080, %v2178, 0.0
    %2219 = vadd.xlane.f32.xlu0 %v2218
    %v2220 = vpop.xlane.xlu0 %2219
    %v2221 = vsel %vm1080, %v2180, 0.0
    %2222 = vadd.xlane.f32.xlu0 %v2221
    %v2223 = vpop.xlane.xlu0 %2222
    %v2224 = vsel %vm1080, %v2182, 0.0
    %2225 = vadd.xlane.f32.xlu0 %v2224
    %v2226 = vpop.xlane.xlu0 %2225
    %v2227 = vsel %vm1080, %v2184, 0.0
    %2228 = vadd.xlane.f32.xlu0 %v2227
    %v2229 = vpop.xlane.xlu0 %2228
    %v2230 = vsel %vm1080, %v2186, 0.0
    %2231 = vadd.xlane.f32.xlu0 %v2230
    %v2232 = vpop.xlane.xlu0 %2231
    %v2233 = vsel %vm1080, %v2188, 0.0
    %2234 = vadd.xlane.f32.xlu0 %v2233
    %v2235 = vpop.xlane.xlu0 %2234
    %v2236 = vsel %vm1080, %v2190, 0.0
    %2237 = vadd.xlane.f32.xlu0 %v2236
    %v2238 = vpop.xlane.xlu0 %2237
    %v2239 = vrcp.pop %v2193
    %v2240 = vmul.f32 %v2160, %v2239
    %v2241 = vrcp.pop %v2196
    %v2242 = vmul.f32 %v2162, %v2241
    %v2243 = vrcp.pop %v2199
    %v2244 = vmul.f32 %v2164, %v2243
    %v2245 = vrcp.pop %v2202
    %v2246 = vmul.f32 %v2166, %v2245
    %v2247 = vrcp.pop %v2205
    %v2248 = vmul.f32 %v2168, %v2247
    %v2249 = vrcp.pop %v2208
    %v2250 = vmul.f32 %v2170, %v2249
    %v2251 = vrcp.pop %v2211
    %v2252 = vmul.f32 %v2172, %v2251
    %v2253 = vrcp.pop %v2214
    %v2254 = vmul.f32 %v2174, %v2253
    %v2255 = vrcp.pop %v2217
    %v2256 = vmul.f32 %v2176, %v2255
    %v2257 = vrcp.pop %v2220
    %v2258 = vmul.f32 %v2178, %v2257
    %v2259 = vrcp.pop %v2223
    %v2260 = vmul.f32 %v2180, %v2259
    %v2261 = vrcp.pop %v2226
    %v2262 = vmul.f32 %v2182, %v2261
    %v2263 = vrcp.pop %v2229
    %v2264 = vmul.f32 %v2184, %v2263
    %v2265 = vrcp.pop %v2232
    %v2266 = vmul.f32 %v2186, %v2265
    %v2267 = vrcp.pop %v2235
    %v2268 = vmul.f32 %v2188, %v2267
    %v2269 = vrcp.pop %v2238
    %v2270 = vmul.f32 %v2190, %v2269
    %v2271 = vpack.c.bf16 %v2242, %v2240
    %v2272 = vpack.c.bf16 %v2246, %v2244
    %v2273 = vpack.c.bf16 %v2250, %v2248
    %v2274 = vpack.c.bf16 %v2254, %v2252
    %v2275 = vpack.c.bf16 %v2258, %v2256
    %v2276 = vpack.c.bf16 %v2262, %v2260
    %v2277 = vpack.c.bf16 %v2266, %v2264
    %v2278 = vpack.c.bf16 %v2270, %v2268
    %2281 = vrot.lane.b32.xlu0 %v1543, 96
    %v2282 = vpop.permute.xlu0 %2281
    %2283 = vrot.lane.b32.xlu0 %v1544, 96
    %v2284 = vpop.permute.xlu0 %2283
    %v2288 = vsel %vm1080, %v2271, 0
    %v2291 = vsel %vm1080, %v2272, 0
    %2293 = vmatprep.subr.bf16.mxu0 0
    %2294 = vmatpush1.bf16.msra.mxu0 0
    %2295 = vmatprep.subr.bf16.mxu0 0
    %2296 = vmatpush1.bf16.msra.mxu0 0
    %2297 = vmatprep.subr.bf16.mxu0 0
    %2298 = vmatpush1.bf16.msra.mxu0 0
    %2299 = vmatprep.subr.bf16.mxu0 0
    %2300 = vmatpush1.bf16.msra.mxu0 0
    %2301 = vmatprep.subr.bf16.mxu0 0
    %2302 = vmatpush1.bf16.msra.mxu0 0
    %2303 = vmatprep.subr.bf16.mxu0 0
    %2304 = vmatpush1.bf16.msra.mxu0 0
    %2305 = vmatprep.subr.bf16.mxu0 0
    %2306 = vmatpush1.bf16.msra.mxu0 %v2284
    %2307 = vmatprep.subr.bf16.mxu0 0
    %2308 = vmatpush1.bf16.msra.mxu0 %v2282
    %2309 = vmatprep.subr.bf16.mxu0 0
    %2310 = vmatpush2.bf16.msra.mxu0 0
    %2311 = vmatprep.subr.bf16.mxu0 0
    %2312 = vmatpush2.bf16.msra.mxu0 0
    %2313 = vmatprep.subr.bf16.mxu0 0
    %2314 = vmatpush2.bf16.msra.mxu0 0
    %2315 = vmatprep.subr.bf16.mxu0 0
    %2316 = vmatpush2.bf16.msra.mxu0 0
    %2317 = vmatprep.subr.bf16.mxu0 0
    %2318 = vmatpush2.bf16.msra.mxu0 0
    %2319 = vmatprep.subr.bf16.mxu0 0
    %2320 = vmatpush2.bf16.msra.mxu0 0
    %2321 = vmatprep.subr.bf16.mxu0 0
    %2322 = vmatpush2.bf16.msra.mxu0 0
    %2323 = vmatprep.subr.bf16.mxu0 0
    %2324 = vmatpush2.bf16.msra.mxu0 0
    %2325 = vmatprep.mubr.bf16.mxu0 0
    %2326 = vmatmul.mubr.bf16.gmra.mxu0 %v2288
    %v2327 = vpop.f32.mrf.mxu0
    %v2328 = vadd.f32 0.0, %v2327
    %v2329 = vpop.f32.mrf.mxu0
    %v2330 = vpop.f32.mrf.mxu0
    %v2331 = vadd.f32 0.0, %v2330
    %v2332 = vpop.f32.mrf.mxu0
    %2333 = vmatprep.mubr.bf16.mxu0 0
    %2334 = vmatmul.mubr.bf16.gmra.mxu0 %v2291
    %v2335 = vpop.f32.mrf.mxu0
    %v2336 = vadd.f32 0.0, %v2335
    %v2337 = vpop.f32.mrf.mxu0
    %v2338 = vpop.f32.mrf.mxu0
    %v2339 = vadd.f32 0.0, %v2338
    %v2340 = vpop.f32.mrf.mxu0
    %2341 = vdwg.mxu0
    %2344 = vrot.lane.b32.xlu0 %v1545, 96
    %v2345 = vpop.permute.xlu0 %2344
    %2346 = vrot.lane.b32.xlu0 %v1546, 96
    %v2347 = vpop.permute.xlu0 %2346
    %v2351 = vsel %vm1080, %v2273, 0
    %v2354 = vsel %vm1080, %v2274, 0
    %2356 = vmatprep.subr.bf16.mxu0 0
    %2357 = vmatpush1.bf16.msra.mxu0 0
    %2358 = vmatprep.subr.bf16.mxu0 0
    %2359 = vmatpush1.bf16.msra.mxu0 0
    %2360 = vmatprep.subr.bf16.mxu0 0
    %2361 = vmatpush1.bf16.msra.mxu0 0
    %2362 = vmatprep.subr.bf16.mxu0 0
    %2363 = vmatpush1.bf16.msra.mxu0 0
    %2364 = vmatprep.subr.bf16.mxu0 0
    %2365 = vmatpush1.bf16.msra.mxu0 0
    %2366 = vmatprep.subr.bf16.mxu0 0
    %2367 = vmatpush1.bf16.msra.mxu0 0
    %2368 = vmatprep.subr.bf16.mxu0 0
    %2369 = vmatpush1.bf16.msra.mxu0 %v2347
    %2370 = vmatprep.subr.bf16.mxu0 0
    %2371 = vmatpush1.bf16.msra.mxu0 %v2345
    %2372 = vmatprep.subr.bf16.mxu0 0
    %2373 = vmatpush2.bf16.msra.mxu0 0
    %2374 = vmatprep.subr.bf16.mxu0 0
    %2375 = vmatpush2.bf16.msra.mxu0 0
    %2376 = vmatprep.subr.bf16.mxu0 0
    %2377 = vmatpush2.bf16.msra.mxu0 0
    %2378 = vmatprep.subr.bf16.mxu0 0
    %2379 = vmatpush2.bf16.msra.mxu0 0
    %2380 = vmatprep.subr.bf16.mxu0 0
    %2381 = vmatpush2.bf16.msra.mxu0 0
    %2382 = vmatprep.subr.bf16.mxu0 0
    %2383 = vmatpush2.bf16.msra.mxu0 0
    %2384 = vmatprep.subr.bf16.mxu0 0
    %2385 = vmatpush2.bf16.msra.mxu0 0
    %2386 = vmatprep.subr.bf16.mxu0 0
    %2387 = vmatpush2.bf16.msra.mxu0 0
    %2388 = vmatprep.mubr.bf16.mxu0 0
    %2389 = vmatmul.mubr.bf16.gmra.mxu0 %v2351
    %v2390 = vpop.f32.mrf.mxu0
    %v2391 = vadd.f32 0.0, %v2390
    %v2392 = vpop.f32.mrf.mxu0
    %v2393 = vpop.f32.mrf.mxu0
    %v2394 = vadd.f32 0.0, %v2393
    %v2395 = vpop.f32.mrf.mxu0
    %2396 = vmatprep.mubr.bf16.mxu0 0
    %2397 = vmatmul.mubr.bf16.gmra.mxu0 %v2354
    %v2398 = vpop.f32.mrf.mxu0
    %v2399 = vadd.f32 0.0, %v2398
    %v2400 = vpop.f32.mrf.mxu0
    %v2401 = vpop.f32.mrf.mxu0
    %v2402 = vadd.f32 0.0, %v2401
    %v2403 = vpop.f32.mrf.mxu0
    %2404 = vdwg.mxu0
    %2407 = vrot.lane.b32.xlu0 %v1547, 96
    %v2408 = vpop.permute.xlu0 %2407
    %2409 = vrot.lane.b32.xlu0 %v1548, 96
    %v2410 = vpop.permute.xlu0 %2409
    %v2414 = vsel %vm1080, %v2275, 0
    %v2417 = vsel %vm1080, %v2276, 0
    %2419 = vmatprep.subr.bf16.mxu0 0
    %2420 = vmatpush1.bf16.msra.mxu0 0
    %2421 = vmatprep.subr.bf16.mxu0 0
    %2422 = vmatpush1.bf16.msra.mxu0 0
    %2423 = vmatprep.subr.bf16.mxu0 0
    %2424 = vmatpush1.bf16.msra.mxu0 0
    %2425 = vmatprep.subr.bf16.mxu0 0
    %2426 = vmatpush1.bf16.msra.mxu0 0
    %2427 = vmatprep.subr.bf16.mxu0 0
    %2428 = vmatpush1.bf16.msra.mxu0 0
    %2429 = vmatprep.subr.bf16.mxu0 0
    %2430 = vmatpush1.bf16.msra.mxu0 0
    %2431 = vmatprep.subr.bf16.mxu0 0
    %2432 = vmatpush1.bf16.msra.mxu0 %v2410
    %2433 = vmatprep.subr.bf16.mxu0 0
    %2434 = vmatpush1.bf16.msra.mxu0 %v2408
    %2435 = vmatprep.subr.bf16.mxu0 0
    %2436 = vmatpush2.bf16.msra.mxu0 0
    %2437 = vmatprep.subr.bf16.mxu0 0
    %2438 = vmatpush2.bf16.msra.mxu0 0
    %2439 = vmatprep.subr.bf16.mxu0 0
    %2440 = vmatpush2.bf16.msra.mxu0 0
    %2441 = vmatprep.subr.bf16.mxu0 0
    %2442 = vmatpush2.bf16.msra.mxu0 0
    %2443 = vmatprep.subr.bf16.mxu0 0
    %2444 = vmatpush2.bf16.msra.mxu0 0
    %2445 = vmatprep.subr.bf16.mxu0 0
    %2446 = vmatpush2.bf16.msra.mxu0 0
    %2447 = vmatprep.subr.bf16.mxu0 0
    %2448 = vmatpush2.bf16.msra.mxu0 0
    %2449 = vmatprep.subr.bf16.mxu0 0
    %2450 = vmatpush2.bf16.msra.mxu0 0
    %2451 = vmatprep.mubr.bf16.mxu0 0
    %2452 = vmatmul.mubr.bf16.gmra.mxu0 %v2414
    %v2453 = vpop.f32.mrf.mxu0
    %v2454 = vadd.f32 0.0, %v2453
    %v2455 = vpop.f32.mrf.mxu0
    %v2456 = vpop.f32.mrf.mxu0
    %v2457 = vadd.f32 0.0, %v2456
    %v2458 = vpop.f32.mrf.mxu0
    %2459 = vmatprep.mubr.bf16.mxu0 0
    %2460 = vmatmul.mubr.bf16.gmra.mxu0 %v2417
    %v2461 = vpop.f32.mrf.mxu0
    %v2462 = vadd.f32 0.0, %v2461
    %v2463 = vpop.f32.mrf.mxu0
    %v2464 = vpop.f32.mrf.mxu0
    %v2465 = vadd.f32 0.0, %v2464
    %v2466 = vpop.f32.mrf.mxu0
    %2467 = vdwg.mxu0
    %2470 = vrot.lane.b32.xlu0 %v1549, 96
    %v2471 = vpop.permute.xlu0 %2470
    %2472 = vrot.lane.b32.xlu0 %v1550, 96
    %v2473 = vpop.permute.xlu0 %2472
    %v2477 = vsel %vm1080, %v2277, 0
    %v2480 = vsel %vm1080, %v2278, 0
    %2482 = vmatprep.subr.bf16.mxu0 0
    %2483 = vmatpush1.bf16.msra.mxu0 0
    %2484 = vmatprep.subr.bf16.mxu0 0
    %2485 = vmatpush1.bf16.msra.mxu0 0
    %2486 = vmatprep.subr.bf16.mxu0 0
    %2487 = vmatpush1.bf16.msra.mxu0 0
    %2488 = vmatprep.subr.bf16.mxu0 0
    %2489 = vmatpush1.bf16.msra.mxu0 0
    %2490 = vmatprep.subr.bf16.mxu0 0
    %2491 = vmatpush1.bf16.msra.mxu0 0
    %2492 = vmatprep.subr.bf16.mxu0 0
    %2493 = vmatpush1.bf16.msra.mxu0 0
    %2494 = vmatprep.subr.bf16.mxu0 0
    %2495 = vmatpush1.bf16.msra.mxu0 %v2473
    %2496 = vmatprep.subr.bf16.mxu0 0
    %2497 = vmatpush1.bf16.msra.mxu0 %v2471
    %2498 = vmatprep.subr.bf16.mxu0 0
    %2499 = vmatpush2.bf16.msra.mxu0 0
    %2500 = vmatprep.subr.bf16.mxu0 0
    %2501 = vmatpush2.bf16.msra.mxu0 0
    %2502 = vmatprep.subr.bf16.mxu0 0
    %2503 = vmatpush2.bf16.msra.mxu0 0
    %2504 = vmatprep.subr.bf16.mxu0 0
    %2505 = vmatpush2.bf16.msra.mxu0 0
    %2506 = vmatprep.subr.bf16.mxu0 0
    %2507 = vmatpush2.bf16.msra.mxu0 0
    %2508 = vmatprep.subr.bf16.mxu0 0
    %2509 = vmatpush2.bf16.msra.mxu0 0
    %2510 = vmatprep.subr.bf16.mxu0 0
    %2511 = vmatpush2.bf16.msra.mxu0 0
    %2512 = vmatprep.subr.bf16.mxu0 0
    %2513 = vmatpush2.bf16.msra.mxu0 0
    %2514 = vmatprep.mubr.bf16.mxu0 0
    %2515 = vmatmul.mubr.bf16.gmra.mxu0 %v2477
    %v2516 = vpop.f32.mrf.mxu0
    %v2517 = vadd.f32 0.0, %v2516
    %v2518 = vpop.f32.mrf.mxu0
    %v2519 = vpop.f32.mrf.mxu0
    %v2520 = vadd.f32 0.0, %v2519
    %v2521 = vpop.f32.mrf.mxu0
    %2522 = vmatprep.mubr.bf16.mxu0 0
    %2523 = vmatmul.mubr.bf16.gmra.mxu0 %v2480
    %v2524 = vpop.f32.mrf.mxu0
    %v2525 = vadd.f32 0.0, %v2524
    %v2526 = vpop.f32.mrf.mxu0
    %v2527 = vpop.f32.mrf.mxu0
    %v2528 = vadd.f32 0.0, %v2527
    %v2529 = vpop.f32.mrf.mxu0
    %2530 = vdwg.mxu0
    %2531 = vrot.lane.b32.xlu0 %v1064, 64
    %v2532 = vpop.permute.xlu0 %2531
    %2533 = vrot.lane.b32.xlu0 %v1065, 64
    %v2534 = vpop.permute.xlu0 %2533
    %2535 = vrot.lane.b32.xlu0 %v1072, 64
    %v2536 = vpop.permute.xlu0 %2535
    %2537 = vrot.lane.b32.xlu0 %v1073, 64
    %v2538 = vpop.permute.xlu0 %2537
    %v2540 = vsel %vm1080, %v2532, 0
    %v2543 = vsel %vm1080, %v2534, 0
    %v2546 = vsel %vm1080, %v2536, 0
    %v2549 = vsel %vm1080, %v2538, 0
    %2551 = vmatprep.subr.bf16.mxu0 0
    %2552 = vmatpush1.bf16.xpose.msra.mxu0 0
    %2553 = vmatprep.subr.bf16.mxu0 0
    %2554 = vmatpush1.bf16.xpose.msra.mxu0 0
    %2555 = vmatprep.subr.bf16.mxu0 0
    %2556 = vmatpush1.bf16.xpose.msra.mxu0 0
    %2557 = vmatprep.subr.bf16.mxu0 0
    %2558 = vmatpush1.bf16.xpose.msra.mxu0 0
    %2559 = vmatprep.subr.bf16.mxu0 0
    %2560 = vmatpush1.bf16.xpose.msra.mxu0 0
    %2561 = vmatprep.subr.bf16.mxu0 0
    %2562 = vmatpush1.bf16.xpose.msra.mxu0 0
    %2563 = vmatprep.subr.bf16.mxu0 0
    %2564 = vmatpush1.bf16.xpose.msra.mxu0 %v2549
    %2565 = vmatprep.subr.bf16.mxu0 0
    %2566 = vmatpush1.bf16.xpose.msra.mxu0 %v2546
    %2567 = vmatprep.subr.bf16.mxu0 0
    %2568 = vmatpush2.bf16.xpose.msra.mxu0 0
    %2569 = vmatprep.subr.bf16.mxu0 0
    %2570 = vmatpush2.bf16.xpose.msra.mxu0 0
    %2571 = vmatprep.subr.bf16.mxu0 0
    %2572 = vmatpush2.bf16.xpose.msra.mxu0 0
    %2573 = vmatprep.subr.bf16.mxu0 0
    %2574 = vmatpush2.bf16.xpose.msra.mxu0 0
    %2575 = vmatprep.subr.bf16.mxu0 0
    %2576 = vmatpush2.bf16.xpose.msra.mxu0 0
    %2577 = vmatprep.subr.bf16.mxu0 0
    %2578 = vmatpush2.bf16.xpose.msra.mxu0 0
    %2579 = vmatprep.subr.bf16.mxu0 0
    %2580 = vmatpush2.bf16.xpose.msra.mxu0 0
    %2581 = vmatprep.subr.bf16.mxu0 0
    %2582 = vmatpush2.bf16.xpose.msra.mxu0 0
    %2583 = vmatprep.mubr.bf16.mxu0 0
    %2584 = vmatmul.mubr.bf16.gmra.mxu0 %v2540
    %v2585 = vpop.f32.mrf.mxu0
    %v2586 = vadd.f32 0.0, %v2585
    %v2587 = vpop.f32.mrf.mxu0
    %v2588 = vpop.f32.mrf.mxu0
    %v2589 = vadd.f32 0.0, %v2588
    %v2590 = vpop.f32.mrf.mxu0
    %2591 = vmatprep.mubr.bf16.mxu0 0
    %2592 = vmatmul.mubr.bf16.gmra.mxu0 %v2543
    %v2593 = vpop.f32.mrf.mxu0
    %v2594 = vadd.f32 0.0, %v2593
    %v2595 = vpop.f32.mrf.mxu0
    %v2596 = vpop.f32.mrf.mxu0
    %v2597 = vadd.f32 0.0, %v2596
    %v2598 = vpop.f32.mrf.mxu0
    %2599 = vdwg.mxu0
    %2600 = vrot.lane.b32.xlu0 %v1066, 64
    %v2601 = vpop.permute.xlu0 %2600
    %2602 = vrot.lane.b32.xlu0 %v1067, 64
    %v2603 = vpop.permute.xlu0 %2602
    %2604 = vrot.lane.b32.xlu0 %v1074, 64
    %v2605 = vpop.permute.xlu0 %2604
    %2606 = vrot.lane.b32.xlu0 %v1075, 64
    %v2607 = vpop.permute.xlu0 %2606
    %v2609 = vsel %vm1080, %v2601, 0
    %v2612 = vsel %vm1080, %v2603, 0
    %v2615 = vsel %vm1080, %v2605, 0
    %v2618 = vsel %vm1080, %v2607, 0
    %2620 = vmatprep.subr.bf16.mxu0 0
    %2621 = vmatpush1.bf16.xpose.msra.mxu0 0
    %2622 = vmatprep.subr.bf16.mxu0 0
    %2623 = vmatpush1.bf16.xpose.msra.mxu0 0
    %2624 = vmatprep.subr.bf16.mxu0 0
    %2625 = vmatpush1.bf16.xpose.msra.mxu0 0
    %2626 = vmatprep.subr.bf16.mxu0 0
    %2627 = vmatpush1.bf16.xpose.msra.mxu0 0
    %2628 = vmatprep.subr.bf16.mxu0 0
    %2629 = vmatpush1.bf16.xpose.msra.mxu0 0
    %2630 = vmatprep.subr.bf16.mxu0 0
    %2631 = vmatpush1.bf16.xpose.msra.mxu0 0
    %2632 = vmatprep.subr.bf16.mxu0 0
    %2633 = vmatpush1.bf16.xpose.msra.mxu0 %v2618
    %2634 = vmatprep.subr.bf16.mxu0 0
    %2635 = vmatpush1.bf16.xpose.msra.mxu0 %v2615
    %2636 = vmatprep.subr.bf16.mxu0 0
    %2637 = vmatpush2.bf16.xpose.msra.mxu0 0
    %2638 = vmatprep.subr.bf16.mxu0 0
    %2639 = vmatpush2.bf16.xpose.msra.mxu0 0
    %2640 = vmatprep.subr.bf16.mxu0 0
    %2641 = vmatpush2.bf16.xpose.msra.mxu0 0
    %2642 = vmatprep.subr.bf16.mxu0 0
    %2643 = vmatpush2.bf16.xpose.msra.mxu0 0
    %2644 = vmatprep.subr.bf16.mxu0 0
    %2645 = vmatpush2.bf16.xpose.msra.mxu0 0
    %2646 = vmatprep.subr.bf16.mxu0 0
    %2647 = vmatpush2.bf16.xpose.msra.mxu0 0
    %2648 = vmatprep.subr.bf16.mxu0 0
    %2649 = vmatpush2.bf16.xpose.msra.mxu0 0
    %2650 = vmatprep.subr.bf16.mxu0 0
    %2651 = vmatpush2.bf16.xpose.msra.mxu0 0
    %2652 = vmatprep.mubr.bf16.mxu0 0
    %2653 = vmatmul.mubr.bf16.gmra.mxu0 %v2609
    %v2654 = vpop.f32.mrf.mxu0
    %v2655 = vadd.f32 0.0, %v2654
    %v2656 = vpop.f32.mrf.mxu0
    %v2657 = vpop.f32.mrf.mxu0
    %v2658 = vadd.f32 0.0, %v2657
    %v2659 = vpop.f32.mrf.mxu0
    %2660 = vmatprep.mubr.bf16.mxu0 0
    %2661 = vmatmul.mubr.bf16.gmra.mxu0 %v2612
    %v2662 = vpop.f32.mrf.mxu0
    %v2663 = vadd.f32 0.0, %v2662
    %v2664 = vpop.f32.mrf.mxu0
    %v2665 = vpop.f32.mrf.mxu0
    %v2666 = vadd.f32 0.0, %v2665
    %v2667 = vpop.f32.mrf.mxu0
    %2668 = vdwg.mxu0
    %2669 = vrot.lane.b32.xlu0 %v1068, 64
    %v2670 = vpop.permute.xlu0 %2669
    %2671 = vrot.lane.b32.xlu0 %v1069, 64
    %v2672 = vpop.permute.xlu0 %2671
    %2673 = vrot.lane.b32.xlu0 %v1076, 64
    %v2674 = vpop.permute.xlu0 %2673
    %2675 = vrot.lane.b32.xlu0 %v1077, 64
    %v2676 = vpop.permute.xlu0 %2675
    %v2678 = vsel %vm1080, %v2670, 0
    %v2681 = vsel %vm1080, %v2672, 0
    %v2684 = vsel %vm1080, %v2674, 0
    %v2687 = vsel %vm1080, %v2676, 0
    %2689 = vmatprep.subr.bf16.mxu0 0
    %2690 = vmatpush1.bf16.xpose.msra.mxu0 0
    %2691 = vmatprep.subr.bf16.mxu0 0
    %2692 = vmatpush1.bf16.xpose.msra.mxu0 0
    %2693 = vmatprep.subr.bf16.mxu0 0
    %2694 = vmatpush1.bf16.xpose.msra.mxu0 0
    %2695 = vmatprep.subr.bf16.mxu0 0
    %2696 = vmatpush1.bf16.xpose.msra.mxu0 0
    %2697 = vmatprep.subr.bf16.mxu0 0
    %2698 = vmatpush1.bf16.xpose.msra.mxu0 0
    %2699 = vmatprep.subr.bf16.mxu0 0
    %2700 = vmatpush1.bf16.xpose.msra.mxu0 0
    %2701 = vmatprep.subr.bf16.mxu0 0
    %2702 = vmatpush1.bf16.xpose.msra.mxu0 %v2687
    %2703 = vmatprep.subr.bf16.mxu0 0
    %2704 = vmatpush1.bf16.xpose.msra.mxu0 %v2684
    %2705 = vmatprep.subr.bf16.mxu0 0
    %2706 = vmatpush2.bf16.xpose.msra.mxu0 0
    %2707 = vmatprep.subr.bf16.mxu0 0
    %2708 = vmatpush2.bf16.xpose.msra.mxu0 0
    %2709 = vmatprep.subr.bf16.mxu0 0
    %2710 = vmatpush2.bf16.xpose.msra.mxu0 0
    %2711 = vmatprep.subr.bf16.mxu0 0
    %2712 = vmatpush2.bf16.xpose.msra.mxu0 0
    %2713 = vmatprep.subr.bf16.mxu0 0
    %2714 = vmatpush2.bf16.xpose.msra.mxu0 0
    %2715 = vmatprep.subr.bf16.mxu0 0
    %2716 = vmatpush2.bf16.xpose.msra.mxu0 0
    %2717 = vmatprep.subr.bf16.mxu0 0
    %2718 = vmatpush2.bf16.xpose.msra.mxu0 0
    %2719 = vmatprep.subr.bf16.mxu0 0
    %2720 = vmatpush2.bf16.xpose.msra.mxu0 0
    %2721 = vmatprep.mubr.bf16.mxu0 0
    %2722 = vmatmul.mubr.bf16.gmra.mxu0 %v2678
    %v2723 = vpop.f32.mrf.mxu0
    %v2724 = vadd.f32 0.0, %v2723
    %v2725 = vpop.f32.mrf.mxu0
    %v2726 = vpop.f32.mrf.mxu0
    %v2727 = vadd.f32 0.0, %v2726
    %v2728 = vpop.f32.mrf.mxu0
    %2729 = vmatprep.mubr.bf16.mxu0 0
    %2730 = vmatmul.mubr.bf16.gmra.mxu0 %v2681
    %v2731 = vpop.f32.mrf.mxu0
    %v2732 = vadd.f32 0.0, %v2731
    %v2733 = vpop.f32.mrf.mxu0
    %v2734 = vpop.f32.mrf.mxu0
    %v2735 = vadd.f32 0.0, %v2734
    %v2736 = vpop.f32.mrf.mxu0
    %2737 = vdwg.mxu0
    %2738 = vrot.lane.b32.xlu0 %v1070, 64
    %v2739 = vpop.permute.xlu0 %2738
    %2740 = vrot.lane.b32.xlu0 %v1071, 64
    %v2741 = vpop.permute.xlu0 %2740
    %2742 = vrot.lane.b32.xlu0 %v1078, 64
    %v2743 = vpop.permute.xlu0 %2742
    %2744 = vrot.lane.b32.xlu0 %v1079, 64
    %v2745 = vpop.permute.xlu0 %2744
    %v2747 = vsel %vm1080, %v2739, 0
    %v2750 = vsel %vm1080, %v2741, 0
    %v2753 = vsel %vm1080, %v2743, 0
    %v2756 = vsel %vm1080, %v2745, 0
    %2758 = vmatprep.subr.bf16.mxu0 0
    %2759 = vmatpush1.bf16.xpose.msra.mxu0 0
    %2760 = vmatprep.subr.bf16.mxu0 0
    %2761 = vmatpush1.bf16.xpose.msra.mxu0 0
    %2762 = vmatprep.subr.bf16.mxu0 0
    %2763 = vmatpush1.bf16.xpose.msra.mxu0 0
    %2764 = vmatprep.subr.bf16.mxu0 0
    %2765 = vmatpush1.bf16.xpose.msra.mxu0 0
    %2766 = vmatprep.subr.bf16.mxu0 0
    %2767 = vmatpush1.bf16.xpose.msra.mxu0 0
    %2768 = vmatprep.subr.bf16.mxu0 0
    %2769 = vmatpush1.bf16.xpose.msra.mxu0 0
    %2770 = vmatprep.subr.bf16.mxu0 0
    %2771 = vmatpush1.bf16.xpose.msra.mxu0 %v2756
    %2772 = vmatprep.subr.bf16.mxu0 0
    %2773 = vmatpush1.bf16.xpose.msra.mxu0 %v2753
    %2774 = vmatprep.subr.bf16.mxu0 0
    %2775 = vmatpush2.bf16.xpose.msra.mxu0 0
    %2776 = vmatprep.subr.bf16.mxu0 0
    %2777 = vmatpush2.bf16.xpose.msra.mxu0 0
    %2778 = vmatprep.subr.bf16.mxu0 0
    %2779 = vmatpush2.bf16.xpose.msra.mxu0 0
    %2780 = vmatprep.subr.bf16.mxu0 0
    %2781 = vmatpush2.bf16.xpose.msra.mxu0 0
    %2782 = vmatprep.subr.bf16.mxu0 0
    %2783 = vmatpush2.bf16.xpose.msra.mxu0 0
    %2784 = vmatprep.subr.bf16.mxu0 0
    %2785 = vmatpush2.bf16.xpose.msra.mxu0 0
    %2786 = vmatprep.subr.bf16.mxu0 0
    %2787 = vmatpush2.bf16.xpose.msra.mxu0 0
    %2788 = vmatprep.subr.bf16.mxu0 0
    %2789 = vmatpush2.bf16.xpose.msra.mxu0 0
    %2790 = vmatprep.mubr.bf16.mxu0 0
    %2791 = vmatmul.mubr.bf16.gmra.mxu0 %v2747
    %v2792 = vpop.f32.mrf.mxu0
    %v2793 = vadd.f32 0.0, %v2792
    %v2794 = vpop.f32.mrf.mxu0
    %v2795 = vpop.f32.mrf.mxu0
    %v2796 = vadd.f32 0.0, %v2795
    %v2797 = vpop.f32.mrf.mxu0
    %2798 = vmatprep.mubr.bf16.mxu0 0
    %2799 = vmatmul.mubr.bf16.gmra.mxu0 %v2750
    %v2800 = vpop.f32.mrf.mxu0
    %v2801 = vadd.f32 0.0, %v2800
    %v2802 = vpop.f32.mrf.mxu0
    %v2803 = vpop.f32.mrf.mxu0
    %v2804 = vadd.f32 0.0, %v2803
    %v2805 = vpop.f32.mrf.mxu0
    %2806 = vdwg.mxu0
    %v2807 = vmul.f32 %v2586, 0.17677669
    %v2808 = vmul.f32 %v2589, 0.17677669
    %v2809 = vmul.f32 %v2594, 0.17677669
    %v2810 = vmul.f32 %v2597, 0.17677669
    %v2811 = vmul.f32 %v2655, 0.17677669
    %v2812 = vmul.f32 %v2658, 0.17677669
    %v2813 = vmul.f32 %v2663, 0.17677669
    %v2814 = vmul.f32 %v2666, 0.17677669
    %v2815 = vmul.f32 %v2724, 0.17677669
    %v2816 = vmul.f32 %v2727, 0.17677669
    %v2817 = vmul.f32 %v2732, 0.17677669
    %v2818 = vmul.f32 %v2735, 0.17677669
    %v2819 = vmul.f32 %v2793, 0.17677669
    %v2820 = vmul.f32 %v2796, 0.17677669
    %v2821 = vmul.f32 %v2801, 0.17677669
    %v2822 = vmul.f32 %v2804, 0.17677669
    %v2823 = vsel %vm1342, %v2807, -1e+30
    %v2824 = vsel %vm1342, %v2808, -1e+30
    %v2825 = vsel %vm1342, %v2809, -1e+30
    %v2826 = vsel %vm1342, %v2810, -1e+30
    %v2827 = vsel %vm1342, %v2811, -1e+30
    %v2828 = vsel %vm1342, %v2812, -1e+30
    %v2829 = vsel %vm1342, %v2813, -1e+30
    %v2830 = vsel %vm1342, %v2814, -1e+30
    %v2831 = vsel %vm1342, %v2815, -1e+30
    %v2832 = vsel %vm1342, %v2816, -1e+30
    %v2833 = vsel %vm1342, %v2817, -1e+30
    %v2834 = vsel %vm1342, %v2818, -1e+30
    %v2835 = vsel %vm1342, %v2819, -1e+30
    %v2836 = vsel %vm1342, %v2820, -1e+30
    %v2837 = vsel %vm1342, %v2821, -1e+30
    %v2838 = vsel %vm1342, %v2822, -1e+30
    %v2839 = vsel %vm1080, %v2823, -inf
    %2840 = vmax.xlane.f32.xlu0 %v2839
    %v2841 = vpop.xlane.xlu0 %2840
    %v2842 = vsel %vm1080, %v2824, -inf
    %2843 = vmax.xlane.f32.xlu0 %v2842
    %v2844 = vpop.xlane.xlu0 %2843
    %v2845 = vsel %vm1080, %v2825, -inf
    %2846 = vmax.xlane.f32.xlu0 %v2845
    %v2847 = vpop.xlane.xlu0 %2846
    %v2848 = vsel %vm1080, %v2826, -inf
    %2849 = vmax.xlane.f32.xlu0 %v2848
    %v2850 = vpop.xlane.xlu0 %2849
    %v2851 = vsel %vm1080, %v2827, -inf
    %2852 = vmax.xlane.f32.xlu0 %v2851
    %v2853 = vpop.xlane.xlu0 %2852
    %v2854 = vsel %vm1080, %v2828, -inf
    %2855 = vmax.xlane.f32.xlu0 %v2854
    %v2856 = vpop.xlane.xlu0 %2855
    %v2857 = vsel %vm1080, %v2829, -inf
    %2858 = vmax.xlane.f32.xlu0 %v2857
    %v2859 = vpop.xlane.xlu0 %2858
    %v2860 = vsel %vm1080, %v2830, -inf
    %2861 = vmax.xlane.f32.xlu0 %v2860
    %v2862 = vpop.xlane.xlu0 %2861
    %v2863 = vsel %vm1080, %v2831, -inf
    %2864 = vmax.xlane.f32.xlu0 %v2863
    %v2865 = vpop.xlane.xlu0 %2864
    %v2866 = vsel %vm1080, %v2832, -inf
    %2867 = vmax.xlane.f32.xlu0 %v2866
    %v2868 = vpop.xlane.xlu0 %2867
    %v2869 = vsel %vm1080, %v2833, -inf
    %2870 = vmax.xlane.f32.xlu0 %v2869
    %v2871 = vpop.xlane.xlu0 %2870
    %v2872 = vsel %vm1080, %v2834, -inf
    %2873 = vmax.xlane.f32.xlu0 %v2872
    %v2874 = vpop.xlane.xlu0 %2873
    %v2875 = vsel %vm1080, %v2835, -inf
    %2876 = vmax.xlane.f32.xlu0 %v2875
    %v2877 = vpop.xlane.xlu0 %2876
    %v2878 = vsel %vm1080, %v2836, -inf
    %2879 = vmax.xlane.f32.xlu0 %v2878
    %v2880 = vpop.xlane.xlu0 %2879
    %v2881 = vsel %vm1080, %v2837, -inf
    %2882 = vmax.xlane.f32.xlu0 %v2881
    %v2883 = vpop.xlane.xlu0 %2882
    %v2884 = vsel %vm1080, %v2838, -inf
    %2885 = vmax.xlane.f32.xlu0 %v2884
    %v2886 = vpop.xlane.xlu0 %2885
    %v2887 = vsub.f32 %v2823, %v2841
    %v2888 = vsub.f32 %v2824, %v2844
    %v2889 = vsub.f32 %v2825, %v2847
    %v2890 = vsub.f32 %v2826, %v2850
    %v2891 = vsub.f32 %v2827, %v2853
    %v2892 = vsub.f32 %v2828, %v2856
    %v2893 = vsub.f32 %v2829, %v2859
    %v2894 = vsub.f32 %v2830, %v2862
    %v2895 = vsub.f32 %v2831, %v2865
    %v2896 = vsub.f32 %v2832, %v2868
    %v2897 = vsub.f32 %v2833, %v2871
    %v2898 = vsub.f32 %v2834, %v2874
    %v2899 = vsub.f32 %v2835, %v2877
    %v2900 = vsub.f32 %v2836, %v2880
    %v2901 = vsub.f32 %v2837, %v2883
    %v2902 = vsub.f32 %v2838, %v2886
    %v2903 = vmul.f32 %v2887, 1.442695
    %v2904 = vpow.pop %v2903
    %v2905 = vmul.f32 %v2888, 1.442695
    %v2906 = vpow.pop %v2905
    %v2907 = vmul.f32 %v2889, 1.442695
    %v2908 = vpow.pop %v2907
    %v2909 = vmul.f32 %v2890, 1.442695
    %v2910 = vpow.pop %v2909
    %v2911 = vmul.f32 %v2891, 1.442695
    %v2912 = vpow.pop %v2911
    %v2913 = vmul.f32 %v2892, 1.442695
    %v2914 = vpow.pop %v2913
    %v2915 = vmul.f32 %v2893, 1.442695
    %v2916 = vpow.pop %v2915
    %v2917 = vmul.f32 %v2894, 1.442695
    %v2918 = vpow.pop %v2917
    %v2919 = vmul.f32 %v2895, 1.442695
    %v2920 = vpow.pop %v2919
    %v2921 = vmul.f32 %v2896, 1.442695
    %v2922 = vpow.pop %v2921
    %v2923 = vmul.f32 %v2897, 1.442695
    %v2924 = vpow.pop %v2923
    %v2925 = vmul.f32 %v2898, 1.442695
    %v2926 = vpow.pop %v2925
    %v2927 = vmul.f32 %v2899, 1.442695
    %v2928 = vpow.pop %v2927
    %v2929 = vmul.f32 %v2900, 1.442695
    %v2930 = vpow.pop %v2929
    %v2931 = vmul.f32 %v2901, 1.442695
    %v2932 = vpow.pop %v2931
    %v2933 = vmul.f32 %v2902, 1.442695
    %v2934 = vpow.pop %v2933
    %v2935 = vsel %vm1080, %v2904, 0.0
    %2936 = vadd.xlane.f32.xlu0 %v2935
    %v2937 = vpop.xlane.xlu0 %2936
    %v2938 = vsel %vm1080, %v2906, 0.0
    %2939 = vadd.xlane.f32.xlu0 %v2938
    %v2940 = vpop.xlane.xlu0 %2939
    %v2941 = vsel %vm1080, %v2908, 0.0
    %2942 = vadd.xlane.f32.xlu0 %v2941
    %v2943 = vpop.xlane.xlu0 %2942
    %v2944 = vsel %vm1080, %v2910, 0.0
    %2945 = vadd.xlane.f32.xlu0 %v2944
    %v2946 = vpop.xlane.xlu0 %2945
    %v2947 = vsel %vm1080, %v2912, 0.0
    %2948 = vadd.xlane.f32.xlu0 %v2947
    %v2949 = vpop.xlane.xlu0 %2948
    %v2950 = vsel %vm1080, %v2914, 0.0
    %2951 = vadd.xlane.f32.xlu0 %v2950
    %v2952 = vpop.xlane.xlu0 %2951
    %v2953 = vsel %vm1080, %v2916, 0.0
    %2954 = vadd.xlane.f32.xlu0 %v2953
    %v2955 = vpop.xlane.xlu0 %2954
    %v2956 = vsel %vm1080, %v2918, 0.0
    %2957 = vadd.xlane.f32.xlu0 %v2956
    %v2958 = vpop.xlane.xlu0 %2957
    %v2959 = vsel %vm1080, %v2920, 0.0
    %2960 = vadd.xlane.f32.xlu0 %v2959
    %v2961 = vpop.xlane.xlu0 %2960
    %v2962 = vsel %vm1080, %v2922, 0.0
    %2963 = vadd.xlane.f32.xlu0 %v2962
    %v2964 = vpop.xlane.xlu0 %2963
    %v2965 = vsel %vm1080, %v2924, 0.0
    %2966 = vadd.xlane.f32.xlu0 %v2965
    %v2967 = vpop.xlane.xlu0 %2966
    %v2968 = vsel %vm1080, %v2926, 0.0
    %2969 = vadd.xlane.f32.xlu0 %v2968
    %v2970 = vpop.xlane.xlu0 %2969
    %v2971 = vsel %vm1080, %v2928, 0.0
    %2972 = vadd.xlane.f32.xlu0 %v2971
    %v2973 = vpop.xlane.xlu0 %2972
    %v2974 = vsel %vm1080, %v2930, 0.0
    %2975 = vadd.xlane.f32.xlu0 %v2974
    %v2976 = vpop.xlane.xlu0 %2975
    %v2977 = vsel %vm1080, %v2932, 0.0
    %2978 = vadd.xlane.f32.xlu0 %v2977
    %v2979 = vpop.xlane.xlu0 %2978
    %v2980 = vsel %vm1080, %v2934, 0.0
    %2981 = vadd.xlane.f32.xlu0 %v2980
    %v2982 = vpop.xlane.xlu0 %2981
    %v2983 = vrcp.pop %v2937
    %v2984 = vmul.f32 %v2904, %v2983
    %v2985 = vrcp.pop %v2940
    %v2986 = vmul.f32 %v2906, %v2985
    %v2987 = vrcp.pop %v2943
    %v2988 = vmul.f32 %v2908, %v2987
    %v2989 = vrcp.pop %v2946
    %v2990 = vmul.f32 %v2910, %v2989
    %v2991 = vrcp.pop %v2949
    %v2992 = vmul.f32 %v2912, %v2991
    %v2993 = vrcp.pop %v2952
    %v2994 = vmul.f32 %v2914, %v2993
    %v2995 = vrcp.pop %v2955
    %v2996 = vmul.f32 %v2916, %v2995
    %v2997 = vrcp.pop %v2958
    %v2998 = vmul.f32 %v2918, %v2997
    %v2999 = vrcp.pop %v2961
    %v3000 = vmul.f32 %v2920, %v2999
    %v3001 = vrcp.pop %v2964
    %v3002 = vmul.f32 %v2922, %v3001
    %v3003 = vrcp.pop %v2967
    %v3004 = vmul.f32 %v2924, %v3003
    %v3005 = vrcp.pop %v2970
    %v3006 = vmul.f32 %v2926, %v3005
    %v3007 = vrcp.pop %v2973
    %v3008 = vmul.f32 %v2928, %v3007
    %v3009 = vrcp.pop %v2976
    %v3010 = vmul.f32 %v2930, %v3009
    %v3011 = vrcp.pop %v2979
    %v3012 = vmul.f32 %v2932, %v3011
    %v3013 = vrcp.pop %v2982
    %v3014 = vmul.f32 %v2934, %v3013
    %v3015 = vpack.c.bf16 %v2986, %v2984
    %v3016 = vpack.c.bf16 %v2990, %v2988
    %v3017 = vpack.c.bf16 %v2994, %v2992
    %v3018 = vpack.c.bf16 %v2998, %v2996
    %v3019 = vpack.c.bf16 %v3002, %v3000
    %v3020 = vpack.c.bf16 %v3006, %v3004
    %v3021 = vpack.c.bf16 %v3010, %v3008
    %v3022 = vpack.c.bf16 %v3014, %v3012
    %3023 = vrot.lane.b32.xlu0 %v1543, 64
    %v3024 = vpop.permute.xlu0 %3023
    %3025 = vrot.lane.b32.xlu0 %v1544, 64
    %v3026 = vpop.permute.xlu0 %3025
    %v3030 = vsel %vm1080, %v3015, 0
    %v3033 = vsel %vm1080, %v3016, 0
    %3035 = vmatprep.subr.bf16.mxu0 0
    %3036 = vmatpush1.bf16.msra.mxu0 0
    %3037 = vmatprep.subr.bf16.mxu0 0
    %3038 = vmatpush1.bf16.msra.mxu0 0
    %3039 = vmatprep.subr.bf16.mxu0 0
    %3040 = vmatpush1.bf16.msra.mxu0 0
    %3041 = vmatprep.subr.bf16.mxu0 0
    %3042 = vmatpush1.bf16.msra.mxu0 0
    %3043 = vmatprep.subr.bf16.mxu0 0
    %3044 = vmatpush1.bf16.msra.mxu0 0
    %3045 = vmatprep.subr.bf16.mxu0 0
    %3046 = vmatpush1.bf16.msra.mxu0 0
    %3047 = vmatprep.subr.bf16.mxu0 0
    %3048 = vmatpush1.bf16.msra.mxu0 %v3026
    %3049 = vmatprep.subr.bf16.mxu0 0
    %3050 = vmatpush1.bf16.msra.mxu0 %v3024
    %3051 = vmatprep.subr.bf16.mxu0 0
    %3052 = vmatpush2.bf16.msra.mxu0 0
    %3053 = vmatprep.subr.bf16.mxu0 0
    %3054 = vmatpush2.bf16.msra.mxu0 0
    %3055 = vmatprep.subr.bf16.mxu0 0
    %3056 = vmatpush2.bf16.msra.mxu0 0
    %3057 = vmatprep.subr.bf16.mxu0 0
    %3058 = vmatpush2.bf16.msra.mxu0 0
    %3059 = vmatprep.subr.bf16.mxu0 0
    %3060 = vmatpush2.bf16.msra.mxu0 0
    %3061 = vmatprep.subr.bf16.mxu0 0
    %3062 = vmatpush2.bf16.msra.mxu0 0
    %3063 = vmatprep.subr.bf16.mxu0 0
    %3064 = vmatpush2.bf16.msra.mxu0 0
    %3065 = vmatprep.subr.bf16.mxu0 0
    %3066 = vmatpush2.bf16.msra.mxu0 0
    %3067 = vmatprep.mubr.bf16.mxu0 0
    %3068 = vmatmul.mubr.bf16.gmra.mxu0 %v3030
    %v3069 = vpop.f32.mrf.mxu0
    %v3070 = vadd.f32 0.0, %v3069
    %v3071 = vpop.f32.mrf.mxu0
    %v3072 = vpop.f32.mrf.mxu0
    %v3073 = vadd.f32 0.0, %v3072
    %v3074 = vpop.f32.mrf.mxu0
    %3075 = vmatprep.mubr.bf16.mxu0 0
    %3076 = vmatmul.mubr.bf16.gmra.mxu0 %v3033
    %v3077 = vpop.f32.mrf.mxu0
    %v3078 = vadd.f32 0.0, %v3077
    %v3079 = vpop.f32.mrf.mxu0
    %v3080 = vpop.f32.mrf.mxu0
    %v3081 = vadd.f32 0.0, %v3080
    %v3082 = vpop.f32.mrf.mxu0
    %3083 = vdwg.mxu0
    %3084 = vrot.lane.b32.xlu0 %v1545, 64
    %v3085 = vpop.permute.xlu0 %3084
    %3086 = vrot.lane.b32.xlu0 %v1546, 64
    %v3087 = vpop.permute.xlu0 %3086
    %v3091 = vsel %vm1080, %v3017, 0
    %v3094 = vsel %vm1080, %v3018, 0
    %3096 = vmatprep.subr.bf16.mxu0 0
    %3097 = vmatpush1.bf16.msra.mxu0 0
    %3098 = vmatprep.subr.bf16.mxu0 0
    %3099 = vmatpush1.bf16.msra.mxu0 0
    %3100 = vmatprep.subr.bf16.mxu0 0
    %3101 = vmatpush1.bf16.msra.mxu0 0
    %3102 = vmatprep.subr.bf16.mxu0 0
    %3103 = vmatpush1.bf16.msra.mxu0 0
    %3104 = vmatprep.subr.bf16.mxu0 0
    %3105 = vmatpush1.bf16.msra.mxu0 0
    %3106 = vmatprep.subr.bf16.mxu0 0
    %3107 = vmatpush1.bf16.msra.mxu0 0
    %3108 = vmatprep.subr.bf16.mxu0 0
    %3109 = vmatpush1.bf16.msra.mxu0 %v3087
    %3110 = vmatprep.subr.bf16.mxu0 0
    %3111 = vmatpush1.bf16.msra.mxu0 %v3085
    %3112 = vmatprep.subr.bf16.mxu0 0
    %3113 = vmatpush2.bf16.msra.mxu0 0
    %3114 = vmatprep.subr.bf16.mxu0 0
    %3115 = vmatpush2.bf16.msra.mxu0 0
    %3116 = vmatprep.subr.bf16.mxu0 0
    %3117 = vmatpush2.bf16.msra.mxu0 0
    %3118 = vmatprep.subr.bf16.mxu0 0
    %3119 = vmatpush2.bf16.msra.mxu0 0
    %3120 = vmatprep.subr.bf16.mxu0 0
    %3121 = vmatpush2.bf16.msra.mxu0 0
    %3122 = vmatprep.subr.bf16.mxu0 0
    %3123 = vmatpush2.bf16.msra.mxu0 0
    %3124 = vmatprep.subr.bf16.mxu0 0
    %3125 = vmatpush2.bf16.msra.mxu0 0
    %3126 = vmatprep.subr.bf16.mxu0 0
    %3127 = vmatpush2.bf16.msra.mxu0 0
    %3128 = vmatprep.mubr.bf16.mxu0 0
    %3129 = vmatmul.mubr.bf16.gmra.mxu0 %v3091
    %v3130 = vpop.f32.mrf.mxu0
    %v3131 = vadd.f32 0.0, %v3130
    %v3132 = vpop.f32.mrf.mxu0
    %v3133 = vpop.f32.mrf.mxu0
    %v3134 = vadd.f32 0.0, %v3133
    %v3135 = vpop.f32.mrf.mxu0
    %3136 = vmatprep.mubr.bf16.mxu0 0
    %3137 = vmatmul.mubr.bf16.gmra.mxu0 %v3094
    %v3138 = vpop.f32.mrf.mxu0
    %v3139 = vadd.f32 0.0, %v3138
    %v3140 = vpop.f32.mrf.mxu0
    %v3141 = vpop.f32.mrf.mxu0
    %v3142 = vadd.f32 0.0, %v3141
    %v3143 = vpop.f32.mrf.mxu0
    %3144 = vdwg.mxu0
    %3145 = vrot.lane.b32.xlu0 %v1547, 64
    %v3146 = vpop.permute.xlu0 %3145
    %3147 = vrot.lane.b32.xlu0 %v1548, 64
    %v3148 = vpop.permute.xlu0 %3147
    %v3152 = vsel %vm1080, %v3019, 0
    %v3155 = vsel %vm1080, %v3020, 0
    %3157 = vmatprep.subr.bf16.mxu0 0
    %3158 = vmatpush1.bf16.msra.mxu0 0
    %3159 = vmatprep.subr.bf16.mxu0 0
    %3160 = vmatpush1.bf16.msra.mxu0 0
    %3161 = vmatprep.subr.bf16.mxu0 0
    %3162 = vmatpush1.bf16.msra.mxu0 0
    %3163 = vmatprep.subr.bf16.mxu0 0
    %3164 = vmatpush1.bf16.msra.mxu0 0
    %3165 = vmatprep.subr.bf16.mxu0 0
    %3166 = vmatpush1.bf16.msra.mxu0 0
    %3167 = vmatprep.subr.bf16.mxu0 0
    %3168 = vmatpush1.bf16.msra.mxu0 0
    %3169 = vmatprep.subr.bf16.mxu0 0
    %3170 = vmatpush1.bf16.msra.mxu0 %v3148
    %3171 = vmatprep.subr.bf16.mxu0 0
    %3172 = vmatpush1.bf16.msra.mxu0 %v3146
    %3173 = vmatprep.subr.bf16.mxu0 0
    %3174 = vmatpush2.bf16.msra.mxu0 0
    %3175 = vmatprep.subr.bf16.mxu0 0
    %3176 = vmatpush2.bf16.msra.mxu0 0
    %3177 = vmatprep.subr.bf16.mxu0 0
    %3178 = vmatpush2.bf16.msra.mxu0 0
    %3179 = vmatprep.subr.bf16.mxu0 0
    %3180 = vmatpush2.bf16.msra.mxu0 0
    %3181 = vmatprep.subr.bf16.mxu0 0
    %3182 = vmatpush2.bf16.msra.mxu0 0
    %3183 = vmatprep.subr.bf16.mxu0 0
    %3184 = vmatpush2.bf16.msra.mxu0 0
    %3185 = vmatprep.subr.bf16.mxu0 0
    %3186 = vmatpush2.bf16.msra.mxu0 0
    %3187 = vmatprep.subr.bf16.mxu0 0
    %3188 = vmatpush2.bf16.msra.mxu0 0
    %3189 = vmatprep.mubr.bf16.mxu0 0
    %3190 = vmatmul.mubr.bf16.gmra.mxu0 %v3152
    %v3191 = vpop.f32.mrf.mxu0
    %v3192 = vadd.f32 0.0, %v3191
    %v3193 = vpop.f32.mrf.mxu0
    %v3194 = vpop.f32.mrf.mxu0
    %v3195 = vadd.f32 0.0, %v3194
    %v3196 = vpop.f32.mrf.mxu0
    %3197 = vmatprep.mubr.bf16.mxu0 0
    %3198 = vmatmul.mubr.bf16.gmra.mxu0 %v3155
    %v3199 = vpop.f32.mrf.mxu0
    %v3200 = vadd.f32 0.0, %v3199
    %v3201 = vpop.f32.mrf.mxu0
    %v3202 = vpop.f32.mrf.mxu0
    %v3203 = vadd.f32 0.0, %v3202
    %v3204 = vpop.f32.mrf.mxu0
    %3205 = vdwg.mxu0
    %3206 = vrot.lane.b32.xlu0 %v1549, 64
    %v3207 = vpop.permute.xlu0 %3206
    %3208 = vrot.lane.b32.xlu0 %v1550, 64
    %v3209 = vpop.permute.xlu0 %3208
    %v3213 = vsel %vm1080, %v3021, 0
    %v3216 = vsel %vm1080, %v3022, 0
    %3218 = vmatprep.subr.bf16.mxu0 0
    %3219 = vmatpush1.bf16.msra.mxu0 0
    %3220 = vmatprep.subr.bf16.mxu0 0
    %3221 = vmatpush1.bf16.msra.mxu0 0
    %3222 = vmatprep.subr.bf16.mxu0 0
    %3223 = vmatpush1.bf16.msra.mxu0 0
    %3224 = vmatprep.subr.bf16.mxu0 0
    %3225 = vmatpush1.bf16.msra.mxu0 0
    %3226 = vmatprep.subr.bf16.mxu0 0
    %3227 = vmatpush1.bf16.msra.mxu0 0
    %3228 = vmatprep.subr.bf16.mxu0 0
    %3229 = vmatpush1.bf16.msra.mxu0 0
    %3230 = vmatprep.subr.bf16.mxu0 0
    %3231 = vmatpush1.bf16.msra.mxu0 %v3209
    %3232 = vmatprep.subr.bf16.mxu0 0
    %3233 = vmatpush1.bf16.msra.mxu0 %v3207
    %3234 = vmatprep.subr.bf16.mxu0 0
    %3235 = vmatpush2.bf16.msra.mxu0 0
    %3236 = vmatprep.subr.bf16.mxu0 0
    %3237 = vmatpush2.bf16.msra.mxu0 0
    %3238 = vmatprep.subr.bf16.mxu0 0
    %3239 = vmatpush2.bf16.msra.mxu0 0
    %3240 = vmatprep.subr.bf16.mxu0 0
    %3241 = vmatpush2.bf16.msra.mxu0 0
    %3242 = vmatprep.subr.bf16.mxu0 0
    %3243 = vmatpush2.bf16.msra.mxu0 0
    %3244 = vmatprep.subr.bf16.mxu0 0
    %3245 = vmatpush2.bf16.msra.mxu0 0
    %3246 = vmatprep.subr.bf16.mxu0 0
    %3247 = vmatpush2.bf16.msra.mxu0 0
    %3248 = vmatprep.subr.bf16.mxu0 0
    %3249 = vmatpush2.bf16.msra.mxu0 0
    %3250 = vmatprep.mubr.bf16.mxu0 0
    %3251 = vmatmul.mubr.bf16.gmra.mxu0 %v3213
    %v3252 = vpop.f32.mrf.mxu0
    %v3253 = vadd.f32 0.0, %v3252
    %v3254 = vpop.f32.mrf.mxu0
    %v3255 = vpop.f32.mrf.mxu0
    %v3256 = vadd.f32 0.0, %v3255
    %v3257 = vpop.f32.mrf.mxu0
    %3258 = vmatprep.mubr.bf16.mxu0 0
    %3259 = vmatmul.mubr.bf16.gmra.mxu0 %v3216
    %v3260 = vpop.f32.mrf.mxu0
    %v3261 = vadd.f32 0.0, %v3260
    %v3262 = vpop.f32.mrf.mxu0
    %v3263 = vpop.f32.mrf.mxu0
    %v3264 = vadd.f32 0.0, %v3263
    %v3265 = vpop.f32.mrf.mxu0
    %3266 = vdwg.mxu0
    %3267 = vrot.lane.b32.xlu0 %v1064, 32
    %v3268 = vpop.permute.xlu0 %3267
    %3269 = vrot.lane.b32.xlu0 %v1065, 32
    %v3270 = vpop.permute.xlu0 %3269
    %3271 = vrot.lane.b32.xlu0 %v1072, 32
    %v3272 = vpop.permute.xlu0 %3271
    %3273 = vrot.lane.b32.xlu0 %v1073, 32
    %v3274 = vpop.permute.xlu0 %3273
    %v3276 = vsel %vm1080, %v3268, 0
    %v3279 = vsel %vm1080, %v3270, 0
    %v3282 = vsel %vm1080, %v3272, 0
    %v3285 = vsel %vm1080, %v3274, 0
    %3287 = vmatprep.subr.bf16.mxu0 0
    %3288 = vmatpush1.bf16.xpose.msra.mxu0 0
    %3289 = vmatprep.subr.bf16.mxu0 0
    %3290 = vmatpush1.bf16.xpose.msra.mxu0 0
    %3291 = vmatprep.subr.bf16.mxu0 0
    %3292 = vmatpush1.bf16.xpose.msra.mxu0 0
    %3293 = vmatprep.subr.bf16.mxu0 0
    %3294 = vmatpush1.bf16.xpose.msra.mxu0 0
    %3295 = vmatprep.subr.bf16.mxu0 0
    %3296 = vmatpush1.bf16.xpose.msra.mxu0 0
    %3297 = vmatprep.subr.bf16.mxu0 0
    %3298 = vmatpush1.bf16.xpose.msra.mxu0 0
    %3299 = vmatprep.subr.bf16.mxu0 0
    %3300 = vmatpush1.bf16.xpose.msra.mxu0 %v3285
    %3301 = vmatprep.subr.bf16.mxu0 0
    %3302 = vmatpush1.bf16.xpose.msra.mxu0 %v3282
    %3303 = vmatprep.subr.bf16.mxu0 0
    %3304 = vmatpush2.bf16.xpose.msra.mxu0 0
    %3305 = vmatprep.subr.bf16.mxu0 0
    %3306 = vmatpush2.bf16.xpose.msra.mxu0 0
    %3307 = vmatprep.subr.bf16.mxu0 0
    %3308 = vmatpush2.bf16.xpose.msra.mxu0 0
    %3309 = vmatprep.subr.bf16.mxu0 0
    %3310 = vmatpush2.bf16.xpose.msra.mxu0 0
    %3311 = vmatprep.subr.bf16.mxu0 0
    %3312 = vmatpush2.bf16.xpose.msra.mxu0 0
    %3313 = vmatprep.subr.bf16.mxu0 0
    %3314 = vmatpush2.bf16.xpose.msra.mxu0 0
    %3315 = vmatprep.subr.bf16.mxu0 0
    %3316 = vmatpush2.bf16.xpose.msra.mxu0 0
    %3317 = vmatprep.subr.bf16.mxu0 0
    %3318 = vmatpush2.bf16.xpose.msra.mxu0 0
    %3319 = vmatprep.mubr.bf16.mxu0 0
    %3320 = vmatmul.mubr.bf16.gmra.mxu0 %v3276
    %v3321 = vpop.f32.mrf.mxu0
    %v3322 = vadd.f32 0.0, %v3321
    %v3323 = vpop.f32.mrf.mxu0
    %v3324 = vpop.f32.mrf.mxu0
    %v3325 = vadd.f32 0.0, %v3324
    %v3326 = vpop.f32.mrf.mxu0
    %3327 = vmatprep.mubr.bf16.mxu0 0
    %3328 = vmatmul.mubr.bf16.gmra.mxu0 %v3279
    %v3329 = vpop.f32.mrf.mxu0
    %v3330 = vadd.f32 0.0, %v3329
    %v3331 = vpop.f32.mrf.mxu0
    %v3332 = vpop.f32.mrf.mxu0
    %v3333 = vadd.f32 0.0, %v3332
    %v3334 = vpop.f32.mrf.mxu0
    %3335 = vdwg.mxu0
    %3336 = vrot.lane.b32.xlu0 %v1066, 32
    %v3337 = vpop.permute.xlu0 %3336
    %3338 = vrot.lane.b32.xlu0 %v1067, 32
    %v3339 = vpop.permute.xlu0 %3338
    %3340 = vrot.lane.b32.xlu0 %v1074, 32
    %v3341 = vpop.permute.xlu0 %3340
    %3342 = vrot.lane.b32.xlu0 %v1075, 32
    %v3343 = vpop.permute.xlu0 %3342
    %v3345 = vsel %vm1080, %v3337, 0
    %v3348 = vsel %vm1080, %v3339, 0
    %v3351 = vsel %vm1080, %v3341, 0
    %v3354 = vsel %vm1080, %v3343, 0
    %3356 = vmatprep.subr.bf16.mxu0 0
    %3357 = vmatpush1.bf16.xpose.msra.mxu0 0
    %3358 = vmatprep.subr.bf16.mxu0 0
    %3359 = vmatpush1.bf16.xpose.msra.mxu0 0
    %3360 = vmatprep.subr.bf16.mxu0 0
    %3361 = vmatpush1.bf16.xpose.msra.mxu0 0
    %3362 = vmatprep.subr.bf16.mxu0 0
    %3363 = vmatpush1.bf16.xpose.msra.mxu0 0
    %3364 = vmatprep.subr.bf16.mxu0 0
    %3365 = vmatpush1.bf16.xpose.msra.mxu0 0
    %3366 = vmatprep.subr.bf16.mxu0 0
    %3367 = vmatpush1.bf16.xpose.msra.mxu0 0
    %3368 = vmatprep.subr.bf16.mxu0 0
    %3369 = vmatpush1.bf16.xpose.msra.mxu0 %v3354
    %3370 = vmatprep.subr.bf16.mxu0 0
    %3371 = vmatpush1.bf16.xpose.msra.mxu0 %v3351
    %3372 = vmatprep.subr.bf16.mxu0 0
    %3373 = vmatpush2.bf16.xpose.msra.mxu0 0
    %3374 = vmatprep.subr.bf16.mxu0 0
    %3375 = vmatpush2.bf16.xpose.msra.mxu0 0
    %3376 = vmatprep.subr.bf16.mxu0 0
    %3377 = vmatpush2.bf16.xpose.msra.mxu0 0
    %3378 = vmatprep.subr.bf16.mxu0 0
    %3379 = vmatpush2.bf16.xpose.msra.mxu0 0
    %3380 = vmatprep.subr.bf16.mxu0 0
    %3381 = vmatpush2.bf16.xpose.msra.mxu0 0
    %3382 = vmatprep.subr.bf16.mxu0 0
    %3383 = vmatpush2.bf16.xpose.msra.mxu0 0
    %3384 = vmatprep.subr.bf16.mxu0 0
    %3385 = vmatpush2.bf16.xpose.msra.mxu0 0
    %3386 = vmatprep.subr.bf16.mxu0 0
    %3387 = vmatpush2.bf16.xpose.msra.mxu0 0
    %3388 = vmatprep.mubr.bf16.mxu0 0
    %3389 = vmatmul.mubr.bf16.gmra.mxu0 %v3345
    %v3390 = vpop.f32.mrf.mxu0
    %v3391 = vadd.f32 0.0, %v3390
    %v3392 = vpop.f32.mrf.mxu0
    %v3393 = vpop.f32.mrf.mxu0
    %v3394 = vadd.f32 0.0, %v3393
    %v3395 = vpop.f32.mrf.mxu0
    %3396 = vmatprep.mubr.bf16.mxu0 0
    %3397 = vmatmul.mubr.bf16.gmra.mxu0 %v3348
    %v3398 = vpop.f32.mrf.mxu0
    %v3399 = vadd.f32 0.0, %v3398
    %v3400 = vpop.f32.mrf.mxu0
    %v3401 = vpop.f32.mrf.mxu0
    %v3402 = vadd.f32 0.0, %v3401
    %v3403 = vpop.f32.mrf.mxu0
    %3404 = vdwg.mxu0
    %3405 = vrot.lane.b32.xlu0 %v1068, 32
    %v3406 = vpop.permute.xlu0 %3405
    %3407 = vrot.lane.b32.xlu0 %v1069, 32
    %v3408 = vpop.permute.xlu0 %3407
    %3409 = vrot.lane.b32.xlu0 %v1076, 32
    %v3410 = vpop.permute.xlu0 %3409
    %3411 = vrot.lane.b32.xlu0 %v1077, 32
    %v3412 = vpop.permute.xlu0 %3411
    %v3414 = vsel %vm1080, %v3406, 0
    %v3417 = vsel %vm1080, %v3408, 0
    %v3420 = vsel %vm1080, %v3410, 0
    %v3423 = vsel %vm1080, %v3412, 0
    %3425 = vmatprep.subr.bf16.mxu0 0
    %3426 = vmatpush1.bf16.xpose.msra.mxu0 0
    %3427 = vmatprep.subr.bf16.mxu0 0
    %3428 = vmatpush1.bf16.xpose.msra.mxu0 0
    %3429 = vmatprep.subr.bf16.mxu0 0
    %3430 = vmatpush1.bf16.xpose.msra.mxu0 0
    %3431 = vmatprep.subr.bf16.mxu0 0
    %3432 = vmatpush1.bf16.xpose.msra.mxu0 0
    %3433 = vmatprep.subr.bf16.mxu0 0
    %3434 = vmatpush1.bf16.xpose.msra.mxu0 0
    %3435 = vmatprep.subr.bf16.mxu0 0
    %3436 = vmatpush1.bf16.xpose.msra.mxu0 0
    %3437 = vmatprep.subr.bf16.mxu0 0
    %3438 = vmatpush1.bf16.xpose.msra.mxu0 %v3423
    %3439 = vmatprep.subr.bf16.mxu0 0
    %3440 = vmatpush1.bf16.xpose.msra.mxu0 %v3420
    %3441 = vmatprep.subr.bf16.mxu0 0
    %3442 = vmatpush2.bf16.xpose.msra.mxu0 0
    %3443 = vmatprep.subr.bf16.mxu0 0
    %3444 = vmatpush2.bf16.xpose.msra.mxu0 0
    %3445 = vmatprep.subr.bf16.mxu0 0
    %3446 = vmatpush2.bf16.xpose.msra.mxu0 0
    %3447 = vmatprep.subr.bf16.mxu0 0
    %3448 = vmatpush2.bf16.xpose.msra.mxu0 0
    %3449 = vmatprep.subr.bf16.mxu0 0
    %3450 = vmatpush2.bf16.xpose.msra.mxu0 0
    %3451 = vmatprep.subr.bf16.mxu0 0
    %3452 = vmatpush2.bf16.xpose.msra.mxu0 0
    %3453 = vmatprep.subr.bf16.mxu0 0
    %3454 = vmatpush2.bf16.xpose.msra.mxu0 0
    %3455 = vmatprep.subr.bf16.mxu0 0
    %3456 = vmatpush2.bf16.xpose.msra.mxu0 0
    %3457 = vmatprep.mubr.bf16.mxu0 0
    %3458 = vmatmul.mubr.bf16.gmra.mxu0 %v3414
    %v3459 = vpop.f32.mrf.mxu0
    %v3460 = vadd.f32 0.0, %v3459
    %v3461 = vpop.f32.mrf.mxu0
    %v3462 = vpop.f32.mrf.mxu0
    %v3463 = vadd.f32 0.0, %v3462
    %v3464 = vpop.f32.mrf.mxu0
    %3465 = vmatprep.mubr.bf16.mxu0 0
    %3466 = vmatmul.mubr.bf16.gmra.mxu0 %v3417
    %v3467 = vpop.f32.mrf.mxu0
    %v3468 = vadd.f32 0.0, %v3467
    %v3469 = vpop.f32.mrf.mxu0
    %v3470 = vpop.f32.mrf.mxu0
    %v3471 = vadd.f32 0.0, %v3470
    %v3472 = vpop.f32.mrf.mxu0
    %3473 = vdwg.mxu0
    %3474 = vrot.lane.b32.xlu0 %v1070, 32
    %v3475 = vpop.permute.xlu0 %3474
    %3476 = vrot.lane.b32.xlu0 %v1071, 32
    %v3477 = vpop.permute.xlu0 %3476
    %3478 = vrot.lane.b32.xlu0 %v1078, 32
    %v3479 = vpop.permute.xlu0 %3478
    %3480 = vrot.lane.b32.xlu0 %v1079, 32
    %v3481 = vpop.permute.xlu0 %3480
    %v3483 = vsel %vm1080, %v3475, 0
    %v3486 = vsel %vm1080, %v3477, 0
    %v3489 = vsel %vm1080, %v3479, 0
    %v3492 = vsel %vm1080, %v3481, 0
    %3494 = vmatprep.subr.bf16.mxu0 0
    %3495 = vmatpush1.bf16.xpose.msra.mxu0 0
    %3496 = vmatprep.subr.bf16.mxu0 0
    %3497 = vmatpush1.bf16.xpose.msra.mxu0 0
    %3498 = vmatprep.subr.bf16.mxu0 0
    %3499 = vmatpush1.bf16.xpose.msra.mxu0 0
    %3500 = vmatprep.subr.bf16.mxu0 0
    %3501 = vmatpush1.bf16.xpose.msra.mxu0 0
    %3502 = vmatprep.subr.bf16.mxu0 0
    %3503 = vmatpush1.bf16.xpose.msra.mxu0 0
    %3504 = vmatprep.subr.bf16.mxu0 0
    %3505 = vmatpush1.bf16.xpose.msra.mxu0 0
    %3506 = vmatprep.subr.bf16.mxu0 0
    %3507 = vmatpush1.bf16.xpose.msra.mxu0 %v3492
    %3508 = vmatprep.subr.bf16.mxu0 0
    %3509 = vmatpush1.bf16.xpose.msra.mxu0 %v3489
    %3510 = vmatprep.subr.bf16.mxu0 0
    %3511 = vmatpush2.bf16.xpose.msra.mxu0 0
    %3512 = vmatprep.subr.bf16.mxu0 0
    %3513 = vmatpush2.bf16.xpose.msra.mxu0 0
    %3514 = vmatprep.subr.bf16.mxu0 0
    %3515 = vmatpush2.bf16.xpose.msra.mxu0 0
    %3516 = vmatprep.subr.bf16.mxu0 0
    %3517 = vmatpush2.bf16.xpose.msra.mxu0 0
    %3518 = vmatprep.subr.bf16.mxu0 0
    %3519 = vmatpush2.bf16.xpose.msra.mxu0 0
    %3520 = vmatprep.subr.bf16.mxu0 0
    %3521 = vmatpush2.bf16.xpose.msra.mxu0 0
    %3522 = vmatprep.subr.bf16.mxu0 0
    %3523 = vmatpush2.bf16.xpose.msra.mxu0 0
    %3524 = vmatprep.subr.bf16.mxu0 0
    %3525 = vmatpush2.bf16.xpose.msra.mxu0 0
    %3526 = vmatprep.mubr.bf16.mxu0 0
    %3527 = vmatmul.mubr.bf16.gmra.mxu0 %v3483
    %v3528 = vpop.f32.mrf.mxu0
    %v3529 = vadd.f32 0.0, %v3528
    %v3530 = vpop.f32.mrf.mxu0
    %v3531 = vpop.f32.mrf.mxu0
    %v3532 = vadd.f32 0.0, %v3531
    %v3533 = vpop.f32.mrf.mxu0
    %3534 = vmatprep.mubr.bf16.mxu0 0
    %3535 = vmatmul.mubr.bf16.gmra.mxu0 %v3486
    %v3536 = vpop.f32.mrf.mxu0
    %v3537 = vadd.f32 0.0, %v3536
    %v3538 = vpop.f32.mrf.mxu0
    %v3539 = vpop.f32.mrf.mxu0
    %v3540 = vadd.f32 0.0, %v3539
    %v3541 = vpop.f32.mrf.mxu0
    %3542 = vdwg.mxu0
    %v3543 = vmul.f32 %v3322, 0.17677669
    %v3544 = vmul.f32 %v3325, 0.17677669
    %v3545 = vmul.f32 %v3330, 0.17677669
    %v3546 = vmul.f32 %v3333, 0.17677669
    %v3547 = vmul.f32 %v3391, 0.17677669
    %v3548 = vmul.f32 %v3394, 0.17677669
    %v3549 = vmul.f32 %v3399, 0.17677669
    %v3550 = vmul.f32 %v3402, 0.17677669
    %v3551 = vmul.f32 %v3460, 0.17677669
    %v3552 = vmul.f32 %v3463, 0.17677669
    %v3553 = vmul.f32 %v3468, 0.17677669
    %v3554 = vmul.f32 %v3471, 0.17677669
    %v3555 = vmul.f32 %v3529, 0.17677669
    %v3556 = vmul.f32 %v3532, 0.17677669
    %v3557 = vmul.f32 %v3537, 0.17677669
    %v3558 = vmul.f32 %v3540, 0.17677669
    %v3559 = vsel %vm1342, %v3543, -1e+30
    %v3560 = vsel %vm1342, %v3544, -1e+30
    %v3561 = vsel %vm1342, %v3545, -1e+30
    %v3562 = vsel %vm1342, %v3546, -1e+30
    %v3563 = vsel %vm1342, %v3547, -1e+30
    %v3564 = vsel %vm1342, %v3548, -1e+30
    %v3565 = vsel %vm1342, %v3549, -1e+30
    %v3566 = vsel %vm1342, %v3550, -1e+30
    %v3567 = vsel %vm1342, %v3551, -1e+30
    %v3568 = vsel %vm1342, %v3552, -1e+30
    %v3569 = vsel %vm1342, %v3553, -1e+30
    %v3570 = vsel %vm1342, %v3554, -1e+30
    %v3571 = vsel %vm1342, %v3555, -1e+30
    %v3572 = vsel %vm1342, %v3556, -1e+30
    %v3573 = vsel %vm1342, %v3557, -1e+30
    %v3574 = vsel %vm1342, %v3558, -1e+30
    %v3575 = vsel %vm1080, %v3559, -inf
    %3576 = vmax.xlane.f32.xlu0 %v3575
    %v3577 = vpop.xlane.xlu0 %3576
    %v3578 = vsel %vm1080, %v3560, -inf
    %3579 = vmax.xlane.f32.xlu0 %v3578
    %v3580 = vpop.xlane.xlu0 %3579
    %v3581 = vsel %vm1080, %v3561, -inf
    %3582 = vmax.xlane.f32.xlu0 %v3581
    %v3583 = vpop.xlane.xlu0 %3582
    %v3584 = vsel %vm1080, %v3562, -inf
    %3585 = vmax.xlane.f32.xlu0 %v3584
    %v3586 = vpop.xlane.xlu0 %3585
    %v3587 = vsel %vm1080, %v3563, -inf
    %3588 = vmax.xlane.f32.xlu0 %v3587
    %v3589 = vpop.xlane.xlu0 %3588
    %v3590 = vsel %vm1080, %v3564, -inf
    %3591 = vmax.xlane.f32.xlu0 %v3590
    %v3592 = vpop.xlane.xlu0 %3591
    %v3593 = vsel %vm1080, %v3565, -inf
    %3594 = vmax.xlane.f32.xlu0 %v3593
    %v3595 = vpop.xlane.xlu0 %3594
    %v3596 = vsel %vm1080, %v3566, -inf
    %3597 = vmax.xlane.f32.xlu0 %v3596
    %v3598 = vpop.xlane.xlu0 %3597
    %v3599 = vsel %vm1080, %v3567, -inf
    %3600 = vmax.xlane.f32.xlu0 %v3599
    %v3601 = vpop.xlane.xlu0 %3600
    %v3602 = vsel %vm1080, %v3568, -inf
    %3603 = vmax.xlane.f32.xlu0 %v3602
    %v3604 = vpop.xlane.xlu0 %3603
    %v3605 = vsel %vm1080, %v3569, -inf
    %3606 = vmax.xlane.f32.xlu0 %v3605
    %v3607 = vpop.xlane.xlu0 %3606
    %v3608 = vsel %vm1080, %v3570, -inf
    %3609 = vmax.xlane.f32.xlu0 %v3608
    %v3610 = vpop.xlane.xlu0 %3609
    %v3611 = vsel %vm1080, %v3571, -inf
    %3612 = vmax.xlane.f32.xlu0 %v3611
    %v3613 = vpop.xlane.xlu0 %3612
    %v3614 = vsel %vm1080, %v3572, -inf
    %3615 = vmax.xlane.f32.xlu0 %v3614
    %v3616 = vpop.xlane.xlu0 %3615
    %v3617 = vsel %vm1080, %v3573, -inf
    %3618 = vmax.xlane.f32.xlu0 %v3617
    %v3619 = vpop.xlane.xlu0 %3618
    %v3620 = vsel %vm1080, %v3574, -inf
    %3621 = vmax.xlane.f32.xlu0 %v3620
    %v3622 = vpop.xlane.xlu0 %3621
    %v3623 = vsub.f32 %v3559, %v3577
    %v3624 = vsub.f32 %v3560, %v3580
    %v3625 = vsub.f32 %v3561, %v3583
    %v3626 = vsub.f32 %v3562, %v3586
    %v3627 = vsub.f32 %v3563, %v3589
    %v3628 = vsub.f32 %v3564, %v3592
    %v3629 = vsub.f32 %v3565, %v3595
    %v3630 = vsub.f32 %v3566, %v3598
    %v3631 = vsub.f32 %v3567, %v3601
    %v3632 = vsub.f32 %v3568, %v3604
    %v3633 = vsub.f32 %v3569, %v3607
    %v3634 = vsub.f32 %v3570, %v3610
    %v3635 = vsub.f32 %v3571, %v3613
    %v3636 = vsub.f32 %v3572, %v3616
    %v3637 = vsub.f32 %v3573, %v3619
    %v3638 = vsub.f32 %v3574, %v3622
    %v3639 = vmul.f32 %v3623, 1.442695
    %v3640 = vpow.pop %v3639
    %v3641 = vmul.f32 %v3624, 1.442695
    %v3642 = vpow.pop %v3641
    %v3643 = vmul.f32 %v3625, 1.442695
    %v3644 = vpow.pop %v3643
    %v3645 = vmul.f32 %v3626, 1.442695
    %v3646 = vpow.pop %v3645
    %v3647 = vmul.f32 %v3627, 1.442695
    %v3648 = vpow.pop %v3647
    %v3649 = vmul.f32 %v3628, 1.442695
    %v3650 = vpow.pop %v3649
    %v3651 = vmul.f32 %v3629, 1.442695
    %v3652 = vpow.pop %v3651
    %v3653 = vmul.f32 %v3630, 1.442695
    %v3654 = vpow.pop %v3653
    %v3655 = vmul.f32 %v3631, 1.442695
    %v3656 = vpow.pop %v3655
    %v3657 = vmul.f32 %v3632, 1.442695
    %v3658 = vpow.pop %v3657
    %v3659 = vmul.f32 %v3633, 1.442695
    %v3660 = vpow.pop %v3659
    %v3661 = vmul.f32 %v3634, 1.442695
    %v3662 = vpow.pop %v3661
    %v3663 = vmul.f32 %v3635, 1.442695
    %v3664 = vpow.pop %v3663
    %v3665 = vmul.f32 %v3636, 1.442695
    %v3666 = vpow.pop %v3665
    %v3667 = vmul.f32 %v3637, 1.442695
    %v3668 = vpow.pop %v3667
    %v3669 = vmul.f32 %v3638, 1.442695
    %v3670 = vpow.pop %v3669
    %v3671 = vsel %vm1080, %v3640, 0.0
    %3672 = vadd.xlane.f32.xlu0 %v3671
    %v3673 = vpop.xlane.xlu0 %3672
    %v3674 = vsel %vm1080, %v3642, 0.0
    %3675 = vadd.xlane.f32.xlu0 %v3674
    %v3676 = vpop.xlane.xlu0 %3675
    %v3677 = vsel %vm1080, %v3644, 0.0
    %3678 = vadd.xlane.f32.xlu0 %v3677
    %v3679 = vpop.xlane.xlu0 %3678
    %v3680 = vsel %vm1080, %v3646, 0.0
    %3681 = vadd.xlane.f32.xlu0 %v3680
    %v3682 = vpop.xlane.xlu0 %3681
    %v3683 = vsel %vm1080, %v3648, 0.0
    %3684 = vadd.xlane.f32.xlu0 %v3683
    %v3685 = vpop.xlane.xlu0 %3684
    %v3686 = vsel %vm1080, %v3650, 0.0
    %3687 = vadd.xlane.f32.xlu0 %v3686
    %v3688 = vpop.xlane.xlu0 %3687
    %v3689 = vsel %vm1080, %v3652, 0.0
    %3690 = vadd.xlane.f32.xlu0 %v3689
    %v3691 = vpop.xlane.xlu0 %3690
    %v3692 = vsel %vm1080, %v3654, 0.0
    %3693 = vadd.xlane.f32.xlu0 %v3692
    %v3694 = vpop.xlane.xlu0 %3693
    %v3695 = vsel %vm1080, %v3656, 0.0
    %3696 = vadd.xlane.f32.xlu0 %v3695
    %v3697 = vpop.xlane.xlu0 %3696
    %v3698 = vsel %vm1080, %v3658, 0.0
    %3699 = vadd.xlane.f32.xlu0 %v3698
    %v3700 = vpop.xlane.xlu0 %3699
    %v3701 = vsel %vm1080, %v3660, 0.0
    %3702 = vadd.xlane.f32.xlu0 %v3701
    %v3703 = vpop.xlane.xlu0 %3702
    %v3704 = vsel %vm1080, %v3662, 0.0
    %3705 = vadd.xlane.f32.xlu0 %v3704
    %v3706 = vpop.xlane.xlu0 %3705
    %v3707 = vsel %vm1080, %v3664, 0.0
    %3708 = vadd.xlane.f32.xlu0 %v3707
    %v3709 = vpop.xlane.xlu0 %3708
    %v3710 = vsel %vm1080, %v3666, 0.0
    %3711 = vadd.xlane.f32.xlu0 %v3710
    %v3712 = vpop.xlane.xlu0 %3711
    %v3713 = vsel %vm1080, %v3668, 0.0
    %3714 = vadd.xlane.f32.xlu0 %v3713
    %v3715 = vpop.xlane.xlu0 %3714
    %v3716 = vsel %vm1080, %v3670, 0.0
    %3717 = vadd.xlane.f32.xlu0 %v3716
    %v3718 = vpop.xlane.xlu0 %3717
    %v3719 = vrcp.pop %v3673
    %v3720 = vmul.f32 %v3640, %v3719
    %v3721 = vrcp.pop %v3676
    %v3722 = vmul.f32 %v3642, %v3721
    %v3723 = vrcp.pop %v3679
    %v3724 = vmul.f32 %v3644, %v3723
    %v3725 = vrcp.pop %v3682
    %v3726 = vmul.f32 %v3646, %v3725
    %v3727 = vrcp.pop %v3685
    %v3728 = vmul.f32 %v3648, %v3727
    %v3729 = vrcp.pop %v3688
    %v3730 = vmul.f32 %v3650, %v3729
    %v3731 = vrcp.pop %v3691
    %v3732 = vmul.f32 %v3652, %v3731
    %v3733 = vrcp.pop %v3694
    %v3734 = vmul.f32 %v3654, %v3733
    %v3735 = vrcp.pop %v3697
    %v3736 = vmul.f32 %v3656, %v3735
    %v3737 = vrcp.pop %v3700
    %v3738 = vmul.f32 %v3658, %v3737
    %v3739 = vrcp.pop %v3703
    %v3740 = vmul.f32 %v3660, %v3739
    %v3741 = vrcp.pop %v3706
    %v3742 = vmul.f32 %v3662, %v3741
    %v3743 = vrcp.pop %v3709
    %v3744 = vmul.f32 %v3664, %v3743
    %v3745 = vrcp.pop %v3712
    %v3746 = vmul.f32 %v3666, %v3745
    %v3747 = vrcp.pop %v3715
    %v3748 = vmul.f32 %v3668, %v3747
    %v3749 = vrcp.pop %v3718
    %v3750 = vmul.f32 %v3670, %v3749
    %v3751 = vpack.c.bf16 %v3722, %v3720
    %v3752 = vpack.c.bf16 %v3726, %v3724
    %v3753 = vpack.c.bf16 %v3730, %v3728
    %v3754 = vpack.c.bf16 %v3734, %v3732
    %v3755 = vpack.c.bf16 %v3738, %v3736
    %v3756 = vpack.c.bf16 %v3742, %v3740
    %v3757 = vpack.c.bf16 %v3746, %v3744
    %v3758 = vpack.c.bf16 %v3750, %v3748
    %3759 = vrot.lane.b32.xlu0 %v1543, 32
    %v3760 = vpop.permute.xlu0 %3759
    %3761 = vrot.lane.b32.xlu0 %v1544, 32
    %v3762 = vpop.permute.xlu0 %3761
    %v3766 = vsel %vm1080, %v3751, 0
    %v3769 = vsel %vm1080, %v3752, 0
    %3771 = vmatprep.subr.bf16.mxu0 0
    %3772 = vmatpush1.bf16.msra.mxu0 0
    %3773 = vmatprep.subr.bf16.mxu0 0
    %3774 = vmatpush1.bf16.msra.mxu0 0
    %3775 = vmatprep.subr.bf16.mxu0 0
    %3776 = vmatpush1.bf16.msra.mxu0 0
    %3777 = vmatprep.subr.bf16.mxu0 0
    %3778 = vmatpush1.bf16.msra.mxu0 0
    %3779 = vmatprep.subr.bf16.mxu0 0
    %3780 = vmatpush1.bf16.msra.mxu0 0
    %3781 = vmatprep.subr.bf16.mxu0 0
    %3782 = vmatpush1.bf16.msra.mxu0 0
    %3783 = vmatprep.subr.bf16.mxu0 0
    %3784 = vmatpush1.bf16.msra.mxu0 %v3762
    %3785 = vmatprep.subr.bf16.mxu0 0
    %3786 = vmatpush1.bf16.msra.mxu0 %v3760
    %3787 = vmatprep.subr.bf16.mxu0 0
    %3788 = vmatpush2.bf16.msra.mxu0 0
    %3789 = vmatprep.subr.bf16.mxu0 0
    %3790 = vmatpush2.bf16.msra.mxu0 0
    %3791 = vmatprep.subr.bf16.mxu0 0
    %3792 = vmatpush2.bf16.msra.mxu0 0
    %3793 = vmatprep.subr.bf16.mxu0 0
    %3794 = vmatpush2.bf16.msra.mxu0 0
    %3795 = vmatprep.subr.bf16.mxu0 0
    %3796 = vmatpush2.bf16.msra.mxu0 0
    %3797 = vmatprep.subr.bf16.mxu0 0
    %3798 = vmatpush2.bf16.msra.mxu0 0
    %3799 = vmatprep.subr.bf16.mxu0 0
    %3800 = vmatpush2.bf16.msra.mxu0 0
    %3801 = vmatprep.subr.bf16.mxu0 0
    %3802 = vmatpush2.bf16.msra.mxu0 0
    %3803 = vmatprep.mubr.bf16.mxu0 0
    %3804 = vmatmul.mubr.bf16.gmra.mxu0 %v3766
    %v3805 = vpop.f32.mrf.mxu0
    %v3806 = vadd.f32 0.0, %v3805
    %v3807 = vpop.f32.mrf.mxu0
    %v3808 = vpop.f32.mrf.mxu0
    %v3809 = vadd.f32 0.0, %v3808
    %v3810 = vpop.f32.mrf.mxu0
    %3811 = vmatprep.mubr.bf16.mxu0 0
    %3812 = vmatmul.mubr.bf16.gmra.mxu0 %v3769
    %v3813 = vpop.f32.mrf.mxu0
    %v3814 = vadd.f32 0.0, %v3813
    %v3815 = vpop.f32.mrf.mxu0
    %v3816 = vpop.f32.mrf.mxu0
    %v3817 = vadd.f32 0.0, %v3816
    %v3818 = vpop.f32.mrf.mxu0
    %3819 = vdwg.mxu0
    %3820 = vrot.lane.b32.xlu0 %v1545, 32
    %v3821 = vpop.permute.xlu0 %3820
    %3822 = vrot.lane.b32.xlu0 %v1546, 32
    %v3823 = vpop.permute.xlu0 %3822
    %v3827 = vsel %vm1080, %v3753, 0
    %v3830 = vsel %vm1080, %v3754, 0
    %3832 = vmatprep.subr.bf16.mxu0 0
    %3833 = vmatpush1.bf16.msra.mxu0 0
    %3834 = vmatprep.subr.bf16.mxu0 0
    %3835 = vmatpush1.bf16.msra.mxu0 0
    %3836 = vmatprep.subr.bf16.mxu0 0
    %3837 = vmatpush1.bf16.msra.mxu0 0
    %3838 = vmatprep.subr.bf16.mxu0 0
    %3839 = vmatpush1.bf16.msra.mxu0 0
    %3840 = vmatprep.subr.bf16.mxu0 0
    %3841 = vmatpush1.bf16.msra.mxu0 0
    %3842 = vmatprep.subr.bf16.mxu0 0
    %3843 = vmatpush1.bf16.msra.mxu0 0
    %3844 = vmatprep.subr.bf16.mxu0 0
    %3845 = vmatpush1.bf16.msra.mxu0 %v3823
    %3846 = vmatprep.subr.bf16.mxu0 0
    %3847 = vmatpush1.bf16.msra.mxu0 %v3821
    %3848 = vmatprep.subr.bf16.mxu0 0
    %3849 = vmatpush2.bf16.msra.mxu0 0
    %3850 = vmatprep.subr.bf16.mxu0 0
    %3851 = vmatpush2.bf16.msra.mxu0 0
    %3852 = vmatprep.subr.bf16.mxu0 0
    %3853 = vmatpush2.bf16.msra.mxu0 0
    %3854 = vmatprep.subr.bf16.mxu0 0
    %3855 = vmatpush2.bf16.msra.mxu0 0
    %3856 = vmatprep.subr.bf16.mxu0 0
    %3857 = vmatpush2.bf16.msra.mxu0 0
    %3858 = vmatprep.subr.bf16.mxu0 0
    %3859 = vmatpush2.bf16.msra.mxu0 0
    %3860 = vmatprep.subr.bf16.mxu0 0
    %3861 = vmatpush2.bf16.msra.mxu0 0
    %3862 = vmatprep.subr.bf16.mxu0 0
    %3863 = vmatpush2.bf16.msra.mxu0 0
    %3864 = vmatprep.mubr.bf16.mxu0 0
    %3865 = vmatmul.mubr.bf16.gmra.mxu0 %v3827
    %v3866 = vpop.f32.mrf.mxu0
    %v3867 = vadd.f32 0.0, %v3866
    %v3868 = vpop.f32.mrf.mxu0
    %v3869 = vpop.f32.mrf.mxu0
    %v3870 = vadd.f32 0.0, %v3869
    %v3871 = vpop.f32.mrf.mxu0
    %3872 = vmatprep.mubr.bf16.mxu0 0
    %3873 = vmatmul.mubr.bf16.gmra.mxu0 %v3830
    %v3874 = vpop.f32.mrf.mxu0
    %v3875 = vadd.f32 0.0, %v3874
    %v3876 = vpop.f32.mrf.mxu0
    %v3877 = vpop.f32.mrf.mxu0
    %v3878 = vadd.f32 0.0, %v3877
    %v3879 = vpop.f32.mrf.mxu0
    %3880 = vdwg.mxu0
    %3881 = vrot.lane.b32.xlu0 %v1547, 32
    %v3882 = vpop.permute.xlu0 %3881
    %3883 = vrot.lane.b32.xlu0 %v1548, 32
    %v3884 = vpop.permute.xlu0 %3883
    %v3888 = vsel %vm1080, %v3755, 0
    %v3891 = vsel %vm1080, %v3756, 0
    %3893 = vmatprep.subr.bf16.mxu0 0
    %3894 = vmatpush1.bf16.msra.mxu0 0
    %3895 = vmatprep.subr.bf16.mxu0 0
    %3896 = vmatpush1.bf16.msra.mxu0 0
    %3897 = vmatprep.subr.bf16.mxu0 0
    %3898 = vmatpush1.bf16.msra.mxu0 0
    %3899 = vmatprep.subr.bf16.mxu0 0
    %3900 = vmatpush1.bf16.msra.mxu0 0
    %3901 = vmatprep.subr.bf16.mxu0 0
    %3902 = vmatpush1.bf16.msra.mxu0 0
    %3903 = vmatprep.subr.bf16.mxu0 0
    %3904 = vmatpush1.bf16.msra.mxu0 0
    %3905 = vmatprep.subr.bf16.mxu0 0
    %3906 = vmatpush1.bf16.msra.mxu0 %v3884
    %3907 = vmatprep.subr.bf16.mxu0 0
    %3908 = vmatpush1.bf16.msra.mxu0 %v3882
    %3909 = vmatprep.subr.bf16.mxu0 0
    %3910 = vmatpush2.bf16.msra.mxu0 0
    %3911 = vmatprep.subr.bf16.mxu0 0
    %3912 = vmatpush2.bf16.msra.mxu0 0
    %3913 = vmatprep.subr.bf16.mxu0 0
    %3914 = vmatpush2.bf16.msra.mxu0 0
    %3915 = vmatprep.subr.bf16.mxu0 0
    %3916 = vmatpush2.bf16.msra.mxu0 0
    %3917 = vmatprep.subr.bf16.mxu0 0
    %3918 = vmatpush2.bf16.msra.mxu0 0
    %3919 = vmatprep.subr.bf16.mxu0 0
    %3920 = vmatpush2.bf16.msra.mxu0 0
    %3921 = vmatprep.subr.bf16.mxu0 0
    %3922 = vmatpush2.bf16.msra.mxu0 0
    %3923 = vmatprep.subr.bf16.mxu0 0
    %3924 = vmatpush2.bf16.msra.mxu0 0
    %3925 = vmatprep.mubr.bf16.mxu0 0
    %3926 = vmatmul.mubr.bf16.gmra.mxu0 %v3888
    %v3927 = vpop.f32.mrf.mxu0
    %v3928 = vadd.f32 0.0, %v3927
    %v3929 = vpop.f32.mrf.mxu0
    %v3930 = vpop.f32.mrf.mxu0
    %v3931 = vadd.f32 0.0, %v3930
    %v3932 = vpop.f32.mrf.mxu0
    %3933 = vmatprep.mubr.bf16.mxu0 0
    %3934 = vmatmul.mubr.bf16.gmra.mxu0 %v3891
    %v3935 = vpop.f32.mrf.mxu0
    %v3936 = vadd.f32 0.0, %v3935
    %v3937 = vpop.f32.mrf.mxu0
    %v3938 = vpop.f32.mrf.mxu0
    %v3939 = vadd.f32 0.0, %v3938
    %v3940 = vpop.f32.mrf.mxu0
    %3941 = vdwg.mxu0
    %3942 = vrot.lane.b32.xlu0 %v1549, 32
    %v3943 = vpop.permute.xlu0 %3942
    %3944 = vrot.lane.b32.xlu0 %v1550, 32
    %v3945 = vpop.permute.xlu0 %3944
    %v3949 = vsel %vm1080, %v3757, 0
    %v3952 = vsel %vm1080, %v3758, 0
    %3954 = vmatprep.subr.bf16.mxu0 0
    %3955 = vmatpush1.bf16.msra.mxu0 0
    %3956 = vmatprep.subr.bf16.mxu0 0
    %3957 = vmatpush1.bf16.msra.mxu0 0
    %3958 = vmatprep.subr.bf16.mxu0 0
    %3959 = vmatpush1.bf16.msra.mxu0 0
    %3960 = vmatprep.subr.bf16.mxu0 0
    %3961 = vmatpush1.bf16.msra.mxu0 0
    %3962 = vmatprep.subr.bf16.mxu0 0
    %3963 = vmatpush1.bf16.msra.mxu0 0
    %3964 = vmatprep.subr.bf16.mxu0 0
    %3965 = vmatpush1.bf16.msra.mxu0 0
    %3966 = vmatprep.subr.bf16.mxu0 0
    %3967 = vmatpush1.bf16.msra.mxu0 %v3945
    %3968 = vmatprep.subr.bf16.mxu0 0
    %3969 = vmatpush1.bf16.msra.mxu0 %v3943
    %3970 = vmatprep.subr.bf16.mxu0 0
    %3971 = vmatpush2.bf16.msra.mxu0 0
    %3972 = vmatprep.subr.bf16.mxu0 0
    %3973 = vmatpush2.bf16.msra.mxu0 0
    %3974 = vmatprep.subr.bf16.mxu0 0
    %3975 = vmatpush2.bf16.msra.mxu0 0
    %3976 = vmatprep.subr.bf16.mxu0 0
    %3977 = vmatpush2.bf16.msra.mxu0 0
    %3978 = vmatprep.subr.bf16.mxu0 0
    %3979 = vmatpush2.bf16.msra.mxu0 0
    %3980 = vmatprep.subr.bf16.mxu0 0
    %3981 = vmatpush2.bf16.msra.mxu0 0
    %3982 = vmatprep.subr.bf16.mxu0 0
    %3983 = vmatpush2.bf16.msra.mxu0 0
    %3984 = vmatprep.subr.bf16.mxu0 0
    %3985 = vmatpush2.bf16.msra.mxu0 0
    %3986 = vmatprep.mubr.bf16.mxu0 0
    %3987 = vmatmul.mubr.bf16.gmra.mxu0 %v3949
    %v3988 = vpop.f32.mrf.mxu0
    %v3989 = vadd.f32 0.0, %v3988
    %v3990 = vpop.f32.mrf.mxu0
    %v3991 = vpop.f32.mrf.mxu0
    %v3992 = vadd.f32 0.0, %v3991
    %v3993 = vpop.f32.mrf.mxu0
    %3994 = vmatprep.mubr.bf16.mxu0 0
    %3995 = vmatmul.mubr.bf16.gmra.mxu0 %v3952
    %v3996 = vpop.f32.mrf.mxu0
    %v3997 = vadd.f32 0.0, %v3996
    %v3998 = vpop.f32.mrf.mxu0
    %v3999 = vpop.f32.mrf.mxu0
    %v4000 = vadd.f32 0.0, %v3999
    %v4001 = vpop.f32.mrf.mxu0
    %4002 = vdwg.mxu0
    %4019 = vrot.lane.b32.xlu0 %v2328, 32
    %v4020 = vpop.permute.xlu0 %4019
    %4021 = vrot.lane.b32.xlu0 %v2331, 32
    %v4022 = vpop.permute.xlu0 %4021
    %4023 = vrot.lane.b32.xlu0 %v2336, 32
    %v4024 = vpop.permute.xlu0 %4023
    %4025 = vrot.lane.b32.xlu0 %v2339, 32
    %v4026 = vpop.permute.xlu0 %4025
    %4027 = vrot.lane.b32.xlu0 %v2391, 32
    %v4028 = vpop.permute.xlu0 %4027
    %4029 = vrot.lane.b32.xlu0 %v2394, 32
    %v4030 = vpop.permute.xlu0 %4029
    %4031 = vrot.lane.b32.xlu0 %v2399, 32
    %v4032 = vpop.permute.xlu0 %4031
    %4033 = vrot.lane.b32.xlu0 %v2402, 32
    %v4034 = vpop.permute.xlu0 %4033
    %4035 = vrot.lane.b32.xlu0 %v2454, 32
    %v4036 = vpop.permute.xlu0 %4035
    %4037 = vrot.lane.b32.xlu0 %v2457, 32
    %v4038 = vpop.permute.xlu0 %4037
    %4039 = vrot.lane.b32.xlu0 %v2462, 32
    %v4040 = vpop.permute.xlu0 %4039
    %4041 = vrot.lane.b32.xlu0 %v2465, 32
    %v4042 = vpop.permute.xlu0 %4041
    %4043 = vrot.lane.b32.xlu0 %v2517, 32
    %v4044 = vpop.permute.xlu0 %4043
    %4045 = vrot.lane.b32.xlu0 %v2520, 32
    %v4046 = vpop.permute.xlu0 %4045
    %4047 = vrot.lane.b32.xlu0 %v2525, 32
    %v4048 = vpop.permute.xlu0 %4047
    %4049 = vrot.lane.b32.xlu0 %v2528, 32
    %v4050 = vpop.permute.xlu0 %4049
    %4083 = vrot.lane.b32.xlu0 %v3070, 64
    %v4084 = vpop.permute.xlu0 %4083
    %4085 = vrot.lane.b32.xlu0 %v3073, 64
    %v4086 = vpop.permute.xlu0 %4085
    %4087 = vrot.lane.b32.xlu0 %v3078, 64
    %v4088 = vpop.permute.xlu0 %4087
    %4089 = vrot.lane.b32.xlu0 %v3081, 64
    %v4090 = vpop.permute.xlu0 %4089
    %4091 = vrot.lane.b32.xlu0 %v3131, 64
    %v4092 = vpop.permute.xlu0 %4091
    %4093 = vrot.lane.b32.xlu0 %v3134, 64
    %v4094 = vpop.permute.xlu0 %4093
    %4095 = vrot.lane.b32.xlu0 %v3139, 64
    %v4096 = vpop.permute.xlu0 %4095
    %4097 = vrot.lane.b32.xlu0 %v3142, 64
    %v4098 = vpop.permute.xlu0 %4097
    %4099 = vrot.lane.b32.xlu0 %v3192, 64
    %v4100 = vpop.permute.xlu0 %4099
    %4101 = vrot.lane.b32.xlu0 %v3195, 64
    %v4102 = vpop.permute.xlu0 %4101
    %4103 = vrot.lane.b32.xlu0 %v3200, 64
    %v4104 = vpop.permute.xlu0 %4103
    %4105 = vrot.lane.b32.xlu0 %v3203, 64
    %v4106 = vpop.permute.xlu0 %4105
    %4107 = vrot.lane.b32.xlu0 %v3253, 64
    %v4108 = vpop.permute.xlu0 %4107
    %4109 = vrot.lane.b32.xlu0 %v3256, 64
    %v4110 = vpop.permute.xlu0 %4109
    %4111 = vrot.lane.b32.xlu0 %v3261, 64
    %v4112 = vpop.permute.xlu0 %4111
    %4113 = vrot.lane.b32.xlu0 %v3264, 64
    %v4114 = vpop.permute.xlu0 %4113
    %4147 = vrot.lane.b32.xlu0 %v3806, 96
    %v4148 = vpop.permute.xlu0 %4147
    %4149 = vrot.lane.b32.xlu0 %v3809, 96
    %v4150 = vpop.permute.xlu0 %4149
    %4151 = vrot.lane.b32.xlu0 %v3814, 96
    %v4152 = vpop.permute.xlu0 %4151
    %4153 = vrot.lane.b32.xlu0 %v3817, 96
    %v4154 = vpop.permute.xlu0 %4153
    %4155 = vrot.lane.b32.xlu0 %v3867, 96
    %v4156 = vpop.permute.xlu0 %4155
    %4157 = vrot.lane.b32.xlu0 %v3870, 96
    %v4158 = vpop.permute.xlu0 %4157
    %4159 = vrot.lane.b32.xlu0 %v3875, 96
    %v4160 = vpop.permute.xlu0 %4159
    %4161 = vrot.lane.b32.xlu0 %v3878, 96
    %v4162 = vpop.permute.xlu0 %4161
    %4163 = vrot.lane.b32.xlu0 %v3928, 96
    %v4164 = vpop.permute.xlu0 %4163
    %4165 = vrot.lane.b32.xlu0 %v3931, 96
    %v4166 = vpop.permute.xlu0 %4165
    %4167 = vrot.lane.b32.xlu0 %v3936, 96
    %v4168 = vpop.permute.xlu0 %4167
    %4169 = vrot.lane.b32.xlu0 %v3939, 96
    %v4170 = vpop.permute.xlu0 %4169
    %4171 = vrot.lane.b32.xlu0 %v3989, 96
    %v4172 = vpop.permute.xlu0 %4171
    %4173 = vrot.lane.b32.xlu0 %v3992, 96
    %v4174 = vpop.permute.xlu0 %4173
    %4175 = vrot.lane.b32.xlu0 %v3997, 96
    %v4176 = vpop.permute.xlu0 %4175
    %4177 = vrot.lane.b32.xlu0 %v4000, 96
    %v4178 = vpop.permute.xlu0 %4177
    %v4195 = vsel %vm1080, %v1592, %v4020
    %v4196 = vsel %vm1080, %v1595, %v4022
    %v4197 = vsel %vm1080, %v1600, %v4024
    %v4198 = vsel %vm1080, %v1603, %v4026
    %v4199 = vsel %vm1080, %v1647, %v4028
    %v4200 = vsel %vm1080, %v1650, %v4030
    %v4201 = vsel %vm1080, %v1655, %v4032
    %v4202 = vsel %vm1080, %v1658, %v4034
    %v4203 = vsel %vm1080, %v1702, %v4036
    %v4204 = vsel %vm1080, %v1705, %v4038
    %v4205 = vsel %vm1080, %v1710, %v4040
    %v4206 = vsel %vm1080, %v1713, %v4042
    %v4207 = vsel %vm1080, %v1757, %v4044
    %v4208 = vsel %vm1080, %v1760, %v4046
    %v4209 = vsel %vm1080, %v1765, %v4048
    %v4210 = vsel %vm1080, %v1768, %v4050
    %vm4211 = vcmask 523264
    %v4212 = vsel %vm4211, %v4195, %v4084
    %v4213 = vsel %vm4211, %v4196, %v4086
    %v4214 = vsel %vm4211, %v4197, %v4088
    %v4215 = vsel %vm4211, %v4198, %v4090
    %v4216 = vsel %vm4211, %v4199, %v4092
    %v4217 = vsel %vm4211, %v4200, %v4094
    %v4218 = vsel %vm4211, %v4201, %v4096
    %v4219 = vsel %vm4211, %v4202, %v4098
    %v4220 = vsel %vm4211, %v4203, %v4100
    %v4221 = vsel %vm4211, %v4204, %v4102
    %v4222 = vsel %vm4211, %v4205, %v4104
    %v4223 = vsel %vm4211, %v4206, %v4106
    %v4224 = vsel %vm4211, %v4207, %v4108
    %v4225 = vsel %vm4211, %v4208, %v4110
    %v4226 = vsel %vm4211, %v4209, %v4112
    %v4227 = vsel %vm4211, %v4210, %v4114
    %vm4228 = vcmask 785408
    %v4229 = vsel %vm4228, %v4212, %v4148
    %v4230 = vsel %vm4228, %v4213, %v4150
    %v4231 = vsel %vm4228, %v4214, %v4152
    %v4232 = vsel %vm4228, %v4215, %v4154
    %v4233 = vsel %vm4228, %v4216, %v4156
    %v4234 = vsel %vm4228, %v4217, %v4158
    %v4235 = vsel %vm4228, %v4218, %v4160
    %v4236 = vsel %vm4228, %v4219, %v4162
    %v4237 = vsel %vm4228, %v4220, %v4164
    %v4238 = vsel %vm4228, %v4221, %v4166
    %v4239 = vsel %vm4228, %v4222, %v4168
    %v4240 = vsel %vm4228, %v4223, %v4170
    %v4241 = vsel %vm4228, %v4224, %v4172
    %v4242 = vsel %vm4228, %v4225, %v4174
    %v4243 = vsel %vm4228, %v4226, %v4176
    %v4244 = vsel %vm4228, %v4227, %v4178
    %v4245 = vpack.c.bf16 %v4230, %v4229
    %v4246 = vpack.c.bf16 %v4232, %v4231
    %v4247 = vpack.c.bf16 %v4234, %v4233
    %v4248 = vpack.c.bf16 %v4236, %v4235
    %v4249 = vpack.c.bf16 %v4238, %v4237
    %v4250 = vpack.c.bf16 %v4240, %v4239
    %v4251 = vpack.c.bf16 %v4242, %v4241
    %v4252 = vpack.c.bf16 %v4244, %v4243
    %v4269 = vunpack.c.l.b16 %v371
    %v4270 = vunpack.c.l.b16 %v372
    %v4271 = vunpack.c.l.b16 %v373
    %v4272 = vunpack.c.l.b16 %v374
    %v4273 = vunpack.c.l.b16 %v375
    %v4274 = vunpack.c.l.b16 %v376
    %v4275 = vunpack.c.l.b16 %v377
    %v4276 = vunpack.c.l.b16 %v378
    %v4277 = vunpack.c.l.b16 %v379
    %v4278 = vunpack.c.l.b16 %v380
    %v4279 = vunpack.c.l.b16 %v381
    %v4280 = vunpack.c.l.b16 %v382
    %v4281 = vunpack.c.l.b16 %v383
    %v4282 = vunpack.c.l.b16 %v384
    %v4283 = vunpack.c.l.b16 %v385
    %v4284 = vunpack.c.l.b16 %v386
    %v4285 = vpack.c.b16 %v4270, %v4269
    %v4286 = vpack.c.b16 %v4272, %v4271
    %v4287 = vpack.c.b16 %v4274, %v4273
    %v4288 = vpack.c.b16 %v4276, %v4275
    %v4289 = vpack.c.b16 %v4278, %v4277
    %v4290 = vpack.c.b16 %v4280, %v4279
    %v4291 = vpack.c.b16 %v4282, %v4281
    %v4292 = vpack.c.b16 %v4284, %v4283
    %4301 = vmatprep.subr.bf16.mxu0 0
    %4302 = vmatpush1.bf16.msra.mxu0 %v4292
    %4303 = vmatprep.subr.bf16.mxu0 0
    %4304 = vmatpush1.bf16.msra.mxu0 %v4291
    %4305 = vmatprep.subr.bf16.mxu0 0
    %4306 = vmatpush1.bf16.msra.mxu0 %v4290
    %4307 = vmatprep.subr.bf16.mxu0 0
    %4308 = vmatpush1.bf16.msra.mxu0 %v4289
    %4309 = vmatprep.subr.bf16.mxu0 0
    %4310 = vmatpush1.bf16.msra.mxu0 %v4288
    %4311 = vmatprep.subr.bf16.mxu0 0
    %4312 = vmatpush1.bf16.msra.mxu0 %v4287
    %4313 = vmatprep.subr.bf16.mxu0 0
    %4314 = vmatpush1.bf16.msra.mxu0 %v4286
    %4315 = vmatprep.subr.bf16.mxu0 0
    %4316 = vmatpush1.bf16.msra.mxu0 %v4285
    %4317 = vmatprep.subr.bf16.mxu0 0
    %4318 = vmatpush2.bf16.msra.mxu0 0
    %4319 = vmatprep.subr.bf16.mxu0 0
    %4320 = vmatpush2.bf16.msra.mxu0 0
    %4321 = vmatprep.subr.bf16.mxu0 0
    %4322 = vmatpush2.bf16.msra.mxu0 0
    %4323 = vmatprep.subr.bf16.mxu0 0
    %4324 = vmatpush2.bf16.msra.mxu0 0
    %4325 = vmatprep.subr.bf16.mxu0 0
    %4326 = vmatpush2.bf16.msra.mxu0 0
    %4327 = vmatprep.subr.bf16.mxu0 0
    %4328 = vmatpush2.bf16.msra.mxu0 0
    %4329 = vmatprep.subr.bf16.mxu0 0
    %4330 = vmatpush2.bf16.msra.mxu0 0
    %4331 = vmatprep.subr.bf16.mxu0 0
    %4332 = vmatpush2.bf16.msra.mxu0 0
    %4333 = vmatprep.mubr.bf16.mxu0 0
    %4334 = vmatmul.mubr.bf16.gmra.mxu0 %v4245
    %v4335 = vpop.f32.mrf.mxu0
    %v4336 = vadd.f32 %v487, %v4335
    %v4337 = vpop.f32.mrf.mxu0
    %v4338 = vpop.f32.mrf.mxu0
    %v4339 = vadd.f32 %v487, %v4338
    %v4340 = vpop.f32.mrf.mxu0
    %4341 = vmatprep.mubr.bf16.mxu0 0
    %4342 = vmatmul.mubr.bf16.gmra.mxu0 %v4246
    %v4343 = vpop.f32.mrf.mxu0
    %v4344 = vadd.f32 %v487, %v4343
    %v4345 = vpop.f32.mrf.mxu0
    %v4346 = vpop.f32.mrf.mxu0
    %v4347 = vadd.f32 %v487, %v4346
    %v4348 = vpop.f32.mrf.mxu0
    %4349 = vmatprep.mubr.bf16.mxu0 0
    %4350 = vmatmul.mubr.bf16.gmra.mxu0 %v4247
    %v4351 = vpop.f32.mrf.mxu0
    %v4352 = vadd.f32 %v487, %v4351
    %v4353 = vpop.f32.mrf.mxu0
    %v4354 = vpop.f32.mrf.mxu0
    %v4355 = vadd.f32 %v487, %v4354
    %v4356 = vpop.f32.mrf.mxu0
    %4357 = vmatprep.mubr.bf16.mxu0 0
    %4358 = vmatmul.mubr.bf16.gmra.mxu0 %v4248
    %v4359 = vpop.f32.mrf.mxu0
    %v4360 = vadd.f32 %v487, %v4359
    %v4361 = vpop.f32.mrf.mxu0
    %v4362 = vpop.f32.mrf.mxu0
    %v4363 = vadd.f32 %v487, %v4362
    %v4364 = vpop.f32.mrf.mxu0
    %4365 = vmatprep.mubr.bf16.mxu0 0
    %4366 = vmatmul.mubr.bf16.gmra.mxu0 %v4249
    %v4367 = vpop.f32.mrf.mxu0
    %v4368 = vadd.f32 %v487, %v4367
    %v4369 = vpop.f32.mrf.mxu0
    %v4370 = vpop.f32.mrf.mxu0
    %v4371 = vadd.f32 %v487, %v4370
    %v4372 = vpop.f32.mrf.mxu0
    %4373 = vmatprep.mubr.bf16.mxu0 0
    %4374 = vmatmul.mubr.bf16.gmra.mxu0 %v4250
    %v4375 = vpop.f32.mrf.mxu0
    %v4376 = vadd.f32 %v487, %v4375
    %v4377 = vpop.f32.mrf.mxu0
    %v4378 = vpop.f32.mrf.mxu0
    %v4379 = vadd.f32 %v487, %v4378
    %v4380 = vpop.f32.mrf.mxu0
    %4381 = vmatprep.mubr.bf16.mxu0 0
    %4382 = vmatmul.mubr.bf16.gmra.mxu0 %v4251
    %v4383 = vpop.f32.mrf.mxu0
    %v4384 = vadd.f32 %v487, %v4383
    %v4385 = vpop.f32.mrf.mxu0
    %v4386 = vpop.f32.mrf.mxu0
    %v4387 = vadd.f32 %v487, %v4386
    %v4388 = vpop.f32.mrf.mxu0
    %4389 = vmatprep.mubr.bf16.mxu0 0
    %4390 = vmatmul.mubr.bf16.gmra.mxu0 %v4252
    %v4391 = vpop.f32.mrf.mxu0
    %v4392 = vadd.f32 %v487, %v4391
    %v4393 = vpop.f32.mrf.mxu0
    %v4394 = vpop.f32.mrf.mxu0
    %v4395 = vadd.f32 %v487, %v4394
    %v4396 = vpop.f32.mrf.mxu0
    %4397 = vdwg.mxu0
    %v4398 = vadd.f32 %v320, %v4336
    %v4399 = vadd.f32 %v321, %v4339
    %v4400 = vadd.f32 %v322, %v4344
    %v4401 = vadd.f32 %v323, %v4347
    %v4402 = vadd.f32 %v324, %v4352
    %v4403 = vadd.f32 %v325, %v4355
    %v4404 = vadd.f32 %v326, %v4360
    %v4405 = vadd.f32 %v327, %v4363
    %v4406 = vadd.f32 %v328, %v4368
    %v4407 = vadd.f32 %v329, %v4371
    %v4408 = vadd.f32 %v330, %v4376
    %v4409 = vadd.f32 %v331, %v4379
    %v4410 = vadd.f32 %v332, %v4384
    %v4411 = vadd.f32 %v333, %v4387
    %v4412 = vadd.f32 %v334, %v4392
    %v4413 = vadd.f32 %v335, %v4395
    %4414 = vadd.xlane.f32.xlu0 %v4398
    %v4415 = vpop.xlane.xlu0 %4414
    %4416 = vadd.xlane.f32.xlu0 %v4399
    %v4417 = vpop.xlane.xlu0 %4416
    %4418 = vadd.xlane.f32.xlu0 %v4400
    %v4419 = vpop.xlane.xlu0 %4418
    %4420 = vadd.xlane.f32.xlu0 %v4401
    %v4421 = vpop.xlane.xlu0 %4420
    %4422 = vadd.xlane.f32.xlu0 %v4402
    %v4423 = vpop.xlane.xlu0 %4422
    %4424 = vadd.xlane.f32.xlu0 %v4403
    %v4425 = vpop.xlane.xlu0 %4424
    %4426 = vadd.xlane.f32.xlu0 %v4404
    %v4427 = vpop.xlane.xlu0 %4426
    %4428 = vadd.xlane.f32.xlu0 %v4405
    %v4429 = vpop.xlane.xlu0 %4428
    %4430 = vadd.xlane.f32.xlu0 %v4406
    %v4431 = vpop.xlane.xlu0 %4430
    %4432 = vadd.xlane.f32.xlu0 %v4407
    %v4433 = vpop.xlane.xlu0 %4432
    %4434 = vadd.xlane.f32.xlu0 %v4408
    %v4435 = vpop.xlane.xlu0 %4434
    %4436 = vadd.xlane.f32.xlu0 %v4409
    %v4437 = vpop.xlane.xlu0 %4436
    %4438 = vadd.xlane.f32.xlu0 %v4410
    %v4439 = vpop.xlane.xlu0 %4438
    %4440 = vadd.xlane.f32.xlu0 %v4411
    %v4441 = vpop.xlane.xlu0 %4440
    %4442 = vadd.xlane.f32.xlu0 %v4412
    %v4443 = vpop.xlane.xlu0 %4442
    %4444 = vadd.xlane.f32.xlu0 %v4413
    %v4445 = vpop.xlane.xlu0 %4444
    %v4446 = vmul.f32 %v4415, %v525
    %v4447 = vmul.f32 %v4417, %v525
    %v4448 = vmul.f32 %v4419, %v525
    %v4449 = vmul.f32 %v4421, %v525
    %v4450 = vmul.f32 %v4423, %v525
    %v4451 = vmul.f32 %v4425, %v525
    %v4452 = vmul.f32 %v4427, %v525
    %v4453 = vmul.f32 %v4429, %v525
    %v4454 = vmul.f32 %v4431, %v525
    %v4455 = vmul.f32 %v4433, %v525
    %v4456 = vmul.f32 %v4435, %v525
    %v4457 = vmul.f32 %v4437, %v525
    %v4458 = vmul.f32 %v4439, %v525
    %v4459 = vmul.f32 %v4441, %v525
    %v4460 = vmul.f32 %v4443, %v525
    %v4461 = vmul.f32 %v4445, %v525
    %v4462 = vsub.f32 %v4398, %v4446
    %v4463 = vsub.f32 %v4399, %v4447
    %v4464 = vsub.f32 %v4400, %v4448
    %v4465 = vsub.f32 %v4401, %v4449
    %v4466 = vsub.f32 %v4402, %v4450
    %v4467 = vsub.f32 %v4403, %v4451
    %v4468 = vsub.f32 %v4404, %v4452
    %v4469 = vsub.f32 %v4405, %v4453
    %v4470 = vsub.f32 %v4406, %v4454
    %v4471 = vsub.f32 %v4407, %v4455
    %v4472 = vsub.f32 %v4408, %v4456
    %v4473 = vsub.f32 %v4409, %v4457
    %v4474 = vsub.f32 %v4410, %v4458
    %v4475 = vsub.f32 %v4411, %v4459
    %v4476 = vsub.f32 %v4412, %v4460
    %v4477 = vsub.f32 %v4413, %v4461
    %v4478 = vmul.f32 %v4462, %v4462
    %v4479 = vmul.f32 %v4463, %v4463
    %v4480 = vmul.f32 %v4464, %v4464
    %v4481 = vmul.f32 %v4465, %v4465
    %v4482 = vmul.f32 %v4466, %v4466
    %v4483 = vmul.f32 %v4467, %v4467
    %v4484 = vmul.f32 %v4468, %v4468
    %v4485 = vmul.f32 %v4469, %v4469
    %v4486 = vmul.f32 %v4470, %v4470
    %v4487 = vmul.f32 %v4471, %v4471
    %v4488 = vmul.f32 %v4472, %v4472
    %v4489 = vmul.f32 %v4473, %v4473
    %v4490 = vmul.f32 %v4474, %v4474
    %v4491 = vmul.f32 %v4475, %v4475
    %v4492 = vmul.f32 %v4476, %v4476
    %v4493 = vmul.f32 %v4477, %v4477
    %4494 = vadd.xlane.f32.xlu0 %v4478
    %v4495 = vpop.xlane.xlu0 %4494
    %4496 = vadd.xlane.f32.xlu0 %v4479
    %v4497 = vpop.xlane.xlu0 %4496
    %4498 = vadd.xlane.f32.xlu0 %v4480
    %v4499 = vpop.xlane.xlu0 %4498
    %4500 = vadd.xlane.f32.xlu0 %v4481
    %v4501 = vpop.xlane.xlu0 %4500
    %4502 = vadd.xlane.f32.xlu0 %v4482
    %v4503 = vpop.xlane.xlu0 %4502
    %4504 = vadd.xlane.f32.xlu0 %v4483
    %v4505 = vpop.xlane.xlu0 %4504
    %4506 = vadd.xlane.f32.xlu0 %v4484
    %v4507 = vpop.xlane.xlu0 %4506
    %4508 = vadd.xlane.f32.xlu0 %v4485
    %v4509 = vpop.xlane.xlu0 %4508
    %4510 = vadd.xlane.f32.xlu0 %v4486
    %v4511 = vpop.xlane.xlu0 %4510
    %4512 = vadd.xlane.f32.xlu0 %v4487
    %v4513 = vpop.xlane.xlu0 %4512
    %4514 = vadd.xlane.f32.xlu0 %v4488
    %v4515 = vpop.xlane.xlu0 %4514
    %4516 = vadd.xlane.f32.xlu0 %v4489
    %v4517 = vpop.xlane.xlu0 %4516
    %4518 = vadd.xlane.f32.xlu0 %v4490
    %v4519 = vpop.xlane.xlu0 %4518
    %4520 = vadd.xlane.f32.xlu0 %v4491
    %v4521 = vpop.xlane.xlu0 %4520
    %4522 = vadd.xlane.f32.xlu0 %v4492
    %v4523 = vpop.xlane.xlu0 %4522
    %4524 = vadd.xlane.f32.xlu0 %v4493
    %v4525 = vpop.xlane.xlu0 %4524
    %v4526 = vmul.f32 %v4495, %v525
    %v4527 = vmul.f32 %v4497, %v525
    %v4528 = vmul.f32 %v4499, %v525
    %v4529 = vmul.f32 %v4501, %v525
    %v4530 = vmul.f32 %v4503, %v525
    %v4531 = vmul.f32 %v4505, %v525
    %v4532 = vmul.f32 %v4507, %v525
    %v4533 = vmul.f32 %v4509, %v525
    %v4534 = vmul.f32 %v4511, %v525
    %v4535 = vmul.f32 %v4513, %v525
    %v4536 = vmul.f32 %v4515, %v525
    %v4537 = vmul.f32 %v4517, %v525
    %v4538 = vmul.f32 %v4519, %v525
    %v4539 = vmul.f32 %v4521, %v525
    %v4540 = vmul.f32 %v4523, %v525
    %v4541 = vmul.f32 %v4525, %v525
    %v4542 = vadd.f32 %v4526, 1e-06
    %v4543 = vadd.f32 %v4527, 1e-06
    %v4544 = vadd.f32 %v4528, 1e-06
    %v4545 = vadd.f32 %v4529, 1e-06
    %v4546 = vadd.f32 %v4530, 1e-06
    %v4547 = vadd.f32 %v4531, 1e-06
    %v4548 = vadd.f32 %v4532, 1e-06
    %v4549 = vadd.f32 %v4533, 1e-06
    %v4550 = vadd.f32 %v4534, 1e-06
    %v4551 = vadd.f32 %v4535, 1e-06
    %v4552 = vadd.f32 %v4536, 1e-06
    %v4553 = vadd.f32 %v4537, 1e-06
    %v4554 = vadd.f32 %v4538, 1e-06
    %v4555 = vadd.f32 %v4539, 1e-06
    %v4556 = vadd.f32 %v4540, 1e-06
    %v4557 = vadd.f32 %v4541, 1e-06
    %v4558 = vrsqrt.pop %v4542
    %v4559 = vrsqrt.pop %v4543
    %v4560 = vrsqrt.pop %v4544
    %v4561 = vrsqrt.pop %v4545
    %v4562 = vrsqrt.pop %v4546
    %v4563 = vrsqrt.pop %v4547
    %v4564 = vrsqrt.pop %v4548
    %v4565 = vrsqrt.pop %v4549
    %v4566 = vrsqrt.pop %v4550
    %v4567 = vrsqrt.pop %v4551
    %v4568 = vrsqrt.pop %v4552
    %v4569 = vrsqrt.pop %v4553
    %v4570 = vrsqrt.pop %v4554
    %v4571 = vrsqrt.pop %v4555
    %v4572 = vrsqrt.pop %v4556
    %v4573 = vrsqrt.pop %v4557
    %v4574 = vmul.f32 %v4462, %v4558
    %v4575 = vmul.f32 %v4463, %v4559
    %v4576 = vmul.f32 %v4464, %v4560
    %v4577 = vmul.f32 %v4465, %v4561
    %v4578 = vmul.f32 %v4466, %v4562
    %v4579 = vmul.f32 %v4467, %v4563
    %v4580 = vmul.f32 %v4468, %v4564
    %v4581 = vmul.f32 %v4469, %v4565
    %v4582 = vmul.f32 %v4470, %v4566
    %v4583 = vmul.f32 %v4471, %v4567
    %v4584 = vmul.f32 %v4472, %v4568
    %v4585 = vmul.f32 %v4473, %v4569
    %v4586 = vmul.f32 %v4474, %v4570
    %v4587 = vmul.f32 %v4475, %v4571
    %v4588 = vmul.f32 %v4476, %v4572
    %v4589 = vmul.f32 %v4477, %v4573
    %v4590 = vmul.f32 %v4574, %v488
    %v4591 = vmul.f32 %v4575, %v488
    %v4592 = vmul.f32 %v4576, %v488
    %v4593 = vmul.f32 %v4577, %v488
    %v4594 = vmul.f32 %v4578, %v488
    %v4595 = vmul.f32 %v4579, %v488
    %v4596 = vmul.f32 %v4580, %v488
    %v4597 = vmul.f32 %v4581, %v488
    %v4598 = vmul.f32 %v4582, %v488
    %v4599 = vmul.f32 %v4583, %v488
    %v4600 = vmul.f32 %v4584, %v488
    %v4601 = vmul.f32 %v4585, %v488
    %v4602 = vmul.f32 %v4586, %v488
    %v4603 = vmul.f32 %v4587, %v488
    %v4604 = vmul.f32 %v4588, %v488
    %v4605 = vmul.f32 %v4589, %v488
    %v4606 = vadd.f32 %v4590, %v489
    %v4607 = vadd.f32 %v4591, %v489
    %v4608 = vadd.f32 %v4592, %v489
    %v4609 = vadd.f32 %v4593, %v489
    %v4610 = vadd.f32 %v4594, %v489
    %v4611 = vadd.f32 %v4595, %v489
    %v4612 = vadd.f32 %v4596, %v489
    %v4613 = vadd.f32 %v4597, %v489
    %v4614 = vadd.f32 %v4598, %v489
    %v4615 = vadd.f32 %v4599, %v489
    %v4616 = vadd.f32 %v4600, %v489
    %v4617 = vadd.f32 %v4601, %v489
    %v4618 = vadd.f32 %v4602, %v489
    %v4619 = vadd.f32 %v4603, %v489
    %v4620 = vadd.f32 %v4604, %v489
    %v4621 = vadd.f32 %v4605, %v489
    %v4622 = vpack.c.bf16 %v4607, %v4606
    %v4623 = vpack.c.bf16 %v4609, %v4608
    %v4624 = vpack.c.bf16 %v4611, %v4610
    %v4625 = vpack.c.bf16 %v4613, %v4612
    %v4626 = vpack.c.bf16 %v4615, %v4614
    %v4627 = vpack.c.bf16 %v4617, %v4616
    %v4628 = vpack.c.bf16 %v4619, %v4618
    %v4629 = vpack.c.bf16 %v4621, %v4620
    %v4631 = vlaneseq
    %v4632 = vshrl.u32 %v4631, 7
    %v4633 = vsub.s32 0, %v4632
    %v4634 = vrot.slane %v491, %v4633
    %v4635 = vlaneseq
    %v4636 = vshrl.u32 %v4635, 7
    %v4637 = vsub.s32 1, %v4636
    %v4638 = vrot.slane %v491, %v4637
    %v4639 = vlaneseq
    %v4640 = vshrl.u32 %v4639, 7
    %v4641 = vsub.s32 2, %v4640
    %v4642 = vrot.slane %v491, %v4641
    %v4643 = vlaneseq
    %v4644 = vshrl.u32 %v4643, 7
    %v4645 = vsub.s32 3, %v4644
    %v4646 = vrot.slane %v491, %v4645
    %v4683 = vunpack.c.l.b16 %v387
    %v4684 = vunpack.c.h.b16 %v387
    %v4685 = vunpack.c.l.b16 %v388
    %v4686 = vunpack.c.h.b16 %v388
    %v4687 = vunpack.c.l.b16 %v389
    %v4688 = vunpack.c.h.b16 %v389
    %v4689 = vunpack.c.l.b16 %v390
    %v4690 = vunpack.c.h.b16 %v390
    %v4691 = vunpack.c.l.b16 %v391
    %v4692 = vunpack.c.h.b16 %v391
    %v4693 = vunpack.c.l.b16 %v392
    %v4694 = vunpack.c.h.b16 %v392
    %v4695 = vunpack.c.l.b16 %v393
    %v4696 = vunpack.c.h.b16 %v393
    %v4697 = vunpack.c.l.b16 %v394
    %v4698 = vunpack.c.h.b16 %v394
    %v4699 = vunpack.c.l.b16 %v395
    %v4700 = vunpack.c.h.b16 %v395
    %v4701 = vunpack.c.l.b16 %v396
    %v4702 = vunpack.c.h.b16 %v396
    %v4703 = vunpack.c.l.b16 %v397
    %v4704 = vunpack.c.h.b16 %v397
    %v4705 = vunpack.c.l.b16 %v398
    %v4706 = vunpack.c.h.b16 %v398
    %v4707 = vunpack.c.l.b16 %v399
    %v4708 = vunpack.c.h.b16 %v399
    %v4709 = vunpack.c.l.b16 %v400
    %v4710 = vunpack.c.h.b16 %v400
    %v4711 = vunpack.c.l.b16 %v401
    %v4712 = vunpack.c.h.b16 %v401
    %v4713 = vunpack.c.l.b16 %v402
    %v4714 = vunpack.c.h.b16 %v402
    %v4715 = vunpack.c.l.b16 %v403
    %v4716 = vunpack.c.h.b16 %v403
    %v4717 = vunpack.c.l.b16 %v404
    %v4718 = vunpack.c.h.b16 %v404
    %v4719 = vunpack.c.l.b16 %v405
    %v4720 = vunpack.c.h.b16 %v405
    %v4721 = vunpack.c.l.b16 %v406
    %v4722 = vunpack.c.h.b16 %v406
    %v4723 = vunpack.c.l.b16 %v407
    %v4724 = vunpack.c.h.b16 %v407
    %v4725 = vunpack.c.l.b16 %v408
    %v4726 = vunpack.c.h.b16 %v408
    %v4727 = vunpack.c.l.b16 %v409
    %v4728 = vunpack.c.h.b16 %v409
    %v4729 = vunpack.c.l.b16 %v410
    %v4730 = vunpack.c.h.b16 %v410
    %v4731 = vunpack.c.l.b16 %v411
    %v4732 = vunpack.c.h.b16 %v411
    %v4733 = vunpack.c.l.b16 %v412
    %v4734 = vunpack.c.h.b16 %v412
    %v4735 = vunpack.c.l.b16 %v413
    %v4736 = vunpack.c.h.b16 %v413
    %v4737 = vunpack.c.l.b16 %v414
    %v4738 = vunpack.c.h.b16 %v414
    %v4739 = vunpack.c.l.b16 %v415
    %v4740 = vunpack.c.h.b16 %v415
    %v4741 = vunpack.c.l.b16 %v416
    %v4742 = vunpack.c.h.b16 %v416
    %v4743 = vunpack.c.l.b16 %v417
    %v4744 = vunpack.c.h.b16 %v417
    %v4745 = vunpack.c.l.b16 %v418
    %v4746 = vunpack.c.h.b16 %v418
    %v4747 = vpack.c.b16 %v4687, %v4683
    %v4748 = vpack.c.b16 %v4688, %v4684
    %v4749 = vpack.c.b16 %v4689, %v4685
    %v4750 = vpack.c.b16 %v4690, %v4686
    %v4751 = vpack.c.b16 %v4695, %v4691
    %v4752 = vpack.c.b16 %v4696, %v4692
    %v4753 = vpack.c.b16 %v4697, %v4693
    %v4754 = vpack.c.b16 %v4698, %v4694
    %v4755 = vpack.c.b16 %v4703, %v4699
    %v4756 = vpack.c.b16 %v4704, %v4700
    %v4757 = vpack.c.b16 %v4705, %v4701
    %v4758 = vpack.c.b16 %v4706, %v4702
    %v4759 = vpack.c.b16 %v4711, %v4707
    %v4760 = vpack.c.b16 %v4712, %v4708
    %v4761 = vpack.c.b16 %v4713, %v4709
    %v4762 = vpack.c.b16 %v4714, %v4710
    %v4763 = vpack.c.b16 %v4719, %v4715
    %v4764 = vpack.c.b16 %v4720, %v4716
    %v4765 = vpack.c.b16 %v4721, %v4717
    %v4766 = vpack.c.b16 %v4722, %v4718
    %v4767 = vpack.c.b16 %v4727, %v4723
    %v4768 = vpack.c.b16 %v4728, %v4724
    %v4769 = vpack.c.b16 %v4729, %v4725
    %v4770 = vpack.c.b16 %v4730, %v4726
    %v4771 = vpack.c.b16 %v4735, %v4731
    %v4772 = vpack.c.b16 %v4736, %v4732
    %v4773 = vpack.c.b16 %v4737, %v4733
    %v4774 = vpack.c.b16 %v4738, %v4734
    %v4775 = vpack.c.b16 %v4743, %v4739
    %v4776 = vpack.c.b16 %v4744, %v4740
    %v4777 = vpack.c.b16 %v4745, %v4741
    %v4778 = vpack.c.b16 %v4746, %v4742
    %4811 = vmatprep.subr.bf16.mxu0 %v4776
    %4812 = vmatpush1.bf16.msra.mxu0 %v4775
    %4813 = vmatprep.subr.bf16.mxu0 %v4772
    %4814 = vmatpush1.bf16.msra.mxu0 %v4771
    %4815 = vmatprep.subr.bf16.mxu0 %v4768
    %4816 = vmatpush1.bf16.msra.mxu0 %v4767
    %4817 = vmatprep.subr.bf16.mxu0 %v4764
    %4818 = vmatpush1.bf16.msra.mxu0 %v4763
    %4819 = vmatprep.subr.bf16.mxu0 %v4760
    %4820 = vmatpush1.bf16.msra.mxu0 %v4759
    %4821 = vmatprep.subr.bf16.mxu0 %v4756
    %4822 = vmatpush1.bf16.msra.mxu0 %v4755
    %4823 = vmatprep.subr.bf16.mxu0 %v4752
    %4824 = vmatpush1.bf16.msra.mxu0 %v4751
    %4825 = vmatprep.subr.bf16.mxu0 %v4748
    %4826 = vmatpush1.bf16.msra.mxu0 %v4747
    %4827 = vmatprep.subr.bf16.mxu0 0
    %4828 = vmatpush2.bf16.msra.mxu0 0
    %4829 = vmatprep.subr.bf16.mxu0 0
    %4830 = vmatpush2.bf16.msra.mxu0 0
    %4831 = vmatprep.subr.bf16.mxu0 0
    %4832 = vmatpush2.bf16.msra.mxu0 0
    %4833 = vmatprep.subr.bf16.mxu0 0
    %4834 = vmatpush2.bf16.msra.mxu0 0
    %4835 = vmatprep.subr.bf16.mxu0 0
    %4836 = vmatpush2.bf16.msra.mxu0 0
    %4837 = vmatprep.subr.bf16.mxu0 0
    %4838 = vmatpush2.bf16.msra.mxu0 0
    %4839 = vmatprep.subr.bf16.mxu0 0
    %4840 = vmatpush2.bf16.msra.mxu0 0
    %4841 = vmatprep.subr.bf16.mxu0 0
    %4842 = vmatpush2.bf16.msra.mxu0 0
    %4843 = vmatprep.mubr.bf16.mxu0 0
    %4844 = vmatmul.mubr.bf16.gmra.mxu0 %v4622
    %v4845 = vpop.f32.mrf.mxu0
    %v4846 = vadd.f32 %v4634, %v4845
    %v4847 = vpop.f32.mrf.mxu0
    %v4848 = vadd.f32 %v4638, %v4847
    %v4849 = vpop.f32.mrf.mxu0
    %v4850 = vadd.f32 %v4634, %v4849
    %v4851 = vpop.f32.mrf.mxu0
    %v4852 = vadd.f32 %v4638, %v4851
    %4853 = vmatprep.mubr.bf16.mxu0 0
    %4854 = vmatmul.mubr.bf16.gmra.mxu0 %v4623
    %v4855 = vpop.f32.mrf.mxu0
    %v4856 = vadd.f32 %v4634, %v4855
    %v4857 = vpop.f32.mrf.mxu0
    %v4858 = vadd.f32 %v4638, %v4857
    %v4859 = vpop.f32.mrf.mxu0
    %v4860 = vadd.f32 %v4634, %v4859
    %v4861 = vpop.f32.mrf.mxu0
    %v4862 = vadd.f32 %v4638, %v4861
    %4863 = vmatprep.mubr.bf16.mxu0 0
    %4864 = vmatmul.mubr.bf16.gmra.mxu0 %v4624
    %v4865 = vpop.f32.mrf.mxu0
    %v4866 = vadd.f32 %v4634, %v4865
    %v4867 = vpop.f32.mrf.mxu0
    %v4868 = vadd.f32 %v4638, %v4867
    %v4869 = vpop.f32.mrf.mxu0
    %v4870 = vadd.f32 %v4634, %v4869
    %v4871 = vpop.f32.mrf.mxu0
    %v4872 = vadd.f32 %v4638, %v4871
    %4873 = vmatprep.mubr.bf16.mxu0 0
    %4874 = vmatmul.mubr.bf16.gmra.mxu0 %v4625
    %v4875 = vpop.f32.mrf.mxu0
    %v4876 = vadd.f32 %v4634, %v4875
    %v4877 = vpop.f32.mrf.mxu0
    %v4878 = vadd.f32 %v4638, %v4877
    %v4879 = vpop.f32.mrf.mxu0
    %v4880 = vadd.f32 %v4634, %v4879
    %v4881 = vpop.f32.mrf.mxu0
    %v4882 = vadd.f32 %v4638, %v4881
    %4883 = vmatprep.mubr.bf16.mxu0 0
    %4884 = vmatmul.mubr.bf16.gmra.mxu0 %v4626
    %v4885 = vpop.f32.mrf.mxu0
    %v4886 = vadd.f32 %v4634, %v4885
    %v4887 = vpop.f32.mrf.mxu0
    %v4888 = vadd.f32 %v4638, %v4887
    %v4889 = vpop.f32.mrf.mxu0
    %v4890 = vadd.f32 %v4634, %v4889
    %v4891 = vpop.f32.mrf.mxu0
    %v4892 = vadd.f32 %v4638, %v4891
    %4893 = vmatprep.mubr.bf16.mxu0 0
    %4894 = vmatmul.mubr.bf16.gmra.mxu0 %v4627
    %v4895 = vpop.f32.mrf.mxu0
    %v4896 = vadd.f32 %v4634, %v4895
    %v4897 = vpop.f32.mrf.mxu0
    %v4898 = vadd.f32 %v4638, %v4897
    %v4899 = vpop.f32.mrf.mxu0
    %v4900 = vadd.f32 %v4634, %v4899
    %v4901 = vpop.f32.mrf.mxu0
    %v4902 = vadd.f32 %v4638, %v4901
    %4903 = vmatprep.mubr.bf16.mxu0 0
    %4904 = vmatmul.mubr.bf16.gmra.mxu0 %v4628
    %v4905 = vpop.f32.mrf.mxu0
    %v4906 = vadd.f32 %v4634, %v4905
    %v4907 = vpop.f32.mrf.mxu0
    %v4908 = vadd.f32 %v4638, %v4907
    %v4909 = vpop.f32.mrf.mxu0
    %v4910 = vadd.f32 %v4634, %v4909
    %v4911 = vpop.f32.mrf.mxu0
    %v4912 = vadd.f32 %v4638, %v4911
    %4913 = vmatprep.mubr.bf16.mxu0 0
    %4914 = vmatmul.mubr.bf16.gmra.mxu0 %v4629
    %v4915 = vpop.f32.mrf.mxu0
    %v4916 = vadd.f32 %v4634, %v4915
    %v4917 = vpop.f32.mrf.mxu0
    %v4918 = vadd.f32 %v4638, %v4917
    %v4919 = vpop.f32.mrf.mxu0
    %v4920 = vadd.f32 %v4634, %v4919
    %v4921 = vpop.f32.mrf.mxu0
    %v4922 = vadd.f32 %v4638, %v4921
    %4923 = vdwg.mxu0
    %4924 = vmatprep.subr.bf16.mxu0 %v4778
    %4925 = vmatpush1.bf16.msra.mxu0 %v4777
    %4926 = vmatprep.subr.bf16.mxu0 %v4774
    %4927 = vmatpush1.bf16.msra.mxu0 %v4773
    %4928 = vmatprep.subr.bf16.mxu0 %v4770
    %4929 = vmatpush1.bf16.msra.mxu0 %v4769
    %4930 = vmatprep.subr.bf16.mxu0 %v4766
    %4931 = vmatpush1.bf16.msra.mxu0 %v4765
    %4932 = vmatprep.subr.bf16.mxu0 %v4762
    %4933 = vmatpush1.bf16.msra.mxu0 %v4761
    %4934 = vmatprep.subr.bf16.mxu0 %v4758
    %4935 = vmatpush1.bf16.msra.mxu0 %v4757
    %4936 = vmatprep.subr.bf16.mxu0 %v4754
    %4937 = vmatpush1.bf16.msra.mxu0 %v4753
    %4938 = vmatprep.subr.bf16.mxu0 %v4750
    %4939 = vmatpush1.bf16.msra.mxu0 %v4749
    %4940 = vmatprep.subr.bf16.mxu0 0
    %4941 = vmatpush2.bf16.msra.mxu0 0
    %4942 = vmatprep.subr.bf16.mxu0 0
    %4943 = vmatpush2.bf16.msra.mxu0 0
    %4944 = vmatprep.subr.bf16.mxu0 0
    %4945 = vmatpush2.bf16.msra.mxu0 0
    %4946 = vmatprep.subr.bf16.mxu0 0
    %4947 = vmatpush2.bf16.msra.mxu0 0
    %4948 = vmatprep.subr.bf16.mxu0 0
    %4949 = vmatpush2.bf16.msra.mxu0 0
    %4950 = vmatprep.subr.bf16.mxu0 0
    %4951 = vmatpush2.bf16.msra.mxu0 0
    %4952 = vmatprep.subr.bf16.mxu0 0
    %4953 = vmatpush2.bf16.msra.mxu0 0
    %4954 = vmatprep.subr.bf16.mxu0 0
    %4955 = vmatpush2.bf16.msra.mxu0 0
    %4956 = vmatprep.mubr.bf16.mxu0 0
    %4957 = vmatmul.mubr.bf16.gmra.mxu0 %v4622
    %v4958 = vpop.f32.mrf.mxu0
    %v4959 = vadd.f32 %v4642, %v4958
    %v4960 = vpop.f32.mrf.mxu0
    %v4961 = vadd.f32 %v4646, %v4960
    %v4962 = vpop.f32.mrf.mxu0
    %v4963 = vadd.f32 %v4642, %v4962
    %v4964 = vpop.f32.mrf.mxu0
    %v4965 = vadd.f32 %v4646, %v4964
    %4966 = vmatprep.mubr.bf16.mxu0 0
    %4967 = vmatmul.mubr.bf16.gmra.mxu0 %v4623
    %v4968 = vpop.f32.mrf.mxu0
    %v4969 = vadd.f32 %v4642, %v4968
    %v4970 = vpop.f32.mrf.mxu0
    %v4971 = vadd.f32 %v4646, %v4970
    %v4972 = vpop.f32.mrf.mxu0
    %v4973 = vadd.f32 %v4642, %v4972
    %v4974 = vpop.f32.mrf.mxu0
    %v4975 = vadd.f32 %v4646, %v4974
    %4976 = vmatprep.mubr.bf16.mxu0 0
    %4977 = vmatmul.mubr.bf16.gmra.mxu0 %v4624
    %v4978 = vpop.f32.mrf.mxu0
    %v4979 = vadd.f32 %v4642, %v4978
    %v4980 = vpop.f32.mrf.mxu0
    %v4981 = vadd.f32 %v4646, %v4980
    %v4982 = vpop.f32.mrf.mxu0
    %v4983 = vadd.f32 %v4642, %v4982
    %v4984 = vpop.f32.mrf.mxu0
    %v4985 = vadd.f32 %v4646, %v4984
    %4986 = vmatprep.mubr.bf16.mxu0 0
    %4987 = vmatmul.mubr.bf16.gmra.mxu0 %v4625
    %v4988 = vpop.f32.mrf.mxu0
    %v4989 = vadd.f32 %v4642, %v4988
    %v4990 = vpop.f32.mrf.mxu0
    %v4991 = vadd.f32 %v4646, %v4990
    %v4992 = vpop.f32.mrf.mxu0
    %v4993 = vadd.f32 %v4642, %v4992
    %v4994 = vpop.f32.mrf.mxu0
    %v4995 = vadd.f32 %v4646, %v4994
    %4996 = vmatprep.mubr.bf16.mxu0 0
    %4997 = vmatmul.mubr.bf16.gmra.mxu0 %v4626
    %v4998 = vpop.f32.mrf.mxu0
    %v4999 = vadd.f32 %v4642, %v4998
    %v5000 = vpop.f32.mrf.mxu0
    %v5001 = vadd.f32 %v4646, %v5000
    %v5002 = vpop.f32.mrf.mxu0
    %v5003 = vadd.f32 %v4642, %v5002
    %v5004 = vpop.f32.mrf.mxu0
    %v5005 = vadd.f32 %v4646, %v5004
    %5006 = vmatprep.mubr.bf16.mxu0 0
    %5007 = vmatmul.mubr.bf16.gmra.mxu0 %v4627
    %v5008 = vpop.f32.mrf.mxu0
    %v5009 = vadd.f32 %v4642, %v5008
    %v5010 = vpop.f32.mrf.mxu0
    %v5011 = vadd.f32 %v4646, %v5010
    %v5012 = vpop.f32.mrf.mxu0
    %v5013 = vadd.f32 %v4642, %v5012
    %v5014 = vpop.f32.mrf.mxu0
    %v5015 = vadd.f32 %v4646, %v5014
    %5016 = vmatprep.mubr.bf16.mxu0 0
    %5017 = vmatmul.mubr.bf16.gmra.mxu0 %v4628
    %v5018 = vpop.f32.mrf.mxu0
    %v5019 = vadd.f32 %v4642, %v5018
    %v5020 = vpop.f32.mrf.mxu0
    %v5021 = vadd.f32 %v4646, %v5020
    %v5022 = vpop.f32.mrf.mxu0
    %v5023 = vadd.f32 %v4642, %v5022
    %v5024 = vpop.f32.mrf.mxu0
    %v5025 = vadd.f32 %v4646, %v5024
    %5026 = vmatprep.mubr.bf16.mxu0 0
    %5027 = vmatmul.mubr.bf16.gmra.mxu0 %v4629
    %v5028 = vpop.f32.mrf.mxu0
    %v5029 = vadd.f32 %v4642, %v5028
    %v5030 = vpop.f32.mrf.mxu0
    %v5031 = vadd.f32 %v4646, %v5030
    %v5032 = vpop.f32.mrf.mxu0
    %v5033 = vadd.f32 %v4642, %v5032
    %v5034 = vpop.f32.mrf.mxu0
    %v5035 = vadd.f32 %v4646, %v5034
    %5036 = vdwg.mxu0
    %v5037 = vmul.f32 %v4846, %v4846
    %v5038 = vmul.f32 %v4848, %v4848
    %v5039 = vmul.f32 %v4959, %v4959
    %v5040 = vmul.f32 %v4961, %v4961
    %v5041 = vmul.f32 %v4850, %v4850
    %v5042 = vmul.f32 %v4852, %v4852
    %v5043 = vmul.f32 %v4963, %v4963
    %v5044 = vmul.f32 %v4965, %v4965
    %v5045 = vmul.f32 %v4856, %v4856
    %v5046 = vmul.f32 %v4858, %v4858
    %v5047 = vmul.f32 %v4969, %v4969
    %v5048 = vmul.f32 %v4971, %v4971
    %v5049 = vmul.f32 %v4860, %v4860
    %v5050 = vmul.f32 %v4862, %v4862
    %v5051 = vmul.f32 %v4973, %v4973
    %v5052 = vmul.f32 %v4975, %v4975
    %v5053 = vmul.f32 %v4866, %v4866
    %v5054 = vmul.f32 %v4868, %v4868
    %v5055 = vmul.f32 %v4979, %v4979
    %v5056 = vmul.f32 %v4981, %v4981
    %v5057 = vmul.f32 %v4870, %v4870
    %v5058 = vmul.f32 %v4872, %v4872
    %v5059 = vmul.f32 %v4983, %v4983
    %v5060 = vmul.f32 %v4985, %v4985
    %v5061 = vmul.f32 %v4876, %v4876
    %v5062 = vmul.f32 %v4878, %v4878
    %v5063 = vmul.f32 %v4989, %v4989
    %v5064 = vmul.f32 %v4991, %v4991
    %v5065 = vmul.f32 %v4880, %v4880
    %v5066 = vmul.f32 %v4882, %v4882
    %v5067 = vmul.f32 %v4993, %v4993
    %v5068 = vmul.f32 %v4995, %v4995
    %v5069 = vmul.f32 %v4886, %v4886
    %v5070 = vmul.f32 %v4888, %v4888
    %v5071 = vmul.f32 %v4999, %v4999
    %v5072 = vmul.f32 %v5001, %v5001
    %v5073 = vmul.f32 %v4890, %v4890
    %v5074 = vmul.f32 %v4892, %v4892
    %v5075 = vmul.f32 %v5003, %v5003
    %v5076 = vmul.f32 %v5005, %v5005
    %v5077 = vmul.f32 %v4896, %v4896
    %v5078 = vmul.f32 %v4898, %v4898
    %v5079 = vmul.f32 %v5009, %v5009
    %v5080 = vmul.f32 %v5011, %v5011
    %v5081 = vmul.f32 %v4900, %v4900
    %v5082 = vmul.f32 %v4902, %v4902
    %v5083 = vmul.f32 %v5013, %v5013
    %v5084 = vmul.f32 %v5015, %v5015
    %v5085 = vmul.f32 %v4906, %v4906
    %v5086 = vmul.f32 %v4908, %v4908
    %v5087 = vmul.f32 %v5019, %v5019
    %v5088 = vmul.f32 %v5021, %v5021
    %v5089 = vmul.f32 %v4910, %v4910
    %v5090 = vmul.f32 %v4912, %v4912
    %v5091 = vmul.f32 %v5023, %v5023
    %v5092 = vmul.f32 %v5025, %v5025
    %v5093 = vmul.f32 %v4916, %v4916
    %v5094 = vmul.f32 %v4918, %v4918
    %v5095 = vmul.f32 %v5029, %v5029
    %v5096 = vmul.f32 %v5031, %v5031
    %v5097 = vmul.f32 %v4920, %v4920
    %v5098 = vmul.f32 %v4922, %v4922
    %v5099 = vmul.f32 %v5033, %v5033
    %v5100 = vmul.f32 %v5035, %v5035
    %v5101 = vmul.f32 %v4846, %v5037
    %v5102 = vmul.f32 %v4848, %v5038
    %v5103 = vmul.f32 %v4959, %v5039
    %v5104 = vmul.f32 %v4961, %v5040
    %v5105 = vmul.f32 %v4850, %v5041
    %v5106 = vmul.f32 %v4852, %v5042
    %v5107 = vmul.f32 %v4963, %v5043
    %v5108 = vmul.f32 %v4965, %v5044
    %v5109 = vmul.f32 %v4856, %v5045
    %v5110 = vmul.f32 %v4858, %v5046
    %v5111 = vmul.f32 %v4969, %v5047
    %v5112 = vmul.f32 %v4971, %v5048
    %v5113 = vmul.f32 %v4860, %v5049
    %v5114 = vmul.f32 %v4862, %v5050
    %v5115 = vmul.f32 %v4973, %v5051
    %v5116 = vmul.f32 %v4975, %v5052
    %v5117 = vmul.f32 %v4866, %v5053
    %v5118 = vmul.f32 %v4868, %v5054
    %v5119 = vmul.f32 %v4979, %v5055
    %v5120 = vmul.f32 %v4981, %v5056
    %v5121 = vmul.f32 %v4870, %v5057
    %v5122 = vmul.f32 %v4872, %v5058
    %v5123 = vmul.f32 %v4983, %v5059
    %v5124 = vmul.f32 %v4985, %v5060
    %v5125 = vmul.f32 %v4876, %v5061
    %v5126 = vmul.f32 %v4878, %v5062
    %v5127 = vmul.f32 %v4989, %v5063
    %v5128 = vmul.f32 %v4991, %v5064
    %v5129 = vmul.f32 %v4880, %v5065
    %v5130 = vmul.f32 %v4882, %v5066
    %v5131 = vmul.f32 %v4993, %v5067
    %v5132 = vmul.f32 %v4995, %v5068
    %v5133 = vmul.f32 %v4886, %v5069
    %v5134 = vmul.f32 %v4888, %v5070
    %v5135 = vmul.f32 %v4999, %v5071
    %v5136 = vmul.f32 %v5001, %v5072
    %v5137 = vmul.f32 %v4890, %v5073
    %v5138 = vmul.f32 %v4892, %v5074
    %v5139 = vmul.f32 %v5003, %v5075
    %v5140 = vmul.f32 %v5005, %v5076
    %v5141 = vmul.f32 %v4896, %v5077
    %v5142 = vmul.f32 %v4898, %v5078
    %v5143 = vmul.f32 %v5009, %v5079
    %v5144 = vmul.f32 %v5011, %v5080
    %v5145 = vmul.f32 %v4900, %v5081
    %v5146 = vmul.f32 %v4902, %v5082
    %v5147 = vmul.f32 %v5013, %v5083
    %v5148 = vmul.f32 %v5015, %v5084
    %v5149 = vmul.f32 %v4906, %v5085
    %v5150 = vmul.f32 %v4908, %v5086
    %v5151 = vmul.f32 %v5019, %v5087
    %v5152 = vmul.f32 %v5021, %v5088
    %v5153 = vmul.f32 %v4910, %v5089
    %v5154 = vmul.f32 %v4912, %v5090
    %v5155 = vmul.f32 %v5023, %v5091
    %v5156 = vmul.f32 %v5025, %v5092
    %v5157 = vmul.f32 %v4916, %v5093
    %v5158 = vmul.f32 %v4918, %v5094
    %v5159 = vmul.f32 %v5029, %v5095
    %v5160 = vmul.f32 %v5031, %v5096
    %v5161 = vmul.f32 %v4920, %v5097
    %v5162 = vmul.f32 %v4922, %v5098
    %v5163 = vmul.f32 %v5033, %v5099
    %v5164 = vmul.f32 %v5035, %v5100
    %v5165 = vmul.f32 %v5101, 0.044715
    %v5166 = vmul.f32 %v5102, 0.044715
    %v5167 = vmul.f32 %v5103, 0.044715
    %v5168 = vmul.f32 %v5104, 0.044715
    %v5169 = vmul.f32 %v5105, 0.044715
    %v5170 = vmul.f32 %v5106, 0.044715
    %v5171 = vmul.f32 %v5107, 0.044715
    %v5172 = vmul.f32 %v5108, 0.044715
    %v5173 = vmul.f32 %v5109, 0.044715
    %v5174 = vmul.f32 %v5110, 0.044715
    %v5175 = vmul.f32 %v5111, 0.044715
    %v5176 = vmul.f32 %v5112, 0.044715
    %v5177 = vmul.f32 %v5113, 0.044715
    %v5178 = vmul.f32 %v5114, 0.044715
    %v5179 = vmul.f32 %v5115, 0.044715
    %v5180 = vmul.f32 %v5116, 0.044715
    %v5181 = vmul.f32 %v5117, 0.044715
    %v5182 = vmul.f32 %v5118, 0.044715
    %v5183 = vmul.f32 %v5119, 0.044715
    %v5184 = vmul.f32 %v5120, 0.044715
    %v5185 = vmul.f32 %v5121, 0.044715
    %v5186 = vmul.f32 %v5122, 0.044715
    %v5187 = vmul.f32 %v5123, 0.044715
    %v5188 = vmul.f32 %v5124, 0.044715
    %v5189 = vmul.f32 %v5125, 0.044715
    %v5190 = vmul.f32 %v5126, 0.044715
    %v5191 = vmul.f32 %v5127, 0.044715
    %v5192 = vmul.f32 %v5128, 0.044715
    %v5193 = vmul.f32 %v5129, 0.044715
    %v5194 = vmul.f32 %v5130, 0.044715
    %v5195 = vmul.f32 %v5131, 0.044715
    %v5196 = vmul.f32 %v5132, 0.044715
    %v5197 = vmul.f32 %v5133, 0.044715
    %v5198 = vmul.f32 %v5134, 0.044715
    %v5199 = vmul.f32 %v5135, 0.044715
    %v5200 = vmul.f32 %v5136, 0.044715
    %v5201 = vmul.f32 %v5137, 0.044715
    %v5202 = vmul.f32 %v5138, 0.044715
    %v5203 = vmul.f32 %v5139, 0.044715
    %v5204 = vmul.f32 %v5140, 0.044715
    %v5205 = vmul.f32 %v5141, 0.044715
    %v5206 = vmul.f32 %v5142, 0.044715
    %v5207 = vmul.f32 %v5143, 0.044715
    %v5208 = vmul.f32 %v5144, 0.044715
    %v5209 = vmul.f32 %v5145, 0.044715
    %v5210 = vmul.f32 %v5146, 0.044715
    %v5211 = vmul.f32 %v5147, 0.044715
    %v5212 = vmul.f32 %v5148, 0.044715
    %v5213 = vmul.f32 %v5149, 0.044715
    %v5214 = vmul.f32 %v5150, 0.044715
    %v5215 = vmul.f32 %v5151, 0.044715
    %v5216 = vmul.f32 %v5152, 0.044715
    %v5217 = vmul.f32 %v5153, 0.044715
    %v5218 = vmul.f32 %v5154, 0.044715
    %v5219 = vmul.f32 %v5155, 0.044715
    %v5220 = vmul.f32 %v5156, 0.044715
    %v5221 = vmul.f32 %v5157, 0.044715
    %v5222 = vmul.f32 %v5158, 0.044715
    %v5223 = vmul.f32 %v5159, 0.044715
    %v5224 = vmul.f32 %v5160, 0.044715
    %v5225 = vmul.f32 %v5161, 0.044715
    %v5226 = vmul.f32 %v5162, 0.044715
    %v5227 = vmul.f32 %v5163, 0.044715
    %v5228 = vmul.f32 %v5164, 0.044715
    %v5229 = vadd.f32 %v4846, %v5165
    %v5230 = vadd.f32 %v4848, %v5166
    %v5231 = vadd.f32 %v4959, %v5167
    %v5232 = vadd.f32 %v4961, %v5168
    %v5233 = vadd.f32 %v4850, %v5169
    %v5234 = vadd.f32 %v4852, %v5170
    %v5235 = vadd.f32 %v4963, %v5171
    %v5236 = vadd.f32 %v4965, %v5172
    %v5237 = vadd.f32 %v4856, %v5173
    %v5238 = vadd.f32 %v4858, %v5174
    %v5239 = vadd.f32 %v4969, %v5175
    %v5240 = vadd.f32 %v4971, %v5176
    %v5241 = vadd.f32 %v4860, %v5177
    %v5242 = vadd.f32 %v4862, %v5178
    %v5243 = vadd.f32 %v4973, %v5179
    %v5244 = vadd.f32 %v4975, %v5180
    %v5245 = vadd.f32 %v4866, %v5181
    %v5246 = vadd.f32 %v4868, %v5182
    %v5247 = vadd.f32 %v4979, %v5183
    %v5248 = vadd.f32 %v4981, %v5184
    %v5249 = vadd.f32 %v4870, %v5185
    %v5250 = vadd.f32 %v4872, %v5186
    %v5251 = vadd.f32 %v4983, %v5187
    %v5252 = vadd.f32 %v4985, %v5188
    %v5253 = vadd.f32 %v4876, %v5189
    %v5254 = vadd.f32 %v4878, %v5190
    %v5255 = vadd.f32 %v4989, %v5191
    %v5256 = vadd.f32 %v4991, %v5192
    %v5257 = vadd.f32 %v4880, %v5193
    %v5258 = vadd.f32 %v4882, %v5194
    %v5259 = vadd.f32 %v4993, %v5195
    %v5260 = vadd.f32 %v4995, %v5196
    %v5261 = vadd.f32 %v4886, %v5197
    %v5262 = vadd.f32 %v4888, %v5198
    %v5263 = vadd.f32 %v4999, %v5199
    %v5264 = vadd.f32 %v5001, %v5200
    %v5265 = vadd.f32 %v4890, %v5201
    %v5266 = vadd.f32 %v4892, %v5202
    %v5267 = vadd.f32 %v5003, %v5203
    %v5268 = vadd.f32 %v5005, %v5204
    %v5269 = vadd.f32 %v4896, %v5205
    %v5270 = vadd.f32 %v4898, %v5206
    %v5271 = vadd.f32 %v5009, %v5207
    %v5272 = vadd.f32 %v5011, %v5208
    %v5273 = vadd.f32 %v4900, %v5209
    %v5274 = vadd.f32 %v4902, %v5210
    %v5275 = vadd.f32 %v5013, %v5211
    %v5276 = vadd.f32 %v5015, %v5212
    %v5277 = vadd.f32 %v4906, %v5213
    %v5278 = vadd.f32 %v4908, %v5214
    %v5279 = vadd.f32 %v5019, %v5215
    %v5280 = vadd.f32 %v5021, %v5216
    %v5281 = vadd.f32 %v4910, %v5217
    %v5282 = vadd.f32 %v4912, %v5218
    %v5283 = vadd.f32 %v5023, %v5219
    %v5284 = vadd.f32 %v5025, %v5220
    %v5285 = vadd.f32 %v4916, %v5221
    %v5286 = vadd.f32 %v4918, %v5222
    %v5287 = vadd.f32 %v5029, %v5223
    %v5288 = vadd.f32 %v5031, %v5224
    %v5289 = vadd.f32 %v4920, %v5225
    %v5290 = vadd.f32 %v4922, %v5226
    %v5291 = vadd.f32 %v5033, %v5227
    %v5292 = vadd.f32 %v5035, %v5228
    %v5293 = vmul.f32 %v5229, 0.7978846
    %v5294 = vmul.f32 %v5230, 0.7978846
    %v5295 = vmul.f32 %v5231, 0.7978846
    %v5296 = vmul.f32 %v5232, 0.7978846
    %v5297 = vmul.f32 %v5233, 0.7978846
    %v5298 = vmul.f32 %v5234, 0.7978846
    %v5299 = vmul.f32 %v5235, 0.7978846
    %v5300 = vmul.f32 %v5236, 0.7978846
    %v5301 = vmul.f32 %v5237, 0.7978846
    %v5302 = vmul.f32 %v5238, 0.7978846
    %v5303 = vmul.f32 %v5239, 0.7978846
    %v5304 = vmul.f32 %v5240, 0.7978846
    %v5305 = vmul.f32 %v5241, 0.7978846
    %v5306 = vmul.f32 %v5242, 0.7978846
    %v5307 = vmul.f32 %v5243, 0.7978846
    %v5308 = vmul.f32 %v5244, 0.7978846
    %v5309 = vmul.f32 %v5245, 0.7978846
    %v5310 = vmul.f32 %v5246, 0.7978846
    %v5311 = vmul.f32 %v5247, 0.7978846
    %v5312 = vmul.f32 %v5248, 0.7978846
    %v5313 = vmul.f32 %v5249, 0.7978846
    %v5314 = vmul.f32 %v5250, 0.7978846
    %v5315 = vmul.f32 %v5251, 0.7978846
    %v5316 = vmul.f32 %v5252, 0.7978846
    %v5317 = vmul.f32 %v5253, 0.7978846
    %v5318 = vmul.f32 %v5254, 0.7978846
    %v5319 = vmul.f32 %v5255, 0.7978846
    %v5320 = vmul.f32 %v5256, 0.7978846
    %v5321 = vmul.f32 %v5257, 0.7978846
    %v5322 = vmul.f32 %v5258, 0.7978846
    %v5323 = vmul.f32 %v5259, 0.7978846
    %v5324 = vmul.f32 %v5260, 0.7978846
    %v5325 = vmul.f32 %v5261, 0.7978846
    %v5326 = vmul.f32 %v5262, 0.7978846
    %v5327 = vmul.f32 %v5263, 0.7978846
    %v5328 = vmul.f32 %v5264, 0.7978846
    %v5329 = vmul.f32 %v5265, 0.7978846
    %v5330 = vmul.f32 %v5266, 0.7978846
    %v5331 = vmul.f32 %v5267, 0.7978846
    %v5332 = vmul.f32 %v5268, 0.7978846
    %v5333 = vmul.f32 %v5269, 0.7978846
    %v5334 = vmul.f32 %v5270, 0.7978846
    %v5335 = vmul.f32 %v5271, 0.7978846
    %v5336 = vmul.f32 %v5272, 0.7978846
    %v5337 = vmul.f32 %v5273, 0.7978846
    %v5338 = vmul.f32 %v5274, 0.7978846
    %v5339 = vmul.f32 %v5275, 0.7978846
    %v5340 = vmul.f32 %v5276, 0.7978846
    %v5341 = vmul.f32 %v5277, 0.7978846
    %v5342 = vmul.f32 %v5278, 0.7978846
    %v5343 = vmul.f32 %v5279, 0.7978846
    %v5344 = vmul.f32 %v5280, 0.7978846
    %v5345 = vmul.f32 %v5281, 0.7978846
    %v5346 = vmul.f32 %v5282, 0.7978846
    %v5347 = vmul.f32 %v5283, 0.7978846
    %v5348 = vmul.f32 %v5284, 0.7978846
    %v5349 = vmul.f32 %v5285, 0.7978846
    %v5350 = vmul.f32 %v5286, 0.7978846
    %v5351 = vmul.f32 %v5287, 0.7978846
    %v5352 = vmul.f32 %v5288, 0.7978846
    %v5353 = vmul.f32 %v5289, 0.7978846
    %v5354 = vmul.f32 %v5290, 0.7978846
    %v5355 = vmul.f32 %v5291, 0.7978846
    %v5356 = vmul.f32 %v5292, 0.7978846
    %v5357 = vtanh.pop %v5293
    %v5358 = vtanh.pop %v5294
    %v5359 = vtanh.pop %v5295
    %v5360 = vtanh.pop %v5296
    %v5361 = vtanh.pop %v5297
    %v5362 = vtanh.pop %v5298
    %v5363 = vtanh.pop %v5299
    %v5364 = vtanh.pop %v5300
    %v5365 = vtanh.pop %v5301
    %v5366 = vtanh.pop %v5302
    %v5367 = vtanh.pop %v5303
    %v5368 = vtanh.pop %v5304
    %v5369 = vtanh.pop %v5305
    %v5370 = vtanh.pop %v5306
    %v5371 = vtanh.pop %v5307
    %v5372 = vtanh.pop %v5308
    %v5373 = vtanh.pop %v5309
    %v5374 = vtanh.pop %v5310
    %v5375 = vtanh.pop %v5311
    %v5376 = vtanh.pop %v5312
    %v5377 = vtanh.pop %v5313
    %v5378 = vtanh.pop %v5314
    %v5379 = vtanh.pop %v5315
    %v5380 = vtanh.pop %v5316
    %v5381 = vtanh.pop %v5317
    %v5382 = vtanh.pop %v5318
    %v5383 = vtanh.pop %v5319
    %v5384 = vtanh.pop %v5320
    %v5385 = vtanh.pop %v5321
    %v5386 = vtanh.pop %v5322
    %v5387 = vtanh.pop %v5323
    %v5388 = vtanh.pop %v5324
    %v5389 = vtanh.pop %v5325
    %v5390 = vtanh.pop %v5326
    %v5391 = vtanh.pop %v5327
    %v5392 = vtanh.pop %v5328
    %v5393 = vtanh.pop %v5329
    %v5394 = vtanh.pop %v5330
    %v5395 = vtanh.pop %v5331
    %v5396 = vtanh.pop %v5332
    %v5397 = vtanh.pop %v5333
    %v5398 = vtanh.pop %v5334
    %v5399 = vtanh.pop %v5335
    %v5400 = vtanh.pop %v5336
    %v5401 = vtanh.pop %v5337
    %v5402 = vtanh.pop %v5338
    %v5403 = vtanh.pop %v5339
    %v5404 = vtanh.pop %v5340
    %v5405 = vtanh.pop %v5341
    %v5406 = vtanh.pop %v5342
    %v5407 = vtanh.pop %v5343
    %v5408 = vtanh.pop %v5344
    %v5409 = vtanh.pop %v5345
    %v5410 = vtanh.pop %v5346
    %v5411 = vtanh.pop %v5347
    %v5412 = vtanh.pop %v5348
    %v5413 = vtanh.pop %v5349
    %v5414 = vtanh.pop %v5350
    %v5415 = vtanh.pop %v5351
    %v5416 = vtanh.pop %v5352
    %v5417 = vtanh.pop %v5353
    %v5418 = vtanh.pop %v5354
    %v5419 = vtanh.pop %v5355
    %v5420 = vtanh.pop %v5356
    %v5421 = vadd.f32 %v5357, 1.0
    %v5422 = vadd.f32 %v5358, 1.0
    %v5423 = vadd.f32 %v5359, 1.0
    %v5424 = vadd.f32 %v5360, 1.0
    %v5425 = vadd.f32 %v5361, 1.0
    %v5426 = vadd.f32 %v5362, 1.0
    %v5427 = vadd.f32 %v5363, 1.0
    %v5428 = vadd.f32 %v5364, 1.0
    %v5429 = vadd.f32 %v5365, 1.0
    %v5430 = vadd.f32 %v5366, 1.0
    %v5431 = vadd.f32 %v5367, 1.0
    %v5432 = vadd.f32 %v5368, 1.0
    %v5433 = vadd.f32 %v5369, 1.0
    %v5434 = vadd.f32 %v5370, 1.0
    %v5435 = vadd.f32 %v5371, 1.0
    %v5436 = vadd.f32 %v5372, 1.0
    %v5437 = vadd.f32 %v5373, 1.0
    %v5438 = vadd.f32 %v5374, 1.0
    %v5439 = vadd.f32 %v5375, 1.0
    %v5440 = vadd.f32 %v5376, 1.0
    %v5441 = vadd.f32 %v5377, 1.0
    %v5442 = vadd.f32 %v5378, 1.0
    %v5443 = vadd.f32 %v5379, 1.0
    %v5444 = vadd.f32 %v5380, 1.0
    %v5445 = vadd.f32 %v5381, 1.0
    %v5446 = vadd.f32 %v5382, 1.0
    %v5447 = vadd.f32 %v5383, 1.0
    %v5448 = vadd.f32 %v5384, 1.0
    %v5449 = vadd.f32 %v5385, 1.0
    %v5450 = vadd.f32 %v5386, 1.0
    %v5451 = vadd.f32 %v5387, 1.0
    %v5452 = vadd.f32 %v5388, 1.0
    %v5453 = vadd.f32 %v5389, 1.0
    %v5454 = vadd.f32 %v5390, 1.0
    %v5455 = vadd.f32 %v5391, 1.0
    %v5456 = vadd.f32 %v5392, 1.0
    %v5457 = vadd.f32 %v5393, 1.0
    %v5458 = vadd.f32 %v5394, 1.0
    %v5459 = vadd.f32 %v5395, 1.0
    %v5460 = vadd.f32 %v5396, 1.0
    %v5461 = vadd.f32 %v5397, 1.0
    %v5462 = vadd.f32 %v5398, 1.0
    %v5463 = vadd.f32 %v5399, 1.0
    %v5464 = vadd.f32 %v5400, 1.0
    %v5465 = vadd.f32 %v5401, 1.0
    %v5466 = vadd.f32 %v5402, 1.0
    %v5467 = vadd.f32 %v5403, 1.0
    %v5468 = vadd.f32 %v5404, 1.0
    %v5469 = vadd.f32 %v5405, 1.0
    %v5470 = vadd.f32 %v5406, 1.0
    %v5471 = vadd.f32 %v5407, 1.0
    %v5472 = vadd.f32 %v5408, 1.0
    %v5473 = vadd.f32 %v5409, 1.0
    %v5474 = vadd.f32 %v5410, 1.0
    %v5475 = vadd.f32 %v5411, 1.0
    %v5476 = vadd.f32 %v5412, 1.0
    %v5477 = vadd.f32 %v5413, 1.0
    %v5478 = vadd.f32 %v5414, 1.0
    %v5479 = vadd.f32 %v5415, 1.0
    %v5480 = vadd.f32 %v5416, 1.0
    %v5481 = vadd.f32 %v5417, 1.0
    %v5482 = vadd.f32 %v5418, 1.0
    %v5483 = vadd.f32 %v5419, 1.0
    %v5484 = vadd.f32 %v5420, 1.0
    %v5485 = vmul.f32 %v5421, 0.5
    %v5486 = vmul.f32 %v5422, 0.5
    %v5487 = vmul.f32 %v5423, 0.5
    %v5488 = vmul.f32 %v5424, 0.5
    %v5489 = vmul.f32 %v5425, 0.5
    %v5490 = vmul.f32 %v5426, 0.5
    %v5491 = vmul.f32 %v5427, 0.5
    %v5492 = vmul.f32 %v5428, 0.5
    %v5493 = vmul.f32 %v5429, 0.5
    %v5494 = vmul.f32 %v5430, 0.5
    %v5495 = vmul.f32 %v5431, 0.5
    %v5496 = vmul.f32 %v5432, 0.5
    %v5497 = vmul.f32 %v5433, 0.5
    %v5498 = vmul.f32 %v5434, 0.5
    %v5499 = vmul.f32 %v5435, 0.5
    %v5500 = vmul.f32 %v5436, 0.5
    %v5501 = vmul.f32 %v5437, 0.5
    %v5502 = vmul.f32 %v5438, 0.5
    %v5503 = vmul.f32 %v5439, 0.5
    %v5504 = vmul.f32 %v5440, 0.5
    %v5505 = vmul.f32 %v5441, 0.5
    %v5506 = vmul.f32 %v5442, 0.5
    %v5507 = vmul.f32 %v5443, 0.5
    %v5508 = vmul.f32 %v5444, 0.5
    %v5509 = vmul.f32 %v5445, 0.5
    %v5510 = vmul.f32 %v5446, 0.5
    %v5511 = vmul.f32 %v5447, 0.5
    %v5512 = vmul.f32 %v5448, 0.5
    %v5513 = vmul.f32 %v5449, 0.5
    %v5514 = vmul.f32 %v5450, 0.5
    %v5515 = vmul.f32 %v5451, 0.5
    %v5516 = vmul.f32 %v5452, 0.5
    %v5517 = vmul.f32 %v5453, 0.5
    %v5518 = vmul.f32 %v5454, 0.5
    %v5519 = vmul.f32 %v5455, 0.5
    %v5520 = vmul.f32 %v5456, 0.5
    %v5521 = vmul.f32 %v5457, 0.5
    %v5522 = vmul.f32 %v5458, 0.5
    %v5523 = vmul.f32 %v5459, 0.5
    %v5524 = vmul.f32 %v5460, 0.5
    %v5525 = vmul.f32 %v5461, 0.5
    %v5526 = vmul.f32 %v5462, 0.5
    %v5527 = vmul.f32 %v5463, 0.5
    %v5528 = vmul.f32 %v5464, 0.5
    %v5529 = vmul.f32 %v5465, 0.5
    %v5530 = vmul.f32 %v5466, 0.5
    %v5531 = vmul.f32 %v5467, 0.5
    %v5532 = vmul.f32 %v5468, 0.5
    %v5533 = vmul.f32 %v5469, 0.5
    %v5534 = vmul.f32 %v5470, 0.5
    %v5535 = vmul.f32 %v5471, 0.5
    %v5536 = vmul.f32 %v5472, 0.5
    %v5537 = vmul.f32 %v5473, 0.5
    %v5538 = vmul.f32 %v5474, 0.5
    %v5539 = vmul.f32 %v5475, 0.5
    %v5540 = vmul.f32 %v5476, 0.5
    %v5541 = vmul.f32 %v5477, 0.5
    %v5542 = vmul.f32 %v5478, 0.5
    %v5543 = vmul.f32 %v5479, 0.5
    %v5544 = vmul.f32 %v5480, 0.5
    %v5545 = vmul.f32 %v5481, 0.5
    %v5546 = vmul.f32 %v5482, 0.5
    %v5547 = vmul.f32 %v5483, 0.5
    %v5548 = vmul.f32 %v5484, 0.5
    %v5549 = vmul.f32 %v4846, %v5485
    %v5550 = vmul.f32 %v4848, %v5486
    %v5551 = vmul.f32 %v4959, %v5487
    %v5552 = vmul.f32 %v4961, %v5488
    %v5553 = vmul.f32 %v4850, %v5489
    %v5554 = vmul.f32 %v4852, %v5490
    %v5555 = vmul.f32 %v4963, %v5491
    %v5556 = vmul.f32 %v4965, %v5492
    %v5557 = vmul.f32 %v4856, %v5493
    %v5558 = vmul.f32 %v4858, %v5494
    %v5559 = vmul.f32 %v4969, %v5495
    %v5560 = vmul.f32 %v4971, %v5496
    %v5561 = vmul.f32 %v4860, %v5497
    %v5562 = vmul.f32 %v4862, %v5498
    %v5563 = vmul.f32 %v4973, %v5499
    %v5564 = vmul.f32 %v4975, %v5500
    %v5565 = vmul.f32 %v4866, %v5501
    %v5566 = vmul.f32 %v4868, %v5502
    %v5567 = vmul.f32 %v4979, %v5503
    %v5568 = vmul.f32 %v4981, %v5504
    %v5569 = vmul.f32 %v4870, %v5505
    %v5570 = vmul.f32 %v4872, %v5506
    %v5571 = vmul.f32 %v4983, %v5507
    %v5572 = vmul.f32 %v4985, %v5508
    %v5573 = vmul.f32 %v4876, %v5509
    %v5574 = vmul.f32 %v4878, %v5510
    %v5575 = vmul.f32 %v4989, %v5511
    %v5576 = vmul.f32 %v4991, %v5512
    %v5577 = vmul.f32 %v4880, %v5513
    %v5578 = vmul.f32 %v4882, %v5514
    %v5579 = vmul.f32 %v4993, %v5515
    %v5580 = vmul.f32 %v4995, %v5516
    %v5581 = vmul.f32 %v4886, %v5517
    %v5582 = vmul.f32 %v4888, %v5518
    %v5583 = vmul.f32 %v4999, %v5519
    %v5584 = vmul.f32 %v5001, %v5520
    %v5585 = vmul.f32 %v4890, %v5521
    %v5586 = vmul.f32 %v4892, %v5522
    %v5587 = vmul.f32 %v5003, %v5523
    %v5588 = vmul.f32 %v5005, %v5524
    %v5589 = vmul.f32 %v4896, %v5525
    %v5590 = vmul.f32 %v4898, %v5526
    %v5591 = vmul.f32 %v5009, %v5527
    %v5592 = vmul.f32 %v5011, %v5528
    %v5593 = vmul.f32 %v4900, %v5529
    %v5594 = vmul.f32 %v4902, %v5530
    %v5595 = vmul.f32 %v5013, %v5531
    %v5596 = vmul.f32 %v5015, %v5532
    %v5597 = vmul.f32 %v4906, %v5533
    %v5598 = vmul.f32 %v4908, %v5534
    %v5599 = vmul.f32 %v5019, %v5535
    %v5600 = vmul.f32 %v5021, %v5536
    %v5601 = vmul.f32 %v4910, %v5537
    %v5602 = vmul.f32 %v4912, %v5538
    %v5603 = vmul.f32 %v5023, %v5539
    %v5604 = vmul.f32 %v5025, %v5540
    %v5605 = vmul.f32 %v4916, %v5541
    %v5606 = vmul.f32 %v4918, %v5542
    %v5607 = vmul.f32 %v5029, %v5543
    %v5608 = vmul.f32 %v5031, %v5544
    %v5609 = vmul.f32 %v4920, %v5545
    %v5610 = vmul.f32 %v4922, %v5546
    %v5611 = vmul.f32 %v5033, %v5547
    %v5612 = vmul.f32 %v5035, %v5548
    %v5613 = vpack.c.bf16 %v5553, %v5549
    %v5614 = vpack.c.bf16 %v5554, %v5550
    %v5615 = vpack.c.bf16 %v5555, %v5551
    %v5616 = vpack.c.bf16 %v5556, %v5552
    %v5617 = vpack.c.bf16 %v5561, %v5557
    %v5618 = vpack.c.bf16 %v5562, %v5558
    %v5619 = vpack.c.bf16 %v5563, %v5559
    %v5620 = vpack.c.bf16 %v5564, %v5560
    %v5621 = vpack.c.bf16 %v5569, %v5565
    %v5622 = vpack.c.bf16 %v5570, %v5566
    %v5623 = vpack.c.bf16 %v5571, %v5567
    %v5624 = vpack.c.bf16 %v5572, %v5568
    %v5625 = vpack.c.bf16 %v5577, %v5573
    %v5626 = vpack.c.bf16 %v5578, %v5574
    %v5627 = vpack.c.bf16 %v5579, %v5575
    %v5628 = vpack.c.bf16 %v5580, %v5576
    %v5629 = vpack.c.bf16 %v5585, %v5581
    %v5630 = vpack.c.bf16 %v5586, %v5582
    %v5631 = vpack.c.bf16 %v5587, %v5583
    %v5632 = vpack.c.bf16 %v5588, %v5584
    %v5633 = vpack.c.bf16 %v5593, %v5589
    %v5634 = vpack.c.bf16 %v5594, %v5590
    %v5635 = vpack.c.bf16 %v5595, %v5591
    %v5636 = vpack.c.bf16 %v5596, %v5592
    %v5637 = vpack.c.bf16 %v5601, %v5597
    %v5638 = vpack.c.bf16 %v5602, %v5598
    %v5639 = vpack.c.bf16 %v5603, %v5599
    %v5640 = vpack.c.bf16 %v5604, %v5600
    %v5641 = vpack.c.bf16 %v5609, %v5605
    %v5642 = vpack.c.bf16 %v5610, %v5606
    %v5643 = vpack.c.bf16 %v5611, %v5607
    %v5644 = vpack.c.bf16 %v5612, %v5608
    %v5709 = vunpack.c.l.b16 %v419
    %v5710 = vunpack.c.l.b16 %v420
    %v5711 = vunpack.c.l.b16 %v421
    %v5712 = vunpack.c.l.b16 %v422
    %v5713 = vunpack.c.l.b16 %v423
    %v5714 = vunpack.c.l.b16 %v424
    %v5715 = vunpack.c.l.b16 %v425
    %v5716 = vunpack.c.l.b16 %v426
    %v5717 = vunpack.c.l.b16 %v427
    %v5718 = vunpack.c.l.b16 %v428
    %v5719 = vunpack.c.l.b16 %v429
    %v5720 = vunpack.c.l.b16 %v430
    %v5721 = vunpack.c.l.b16 %v431
    %v5722 = vunpack.c.l.b16 %v432
    %v5723 = vunpack.c.l.b16 %v433
    %v5724 = vunpack.c.l.b16 %v434
    %v5725 = vunpack.c.l.b16 %v435
    %v5726 = vunpack.c.l.b16 %v436
    %v5727 = vunpack.c.l.b16 %v437
    %v5728 = vunpack.c.l.b16 %v438
    %v5729 = vunpack.c.l.b16 %v439
    %v5730 = vunpack.c.l.b16 %v440
    %v5731 = vunpack.c.l.b16 %v441
    %v5732 = vunpack.c.l.b16 %v442
    %v5733 = vunpack.c.l.b16 %v443
    %v5734 = vunpack.c.l.b16 %v444
    %v5735 = vunpack.c.l.b16 %v445
    %v5736 = vunpack.c.l.b16 %v446
    %v5737 = vunpack.c.l.b16 %v447
    %v5738 = vunpack.c.l.b16 %v448
    %v5739 = vunpack.c.l.b16 %v449
    %v5740 = vunpack.c.l.b16 %v450
    %v5741 = vunpack.c.l.b16 %v451
    %v5742 = vunpack.c.l.b16 %v452
    %v5743 = vunpack.c.l.b16 %v453
    %v5744 = vunpack.c.l.b16 %v454
    %v5745 = vunpack.c.l.b16 %v455
    %v5746 = vunpack.c.l.b16 %v456
    %v5747 = vunpack.c.l.b16 %v457
    %v5748 = vunpack.c.l.b16 %v458
    %v5749 = vunpack.c.l.b16 %v459
    %v5750 = vunpack.c.l.b16 %v460
    %v5751 = vunpack.c.l.b16 %v461
    %v5752 = vunpack.c.l.b16 %v462
    %v5753 = vunpack.c.l.b16 %v463
    %v5754 = vunpack.c.l.b16 %v464
    %v5755 = vunpack.c.l.b16 %v465
    %v5756 = vunpack.c.l.b16 %v466
    %v5757 = vunpack.c.l.b16 %v467
    %v5758 = vunpack.c.l.b16 %v468
    %v5759 = vunpack.c.l.b16 %v469
    %v5760 = vunpack.c.l.b16 %v470
    %v5761 = vunpack.c.l.b16 %v471
    %v5762 = vunpack.c.l.b16 %v472
    %v5763 = vunpack.c.l.b16 %v473
    %v5764 = vunpack.c.l.b16 %v474
    %v5765 = vunpack.c.l.b16 %v475
    %v5766 = vunpack.c.l.b16 %v476
    %v5767 = vunpack.c.l.b16 %v477
    %v5768 = vunpack.c.l.b16 %v478
    %v5769 = vunpack.c.l.b16 %v479
    %v5770 = vunpack.c.l.b16 %v480
    %v5771 = vunpack.c.l.b16 %v481
    %v5772 = vunpack.c.l.b16 %v482
    %v5773 = vpack.c.b16 %v5710, %v5709
    %v5774 = vpack.c.b16 %v5712, %v5711
    %v5775 = vpack.c.b16 %v5714, %v5713
    %v5776 = vpack.c.b16 %v5716, %v5715
    %v5777 = vpack.c.b16 %v5718, %v5717
    %v5778 = vpack.c.b16 %v5720, %v5719
    %v5779 = vpack.c.b16 %v5722, %v5721
    %v5780 = vpack.c.b16 %v5724, %v5723
    %v5781 = vpack.c.b16 %v5726, %v5725
    %v5782 = vpack.c.b16 %v5728, %v5727
    %v5783 = vpack.c.b16 %v5730, %v5729
    %v5784 = vpack.c.b16 %v5732, %v5731
    %v5785 = vpack.c.b16 %v5734, %v5733
    %v5786 = vpack.c.b16 %v5736, %v5735
    %v5787 = vpack.c.b16 %v5738, %v5737
    %v5788 = vpack.c.b16 %v5740, %v5739
    %v5789 = vpack.c.b16 %v5742, %v5741
    %v5790 = vpack.c.b16 %v5744, %v5743
    %v5791 = vpack.c.b16 %v5746, %v5745
    %v5792 = vpack.c.b16 %v5748, %v5747
    %v5793 = vpack.c.b16 %v5750, %v5749
    %v5794 = vpack.c.b16 %v5752, %v5751
    %v5795 = vpack.c.b16 %v5754, %v5753
    %v5796 = vpack.c.b16 %v5756, %v5755
    %v5797 = vpack.c.b16 %v5758, %v5757
    %v5798 = vpack.c.b16 %v5760, %v5759
    %v5799 = vpack.c.b16 %v5762, %v5761
    %v5800 = vpack.c.b16 %v5764, %v5763
    %v5801 = vpack.c.b16 %v5766, %v5765
    %v5802 = vpack.c.b16 %v5768, %v5767
    %v5803 = vpack.c.b16 %v5770, %v5769
    %v5804 = vpack.c.b16 %v5772, %v5771
    %5837 = vmatprep.subr.bf16.mxu0 0
    %5838 = vmatpush1.bf16.msra.mxu0 %v5780
    %5839 = vmatprep.subr.bf16.mxu0 0
    %5840 = vmatpush1.bf16.msra.mxu0 %v5779
    %5841 = vmatprep.subr.bf16.mxu0 0
    %5842 = vmatpush1.bf16.msra.mxu0 %v5778
    %5843 = vmatprep.subr.bf16.mxu0 0
    %5844 = vmatpush1.bf16.msra.mxu0 %v5777
    %5845 = vmatprep.subr.bf16.mxu0 0
    %5846 = vmatpush1.bf16.msra.mxu0 %v5776
    %5847 = vmatprep.subr.bf16.mxu0 0
    %5848 = vmatpush1.bf16.msra.mxu0 %v5775
    %5849 = vmatprep.subr.bf16.mxu0 0
    %5850 = vmatpush1.bf16.msra.mxu0 %v5774
    %5851 = vmatprep.subr.bf16.mxu0 0
    %5852 = vmatpush1.bf16.msra.mxu0 %v5773
    %5853 = vmatprep.subr.bf16.mxu0 0
    %5854 = vmatpush2.bf16.msra.mxu0 %v5788
    %5855 = vmatprep.subr.bf16.mxu0 0
    %5856 = vmatpush2.bf16.msra.mxu0 %v5787
    %5857 = vmatprep.subr.bf16.mxu0 0
    %5858 = vmatpush2.bf16.msra.mxu0 %v5786
    %5859 = vmatprep.subr.bf16.mxu0 0
    %5860 = vmatpush2.bf16.msra.mxu0 %v5785
    %5861 = vmatprep.subr.bf16.mxu0 0
    %5862 = vmatpush2.bf16.msra.mxu0 %v5784
    %5863 = vmatprep.subr.bf16.mxu0 0
    %5864 = vmatpush2.bf16.msra.mxu0 %v5783
    %5865 = vmatprep.subr.bf16.mxu0 0
    %5866 = vmatpush2.bf16.msra.mxu0 %v5782
    %5867 = vmatprep.subr.bf16.mxu0 0
    %5868 = vmatpush2.bf16.msra.mxu0 %v5781
    %5869 = vmatprep.mubr.bf16.mxu0 %v5614
    %5870 = vmatmul.mubr.bf16.gmra.mxu0 %v5613
    %v5871 = vpop.f32.mrf.mxu0
    %v5872 = vadd.f32 %v492, %v5871
    %v5873 = vpop.f32.mrf.mxu0
    %v5874 = vpop.f32.mrf.mxu0
    %v5875 = vadd.f32 %v492, %v5874
    %v5876 = vpop.f32.mrf.mxu0
    %5877 = vmatprep.mubr.bf16.mxu0 %v5618
    %5878 = vmatmul.mubr.bf16.gmra.mxu0 %v5617
    %v5879 = vpop.f32.mrf.mxu0
    %v5880 = vadd.f32 %v492, %v5879
    %v5881 = vpop.f32.mrf.mxu0
    %v5882 = vpop.f32.mrf.mxu0
    %v5883 = vadd.f32 %v492, %v5882
    %v5884 = vpop.f32.mrf.mxu0
    %5885 = vmatprep.mubr.bf16.mxu0 %v5622
    %5886 = vmatmul.mubr.bf16.gmra.mxu0 %v5621
    %v5887 = vpop.f32.mrf.mxu0
    %v5888 = vadd.f32 %v492, %v5887
    %v5889 = vpop.f32.mrf.mxu0
    %v5890 = vpop.f32.mrf.mxu0
    %v5891 = vadd.f32 %v492, %v5890
    %v5892 = vpop.f32.mrf.mxu0
    %5893 = vmatprep.mubr.bf16.mxu0 %v5626
    %5894 = vmatmul.mubr.bf16.gmra.mxu0 %v5625
    %v5895 = vpop.f32.mrf.mxu0
    %v5896 = vadd.f32 %v492, %v5895
    %v5897 = vpop.f32.mrf.mxu0
    %v5898 = vpop.f32.mrf.mxu0
    %v5899 = vadd.f32 %v492, %v5898
    %v5900 = vpop.f32.mrf.mxu0
    %5901 = vmatprep.mubr.bf16.mxu0 %v5630
    %5902 = vmatmul.mubr.bf16.gmra.mxu0 %v5629
    %v5903 = vpop.f32.mrf.mxu0
    %v5904 = vadd.f32 %v492, %v5903
    %v5905 = vpop.f32.mrf.mxu0
    %v5906 = vpop.f32.mrf.mxu0
    %v5907 = vadd.f32 %v492, %v5906
    %v5908 = vpop.f32.mrf.mxu0
    %5909 = vmatprep.mubr.bf16.mxu0 %v5634
    %5910 = vmatmul.mubr.bf16.gmra.mxu0 %v5633
    %v5911 = vpop.f32.mrf.mxu0
    %v5912 = vadd.f32 %v492, %v5911
    %v5913 = vpop.f32.mrf.mxu0
    %v5914 = vpop.f32.mrf.mxu0
    %v5915 = vadd.f32 %v492, %v5914
    %v5916 = vpop.f32.mrf.mxu0
    %5917 = vmatprep.mubr.bf16.mxu0 %v5638
    %5918 = vmatmul.mubr.bf16.gmra.mxu0 %v5637
    %v5919 = vpop.f32.mrf.mxu0
    %v5920 = vadd.f32 %v492, %v5919
    %v5921 = vpop.f32.mrf.mxu0
    %v5922 = vpop.f32.mrf.mxu0
    %v5923 = vadd.f32 %v492, %v5922
    %v5924 = vpop.f32.mrf.mxu0
    %5925 = vmatprep.mubr.bf16.mxu0 %v5642
    %5926 = vmatmul.mubr.bf16.gmra.mxu0 %v5641
    %v5927 = vpop.f32.mrf.mxu0
    %v5928 = vadd.f32 %v492, %v5927
    %v5929 = vpop.f32.mrf.mxu0
    %v5930 = vpop.f32.mrf.mxu0
    %v5931 = vadd.f32 %v492, %v5930
    %v5932 = vpop.f32.mrf.mxu0
    %5933 = vdwg.mxu0
    %5934 = vmatprep.subr.bf16.mxu0 0
    %5935 = vmatpush1.bf16.msra.mxu0 %v5796
    %5936 = vmatprep.subr.bf16.mxu0 0
    %5937 = vmatpush1.bf16.msra.mxu0 %v5795
    %5938 = vmatprep.subr.bf16.mxu0 0
    %5939 = vmatpush1.bf16.msra.mxu0 %v5794
    %5940 = vmatprep.subr.bf16.mxu0 0
    %5941 = vmatpush1.bf16.msra.mxu0 %v5793
    %5942 = vmatprep.subr.bf16.mxu0 0
    %5943 = vmatpush1.bf16.msra.mxu0 %v5792
    %5944 = vmatprep.subr.bf16.mxu0 0
    %5945 = vmatpush1.bf16.msra.mxu0 %v5791
    %5946 = vmatprep.subr.bf16.mxu0 0
    %5947 = vmatpush1.bf16.msra.mxu0 %v5790
    %5948 = vmatprep.subr.bf16.mxu0 0
    %5949 = vmatpush1.bf16.msra.mxu0 %v5789
    %5950 = vmatprep.subr.bf16.mxu0 0
    %5951 = vmatpush2.bf16.msra.mxu0 %v5804
    %5952 = vmatprep.subr.bf16.mxu0 0
    %5953 = vmatpush2.bf16.msra.mxu0 %v5803
    %5954 = vmatprep.subr.bf16.mxu0 0
    %5955 = vmatpush2.bf16.msra.mxu0 %v5802
    %5956 = vmatprep.subr.bf16.mxu0 0
    %5957 = vmatpush2.bf16.msra.mxu0 %v5801
    %5958 = vmatprep.subr.bf16.mxu0 0
    %5959 = vmatpush2.bf16.msra.mxu0 %v5800
    %5960 = vmatprep.subr.bf16.mxu0 0
    %5961 = vmatpush2.bf16.msra.mxu0 %v5799
    %5962 = vmatprep.subr.bf16.mxu0 0
    %5963 = vmatpush2.bf16.msra.mxu0 %v5798
    %5964 = vmatprep.subr.bf16.mxu0 0
    %5965 = vmatpush2.bf16.msra.mxu0 %v5797
    %5966 = vmatprep.mubr.bf16.mxu0 %v5616
    %5967 = vmatmul.mubr.bf16.gmra.mxu0 %v5615
    %v5968 = vpop.f32.mrf.mxu0
    %v5969 = vadd.f32 %v5872, %v5968
    %v5970 = vpop.f32.mrf.mxu0
    %v5971 = vpop.f32.mrf.mxu0
    %v5972 = vadd.f32 %v5875, %v5971
    %v5973 = vpop.f32.mrf.mxu0
    %5974 = vmatprep.mubr.bf16.mxu0 %v5620
    %5975 = vmatmul.mubr.bf16.gmra.mxu0 %v5619
    %v5976 = vpop.f32.mrf.mxu0
    %v5977 = vadd.f32 %v5880, %v5976
    %v5978 = vpop.f32.mrf.mxu0
    %v5979 = vpop.f32.mrf.mxu0
    %v5980 = vadd.f32 %v5883, %v5979
    %v5981 = vpop.f32.mrf.mxu0
    %5982 = vmatprep.mubr.bf16.mxu0 %v5624
    %5983 = vmatmul.mubr.bf16.gmra.mxu0 %v5623
    %v5984 = vpop.f32.mrf.mxu0
    %v5985 = vadd.f32 %v5888, %v5984
    %v5986 = vpop.f32.mrf.mxu0
    %v5987 = vpop.f32.mrf.mxu0
    %v5988 = vadd.f32 %v5891, %v5987
    %v5989 = vpop.f32.mrf.mxu0
    %5990 = vmatprep.mubr.bf16.mxu0 %v5628
    %5991 = vmatmul.mubr.bf16.gmra.mxu0 %v5627
    %v5992 = vpop.f32.mrf.mxu0
    %v5993 = vadd.f32 %v5896, %v5992
    %v5994 = vpop.f32.mrf.mxu0
    %v5995 = vpop.f32.mrf.mxu0
    %v5996 = vadd.f32 %v5899, %v5995
    %v5997 = vpop.f32.mrf.mxu0
    %5998 = vmatprep.mubr.bf16.mxu0 %v5632
    %5999 = vmatmul.mubr.bf16.gmra.mxu0 %v5631
    %v6000 = vpop.f32.mrf.mxu0
    %v6001 = vadd.f32 %v5904, %v6000
    %v6002 = vpop.f32.mrf.mxu0
    %v6003 = vpop.f32.mrf.mxu0
    %v6004 = vadd.f32 %v5907, %v6003
    %v6005 = vpop.f32.mrf.mxu0
    %6006 = vmatprep.mubr.bf16.mxu0 %v5636
    %6007 = vmatmul.mubr.bf16.gmra.mxu0 %v5635
    %v6008 = vpop.f32.mrf.mxu0
    %v6009 = vadd.f32 %v5912, %v6008
    %v6010 = vpop.f32.mrf.mxu0
    %v6011 = vpop.f32.mrf.mxu0
    %v6012 = vadd.f32 %v5915, %v6011
    %v6013 = vpop.f32.mrf.mxu0
    %6014 = vmatprep.mubr.bf16.mxu0 %v5640
    %6015 = vmatmul.mubr.bf16.gmra.mxu0 %v5639
    %v6016 = vpop.f32.mrf.mxu0
    %v6017 = vadd.f32 %v5920, %v6016
    %v6018 = vpop.f32.mrf.mxu0
    %v6019 = vpop.f32.mrf.mxu0
    %v6020 = vadd.f32 %v5923, %v6019
    %v6021 = vpop.f32.mrf.mxu0
    %6022 = vmatprep.mubr.bf16.mxu0 %v5644
    %6023 = vmatmul.mubr.bf16.gmra.mxu0 %v5643
    %v6024 = vpop.f32.mrf.mxu0
    %v6025 = vadd.f32 %v5928, %v6024
    %v6026 = vpop.f32.mrf.mxu0
    %v6027 = vpop.f32.mrf.mxu0
    %v6028 = vadd.f32 %v5931, %v6027
    %v6029 = vpop.f32.mrf.mxu0
    %6030 = vdwg.mxu0
    %v6031 = vadd.f32 %v4398, %v5969
    %v6032 = vadd.f32 %v4399, %v5972
    %v6033 = vadd.f32 %v4400, %v5977
    %v6034 = vadd.f32 %v4401, %v5980
    %v6035 = vadd.f32 %v4402, %v5985
    %v6036 = vadd.f32 %v4403, %v5988
    %v6037 = vadd.f32 %v4404, %v5993
    %v6038 = vadd.f32 %v4405, %v5996
    %v6039 = vadd.f32 %v4406, %v6001
    %v6040 = vadd.f32 %v4407, %v6004
    %v6041 = vadd.f32 %v4408, %v6009
    %v6042 = vadd.f32 %v4409, %v6012
    %v6043 = vadd.f32 %v4410, %v6017
    %v6044 = vadd.f32 %v4411, %v6020
    %v6045 = vadd.f32 %v4412, %v6025
    %v6046 = vadd.f32 %v4413, %v6028
    %v6047 = vld [vmem:[#allocation2 + $0xa00] sm:$0xff]
    %v6048 = vld [vmem:[#allocation2 + $0xa08] sm:$0xf]
    %v6049 = vld [vmem:[#allocation2 + $0xa10] sm:$0xff]
    %v6050 = vld [vmem:[#allocation2 + $0xa18] sm:$0xf]
    %v6051 = vld [vmem:[#allocation2 + $0xa20] sm:$0xff]
    %v6052 = vld [vmem:[#allocation2 + $0xa28] sm:$0xf]
    %v6053 = vld [vmem:[#allocation2 + $0xa30] sm:$0xff]
    %v6054 = vld [vmem:[#allocation2 + $0xa38] sm:$0xf]
    %v6055 = vld [vmem:[#allocation2 + $0xa40] sm:$0xff]
    %v6056 = vld [vmem:[#allocation2 + $0xa48] sm:$0xf]
    %v6057 = vld [vmem:[#allocation2 + $0xa50] sm:$0xff]
    %v6058 = vld [vmem:[#allocation2 + $0xa58] sm:$0xf]
    %v6059 = vld [vmem:[#allocation2 + $0xa60] sm:$0xff]
    %v6060 = vld [vmem:[#allocation2 + $0xa68] sm:$0xf]
    %v6061 = vld [vmem:[#allocation2 + $0xa70] sm:$0xff]
    %v6062 = vld [vmem:[#allocation2 + $0xa78] sm:$0xf]
    %v6063 = vld [vmem:[#allocation2 + $0xa80] sm:$0xff]
    %v6064 = vld [vmem:[#allocation2 + $0xa88] sm:$0xf]
    %v6065 = vld [vmem:[#allocation2 + $0xa90] sm:$0xff]
    %v6066 = vld [vmem:[#allocation2 + $0xa98] sm:$0xf]
    %v6067 = vld [vmem:[#allocation2 + $0xaa0] sm:$0xff]
    %v6068 = vld [vmem:[#allocation2 + $0xaa8] sm:$0xf]
    %v6069 = vld [vmem:[#allocation2 + $0xab0] sm:$0xff]
    %v6070 = vld [vmem:[#allocation2 + $0xab8] sm:$0xf]
    %v6071 = vld [vmem:[#allocation2 + $0xac0] sm:$0xff]
    %v6072 = vld [vmem:[#allocation2 + $0xac8] sm:$0xf]
    %v6073 = vld [vmem:[#allocation2 + $0xad0] sm:$0xff]
    %v6074 = vld [vmem:[#allocation2 + $0xad8] sm:$0xf]
    %v6075 = vld [vmem:[#allocation2 + $0xae0] sm:$0xff]
    %v6076 = vld [vmem:[#allocation2 + $0xae8] sm:$0xf]
    %v6077 = vld [vmem:[#allocation2 + $0xaf0] sm:$0xff]
    %v6078 = vld [vmem:[#allocation2 + $0xaf8] sm:$0xf]
    %v6079 = vld [vmem:[#allocation2 + $0xb00] sm:$0xf]
    %v6080 = vld [vmem:[#allocation2 + $0xb10] sm:$0xf]
    %v6081 = vld [vmem:[#allocation2 + $0xb20] sm:$0xf]
    %v6082 = vld [vmem:[#allocation2 + $0xb30] sm:$0xf]
    %v6083 = vld [vmem:[#allocation2 + $0xb40] sm:$0xf]
    %v6084 = vld [vmem:[#allocation2 + $0xb50] sm:$0xf]
    %v6085 = vld [vmem:[#allocation2 + $0xb60] sm:$0xf]
    %v6086 = vld [vmem:[#allocation2 + $0xb70] sm:$0xf]
    %v6087 = vld [vmem:[#allocation2 + $0xb80] sm:$0xf]
    %v6088 = vld [vmem:[#allocation2 + $0xb90] sm:$0xf]
    %v6089 = vld [vmem:[#allocation2 + $0xba0] sm:$0xf]
    %v6090 = vld [vmem:[#allocation2 + $0xbb0] sm:$0xf]
    %v6091 = vld [vmem:[#allocation2 + $0xbc0] sm:$0xf]
    %v6092 = vld [vmem:[#allocation2 + $0xbd0] sm:$0xf]
    %v6093 = vld [vmem:[#allocation2 + $0xbe0] sm:$0xf]
    %v6094 = vld [vmem:[#allocation2 + $0xbf0] sm:$0xf]
    %v6095 = vld [vmem:[#allocation2 + $0xc00] sm:$0xff]
    %v6096 = vld [vmem:[#allocation2 + $0xc08] sm:$0xff]
    %v6097 = vld [vmem:[#allocation2 + $0xc10] sm:$0xff]
    %v6098 = vld [vmem:[#allocation2 + $0xc18] sm:$0xff]
    %v6099 = vld [vmem:[#allocation2 + $0xc20] sm:$0xff]
    %v6100 = vld [vmem:[#allocation2 + $0xc28] sm:$0xff]
    %v6101 = vld [vmem:[#allocation2 + $0xc30] sm:$0xff]
    %v6102 = vld [vmem:[#allocation2 + $0xc38] sm:$0xff]
    %v6103 = vld [vmem:[#allocation2 + $0xc40] sm:$0xff]
    %v6104 = vld [vmem:[#allocation2 + $0xc48] sm:$0xff]
    %v6105 = vld [vmem:[#allocation2 + $0xc50] sm:$0xff]
    %v6106 = vld [vmem:[#allocation2 + $0xc58] sm:$0xff]
    %v6107 = vld [vmem:[#allocation2 + $0xc60] sm:$0xff]
    %v6108 = vld [vmem:[#allocation2 + $0xc68] sm:$0xff]
    %v6109 = vld [vmem:[#allocation2 + $0xc70] sm:$0xff]
    %v6110 = vld [vmem:[#allocation2 + $0xc78] sm:$0xff]
    %v6111 = vld [vmem:[#allocation2 + $0xc80] sm:$0xff]
    %v6112 = vld [vmem:[#allocation2 + $0xc88] sm:$0xff]
    %v6113 = vld [vmem:[#allocation2 + $0xc90] sm:$0xff]
    %v6114 = vld [vmem:[#allocation2 + $0xc98] sm:$0xff]
    %v6115 = vld [vmem:[#allocation2 + $0xca0] sm:$0xff]
    %v6116 = vld [vmem:[#allocation2 + $0xca8] sm:$0xff]
    %v6117 = vld [vmem:[#allocation2 + $0xcb0] sm:$0xff]
    %v6118 = vld [vmem:[#allocation2 + $0xcb8] sm:$0xff]
    %v6119 = vld [vmem:[#allocation2 + $0xcc0] sm:$0xff]
    %v6120 = vld [vmem:[#allocation2 + $0xcc8] sm:$0xff]
    %v6121 = vld [vmem:[#allocation2 + $0xcd0] sm:$0xff]
    %v6122 = vld [vmem:[#allocation2 + $0xcd8] sm:$0xff]
    %v6123 = vld [vmem:[#allocation2 + $0xce0] sm:$0xff]
    %v6124 = vld [vmem:[#allocation2 + $0xce8] sm:$0xff]
    %v6125 = vld [vmem:[#allocation2 + $0xcf0] sm:$0xff]
    %v6126 = vld [vmem:[#allocation2 + $0xcf8] sm:$0xff]
    %v6127 = vld [vmem:[#allocation2 + $0xd00] sm:$0xf]
    %v6128 = vld [vmem:[#allocation2 + $0xd10] sm:$0xf]
    %v6129 = vld [vmem:[#allocation2 + $0xd20] sm:$0xf]
    %v6130 = vld [vmem:[#allocation2 + $0xd30] sm:$0xf]
    %v6131 = vld [vmem:[#allocation2 + $0xd40] sm:$0xf]
    %v6132 = vld [vmem:[#allocation2 + $0xd50] sm:$0xf]
    %v6133 = vld [vmem:[#allocation2 + $0xd60] sm:$0xf]
    %v6134 = vld [vmem:[#allocation2 + $0xd70] sm:$0xf]
    %v6135 = vld [vmem:[#allocation2 + $0xd80] sm:$0xf]
    %v6136 = vld [vmem:[#allocation2 + $0xd90] sm:$0xf]
    %v6137 = vld [vmem:[#allocation2 + $0xda0] sm:$0xf]
    %v6138 = vld [vmem:[#allocation2 + $0xdb0] sm:$0xf]
    %v6139 = vld [vmem:[#allocation2 + $0xdc0] sm:$0xf]
    %v6140 = vld [vmem:[#allocation2 + $0xdd0] sm:$0xf]
    %v6141 = vld [vmem:[#allocation2 + $0xde0] sm:$0xf]
    %v6142 = vld [vmem:[#allocation2 + $0xdf0] sm:$0xf]
    %v6143 = vld [vmem:[#allocation2 + $0xe00] sm:$0xf]
    %v6144 = vld [vmem:[#allocation2 + $0xe10] sm:$0xf]
    %v6145 = vld [vmem:[#allocation2 + $0xe20] sm:$0xf]
    %v6146 = vld [vmem:[#allocation2 + $0xe30] sm:$0xf]
    %v6147 = vld [vmem:[#allocation2 + $0xe40] sm:$0xf]
    %v6148 = vld [vmem:[#allocation2 + $0xe50] sm:$0xf]
    %v6149 = vld [vmem:[#allocation2 + $0xe60] sm:$0xf]
    %v6150 = vld [vmem:[#allocation2 + $0xe70] sm:$0xf]
    %v6151 = vld [vmem:[#allocation2 + $0xe80] sm:$0xf]
    %v6152 = vld [vmem:[#allocation2 + $0xe90] sm:$0xf]
    %v6153 = vld [vmem:[#allocation2 + $0xea0] sm:$0xf]
    %v6154 = vld [vmem:[#allocation2 + $0xeb0] sm:$0xf]
    %v6155 = vld [vmem:[#allocation2 + $0xec0] sm:$0xf]
    %v6156 = vld [vmem:[#allocation2 + $0xed0] sm:$0xf]
    %v6157 = vld [vmem:[#allocation2 + $0xee0] sm:$0xf]
    %v6158 = vld [vmem:[#allocation2 + $0xef0] sm:$0xf]
    %v6159 = vld [vmem:[#allocation2 + $0xf00] sm:$0xf]
    %v6160 = vld [vmem:[#allocation2 + $0xf10] sm:$0xf]
    %v6161 = vld [vmem:[#allocation2 + $0xf20] sm:$0xf]
    %v6162 = vld [vmem:[#allocation2 + $0xf30] sm:$0xf]
    %v6163 = vld [vmem:[#allocation2 + $0xf40] sm:$0xf]
    %v6164 = vld [vmem:[#allocation2 + $0xf50] sm:$0xf]
    %v6165 = vld [vmem:[#allocation2 + $0xf60] sm:$0xf]
    %v6166 = vld [vmem:[#allocation2 + $0xf70] sm:$0xf]
    %v6167 = vld [vmem:[#allocation2 + $0xf80] sm:$0xf]
    %v6168 = vld [vmem:[#allocation2 + $0xf90] sm:$0xf]
    %v6169 = vld [vmem:[#allocation2 + $0xfa0] sm:$0xf]
    %v6170 = vld [vmem:[#allocation2 + $0xfb0] sm:$0xf]
    %v6171 = vld [vmem:[#allocation2 + $0xfc0] sm:$0xf]
    %v6172 = vld [vmem:[#allocation2 + $0xfd0] sm:$0xf]
    %v6173 = vld [vmem:[#allocation2 + $0xfe0] sm:$0xf]
    %v6174 = vld [vmem:[#allocation2 + $0xff0] sm:$0xf]
    %v6175 = vld [vmem:[#allocation2 + $0x1000] sm:$0xf]
    %v6176 = vld [vmem:[#allocation2 + $0x1010] sm:$0xf]
    %v6177 = vld [vmem:[#allocation2 + $0x1020] sm:$0xf]
    %v6178 = vld [vmem:[#allocation2 + $0x1030] sm:$0xf]
    %v6179 = vld [vmem:[#allocation2 + $0x1040] sm:$0xf]
    %v6180 = vld [vmem:[#allocation2 + $0x1050] sm:$0xf]
    %v6181 = vld [vmem:[#allocation2 + $0x1060] sm:$0xf]
    %v6182 = vld [vmem:[#allocation2 + $0x1070] sm:$0xf]
    %v6183 = vld [vmem:[#allocation2 + $0x1080] sm:$0xf]
    %v6184 = vld [vmem:[#allocation2 + $0x1090] sm:$0xf]
    %v6185 = vld [vmem:[#allocation2 + $0x10a0] sm:$0xf]
    %v6186 = vld [vmem:[#allocation2 + $0x10b0] sm:$0xf]
    %v6187 = vld [vmem:[#allocation2 + $0x10c0] sm:$0xf]
    %v6188 = vld [vmem:[#allocation2 + $0x10d0] sm:$0xf]
    %v6189 = vld [vmem:[#allocation2 + $0x10e0] sm:$0xf]
    %v6190 = vld [vmem:[#allocation2 + $0x10f0] sm:$0xf]
    %v6191 = vld [vmem:[#allocation4 + $0xa3] ss:$0 sm:$0xff]
    %v6192 = vld [vmem:[#allocation4 + $0xa4] ss:$0 sm:$0xff]
    %s6193 = scalar_lea.vmem [#allocation4], 165
    %v6194 = vld [vmem:[%s6193] ss:$8 sm:$0x7]
    %v6195 = vld [vmem:[#allocation4 + $0xa6] ss:$0 sm:$0xff]
    %v6196 = vld [vmem:[#allocation4 + $0xa7] ss:$0 sm:$0xff]
    %v6197 = vld [vmem:[#allocation4 + $0xc0] ss:$0 sm:$0xff]
    %s6198 = scalar_lea.vmem [#allocation4], 193
    %v6199 = vld [vmem:[%s6198] ss:$8 sm:$0xf]
    %v6200 = vld [vmem:[#allocation4 + $0xc2] ss:$0 sm:$0xff]
    %6201 = vadd.xlane.f32.xlu0 %v6031
    %v6202 = vpop.xlane.xlu0 %6201
    %6203 = vadd.xlane.f32.xlu0 %v6032
    %v6204 = vpop.xlane.xlu0 %6203
    %6205 = vadd.xlane.f32.xlu0 %v6033
    %v6206 = vpop.xlane.xlu0 %6205
    %6207 = vadd.xlane.f32.xlu0 %v6034
    %v6208 = vpop.xlane.xlu0 %6207
    %6209 = vadd.xlane.f32.xlu0 %v6035
    %v6210 = vpop.xlane.xlu0 %6209
    %6211 = vadd.xlane.f32.xlu0 %v6036
    %v6212 = vpop.xlane.xlu0 %6211
    %6213 = vadd.xlane.f32.xlu0 %v6037
    %v6214 = vpop.xlane.xlu0 %6213
    %6215 = vadd.xlane.f32.xlu0 %v6038
    %v6216 = vpop.xlane.xlu0 %6215
    %6217 = vadd.xlane.f32.xlu0 %v6039
    %v6218 = vpop.xlane.xlu0 %6217
    %6219 = vadd.xlane.f32.xlu0 %v6040
    %v6220 = vpop.xlane.xlu0 %6219
    %6221 = vadd.xlane.f32.xlu0 %v6041
    %v6222 = vpop.xlane.xlu0 %6221
    %6223 = vadd.xlane.f32.xlu0 %v6042
    %v6224 = vpop.xlane.xlu0 %6223
    %6225 = vadd.xlane.f32.xlu0 %v6043
    %v6226 = vpop.xlane.xlu0 %6225
    %6227 = vadd.xlane.f32.xlu0 %v6044
    %v6228 = vpop.xlane.xlu0 %6227
    %6229 = vadd.xlane.f32.xlu0 %v6045
    %v6230 = vpop.xlane.xlu0 %6229
    %6231 = vadd.xlane.f32.xlu0 %v6046
    %v6232 = vpop.xlane.xlu0 %6231
    %v6233 = vmul.f32 %v6202, %v525
    %v6234 = vmul.f32 %v6204, %v525
    %v6235 = vmul.f32 %v6206, %v525
    %v6236 = vmul.f32 %v6208, %v525
    %v6237 = vmul.f32 %v6210, %v525
    %v6238 = vmul.f32 %v6212, %v525
    %v6239 = vmul.f32 %v6214, %v525
    %v6240 = vmul.f32 %v6216, %v525
    %v6241 = vmul.f32 %v6218, %v525
    %v6242 = vmul.f32 %v6220, %v525
    %v6243 = vmul.f32 %v6222, %v525
    %v6244 = vmul.f32 %v6224, %v525
    %v6245 = vmul.f32 %v6226, %v525
    %v6246 = vmul.f32 %v6228, %v525
    %v6247 = vmul.f32 %v6230, %v525
    %v6248 = vmul.f32 %v6232, %v525
    %v6249 = vsub.f32 %v6031, %v6233
    %v6250 = vsub.f32 %v6032, %v6234
    %v6251 = vsub.f32 %v6033, %v6235
    %v6252 = vsub.f32 %v6034, %v6236
    %v6253 = vsub.f32 %v6035, %v6237
    %v6254 = vsub.f32 %v6036, %v6238
    %v6255 = vsub.f32 %v6037, %v6239
    %v6256 = vsub.f32 %v6038, %v6240
    %v6257 = vsub.f32 %v6039, %v6241
    %v6258 = vsub.f32 %v6040, %v6242
    %v6259 = vsub.f32 %v6041, %v6243
    %v6260 = vsub.f32 %v6042, %v6244
    %v6261 = vsub.f32 %v6043, %v6245
    %v6262 = vsub.f32 %v6044, %v6246
    %v6263 = vsub.f32 %v6045, %v6247
    %v6264 = vsub.f32 %v6046, %v6248
    %v6265 = vmul.f32 %v6249, %v6249
    %v6266 = vmul.f32 %v6250, %v6250
    %v6267 = vmul.f32 %v6251, %v6251
    %v6268 = vmul.f32 %v6252, %v6252
    %v6269 = vmul.f32 %v6253, %v6253
    %v6270 = vmul.f32 %v6254, %v6254
    %v6271 = vmul.f32 %v6255, %v6255
    %v6272 = vmul.f32 %v6256, %v6256
    %v6273 = vmul.f32 %v6257, %v6257
    %v6274 = vmul.f32 %v6258, %v6258
    %v6275 = vmul.f32 %v6259, %v6259
    %v6276 = vmul.f32 %v6260, %v6260
    %v6277 = vmul.f32 %v6261, %v6261
    %v6278 = vmul.f32 %v6262, %v6262
    %v6279 = vmul.f32 %v6263, %v6263
    %v6280 = vmul.f32 %v6264, %v6264
    %6281 = vadd.xlane.f32.xlu0 %v6265
    %v6282 = vpop.xlane.xlu0 %6281
    %6283 = vadd.xlane.f32.xlu0 %v6266
    %v6284 = vpop.xlane.xlu0 %6283
    %6285 = vadd.xlane.f32.xlu0 %v6267
    %v6286 = vpop.xlane.xlu0 %6285
    %6287 = vadd.xlane.f32.xlu0 %v6268
    %v6288 = vpop.xlane.xlu0 %6287
    %6289 = vadd.xlane.f32.xlu0 %v6269
    %v6290 = vpop.xlane.xlu0 %6289
    %6291 = vadd.xlane.f32.xlu0 %v6270
    %v6292 = vpop.xlane.xlu0 %6291
    %6293 = vadd.xlane.f32.xlu0 %v6271
    %v6294 = vpop.xlane.xlu0 %6293
    %6295 = vadd.xlane.f32.xlu0 %v6272
    %v6296 = vpop.xlane.xlu0 %6295
    %6297 = vadd.xlane.f32.xlu0 %v6273
    %v6298 = vpop.xlane.xlu0 %6297
    %6299 = vadd.xlane.f32.xlu0 %v6274
    %v6300 = vpop.xlane.xlu0 %6299
    %6301 = vadd.xlane.f32.xlu0 %v6275
    %v6302 = vpop.xlane.xlu0 %6301
    %6303 = vadd.xlane.f32.xlu0 %v6276
    %v6304 = vpop.xlane.xlu0 %6303
    %6305 = vadd.xlane.f32.xlu0 %v6277
    %v6306 = vpop.xlane.xlu0 %6305
    %6307 = vadd.xlane.f32.xlu0 %v6278
    %v6308 = vpop.xlane.xlu0 %6307
    %6309 = vadd.xlane.f32.xlu0 %v6279
    %v6310 = vpop.xlane.xlu0 %6309
    %6311 = vadd.xlane.f32.xlu0 %v6280
    %v6312 = vpop.xlane.xlu0 %6311
    %v6313 = vmul.f32 %v6282, %v525
    %v6314 = vmul.f32 %v6284, %v525
    %v6315 = vmul.f32 %v6286, %v525
    %v6316 = vmul.f32 %v6288, %v525
    %v6317 = vmul.f32 %v6290, %v525
    %v6318 = vmul.f32 %v6292, %v525
    %v6319 = vmul.f32 %v6294, %v525
    %v6320 = vmul.f32 %v6296, %v525
    %v6321 = vmul.f32 %v6298, %v525
    %v6322 = vmul.f32 %v6300, %v525
    %v6323 = vmul.f32 %v6302, %v525
    %v6324 = vmul.f32 %v6304, %v525
    %v6325 = vmul.f32 %v6306, %v525
    %v6326 = vmul.f32 %v6308, %v525
    %v6327 = vmul.f32 %v6310, %v525
    %v6328 = vmul.f32 %v6312, %v525
    %v6329 = vadd.f32 %v6313, 1e-06
    %v6330 = vadd.f32 %v6314, 1e-06
    %v6331 = vadd.f32 %v6315, 1e-06
    %v6332 = vadd.f32 %v6316, 1e-06
    %v6333 = vadd.f32 %v6317, 1e-06
    %v6334 = vadd.f32 %v6318, 1e-06
    %v6335 = vadd.f32 %v6319, 1e-06
    %v6336 = vadd.f32 %v6320, 1e-06
    %v6337 = vadd.f32 %v6321, 1e-06
    %v6338 = vadd.f32 %v6322, 1e-06
    %v6339 = vadd.f32 %v6323, 1e-06
    %v6340 = vadd.f32 %v6324, 1e-06
    %v6341 = vadd.f32 %v6325, 1e-06
    %v6342 = vadd.f32 %v6326, 1e-06
    %v6343 = vadd.f32 %v6327, 1e-06
    %v6344 = vadd.f32 %v6328, 1e-06
    %v6345 = vrsqrt.pop %v6329
    %v6346 = vrsqrt.pop %v6330
    %v6347 = vrsqrt.pop %v6331
    %v6348 = vrsqrt.pop %v6332
    %v6349 = vrsqrt.pop %v6333
    %v6350 = vrsqrt.pop %v6334
    %v6351 = vrsqrt.pop %v6335
    %v6352 = vrsqrt.pop %v6336
    %v6353 = vrsqrt.pop %v6337
    %v6354 = vrsqrt.pop %v6338
    %v6355 = vrsqrt.pop %v6339
    %v6356 = vrsqrt.pop %v6340
    %v6357 = vrsqrt.pop %v6341
    %v6358 = vrsqrt.pop %v6342
    %v6359 = vrsqrt.pop %v6343
    %v6360 = vrsqrt.pop %v6344
    %v6361 = vmul.f32 %v6249, %v6345
    %v6362 = vmul.f32 %v6250, %v6346
    %v6363 = vmul.f32 %v6251, %v6347
    %v6364 = vmul.f32 %v6252, %v6348
    %v6365 = vmul.f32 %v6253, %v6349
    %v6366 = vmul.f32 %v6254, %v6350
    %v6367 = vmul.f32 %v6255, %v6351
    %v6368 = vmul.f32 %v6256, %v6352
    %v6369 = vmul.f32 %v6257, %v6353
    %v6370 = vmul.f32 %v6258, %v6354
    %v6371 = vmul.f32 %v6259, %v6355
    %v6372 = vmul.f32 %v6260, %v6356
    %v6373 = vmul.f32 %v6261, %v6357
    %v6374 = vmul.f32 %v6262, %v6358
    %v6375 = vmul.f32 %v6263, %v6359
    %v6376 = vmul.f32 %v6264, %v6360
    %v6377 = vmul.f32 %v6361, %v6191
    %v6378 = vmul.f32 %v6362, %v6191
    %v6379 = vmul.f32 %v6363, %v6191
    %v6380 = vmul.f32 %v6364, %v6191
    %v6381 = vmul.f32 %v6365, %v6191
    %v6382 = vmul.f32 %v6366, %v6191
    %v6383 = vmul.f32 %v6367, %v6191
    %v6384 = vmul.f32 %v6368, %v6191
    %v6385 = vmul.f32 %v6369, %v6191
    %v6386 = vmul.f32 %v6370, %v6191
    %v6387 = vmul.f32 %v6371, %v6191
    %v6388 = vmul.f32 %v6372, %v6191
    %v6389 = vmul.f32 %v6373, %v6191
    %v6390 = vmul.f32 %v6374, %v6191
    %v6391 = vmul.f32 %v6375, %v6191
    %v6392 = vmul.f32 %v6376, %v6191
    %v6393 = vadd.f32 %v6377, %v6192
    %v6394 = vadd.f32 %v6378, %v6192
    %v6395 = vadd.f32 %v6379, %v6192
    %v6396 = vadd.f32 %v6380, %v6192
    %v6397 = vadd.f32 %v6381, %v6192
    %v6398 = vadd.f32 %v6382, %v6192
    %v6399 = vadd.f32 %v6383, %v6192
    %v6400 = vadd.f32 %v6384, %v6192
    %v6401 = vadd.f32 %v6385, %v6192
    %v6402 = vadd.f32 %v6386, %v6192
    %v6403 = vadd.f32 %v6387, %v6192
    %v6404 = vadd.f32 %v6388, %v6192
    %v6405 = vadd.f32 %v6389, %v6192
    %v6406 = vadd.f32 %v6390, %v6192
    %v6407 = vadd.f32 %v6391, %v6192
    %v6408 = vadd.f32 %v6392, %v6192
    %v6409 = vpack.c.bf16 %v6394, %v6393
    %v6410 = vpack.c.bf16 %v6396, %v6395
    %v6411 = vpack.c.bf16 %v6398, %v6397
    %v6412 = vpack.c.bf16 %v6400, %v6399
    %v6413 = vpack.c.bf16 %v6402, %v6401
    %v6414 = vpack.c.bf16 %v6404, %v6403
    %v6415 = vpack.c.bf16 %v6406, %v6405
    %v6416 = vpack.c.bf16 %v6408, %v6407
    %v6418 = vlaneseq
    %v6419 = vshrl.u32 %v6418, 7
    %v6420 = vsub.s32 0, %v6419
    %v6421 = vrot.slane %v6194, %v6420
    %v6422 = vlaneseq
    %v6423 = vshrl.u32 %v6422, 7
    %v6424 = vsub.s32 1, %v6423
    %v6425 = vrot.slane %v6194, %v6424
    %v6426 = vlaneseq
    %v6427 = vshrl.u32 %v6426, 7
    %v6428 = vsub.s32 2, %v6427
    %v6429 = vrot.slane %v6194, %v6428
    %v6465 = vunpack.c.l.b16 %v6047
    %v6466 = vunpack.c.h.b16 %v6047
    %v6467 = vunpack.c.l.b16 %v6048
    %v6468 = vunpack.c.l.b16 %v6049
    %v6469 = vunpack.c.h.b16 %v6049
    %v6470 = vunpack.c.l.b16 %v6050
    %v6471 = vunpack.c.l.b16 %v6051
    %v6472 = vunpack.c.h.b16 %v6051
    %v6473 = vunpack.c.l.b16 %v6052
    %v6474 = vunpack.c.l.b16 %v6053
    %v6475 = vunpack.c.h.b16 %v6053
    %v6476 = vunpack.c.l.b16 %v6054
    %v6477 = vunpack.c.l.b16 %v6055
    %v6478 = vunpack.c.h.b16 %v6055
    %v6479 = vunpack.c.l.b16 %v6056
    %v6480 = vunpack.c.l.b16 %v6057
    %v6481 = vunpack.c.h.b16 %v6057
    %v6482 = vunpack.c.l.b16 %v6058
    %v6483 = vunpack.c.l.b16 %v6059
    %v6484 = vunpack.c.h.b16 %v6059
    %v6485 = vunpack.c.l.b16 %v6060
    %v6486 = vunpack.c.l.b16 %v6061
    %v6487 = vunpack.c.h.b16 %v6061
    %v6488 = vunpack.c.l.b16 %v6062
    %v6489 = vunpack.c.l.b16 %v6063
    %v6490 = vunpack.c.h.b16 %v6063
    %v6491 = vunpack.c.l.b16 %v6064
    %v6492 = vunpack.c.l.b16 %v6065
    %v6493 = vunpack.c.h.b16 %v6065
    %v6494 = vunpack.c.l.b16 %v6066
    %v6495 = vunpack.c.l.b16 %v6067
    %v6496 = vunpack.c.h.b16 %v6067
    %v6497 = vunpack.c.l.b16 %v6068
    %v6498 = vunpack.c.l.b16 %v6069
    %v6499 = vunpack.c.h.b16 %v6069
    %v6500 = vunpack.c.l.b16 %v6070
    %v6501 = vunpack.c.l.b16 %v6071
    %v6502 = vunpack.c.h.b16 %v6071
    %v6503 = vunpack.c.l.b16 %v6072
    %v6504 = vunpack.c.l.b16 %v6073
    %v6505 = vunpack.c.h.b16 %v6073
    %v6506 = vunpack.c.l.b16 %v6074
    %v6507 = vunpack.c.l.b16 %v6075
    %v6508 = vunpack.c.h.b16 %v6075
    %v6509 = vunpack.c.l.b16 %v6076
    %v6510 = vunpack.c.l.b16 %v6077
    %v6511 = vunpack.c.h.b16 %v6077
    %v6512 = vunpack.c.l.b16 %v6078
    %v6513 = vpack.c.b16 %v6468, %v6465
    %v6514 = vpack.c.b16 %v6469, %v6466
    %v6515 = vpack.c.b16 %v6470, %v6467
    %v6516 = vpack.c.b16 %v6474, %v6471
    %v6517 = vpack.c.b16 %v6475, %v6472
    %v6518 = vpack.c.b16 %v6476, %v6473
    %v6519 = vpack.c.b16 %v6480, %v6477
    %v6520 = vpack.c.b16 %v6481, %v6478
    %v6521 = vpack.c.b16 %v6482, %v6479
    %v6522 = vpack.c.b16 %v6486, %v6483
    %v6523 = vpack.c.b16 %v6487, %v6484
    %v6524 = vpack.c.b16 %v6488, %v6485
    %v6525 = vpack.c.b16 %v6492, %v6489
    %v6526 = vpack.c.b16 %v6493, %v6490
    %v6527 = vpack.c.b16 %v6494, %v6491
    %v6528 = vpack.c.b16 %v6498, %v6495
    %v6529 = vpack.c.b16 %v6499, %v6496
    %v6530 = vpack.c.b16 %v6500, %v6497
    %v6531 = vpack.c.b16 %v6504, %v6501
    %v6532 = vpack.c.b16 %v6505, %v6502
    %v6533 = vpack.c.b16 %v6506, %v6503
    %v6534 = vpack.c.b16 %v6510, %v6507
    %v6535 = vpack.c.b16 %v6511, %v6508
    %v6536 = vpack.c.b16 %v6512, %v6509
    %6561 = vmatprep.subr.bf16.mxu0 %v6535
    %6562 = vmatpush1.bf16.msra.mxu0 %v6534
    %6563 = vmatprep.subr.bf16.mxu0 %v6532
    %6564 = vmatpush1.bf16.msra.mxu0 %v6531
    %6565 = vmatprep.subr.bf16.mxu0 %v6529
    %6566 = vmatpush1.bf16.msra.mxu0 %v6528
    %6567 = vmatprep.subr.bf16.mxu0 %v6526
    %6568 = vmatpush1.bf16.msra.mxu0 %v6525
    %6569 = vmatprep.subr.bf16.mxu0 %v6523
    %6570 = vmatpush1.bf16.msra.mxu0 %v6522
    %6571 = vmatprep.subr.bf16.mxu0 %v6520
    %6572 = vmatpush1.bf16.msra.mxu0 %v6519
    %6573 = vmatprep.subr.bf16.mxu0 %v6517
    %6574 = vmatpush1.bf16.msra.mxu0 %v6516
    %6575 = vmatprep.subr.bf16.mxu0 %v6514
    %6576 = vmatpush1.bf16.msra.mxu0 %v6513
    %6577 = vmatprep.subr.bf16.mxu0 0
    %6578 = vmatpush2.bf16.msra.mxu0 0
    %6579 = vmatprep.subr.bf16.mxu0 0
    %6580 = vmatpush2.bf16.msra.mxu0 0
    %6581 = vmatprep.subr.bf16.mxu0 0
    %6582 = vmatpush2.bf16.msra.mxu0 0
    %6583 = vmatprep.subr.bf16.mxu0 0
    %6584 = vmatpush2.bf16.msra.mxu0 0
    %6585 = vmatprep.subr.bf16.mxu0 0
    %6586 = vmatpush2.bf16.msra.mxu0 0
    %6587 = vmatprep.subr.bf16.mxu0 0
    %6588 = vmatpush2.bf16.msra.mxu0 0
    %6589 = vmatprep.subr.bf16.mxu0 0
    %6590 = vmatpush2.bf16.msra.mxu0 0
    %6591 = vmatprep.subr.bf16.mxu0 0
    %6592 = vmatpush2.bf16.msra.mxu0 0
    %6593 = vmatprep.mubr.bf16.mxu0 0
    %6594 = vmatmul.mubr.bf16.gmra.mxu0 %v6409
    %v6595 = vpop.f32.mrf.mxu0
    %v6596 = vadd.f32 %v6421, %v6595
    %v6597 = vpop.f32.mrf.mxu0
    %v6598 = vadd.f32 %v6425, %v6597
    %v6599 = vpop.f32.mrf.mxu0
    %v6600 = vadd.f32 %v6421, %v6599
    %v6601 = vpop.f32.mrf.mxu0
    %v6602 = vadd.f32 %v6425, %v6601
    %6603 = vmatprep.mubr.bf16.mxu0 0
    %6604 = vmatmul.mubr.bf16.gmra.mxu0 %v6410
    %v6605 = vpop.f32.mrf.mxu0
    %v6606 = vadd.f32 %v6421, %v6605
    %v6607 = vpop.f32.mrf.mxu0
    %v6608 = vadd.f32 %v6425, %v6607
    %v6609 = vpop.f32.mrf.mxu0
    %v6610 = vadd.f32 %v6421, %v6609
    %v6611 = vpop.f32.mrf.mxu0
    %v6612 = vadd.f32 %v6425, %v6611
    %6613 = vmatprep.mubr.bf16.mxu0 0
    %6614 = vmatmul.mubr.bf16.gmra.mxu0 %v6411
    %v6615 = vpop.f32.mrf.mxu0
    %v6616 = vadd.f32 %v6421, %v6615
    %v6617 = vpop.f32.mrf.mxu0
    %v6618 = vadd.f32 %v6425, %v6617
    %v6619 = vpop.f32.mrf.mxu0
    %v6620 = vadd.f32 %v6421, %v6619
    %v6621 = vpop.f32.mrf.mxu0
    %v6622 = vadd.f32 %v6425, %v6621
    %6623 = vmatprep.mubr.bf16.mxu0 0
    %6624 = vmatmul.mubr.bf16.gmra.mxu0 %v6412
    %v6625 = vpop.f32.mrf.mxu0
    %v6626 = vadd.f32 %v6421, %v6625
    %v6627 = vpop.f32.mrf.mxu0
    %v6628 = vadd.f32 %v6425, %v6627
    %v6629 = vpop.f32.mrf.mxu0
    %v6630 = vadd.f32 %v6421, %v6629
    %v6631 = vpop.f32.mrf.mxu0
    %v6632 = vadd.f32 %v6425, %v6631
    %6633 = vmatprep.mubr.bf16.mxu0 0
    %6634 = vmatmul.mubr.bf16.gmra.mxu0 %v6413
    %v6635 = vpop.f32.mrf.mxu0
    %v6636 = vadd.f32 %v6421, %v6635
    %v6637 = vpop.f32.mrf.mxu0
    %v6638 = vadd.f32 %v6425, %v6637
    %v6639 = vpop.f32.mrf.mxu0
    %v6640 = vadd.f32 %v6421, %v6639
    %v6641 = vpop.f32.mrf.mxu0
    %v6642 = vadd.f32 %v6425, %v6641
    %6643 = vmatprep.mubr.bf16.mxu0 0
    %6644 = vmatmul.mubr.bf16.gmra.mxu0 %v6414
    %v6645 = vpop.f32.mrf.mxu0
    %v6646 = vadd.f32 %v6421, %v6645
    %v6647 = vpop.f32.mrf.mxu0
    %v6648 = vadd.f32 %v6425, %v6647
    %v6649 = vpop.f32.mrf.mxu0
    %v6650 = vadd.f32 %v6421, %v6649
    %v6651 = vpop.f32.mrf.mxu0
    %v6652 = vadd.f32 %v6425, %v6651
    %6653 = vmatprep.mubr.bf16.mxu0 0
    %6654 = vmatmul.mubr.bf16.gmra.mxu0 %v6415
    %v6655 = vpop.f32.mrf.mxu0
    %v6656 = vadd.f32 %v6421, %v6655
    %v6657 = vpop.f32.mrf.mxu0
    %v6658 = vadd.f32 %v6425, %v6657
    %v6659 = vpop.f32.mrf.mxu0
    %v6660 = vadd.f32 %v6421, %v6659
    %v6661 = vpop.f32.mrf.mxu0
    %v6662 = vadd.f32 %v6425, %v6661
    %6663 = vmatprep.mubr.bf16.mxu0 0
    %6664 = vmatmul.mubr.bf16.gmra.mxu0 %v6416
    %v6665 = vpop.f32.mrf.mxu0
    %v6666 = vadd.f32 %v6421, %v6665
    %v6667 = vpop.f32.mrf.mxu0
    %v6668 = vadd.f32 %v6425, %v6667
    %v6669 = vpop.f32.mrf.mxu0
    %v6670 = vadd.f32 %v6421, %v6669
    %v6671 = vpop.f32.mrf.mxu0
    %v6672 = vadd.f32 %v6425, %v6671
    %6673 = vdwg.mxu0
    %6674 = vmatprep.subr.bf16.mxu0 0
    %6675 = vmatpush1.bf16.msra.mxu0 %v6536
    %6676 = vmatprep.subr.bf16.mxu0 0
    %6677 = vmatpush1.bf16.msra.mxu0 %v6533
    %6678 = vmatprep.subr.bf16.mxu0 0
    %6679 = vmatpush1.bf16.msra.mxu0 %v6530
    %6680 = vmatprep.subr.bf16.mxu0 0
    %6681 = vmatpush1.bf16.msra.mxu0 %v6527
    %6682 = vmatprep.subr.bf16.mxu0 0
    %6683 = vmatpush1.bf16.msra.mxu0 %v6524
    %6684 = vmatprep.subr.bf16.mxu0 0
    %6685 = vmatpush1.bf16.msra.mxu0 %v6521
    %6686 = vmatprep.subr.bf16.mxu0 0
    %6687 = vmatpush1.bf16.msra.mxu0 %v6518
    %6688 = vmatprep.subr.bf16.mxu0 0
    %6689 = vmatpush1.bf16.msra.mxu0 %v6515
    %6690 = vmatprep.subr.bf16.mxu0 0
    %6691 = vmatpush2.bf16.msra.mxu0 0
    %6692 = vmatprep.subr.bf16.mxu0 0
    %6693 = vmatpush2.bf16.msra.mxu0 0
    %6694 = vmatprep.subr.bf16.mxu0 0
    %6695 = vmatpush2.bf16.msra.mxu0 0
    %6696 = vmatprep.subr.bf16.mxu0 0
    %6697 = vmatpush2.bf16.msra.mxu0 0
    %6698 = vmatprep.subr.bf16.mxu0 0
    %6699 = vmatpush2.bf16.msra.mxu0 0
    %6700 = vmatprep.subr.bf16.mxu0 0
    %6701 = vmatpush2.bf16.msra.mxu0 0
    %6702 = vmatprep.subr.bf16.mxu0 0
    %6703 = vmatpush2.bf16.msra.mxu0 0
    %6704 = vmatprep.subr.bf16.mxu0 0
    %6705 = vmatpush2.bf16.msra.mxu0 0
    %6706 = vmatprep.mubr.bf16.mxu0 0
    %6707 = vmatmul.mubr.bf16.gmra.mxu0 %v6409
    %v6708 = vpop.f32.mrf.mxu0
    %v6709 = vadd.f32 %v6429, %v6708
    %v6710 = vpop.f32.mrf.mxu0
    %v6711 = vpop.f32.mrf.mxu0
    %v6712 = vadd.f32 %v6429, %v6711
    %v6713 = vpop.f32.mrf.mxu0
    %6714 = vmatprep.mubr.bf16.mxu0 0
    %6715 = vmatmul.mubr.bf16.gmra.mxu0 %v6410
    %v6716 = vpop.f32.mrf.mxu0
    %v6717 = vadd.f32 %v6429, %v6716
    %v6718 = vpop.f32.mrf.mxu0
    %v6719 = vpop.f32.mrf.mxu0
    %v6720 = vadd.f32 %v6429, %v6719
    %v6721 = vpop.f32.mrf.mxu0
    %6722 = vmatprep.mubr.bf16.mxu0 0
    %6723 = vmatmul.mubr.bf16.gmra.mxu0 %v6411
    %v6724 = vpop.f32.mrf.mxu0
    %v6725 = vadd.f32 %v6429, %v6724
    %v6726 = vpop.f32.mrf.mxu0
    %v6727 = vpop.f32.mrf.mxu0
    %v6728 = vadd.f32 %v6429, %v6727
    %v6729 = vpop.f32.mrf.mxu0
    %6730 = vmatprep.mubr.bf16.mxu0 0
    %6731 = vmatmul.mubr.bf16.gmra.mxu0 %v6412
    %v6732 = vpop.f32.mrf.mxu0
    %v6733 = vadd.f32 %v6429, %v6732
    %v6734 = vpop.f32.mrf.mxu0
    %v6735 = vpop.f32.mrf.mxu0
    %v6736 = vadd.f32 %v6429, %v6735
    %v6737 = vpop.f32.mrf.mxu0
    %6738 = vmatprep.mubr.bf16.mxu0 0
    %6739 = vmatmul.mubr.bf16.gmra.mxu0 %v6413
    %v6740 = vpop.f32.mrf.mxu0
    %v6741 = vadd.f32 %v6429, %v6740
    %v6742 = vpop.f32.mrf.mxu0
    %v6743 = vpop.f32.mrf.mxu0
    %v6744 = vadd.f32 %v6429, %v6743
    %v6745 = vpop.f32.mrf.mxu0
    %6746 = vmatprep.mubr.bf16.mxu0 0
    %6747 = vmatmul.mubr.bf16.gmra.mxu0 %v6414
    %v6748 = vpop.f32.mrf.mxu0
    %v6749 = vadd.f32 %v6429, %v6748
    %v6750 = vpop.f32.mrf.mxu0
    %v6751 = vpop.f32.mrf.mxu0
    %v6752 = vadd.f32 %v6429, %v6751
    %v6753 = vpop.f32.mrf.mxu0
    %6754 = vmatprep.mubr.bf16.mxu0 0
    %6755 = vmatmul.mubr.bf16.gmra.mxu0 %v6415
    %v6756 = vpop.f32.mrf.mxu0
    %v6757 = vadd.f32 %v6429, %v6756
    %v6758 = vpop.f32.mrf.mxu0
    %v6759 = vpop.f32.mrf.mxu0
    %v6760 = vadd.f32 %v6429, %v6759
    %v6761 = vpop.f32.mrf.mxu0
    %6762 = vmatprep.mubr.bf16.mxu0 0
    %6763 = vmatmul.mubr.bf16.gmra.mxu0 %v6416
    %v6764 = vpop.f32.mrf.mxu0
    %v6765 = vadd.f32 %v6429, %v6764
    %v6766 = vpop.f32.mrf.mxu0
    %v6767 = vpop.f32.mrf.mxu0
    %v6768 = vadd.f32 %v6429, %v6767
    %v6769 = vpop.f32.mrf.mxu0
    %6770 = vdwg.mxu0
    %v6771 = vpack.c.bf16 %v6600, %v6596
    %v6772 = vpack.c.bf16 %v6610, %v6606
    %v6773 = vpack.c.bf16 %v6620, %v6616
    %v6774 = vpack.c.bf16 %v6630, %v6626
    %v6775 = vpack.c.bf16 %v6640, %v6636
    %v6776 = vpack.c.bf16 %v6650, %v6646
    %v6777 = vpack.c.bf16 %v6660, %v6656
    %v6778 = vpack.c.bf16 %v6670, %v6666
    %v6779 = vpack.c.bf16 %v6602, %v6598
    %v6780 = vpack.c.bf16 %v6612, %v6608
    %v6781 = vpack.c.bf16 %v6622, %v6618
    %v6782 = vpack.c.bf16 %v6632, %v6628
    %v6783 = vpack.c.bf16 %v6642, %v6638
    %v6784 = vpack.c.bf16 %v6652, %v6648
    %v6785 = vpack.c.bf16 %v6662, %v6658
    %v6786 = vpack.c.bf16 %v6672, %v6668
    %v6788 = vsel %vm1080, %v6771, 0
    %v6791 = vsel %vm1080, %v6772, 0
    %v6794 = vsel %vm1080, %v6779, 0
    %v6797 = vsel %vm1080, %v6780, 0
    %6799 = vmatprep.subr.bf16.mxu0 0
    %6800 = vmatpush1.bf16.xpose.msra.mxu0 0
    %6801 = vmatprep.subr.bf16.mxu0 0
    %6802 = vmatpush1.bf16.xpose.msra.mxu0 0
    %6803 = vmatprep.subr.bf16.mxu0 0
    %6804 = vmatpush1.bf16.xpose.msra.mxu0 0
    %6805 = vmatprep.subr.bf16.mxu0 0
    %6806 = vmatpush1.bf16.xpose.msra.mxu0 0
    %6807 = vmatprep.subr.bf16.mxu0 0
    %6808 = vmatpush1.bf16.xpose.msra.mxu0 0
    %6809 = vmatprep.subr.bf16.mxu0 0
    %6810 = vmatpush1.bf16.xpose.msra.mxu0 0
    %6811 = vmatprep.subr.bf16.mxu0 0
    %6812 = vmatpush1.bf16.xpose.msra.mxu0 %v6797
    %6813 = vmatprep.subr.bf16.mxu0 0
    %6814 = vmatpush1.bf16.xpose.msra.mxu0 %v6794
    %6815 = vmatprep.subr.bf16.mxu0 0
    %6816 = vmatpush2.bf16.xpose.msra.mxu0 0
    %6817 = vmatprep.subr.bf16.mxu0 0
    %6818 = vmatpush2.bf16.xpose.msra.mxu0 0
    %6819 = vmatprep.subr.bf16.mxu0 0
    %6820 = vmatpush2.bf16.xpose.msra.mxu0 0
    %6821 = vmatprep.subr.bf16.mxu0 0
    %6822 = vmatpush2.bf16.xpose.msra.mxu0 0
    %6823 = vmatprep.subr.bf16.mxu0 0
    %6824 = vmatpush2.bf16.xpose.msra.mxu0 0
    %6825 = vmatprep.subr.bf16.mxu0 0
    %6826 = vmatpush2.bf16.xpose.msra.mxu0 0
    %6827 = vmatprep.subr.bf16.mxu0 0
    %6828 = vmatpush2.bf16.xpose.msra.mxu0 0
    %6829 = vmatprep.subr.bf16.mxu0 0
    %6830 = vmatpush2.bf16.xpose.msra.mxu0 0
    %6831 = vmatprep.mubr.bf16.mxu0 0
    %6832 = vmatmul.mubr.bf16.gmra.mxu0 %v6788
    %v6833 = vpop.f32.mrf.mxu0
    %v6834 = vadd.f32 0.0, %v6833
    %v6835 = vpop.f32.mrf.mxu0
    %v6836 = vpop.f32.mrf.mxu0
    %v6837 = vadd.f32 0.0, %v6836
    %v6838 = vpop.f32.mrf.mxu0
    %6839 = vmatprep.mubr.bf16.mxu0 0
    %6840 = vmatmul.mubr.bf16.gmra.mxu0 %v6791
    %v6841 = vpop.f32.mrf.mxu0
    %v6842 = vadd.f32 0.0, %v6841
    %v6843 = vpop.f32.mrf.mxu0
    %v6844 = vpop.f32.mrf.mxu0
    %v6845 = vadd.f32 0.0, %v6844
    %v6846 = vpop.f32.mrf.mxu0
    %6847 = vdwg.mxu0
    %v6849 = vsel %vm1080, %v6773, 0
    %v6852 = vsel %vm1080, %v6774, 0
    %v6855 = vsel %vm1080, %v6781, 0
    %v6858 = vsel %vm1080, %v6782, 0
    %6860 = vmatprep.subr.bf16.mxu0 0
    %6861 = vmatpush1.bf16.xpose.msra.mxu0 0
    %6862 = vmatprep.subr.bf16.mxu0 0
    %6863 = vmatpush1.bf16.xpose.msra.mxu0 0
    %6864 = vmatprep.subr.bf16.mxu0 0
    %6865 = vmatpush1.bf16.xpose.msra.mxu0 0
    %6866 = vmatprep.subr.bf16.mxu0 0
    %6867 = vmatpush1.bf16.xpose.msra.mxu0 0
    %6868 = vmatprep.subr.bf16.mxu0 0
    %6869 = vmatpush1.bf16.xpose.msra.mxu0 0
    %6870 = vmatprep.subr.bf16.mxu0 0
    %6871 = vmatpush1.bf16.xpose.msra.mxu0 0
    %6872 = vmatprep.subr.bf16.mxu0 0
    %6873 = vmatpush1.bf16.xpose.msra.mxu0 %v6858
    %6874 = vmatprep.subr.bf16.mxu0 0
    %6875 = vmatpush1.bf16.xpose.msra.mxu0 %v6855
    %6876 = vmatprep.subr.bf16.mxu0 0
    %6877 = vmatpush2.bf16.xpose.msra.mxu0 0
    %6878 = vmatprep.subr.bf16.mxu0 0
    %6879 = vmatpush2.bf16.xpose.msra.mxu0 0
    %6880 = vmatprep.subr.bf16.mxu0 0
    %6881 = vmatpush2.bf16.xpose.msra.mxu0 0
    %6882 = vmatprep.subr.bf16.mxu0 0
    %6883 = vmatpush2.bf16.xpose.msra.mxu0 0
    %6884 = vmatprep.subr.bf16.mxu0 0
    %6885 = vmatpush2.bf16.xpose.msra.mxu0 0
    %6886 = vmatprep.subr.bf16.mxu0 0
    %6887 = vmatpush2.bf16.xpose.msra.mxu0 0
    %6888 = vmatprep.subr.bf16.mxu0 0
    %6889 = vmatpush2.bf16.xpose.msra.mxu0 0
    %6890 = vmatprep.subr.bf16.mxu0 0
    %6891 = vmatpush2.bf16.xpose.msra.mxu0 0
    %6892 = vmatprep.mubr.bf16.mxu0 0
    %6893 = vmatmul.mubr.bf16.gmra.mxu0 %v6849
    %v6894 = vpop.f32.mrf.mxu0
    %v6895 = vadd.f32 0.0, %v6894
    %v6896 = vpop.f32.mrf.mxu0
    %v6897 = vpop.f32.mrf.mxu0
    %v6898 = vadd.f32 0.0, %v6897
    %v6899 = vpop.f32.mrf.mxu0
    %6900 = vmatprep.mubr.bf16.mxu0 0
    %6901 = vmatmul.mubr.bf16.gmra.mxu0 %v6852
    %v6902 = vpop.f32.mrf.mxu0
    %v6903 = vadd.f32 0.0, %v6902
    %v6904 = vpop.f32.mrf.mxu0
    %v6905 = vpop.f32.mrf.mxu0
    %v6906 = vadd.f32 0.0, %v6905
    %v6907 = vpop.f32.mrf.mxu0
    %6908 = vdwg.mxu0
    %v6910 = vsel %vm1080, %v6775, 0
    %v6913 = vsel %vm1080, %v6776, 0
    %v6916 = vsel %vm1080, %v6783, 0
    %v6919 = vsel %vm1080, %v6784, 0
    %6921 = vmatprep.subr.bf16.mxu0 0
    %6922 = vmatpush1.bf16.xpose.msra.mxu0 0
    %6923 = vmatprep.subr.bf16.mxu0 0
    %6924 = vmatpush1.bf16.xpose.msra.mxu0 0
    %6925 = vmatprep.subr.bf16.mxu0 0
    %6926 = vmatpush1.bf16.xpose.msra.mxu0 0
    %6927 = vmatprep.subr.bf16.mxu0 0
    %6928 = vmatpush1.bf16.xpose.msra.mxu0 0
    %6929 = vmatprep.subr.bf16.mxu0 0
    %6930 = vmatpush1.bf16.xpose.msra.mxu0 0
    %6931 = vmatprep.subr.bf16.mxu0 0
    %6932 = vmatpush1.bf16.xpose.msra.mxu0 0
    %6933 = vmatprep.subr.bf16.mxu0 0
    %6934 = vmatpush1.bf16.xpose.msra.mxu0 %v6919
    %6935 = vmatprep.subr.bf16.mxu0 0
    %6936 = vmatpush1.bf16.xpose.msra.mxu0 %v6916
    %6937 = vmatprep.subr.bf16.mxu0 0
    %6938 = vmatpush2.bf16.xpose.msra.mxu0 0
    %6939 = vmatprep.subr.bf16.mxu0 0
    %6940 = vmatpush2.bf16.xpose.msra.mxu0 0
    %6941 = vmatprep.subr.bf16.mxu0 0
    %6942 = vmatpush2.bf16.xpose.msra.mxu0 0
    %6943 = vmatprep.subr.bf16.mxu0 0
    %6944 = vmatpush2.bf16.xpose.msra.mxu0 0
    %6945 = vmatprep.subr.bf16.mxu0 0
    %6946 = vmatpush2.bf16.xpose.msra.mxu0 0
    %6947 = vmatprep.subr.bf16.mxu0 0
    %6948 = vmatpush2.bf16.xpose.msra.mxu0 0
    %6949 = vmatprep.subr.bf16.mxu0 0
    %6950 = vmatpush2.bf16.xpose.msra.mxu0 0
    %6951 = vmatprep.subr.bf16.mxu0 0
    %6952 = vmatpush2.bf16.xpose.msra.mxu0 0
    %6953 = vmatprep.mubr.bf16.mxu0 0
    %6954 = vmatmul.mubr.bf16.gmra.mxu0 %v6910
    %v6955 = vpop.f32.mrf.mxu0
    %v6956 = vadd.f32 0.0, %v6955
    %v6957 = vpop.f32.mrf.mxu0
    %v6958 = vpop.f32.mrf.mxu0
    %v6959 = vadd.f32 0.0, %v6958
    %v6960 = vpop.f32.mrf.mxu0
    %6961 = vmatprep.mubr.bf16.mxu0 0
    %6962 = vmatmul.mubr.bf16.gmra.mxu0 %v6913
    %v6963 = vpop.f32.mrf.mxu0
    %v6964 = vadd.f32 0.0, %v6963
    %v6965 = vpop.f32.mrf.mxu0
    %v6966 = vpop.f32.mrf.mxu0
    %v6967 = vadd.f32 0.0, %v6966
    %v6968 = vpop.f32.mrf.mxu0
    %6969 = vdwg.mxu0
    %v6971 = vsel %vm1080, %v6777, 0
    %v6974 = vsel %vm1080, %v6778, 0
    %v6977 = vsel %vm1080, %v6785, 0
    %v6980 = vsel %vm1080, %v6786, 0
    %6982 = vmatprep.subr.bf16.mxu0 0
    %6983 = vmatpush1.bf16.xpose.msra.mxu0 0
    %6984 = vmatprep.subr.bf16.mxu0 0
    %6985 = vmatpush1.bf16.xpose.msra.mxu0 0
    %6986 = vmatprep.subr.bf16.mxu0 0
    %6987 = vmatpush1.bf16.xpose.msra.mxu0 0
    %6988 = vmatprep.subr.bf16.mxu0 0
    %6989 = vmatpush1.bf16.xpose.msra.mxu0 0
    %6990 = vmatprep.subr.bf16.mxu0 0
    %6991 = vmatpush1.bf16.xpose.msra.mxu0 0
    %6992 = vmatprep.subr.bf16.mxu0 0
    %6993 = vmatpush1.bf16.xpose.msra.mxu0 0
    %6994 = vmatprep.subr.bf16.mxu0 0
    %6995 = vmatpush1.bf16.xpose.msra.mxu0 %v6980
    %6996 = vmatprep.subr.bf16.mxu0 0
    %6997 = vmatpush1.bf16.xpose.msra.mxu0 %v6977
    %6998 = vmatprep.subr.bf16.mxu0 0
    %6999 = vmatpush2.bf16.xpose.msra.mxu0 0
    %7000 = vmatprep.subr.bf16.mxu0 0
    %7001 = vmatpush2.bf16.xpose.msra.mxu0 0
    %7002 = vmatprep.subr.bf16.mxu0 0
    %7003 = vmatpush2.bf16.xpose.msra.mxu0 0
    %7004 = vmatprep.subr.bf16.mxu0 0
    %7005 = vmatpush2.bf16.xpose.msra.mxu0 0
    %7006 = vmatprep.subr.bf16.mxu0 0
    %7007 = vmatpush2.bf16.xpose.msra.mxu0 0
    %7008 = vmatprep.subr.bf16.mxu0 0
    %7009 = vmatpush2.bf16.xpose.msra.mxu0 0
    %7010 = vmatprep.subr.bf16.mxu0 0
    %7011 = vmatpush2.bf16.xpose.msra.mxu0 0
    %7012 = vmatprep.subr.bf16.mxu0 0
    %7013 = vmatpush2.bf16.xpose.msra.mxu0 0
    %7014 = vmatprep.mubr.bf16.mxu0 0
    %7015 = vmatmul.mubr.bf16.gmra.mxu0 %v6971
    %v7016 = vpop.f32.mrf.mxu0
    %v7017 = vadd.f32 0.0, %v7016
    %v7018 = vpop.f32.mrf.mxu0
    %v7019 = vpop.f32.mrf.mxu0
    %v7020 = vadd.f32 0.0, %v7019
    %v7021 = vpop.f32.mrf.mxu0
    %7022 = vmatprep.mubr.bf16.mxu0 0
    %7023 = vmatmul.mubr.bf16.gmra.mxu0 %v6974
    %v7024 = vpop.f32.mrf.mxu0
    %v7025 = vadd.f32 0.0, %v7024
    %v7026 = vpop.f32.mrf.mxu0
    %v7027 = vpop.f32.mrf.mxu0
    %v7028 = vadd.f32 0.0, %v7027
    %v7029 = vpop.f32.mrf.mxu0
    %7030 = vdwg.mxu0
    %v7031 = vmul.f32 %v6834, 0.17677669
    %v7032 = vmul.f32 %v6837, 0.17677669
    %v7033 = vmul.f32 %v6842, 0.17677669
    %v7034 = vmul.f32 %v6845, 0.17677669
    %v7035 = vmul.f32 %v6895, 0.17677669
    %v7036 = vmul.f32 %v6898, 0.17677669
    %v7037 = vmul.f32 %v6903, 0.17677669
    %v7038 = vmul.f32 %v6906, 0.17677669
    %v7039 = vmul.f32 %v6956, 0.17677669
    %v7040 = vmul.f32 %v6959, 0.17677669
    %v7041 = vmul.f32 %v6964, 0.17677669
    %v7042 = vmul.f32 %v6967, 0.17677669
    %v7043 = vmul.f32 %v7017, 0.17677669
    %v7044 = vmul.f32 %v7020, 0.17677669
    %v7045 = vmul.f32 %v7025, 0.17677669
    %v7046 = vmul.f32 %v7028, 0.17677669
    %v7047 = vsel %vm1342, %v7031, -1e+30
    %v7048 = vsel %vm1342, %v7032, -1e+30
    %v7049 = vsel %vm1342, %v7033, -1e+30
    %v7050 = vsel %vm1342, %v7034, -1e+30
    %v7051 = vsel %vm1342, %v7035, -1e+30
    %v7052 = vsel %vm1342, %v7036, -1e+30
    %v7053 = vsel %vm1342, %v7037, -1e+30
    %v7054 = vsel %vm1342, %v7038, -1e+30
    %v7055 = vsel %vm1342, %v7039, -1e+30
    %v7056 = vsel %vm1342, %v7040, -1e+30
    %v7057 = vsel %vm1342, %v7041, -1e+30
    %v7058 = vsel %vm1342, %v7042, -1e+30
    %v7059 = vsel %vm1342, %v7043, -1e+30
    %v7060 = vsel %vm1342, %v7044, -1e+30
    %v7061 = vsel %vm1342, %v7045, -1e+30
    %v7062 = vsel %vm1342, %v7046, -1e+30
    %v7063 = vsel %vm1080, %v7047, -inf
    %7064 = vmax.xlane.f32.xlu0 %v7063
    %v7065 = vpop.xlane.xlu0 %7064
    %v7066 = vsel %vm1080, %v7048, -inf
    %7067 = vmax.xlane.f32.xlu0 %v7066
    %v7068 = vpop.xlane.xlu0 %7067
    %v7069 = vsel %vm1080, %v7049, -inf
    %7070 = vmax.xlane.f32.xlu0 %v7069
    %v7071 = vpop.xlane.xlu0 %7070
    %v7072 = vsel %vm1080, %v7050, -inf
    %7073 = vmax.xlane.f32.xlu0 %v7072
    %v7074 = vpop.xlane.xlu0 %7073
    %v7075 = vsel %vm1080, %v7051, -inf
    %7076 = vmax.xlane.f32.xlu0 %v7075
    %v7077 = vpop.xlane.xlu0 %7076
    %v7078 = vsel %vm1080, %v7052, -inf
    %7079 = vmax.xlane.f32.xlu0 %v7078
    %v7080 = vpop.xlane.xlu0 %7079
    %v7081 = vsel %vm1080, %v7053, -inf
    %7082 = vmax.xlane.f32.xlu0 %v7081
    %v7083 = vpop.xlane.xlu0 %7082
    %v7084 = vsel %vm1080, %v7054, -inf
    %7085 = vmax.xlane.f32.xlu0 %v7084
    %v7086 = vpop.xlane.xlu0 %7085
    %v7087 = vsel %vm1080, %v7055, -inf
    %7088 = vmax.xlane.f32.xlu0 %v7087
    %v7089 = vpop.xlane.xlu0 %7088
    %v7090 = vsel %vm1080, %v7056, -inf
    %7091 = vmax.xlane.f32.xlu0 %v7090
    %v7092 = vpop.xlane.xlu0 %7091
    %v7093 = vsel %vm1080, %v7057, -inf
    %7094 = vmax.xlane.f32.xlu0 %v7093
    %v7095 = vpop.xlane.xlu0 %7094
    %v7096 = vsel %vm1080, %v7058, -inf
    %7097 = vmax.xlane.f32.xlu0 %v7096
    %v7098 = vpop.xlane.xlu0 %7097
    %v7099 = vsel %vm1080, %v7059, -inf
    %7100 = vmax.xlane.f32.xlu0 %v7099
    %v7101 = vpop.xlane.xlu0 %7100
    %v7102 = vsel %vm1080, %v7060, -inf
    %7103 = vmax.xlane.f32.xlu0 %v7102
    %v7104 = vpop.xlane.xlu0 %7103
    %v7105 = vsel %vm1080, %v7061, -inf
    %7106 = vmax.xlane.f32.xlu0 %v7105
    %v7107 = vpop.xlane.xlu0 %7106
    %v7108 = vsel %vm1080, %v7062, -inf
    %7109 = vmax.xlane.f32.xlu0 %v7108
    %v7110 = vpop.xlane.xlu0 %7109
    %v7111 = vsub.f32 %v7047, %v7065
    %v7112 = vsub.f32 %v7048, %v7068
    %v7113 = vsub.f32 %v7049, %v7071
    %v7114 = vsub.f32 %v7050, %v7074
    %v7115 = vsub.f32 %v7051, %v7077
    %v7116 = vsub.f32 %v7052, %v7080
    %v7117 = vsub.f32 %v7053, %v7083
    %v7118 = vsub.f32 %v7054, %v7086
    %v7119 = vsub.f32 %v7055, %v7089
    %v7120 = vsub.f32 %v7056, %v7092
    %v7121 = vsub.f32 %v7057, %v7095
    %v7122 = vsub.f32 %v7058, %v7098
    %v7123 = vsub.f32 %v7059, %v7101
    %v7124 = vsub.f32 %v7060, %v7104
    %v7125 = vsub.f32 %v7061, %v7107
    %v7126 = vsub.f32 %v7062, %v7110
    %v7127 = vmul.f32 %v7111, 1.442695
    %v7128 = vpow.pop %v7127
    %v7129 = vmul.f32 %v7112, 1.442695
    %v7130 = vpow.pop %v7129
    %v7131 = vmul.f32 %v7113, 1.442695
    %v7132 = vpow.pop %v7131
    %v7133 = vmul.f32 %v7114, 1.442695
    %v7134 = vpow.pop %v7133
    %v7135 = vmul.f32 %v7115, 1.442695
    %v7136 = vpow.pop %v7135
    %v7137 = vmul.f32 %v7116, 1.442695
    %v7138 = vpow.pop %v7137
    %v7139 = vmul.f32 %v7117, 1.442695
    %v7140 = vpow.pop %v7139
    %v7141 = vmul.f32 %v7118, 1.442695
    %v7142 = vpow.pop %v7141
    %v7143 = vmul.f32 %v7119, 1.442695
    %v7144 = vpow.pop %v7143
    %v7145 = vmul.f32 %v7120, 1.442695
    %v7146 = vpow.pop %v7145
    %v7147 = vmul.f32 %v7121, 1.442695
    %v7148 = vpow.pop %v7147
    %v7149 = vmul.f32 %v7122, 1.442695
    %v7150 = vpow.pop %v7149
    %v7151 = vmul.f32 %v7123, 1.442695
    %v7152 = vpow.pop %v7151
    %v7153 = vmul.f32 %v7124, 1.442695
    %v7154 = vpow.pop %v7153
    %v7155 = vmul.f32 %v7125, 1.442695
    %v7156 = vpow.pop %v7155
    %v7157 = vmul.f32 %v7126, 1.442695
    %v7158 = vpow.pop %v7157
    %v7159 = vsel %vm1080, %v7128, 0.0
    %7160 = vadd.xlane.f32.xlu0 %v7159
    %v7161 = vpop.xlane.xlu0 %7160
    %v7162 = vsel %vm1080, %v7130, 0.0
    %7163 = vadd.xlane.f32.xlu0 %v7162
    %v7164 = vpop.xlane.xlu0 %7163
    %v7165 = vsel %vm1080, %v7132, 0.0
    %7166 = vadd.xlane.f32.xlu0 %v7165
    %v7167 = vpop.xlane.xlu0 %7166
    %v7168 = vsel %vm1080, %v7134, 0.0
    %7169 = vadd.xlane.f32.xlu0 %v7168
    %v7170 = vpop.xlane.xlu0 %7169
    %v7171 = vsel %vm1080, %v7136, 0.0
    %7172 = vadd.xlane.f32.xlu0 %v7171
    %v7173 = vpop.xlane.xlu0 %7172
    %v7174 = vsel %vm1080, %v7138, 0.0
    %7175 = vadd.xlane.f32.xlu0 %v7174
    %v7176 = vpop.xlane.xlu0 %7175
    %v7177 = vsel %vm1080, %v7140, 0.0
    %7178 = vadd.xlane.f32.xlu0 %v7177
    %v7179 = vpop.xlane.xlu0 %7178
    %v7180 = vsel %vm1080, %v7142, 0.0
    %7181 = vadd.xlane.f32.xlu0 %v7180
    %v7182 = vpop.xlane.xlu0 %7181
    %v7183 = vsel %vm1080, %v7144, 0.0
    %7184 = vadd.xlane.f32.xlu0 %v7183
    %v7185 = vpop.xlane.xlu0 %7184
    %v7186 = vsel %vm1080, %v7146, 0.0
    %7187 = vadd.xlane.f32.xlu0 %v7186
    %v7188 = vpop.xlane.xlu0 %7187
    %v7189 = vsel %vm1080, %v7148, 0.0
    %7190 = vadd.xlane.f32.xlu0 %v7189
    %v7191 = vpop.xlane.xlu0 %7190
    %v7192 = vsel %vm1080, %v7150, 0.0
    %7193 = vadd.xlane.f32.xlu0 %v7192
    %v7194 = vpop.xlane.xlu0 %7193
    %v7195 = vsel %vm1080, %v7152, 0.0
    %7196 = vadd.xlane.f32.xlu0 %v7195
    %v7197 = vpop.xlane.xlu0 %7196
    %v7198 = vsel %vm1080, %v7154, 0.0
    %7199 = vadd.xlane.f32.xlu0 %v7198
    %v7200 = vpop.xlane.xlu0 %7199
    %v7201 = vsel %vm1080, %v7156, 0.0
    %7202 = vadd.xlane.f32.xlu0 %v7201
    %v7203 = vpop.xlane.xlu0 %7202
    %v7204 = vsel %vm1080, %v7158, 0.0
    %7205 = vadd.xlane.f32.xlu0 %v7204
    %v7206 = vpop.xlane.xlu0 %7205
    %v7207 = vrcp.pop %v7161
    %v7208 = vmul.f32 %v7128, %v7207
    %v7209 = vrcp.pop %v7164
    %v7210 = vmul.f32 %v7130, %v7209
    %v7211 = vrcp.pop %v7167
    %v7212 = vmul.f32 %v7132, %v7211
    %v7213 = vrcp.pop %v7170
    %v7214 = vmul.f32 %v7134, %v7213
    %v7215 = vrcp.pop %v7173
    %v7216 = vmul.f32 %v7136, %v7215
    %v7217 = vrcp.pop %v7176
    %v7218 = vmul.f32 %v7138, %v7217
    %v7219 = vrcp.pop %v7179
    %v7220 = vmul.f32 %v7140, %v7219
    %v7221 = vrcp.pop %v7182
    %v7222 = vmul.f32 %v7142, %v7221
    %v7223 = vrcp.pop %v7185
    %v7224 = vmul.f32 %v7144, %v7223
    %v7225 = vrcp.pop %v7188
    %v7226 = vmul.f32 %v7146, %v7225
    %v7227 = vrcp.pop %v7191
    %v7228 = vmul.f32 %v7148, %v7227
    %v7229 = vrcp.pop %v7194
    %v7230 = vmul.f32 %v7150, %v7229
    %v7231 = vrcp.pop %v7197
    %v7232 = vmul.f32 %v7152, %v7231
    %v7233 = vrcp.pop %v7200
    %v7234 = vmul.f32 %v7154, %v7233
    %v7235 = vrcp.pop %v7203
    %v7236 = vmul.f32 %v7156, %v7235
    %v7237 = vrcp.pop %v7206
    %v7238 = vmul.f32 %v7158, %v7237
    %v7239 = vpack.c.bf16 %v7210, %v7208
    %v7240 = vpack.c.bf16 %v7214, %v7212
    %v7241 = vpack.c.bf16 %v7218, %v7216
    %v7242 = vpack.c.bf16 %v7222, %v7220
    %v7243 = vpack.c.bf16 %v7226, %v7224
    %v7244 = vpack.c.bf16 %v7230, %v7228
    %v7245 = vpack.c.bf16 %v7234, %v7232
    %v7246 = vpack.c.bf16 %v7238, %v7236
    %v7247 = vpack.c.bf16 %v6712, %v6709
    %v7248 = vpack.c.bf16 %v6720, %v6717
    %v7249 = vpack.c.bf16 %v6728, %v6725
    %v7250 = vpack.c.bf16 %v6736, %v6733
    %v7251 = vpack.c.bf16 %v6744, %v6741
    %v7252 = vpack.c.bf16 %v6752, %v6749
    %v7253 = vpack.c.bf16 %v6760, %v6757
    %v7254 = vpack.c.bf16 %v6768, %v6765
    %v7256 = vsel %vm1080, %v7239, 0
    %v7259 = vsel %vm1080, %v7240, 0
    %7261 = vmatprep.subr.bf16.mxu0 0
    %7262 = vmatpush1.bf16.msra.mxu0 0
    %7263 = vmatprep.subr.bf16.mxu0 0
    %7264 = vmatpush1.bf16.msra.mxu0 0
    %7265 = vmatprep.subr.bf16.mxu0 0
    %7266 = vmatpush1.bf16.msra.mxu0 0
    %7267 = vmatprep.subr.bf16.mxu0 0
    %7268 = vmatpush1.bf16.msra.mxu0 0
    %7269 = vmatprep.subr.bf16.mxu0 0
    %7270 = vmatpush1.bf16.msra.mxu0 0
    %7271 = vmatprep.subr.bf16.mxu0 0
    %7272 = vmatpush1.bf16.msra.mxu0 0
    %7273 = vmatprep.subr.bf16.mxu0 0
    %7274 = vmatpush1.bf16.msra.mxu0 %v7248
    %7275 = vmatprep.subr.bf16.mxu0 0
    %7276 = vmatpush1.bf16.msra.mxu0 %v7247
    %7277 = vmatprep.subr.bf16.mxu0 0
    %7278 = vmatpush2.bf16.msra.mxu0 0
    %7279 = vmatprep.subr.bf16.mxu0 0
    %7280 = vmatpush2.bf16.msra.mxu0 0
    %7281 = vmatprep.subr.bf16.mxu0 0
    %7282 = vmatpush2.bf16.msra.mxu0 0
    %7283 = vmatprep.subr.bf16.mxu0 0
    %7284 = vmatpush2.bf16.msra.mxu0 0
    %7285 = vmatprep.subr.bf16.mxu0 0
    %7286 = vmatpush2.bf16.msra.mxu0 0
    %7287 = vmatprep.subr.bf16.mxu0 0
    %7288 = vmatpush2.bf16.msra.mxu0 0
    %7289 = vmatprep.subr.bf16.mxu0 0
    %7290 = vmatpush2.bf16.msra.mxu0 0
    %7291 = vmatprep.subr.bf16.mxu0 0
    %7292 = vmatpush2.bf16.msra.mxu0 0
    %7293 = vmatprep.mubr.bf16.mxu0 0
    %7294 = vmatmul.mubr.bf16.gmra.mxu0 %v7256
    %v7295 = vpop.f32.mrf.mxu0
    %v7296 = vadd.f32 0.0, %v7295
    %v7297 = vpop.f32.mrf.mxu0
    %v7298 = vpop.f32.mrf.mxu0
    %v7299 = vadd.f32 0.0, %v7298
    %v7300 = vpop.f32.mrf.mxu0
    %7301 = vmatprep.mubr.bf16.mxu0 0
    %7302 = vmatmul.mubr.bf16.gmra.mxu0 %v7259
    %v7303 = vpop.f32.mrf.mxu0
    %v7304 = vadd.f32 0.0, %v7303
    %v7305 = vpop.f32.mrf.mxu0
    %v7306 = vpop.f32.mrf.mxu0
    %v7307 = vadd.f32 0.0, %v7306
    %v7308 = vpop.f32.mrf.mxu0
    %7309 = vdwg.mxu0
    %v7311 = vsel %vm1080, %v7241, 0
    %v7314 = vsel %vm1080, %v7242, 0
    %7316 = vmatprep.subr.bf16.mxu0 0
    %7317 = vmatpush1.bf16.msra.mxu0 0
    %7318 = vmatprep.subr.bf16.mxu0 0
    %7319 = vmatpush1.bf16.msra.mxu0 0
    %7320 = vmatprep.subr.bf16.mxu0 0
    %7321 = vmatpush1.bf16.msra.mxu0 0
    %7322 = vmatprep.subr.bf16.mxu0 0
    %7323 = vmatpush1.bf16.msra.mxu0 0
    %7324 = vmatprep.subr.bf16.mxu0 0
    %7325 = vmatpush1.bf16.msra.mxu0 0
    %7326 = vmatprep.subr.bf16.mxu0 0
    %7327 = vmatpush1.bf16.msra.mxu0 0
    %7328 = vmatprep.subr.bf16.mxu0 0
    %7329 = vmatpush1.bf16.msra.mxu0 %v7250
    %7330 = vmatprep.subr.bf16.mxu0 0
    %7331 = vmatpush1.bf16.msra.mxu0 %v7249
    %7332 = vmatprep.subr.bf16.mxu0 0
    %7333 = vmatpush2.bf16.msra.mxu0 0
    %7334 = vmatprep.subr.bf16.mxu0 0
    %7335 = vmatpush2.bf16.msra.mxu0 0
    %7336 = vmatprep.subr.bf16.mxu0 0
    %7337 = vmatpush2.bf16.msra.mxu0 0
    %7338 = vmatprep.subr.bf16.mxu0 0
    %7339 = vmatpush2.bf16.msra.mxu0 0
    %7340 = vmatprep.subr.bf16.mxu0 0
    %7341 = vmatpush2.bf16.msra.mxu0 0
    %7342 = vmatprep.subr.bf16.mxu0 0
    %7343 = vmatpush2.bf16.msra.mxu0 0
    %7344 = vmatprep.subr.bf16.mxu0 0
    %7345 = vmatpush2.bf16.msra.mxu0 0
    %7346 = vmatprep.subr.bf16.mxu0 0
    %7347 = vmatpush2.bf16.msra.mxu0 0
    %7348 = vmatprep.mubr.bf16.mxu0 0
    %7349 = vmatmul.mubr.bf16.gmra.mxu0 %v7311
    %v7350 = vpop.f32.mrf.mxu0
    %v7351 = vadd.f32 0.0, %v7350
    %v7352 = vpop.f32.mrf.mxu0
    %v7353 = vpop.f32.mrf.mxu0
    %v7354 = vadd.f32 0.0, %v7353
    %v7355 = vpop.f32.mrf.mxu0
    %7356 = vmatprep.mubr.bf16.mxu0 0
    %7357 = vmatmul.mubr.bf16.gmra.mxu0 %v7314
    %v7358 = vpop.f32.mrf.mxu0
    %v7359 = vadd.f32 0.0, %v7358
    %v7360 = vpop.f32.mrf.mxu0
    %v7361 = vpop.f32.mrf.mxu0
    %v7362 = vadd.f32 0.0, %v7361
    %v7363 = vpop.f32.mrf.mxu0
    %7364 = vdwg.mxu0
    %v7366 = vsel %vm1080, %v7243, 0
    %v7369 = vsel %vm1080, %v7244, 0
    %7371 = vmatprep.subr.bf16.mxu0 0
    %7372 = vmatpush1.bf16.msra.mxu0 0
    %7373 = vmatprep.subr.bf16.mxu0 0
    %7374 = vmatpush1.bf16.msra.mxu0 0
    %7375 = vmatprep.subr.bf16.mxu0 0
    %7376 = vmatpush1.bf16.msra.mxu0 0
    %7377 = vmatprep.subr.bf16.mxu0 0
    %7378 = vmatpush1.bf16.msra.mxu0 0
    %7379 = vmatprep.subr.bf16.mxu0 0
    %7380 = vmatpush1.bf16.msra.mxu0 0
    %7381 = vmatprep.subr.bf16.mxu0 0
    %7382 = vmatpush1.bf16.msra.mxu0 0
    %7383 = vmatprep.subr.bf16.mxu0 0
    %7384 = vmatpush1.bf16.msra.mxu0 %v7252
    %7385 = vmatprep.subr.bf16.mxu0 0
    %7386 = vmatpush1.bf16.msra.mxu0 %v7251
    %7387 = vmatprep.subr.bf16.mxu0 0
    %7388 = vmatpush2.bf16.msra.mxu0 0
    %7389 = vmatprep.subr.bf16.mxu0 0
    %7390 = vmatpush2.bf16.msra.mxu0 0
    %7391 = vmatprep.subr.bf16.mxu0 0
    %7392 = vmatpush2.bf16.msra.mxu0 0
    %7393 = vmatprep.subr.bf16.mxu0 0
    %7394 = vmatpush2.bf16.msra.mxu0 0
    %7395 = vmatprep.subr.bf16.mxu0 0
    %7396 = vmatpush2.bf16.msra.mxu0 0
    %7397 = vmatprep.subr.bf16.mxu0 0
    %7398 = vmatpush2.bf16.msra.mxu0 0
    %7399 = vmatprep.subr.bf16.mxu0 0
    %7400 = vmatpush2.bf16.msra.mxu0 0
    %7401 = vmatprep.subr.bf16.mxu0 0
    %7402 = vmatpush2.bf16.msra.mxu0 0
    %7403 = vmatprep.mubr.bf16.mxu0 0
    %7404 = vmatmul.mubr.bf16.gmra.mxu0 %v7366
    %v7405 = vpop.f32.mrf.mxu0
    %v7406 = vadd.f32 0.0, %v7405
    %v7407 = vpop.f32.mrf.mxu0
    %v7408 = vpop.f32.mrf.mxu0
    %v7409 = vadd.f32 0.0, %v7408
    %v7410 = vpop.f32.mrf.mxu0
    %7411 = vmatprep.mubr.bf16.mxu0 0
    %7412 = vmatmul.mubr.bf16.gmra.mxu0 %v7369
    %v7413 = vpop.f32.mrf.mxu0
    %v7414 = vadd.f32 0.0, %v7413
    %v7415 = vpop.f32.mrf.mxu0
    %v7416 = vpop.f32.mrf.mxu0
    %v7417 = vadd.f32 0.0, %v7416
    %v7418 = vpop.f32.mrf.mxu0
    %7419 = vdwg.mxu0
    %v7421 = vsel %vm1080, %v7245, 0
    %v7424 = vsel %vm1080, %v7246, 0
    %7426 = vmatprep.subr.bf16.mxu0 0
    %7427 = vmatpush1.bf16.msra.mxu0 0
    %7428 = vmatprep.subr.bf16.mxu0 0
    %7429 = vmatpush1.bf16.msra.mxu0 0
    %7430 = vmatprep.subr.bf16.mxu0 0
    %7431 = vmatpush1.bf16.msra.mxu0 0
    %7432 = vmatprep.subr.bf16.mxu0 0
    %7433 = vmatpush1.bf16.msra.mxu0 0
    %7434 = vmatprep.subr.bf16.mxu0 0
    %7435 = vmatpush1.bf16.msra.mxu0 0
    %7436 = vmatprep.subr.bf16.mxu0 0
    %7437 = vmatpush1.bf16.msra.mxu0 0
    %7438 = vmatprep.subr.bf16.mxu0 0
    %7439 = vmatpush1.bf16.msra.mxu0 %v7254
    %7440 = vmatprep.subr.bf16.mxu0 0
    %7441 = vmatpush1.bf16.msra.mxu0 %v7253
    %7442 = vmatprep.subr.bf16.mxu0 0
    %7443 = vmatpush2.bf16.msra.mxu0 0
    %7444 = vmatprep.subr.bf16.mxu0 0
    %7445 = vmatpush2.bf16.msra.mxu0 0
    %7446 = vmatprep.subr.bf16.mxu0 0
    %7447 = vmatpush2.bf16.msra.mxu0 0
    %7448 = vmatprep.subr.bf16.mxu0 0
    %7449 = vmatpush2.bf16.msra.mxu0 0
    %7450 = vmatprep.subr.bf16.mxu0 0
    %7451 = vmatpush2.bf16.msra.mxu0 0
    %7452 = vmatprep.subr.bf16.mxu0 0
    %7453 = vmatpush2.bf16.msra.mxu0 0
    %7454 = vmatprep.subr.bf16.mxu0 0
    %7455 = vmatpush2.bf16.msra.mxu0 0
    %7456 = vmatprep.subr.bf16.mxu0 0
    %7457 = vmatpush2.bf16.msra.mxu0 0
    %7458 = vmatprep.mubr.bf16.mxu0 0
    %7459 = vmatmul.mubr.bf16.gmra.mxu0 %v7421
    %v7460 = vpop.f32.mrf.mxu0
    %v7461 = vadd.f32 0.0, %v7460
    %v7462 = vpop.f32.mrf.mxu0
    %v7463 = vpop.f32.mrf.mxu0
    %v7464 = vadd.f32 0.0, %v7463
    %v7465 = vpop.f32.mrf.mxu0
    %7466 = vmatprep.mubr.bf16.mxu0 0
    %7467 = vmatmul.mubr.bf16.gmra.mxu0 %v7424
    %v7468 = vpop.f32.mrf.mxu0
    %v7469 = vadd.f32 0.0, %v7468
    %v7470 = vpop.f32.mrf.mxu0
    %v7471 = vpop.f32.mrf.mxu0
    %v7472 = vadd.f32 0.0, %v7471
    %v7473 = vpop.f32.mrf.mxu0
    %7474 = vdwg.mxu0
    %7477 = vrot.lane.b32.xlu0 %v6771, 96
    %v7478 = vpop.permute.xlu0 %7477
    %7479 = vrot.lane.b32.xlu0 %v6772, 96
    %v7480 = vpop.permute.xlu0 %7479
    %7483 = vrot.lane.b32.xlu0 %v6779, 96
    %v7484 = vpop.permute.xlu0 %7483
    %7485 = vrot.lane.b32.xlu0 %v6780, 96
    %v7486 = vpop.permute.xlu0 %7485
    %v7488 = vsel %vm1080, %v7478, 0
    %v7491 = vsel %vm1080, %v7480, 0
    %v7494 = vsel %vm1080, %v7484, 0
    %v7497 = vsel %vm1080, %v7486, 0
    %7499 = vmatprep.subr.bf16.mxu0 0
    %7500 = vmatpush1.bf16.xpose.msra.mxu0 0
    %7501 = vmatprep.subr.bf16.mxu0 0
    %7502 = vmatpush1.bf16.xpose.msra.mxu0 0
    %7503 = vmatprep.subr.bf16.mxu0 0
    %7504 = vmatpush1.bf16.xpose.msra.mxu0 0
    %7505 = vmatprep.subr.bf16.mxu0 0
    %7506 = vmatpush1.bf16.xpose.msra.mxu0 0
    %7507 = vmatprep.subr.bf16.mxu0 0
    %7508 = vmatpush1.bf16.xpose.msra.mxu0 0
    %7509 = vmatprep.subr.bf16.mxu0 0
    %7510 = vmatpush1.bf16.xpose.msra.mxu0 0
    %7511 = vmatprep.subr.bf16.mxu0 0
    %7512 = vmatpush1.bf16.xpose.msra.mxu0 %v7497
    %7513 = vmatprep.subr.bf16.mxu0 0
    %7514 = vmatpush1.bf16.xpose.msra.mxu0 %v7494
    %7515 = vmatprep.subr.bf16.mxu0 0
    %7516 = vmatpush2.bf16.xpose.msra.mxu0 0
    %7517 = vmatprep.subr.bf16.mxu0 0
    %7518 = vmatpush2.bf16.xpose.msra.mxu0 0
    %7519 = vmatprep.subr.bf16.mxu0 0
    %7520 = vmatpush2.bf16.xpose.msra.mxu0 0
    %7521 = vmatprep.subr.bf16.mxu0 0
    %7522 = vmatpush2.bf16.xpose.msra.mxu0 0
    %7523 = vmatprep.subr.bf16.mxu0 0
    %7524 = vmatpush2.bf16.xpose.msra.mxu0 0
    %7525 = vmatprep.subr.bf16.mxu0 0
    %7526 = vmatpush2.bf16.xpose.msra.mxu0 0
    %7527 = vmatprep.subr.bf16.mxu0 0
    %7528 = vmatpush2.bf16.xpose.msra.mxu0 0
    %7529 = vmatprep.subr.bf16.mxu0 0
    %7530 = vmatpush2.bf16.xpose.msra.mxu0 0
    %7531 = vmatprep.mubr.bf16.mxu0 0
    %7532 = vmatmul.mubr.bf16.gmra.mxu0 %v7488
    %v7533 = vpop.f32.mrf.mxu0
    %v7534 = vadd.f32 0.0, %v7533
    %v7535 = vpop.f32.mrf.mxu0
    %v7536 = vpop.f32.mrf.mxu0
    %v7537 = vadd.f32 0.0, %v7536
    %v7538 = vpop.f32.mrf.mxu0
    %7539 = vmatprep.mubr.bf16.mxu0 0
    %7540 = vmatmul.mubr.bf16.gmra.mxu0 %v7491
    %v7541 = vpop.f32.mrf.mxu0
    %v7542 = vadd.f32 0.0, %v7541
    %v7543 = vpop.f32.mrf.mxu0
    %v7544 = vpop.f32.mrf.mxu0
    %v7545 = vadd.f32 0.0, %v7544
    %v7546 = vpop.f32.mrf.mxu0
    %7547 = vdwg.mxu0
    %7550 = vrot.lane.b32.xlu0 %v6773, 96
    %v7551 = vpop.permute.xlu0 %7550
    %7552 = vrot.lane.b32.xlu0 %v6774, 96
    %v7553 = vpop.permute.xlu0 %7552
    %7556 = vrot.lane.b32.xlu0 %v6781, 96
    %v7557 = vpop.permute.xlu0 %7556
    %7558 = vrot.lane.b32.xlu0 %v6782, 96
    %v7559 = vpop.permute.xlu0 %7558
    %v7561 = vsel %vm1080, %v7551, 0
    %v7564 = vsel %vm1080, %v7553, 0
    %v7567 = vsel %vm1080, %v7557, 0
    %v7570 = vsel %vm1080, %v7559, 0
    %7572 = vmatprep.subr.bf16.mxu0 0
    %7573 = vmatpush1.bf16.xpose.msra.mxu0 0
    %7574 = vmatprep.subr.bf16.mxu0 0
    %7575 = vmatpush1.bf16.xpose.msra.mxu0 0
    %7576 = vmatprep.subr.bf16.mxu0 0
    %7577 = vmatpush1.bf16.xpose.msra.mxu0 0
    %7578 = vmatprep.subr.bf16.mxu0 0
    %7579 = vmatpush1.bf16.xpose.msra.mxu0 0
    %7580 = vmatprep.subr.bf16.mxu0 0
    %7581 = vmatpush1.bf16.xpose.msra.mxu0 0
    %7582 = vmatprep.subr.bf16.mxu0 0
    %7583 = vmatpush1.bf16.xpose.msra.mxu0 0
    %7584 = vmatprep.subr.bf16.mxu0 0
    %7585 = vmatpush1.bf16.xpose.msra.mxu0 %v7570
    %7586 = vmatprep.subr.bf16.mxu0 0
    %7587 = vmatpush1.bf16.xpose.msra.mxu0 %v7567
    %7588 = vmatprep.subr.bf16.mxu0 0
    %7589 = vmatpush2.bf16.xpose.msra.mxu0 0
    %7590 = vmatprep.subr.bf16.mxu0 0
    %7591 = vmatpush2.bf16.xpose.msra.mxu0 0
    %7592 = vmatprep.subr.bf16.mxu0 0
    %7593 = vmatpush2.bf16.xpose.msra.mxu0 0
    %7594 = vmatprep.subr.bf16.mxu0 0
    %7595 = vmatpush2.bf16.xpose.msra.mxu0 0
    %7596 = vmatprep.subr.bf16.mxu0 0
    %7597 = vmatpush2.bf16.xpose.msra.mxu0 0
    %7598 = vmatprep.subr.bf16.mxu0 0
    %7599 = vmatpush2.bf16.xpose.msra.mxu0 0
    %7600 = vmatprep.subr.bf16.mxu0 0
    %7601 = vmatpush2.bf16.xpose.msra.mxu0 0
    %7602 = vmatprep.subr.bf16.mxu0 0
    %7603 = vmatpush2.bf16.xpose.msra.mxu0 0
    %7604 = vmatprep.mubr.bf16.mxu0 0
    %7605 = vmatmul.mubr.bf16.gmra.mxu0 %v7561
    %v7606 = vpop.f32.mrf.mxu0
    %v7607 = vadd.f32 0.0, %v7606
    %v7608 = vpop.f32.mrf.mxu0
    %v7609 = vpop.f32.mrf.mxu0
    %v7610 = vadd.f32 0.0, %v7609
    %v7611 = vpop.f32.mrf.mxu0
    %7612 = vmatprep.mubr.bf16.mxu0 0
    %7613 = vmatmul.mubr.bf16.gmra.mxu0 %v7564
    %v7614 = vpop.f32.mrf.mxu0
    %v7615 = vadd.f32 0.0, %v7614
    %v7616 = vpop.f32.mrf.mxu0
    %v7617 = vpop.f32.mrf.mxu0
    %v7618 = vadd.f32 0.0, %v7617
    %v7619 = vpop.f32.mrf.mxu0
    %7620 = vdwg.mxu0
    %7623 = vrot.lane.b32.xlu0 %v6775, 96
    %v7624 = vpop.permute.xlu0 %7623
    %7625 = vrot.lane.b32.xlu0 %v6776, 96
    %v7626 = vpop.permute.xlu0 %7625
    %7629 = vrot.lane.b32.xlu0 %v6783, 96
    %v7630 = vpop.permute.xlu0 %7629
    %7631 = vrot.lane.b32.xlu0 %v6784, 96
    %v7632 = vpop.permute.xlu0 %7631
    %v7634 = vsel %vm1080, %v7624, 0
    %v7637 = vsel %vm1080, %v7626, 0
    %v7640 = vsel %vm1080, %v7630, 0
    %v7643 = vsel %vm1080, %v7632, 0
    %7645 = vmatprep.subr.bf16.mxu0 0
    %7646 = vmatpush1.bf16.xpose.msra.mxu0 0
    %7647 = vmatprep.subr.bf16.mxu0 0
    %7648 = vmatpush1.bf16.xpose.msra.mxu0 0
    %7649 = vmatprep.subr.bf16.mxu0 0
    %7650 = vmatpush1.bf16.xpose.msra.mxu0 0
    %7651 = vmatprep.subr.bf16.mxu0 0
    %7652 = vmatpush1.bf16.xpose.msra.mxu0 0
    %7653 = vmatprep.subr.bf16.mxu0 0
    %7654 = vmatpush1.bf16.xpose.msra.mxu0 0
    %7655 = vmatprep.subr.bf16.mxu0 0
    %7656 = vmatpush1.bf16.xpose.msra.mxu0 0
    %7657 = vmatprep.subr.bf16.mxu0 0
    %7658 = vmatpush1.bf16.xpose.msra.mxu0 %v7643
    %7659 = vmatprep.subr.bf16.mxu0 0
    %7660 = vmatpush1.bf16.xpose.msra.mxu0 %v7640
    %7661 = vmatprep.subr.bf16.mxu0 0
    %7662 = vmatpush2.bf16.xpose.msra.mxu0 0
    %7663 = vmatprep.subr.bf16.mxu0 0
    %7664 = vmatpush2.bf16.xpose.msra.mxu0 0
    %7665 = vmatprep.subr.bf16.mxu0 0
    %7666 = vmatpush2.bf16.xpose.msra.mxu0 0
    %7667 = vmatprep.subr.bf16.mxu0 0
    %7668 = vmatpush2.bf16.xpose.msra.mxu0 0
    %7669 = vmatprep.subr.bf16.mxu0 0
    %7670 = vmatpush2.bf16.xpose.msra.mxu0 0
    %7671 = vmatprep.subr.bf16.mxu0 0
    %7672 = vmatpush2.bf16.xpose.msra.mxu0 0
    %7673 = vmatprep.subr.bf16.mxu0 0
    %7674 = vmatpush2.bf16.xpose.msra.mxu0 0
    %7675 = vmatprep.subr.bf16.mxu0 0
    %7676 = vmatpush2.bf16.xpose.msra.mxu0 0
    %7677 = vmatprep.mubr.bf16.mxu0 0
    %7678 = vmatmul.mubr.bf16.gmra.mxu0 %v7634
    %v7679 = vpop.f32.mrf.mxu0
    %v7680 = vadd.f32 0.0, %v7679
    %v7681 = vpop.f32.mrf.mxu0
    %v7682 = vpop.f32.mrf.mxu0
    %v7683 = vadd.f32 0.0, %v7682
    %v7684 = vpop.f32.mrf.mxu0
    %7685 = vmatprep.mubr.bf16.mxu0 0
    %7686 = vmatmul.mubr.bf16.gmra.mxu0 %v7637
    %v7687 = vpop.f32.mrf.mxu0
    %v7688 = vadd.f32 0.0, %v7687
    %v7689 = vpop.f32.mrf.mxu0
    %v7690 = vpop.f32.mrf.mxu0
    %v7691 = vadd.f32 0.0, %v7690
    %v7692 = vpop.f32.mrf.mxu0
    %7693 = vdwg.mxu0
    %7696 = vrot.lane.b32.xlu0 %v6777, 96
    %v7697 = vpop.permute.xlu0 %7696
    %7698 = vrot.lane.b32.xlu0 %v6778, 96
    %v7699 = vpop.permute.xlu0 %7698
    %7702 = vrot.lane.b32.xlu0 %v6785, 96
    %v7703 = vpop.permute.xlu0 %7702
    %7704 = vrot.lane.b32.xlu0 %v6786, 96
    %v7705 = vpop.permute.xlu0 %7704
    %v7707 = vsel %vm1080, %v7697, 0
    %v7710 = vsel %vm1080, %v7699, 0
    %v7713 = vsel %vm1080, %v7703, 0
    %v7716 = vsel %vm1080, %v7705, 0
    %7718 = vmatprep.subr.bf16.mxu0 0
    %7719 = vmatpush1.bf16.xpose.msra.mxu0 0
    %7720 = vmatprep.subr.bf16.mxu0 0
    %7721 = vmatpush1.bf16.xpose.msra.mxu0 0
    %7722 = vmatprep.subr.bf16.mxu0 0
    %7723 = vmatpush1.bf16.xpose.msra.mxu0 0
    %7724 = vmatprep.subr.bf16.mxu0 0
    %7725 = vmatpush1.bf16.xpose.msra.mxu0 0
    %7726 = vmatprep.subr.bf16.mxu0 0
    %7727 = vmatpush1.bf16.xpose.msra.mxu0 0
    %7728 = vmatprep.subr.bf16.mxu0 0
    %7729 = vmatpush1.bf16.xpose.msra.mxu0 0
    %7730 = vmatprep.subr.bf16.mxu0 0
    %7731 = vmatpush1.bf16.xpose.msra.mxu0 %v7716
    %7732 = vmatprep.subr.bf16.mxu0 0
    %7733 = vmatpush1.bf16.xpose.msra.mxu0 %v7713
    %7734 = vmatprep.subr.bf16.mxu0 0
    %7735 = vmatpush2.bf16.xpose.msra.mxu0 0
    %7736 = vmatprep.subr.bf16.mxu0 0
    %7737 = vmatpush2.bf16.xpose.msra.mxu0 0
    %7738 = vmatprep.subr.bf16.mxu0 0
    %7739 = vmatpush2.bf16.xpose.msra.mxu0 0
    %7740 = vmatprep.subr.bf16.mxu0 0
    %7741 = vmatpush2.bf16.xpose.msra.mxu0 0
    %7742 = vmatprep.subr.bf16.mxu0 0
    %7743 = vmatpush2.bf16.xpose.msra.mxu0 0
    %7744 = vmatprep.subr.bf16.mxu0 0
    %7745 = vmatpush2.bf16.xpose.msra.mxu0 0
    %7746 = vmatprep.subr.bf16.mxu0 0
    %7747 = vmatpush2.bf16.xpose.msra.mxu0 0
    %7748 = vmatprep.subr.bf16.mxu0 0
    %7749 = vmatpush2.bf16.xpose.msra.mxu0 0
    %7750 = vmatprep.mubr.bf16.mxu0 0
    %7751 = vmatmul.mubr.bf16.gmra.mxu0 %v7707
    %v7752 = vpop.f32.mrf.mxu0
    %v7753 = vadd.f32 0.0, %v7752
    %v7754 = vpop.f32.mrf.mxu0
    %v7755 = vpop.f32.mrf.mxu0
    %v7756 = vadd.f32 0.0, %v7755
    %v7757 = vpop.f32.mrf.mxu0
    %7758 = vmatprep.mubr.bf16.mxu0 0
    %7759 = vmatmul.mubr.bf16.gmra.mxu0 %v7710
    %v7760 = vpop.f32.mrf.mxu0
    %v7761 = vadd.f32 0.0, %v7760
    %v7762 = vpop.f32.mrf.mxu0
    %v7763 = vpop.f32.mrf.mxu0
    %v7764 = vadd.f32 0.0, %v7763
    %v7765 = vpop.f32.mrf.mxu0
    %7766 = vdwg.mxu0
    %v7767 = vmul.f32 %v7534, 0.17677669
    %v7768 = vmul.f32 %v7537, 0.17677669
    %v7769 = vmul.f32 %v7542, 0.17677669
    %v7770 = vmul.f32 %v7545, 0.17677669
    %v7771 = vmul.f32 %v7607, 0.17677669
    %v7772 = vmul.f32 %v7610, 0.17677669
    %v7773 = vmul.f32 %v7615, 0.17677669
    %v7774 = vmul.f32 %v7618, 0.17677669
    %v7775 = vmul.f32 %v7680, 0.17677669
    %v7776 = vmul.f32 %v7683, 0.17677669
    %v7777 = vmul.f32 %v7688, 0.17677669
    %v7778 = vmul.f32 %v7691, 0.17677669
    %v7779 = vmul.f32 %v7753, 0.17677669
    %v7780 = vmul.f32 %v7756, 0.17677669
    %v7781 = vmul.f32 %v7761, 0.17677669
    %v7782 = vmul.f32 %v7764, 0.17677669
    %v7783 = vsel %vm1342, %v7767, -1e+30
    %v7784 = vsel %vm1342, %v7768, -1e+30
    %v7785 = vsel %vm1342, %v7769, -1e+30
    %v7786 = vsel %vm1342, %v7770, -1e+30
    %v7787 = vsel %vm1342, %v7771, -1e+30
    %v7788 = vsel %vm1342, %v7772, -1e+30
    %v7789 = vsel %vm1342, %v7773, -1e+30
    %v7790 = vsel %vm1342, %v7774, -1e+30
    %v7791 = vsel %vm1342, %v7775, -1e+30
    %v7792 = vsel %vm1342, %v7776, -1e+30
    %v7793 = vsel %vm1342, %v7777, -1e+30
    %v7794 = vsel %vm1342, %v7778, -1e+30
    %v7795 = vsel %vm1342, %v7779, -1e+30
    %v7796 = vsel %vm1342, %v7780, -1e+30
    %v7797 = vsel %vm1342, %v7781, -1e+30
    %v7798 = vsel %vm1342, %v7782, -1e+30
    %v7799 = vsel %vm1080, %v7783, -inf
    %7800 = vmax.xlane.f32.xlu0 %v7799
    %v7801 = vpop.xlane.xlu0 %7800
    %v7802 = vsel %vm1080, %v7784, -inf
    %7803 = vmax.xlane.f32.xlu0 %v7802
    %v7804 = vpop.xlane.xlu0 %7803
    %v7805 = vsel %vm1080, %v7785, -inf
    %7806 = vmax.xlane.f32.xlu0 %v7805
    %v7807 = vpop.xlane.xlu0 %7806
    %v7808 = vsel %vm1080, %v7786, -inf
    %7809 = vmax.xlane.f32.xlu0 %v7808
    %v7810 = vpop.xlane.xlu0 %7809
    %v7811 = vsel %vm1080, %v7787, -inf
    %7812 = vmax.xlane.f32.xlu0 %v7811
    %v7813 = vpop.xlane.xlu0 %7812
    %v7814 = vsel %vm1080, %v7788, -inf
    %7815 = vmax.xlane.f32.xlu0 %v7814
    %v7816 = vpop.xlane.xlu0 %7815
    %v7817 = vsel %vm1080, %v7789, -inf
    %7818 = vmax.xlane.f32.xlu0 %v7817
    %v7819 = vpop.xlane.xlu0 %7818
    %v7820 = vsel %vm1080, %v7790, -inf
    %7821 = vmax.xlane.f32.xlu0 %v7820
    %v7822 = vpop.xlane.xlu0 %7821
    %v7823 = vsel %vm1080, %v7791, -inf
    %7824 = vmax.xlane.f32.xlu0 %v7823
    %v7825 = vpop.xlane.xlu0 %7824
    %v7826 = vsel %vm1080, %v7792, -inf
    %7827 = vmax.xlane.f32.xlu0 %v7826
    %v7828 = vpop.xlane.xlu0 %7827
    %v7829 = vsel %vm1080, %v7793, -inf
    %7830 = vmax.xlane.f32.xlu0 %v7829
    %v7831 = vpop.xlane.xlu0 %7830
    %v7832 = vsel %vm1080, %v7794, -inf
    %7833 = vmax.xlane.f32.xlu0 %v7832
    %v7834 = vpop.xlane.xlu0 %7833
    %v7835 = vsel %vm1080, %v7795, -inf
    %7836 = vmax.xlane.f32.xlu0 %v7835
    %v7837 = vpop.xlane.xlu0 %7836
    %v7838 = vsel %vm1080, %v7796, -inf
    %7839 = vmax.xlane.f32.xlu0 %v7838
    %v7840 = vpop.xlane.xlu0 %7839
    %v7841 = vsel %vm1080, %v7797, -inf
    %7842 = vmax.xlane.f32.xlu0 %v7841
    %v7843 = vpop.xlane.xlu0 %7842
    %v7844 = vsel %vm1080, %v7798, -inf
    %7845 = vmax.xlane.f32.xlu0 %v7844
    %v7846 = vpop.xlane.xlu0 %7845
    %v7847 = vsub.f32 %v7783, %v7801
    %v7848 = vsub.f32 %v7784, %v7804
    %v7849 = vsub.f32 %v7785, %v7807
    %v7850 = vsub.f32 %v7786, %v7810
    %v7851 = vsub.f32 %v7787, %v7813
    %v7852 = vsub.f32 %v7788, %v7816
    %v7853 = vsub.f32 %v7789, %v7819
    %v7854 = vsub.f32 %v7790, %v7822
    %v7855 = vsub.f32 %v7791, %v7825
    %v7856 = vsub.f32 %v7792, %v7828
    %v7857 = vsub.f32 %v7793, %v7831
    %v7858 = vsub.f32 %v7794, %v7834
    %v7859 = vsub.f32 %v7795, %v7837
    %v7860 = vsub.f32 %v7796, %v7840
    %v7861 = vsub.f32 %v7797, %v7843
    %v7862 = vsub.f32 %v7798, %v7846
    %v7863 = vmul.f32 %v7847, 1.442695
    %v7864 = vpow.pop %v7863
    %v7865 = vmul.f32 %v7848, 1.442695
    %v7866 = vpow.pop %v7865
    %v7867 = vmul.f32 %v7849, 1.442695
    %v7868 = vpow.pop %v7867
    %v7869 = vmul.f32 %v7850, 1.442695
    %v7870 = vpow.pop %v7869
    %v7871 = vmul.f32 %v7851, 1.442695
    %v7872 = vpow.pop %v7871
    %v7873 = vmul.f32 %v7852, 1.442695
    %v7874 = vpow.pop %v7873
    %v7875 = vmul.f32 %v7853, 1.442695
    %v7876 = vpow.pop %v7875
    %v7877 = vmul.f32 %v7854, 1.442695
    %v7878 = vpow.pop %v7877
    %v7879 = vmul.f32 %v7855, 1.442695
    %v7880 = vpow.pop %v7879
    %v7881 = vmul.f32 %v7856, 1.442695
    %v7882 = vpow.pop %v7881
    %v7883 = vmul.f32 %v7857, 1.442695
    %v7884 = vpow.pop %v7883
    %v7885 = vmul.f32 %v7858, 1.442695
    %v7886 = vpow.pop %v7885
    %v7887 = vmul.f32 %v7859, 1.442695
    %v7888 = vpow.pop %v7887
    %v7889 = vmul.f32 %v7860, 1.442695
    %v7890 = vpow.pop %v7889
    %v7891 = vmul.f32 %v7861, 1.442695
    %v7892 = vpow.pop %v7891
    %v7893 = vmul.f32 %v7862, 1.442695
    %v7894 = vpow.pop %v7893
    %v7895 = vsel %vm1080, %v7864, 0.0
    %7896 = vadd.xlane.f32.xlu0 %v7895
    %v7897 = vpop.xlane.xlu0 %7896
    %v7898 = vsel %vm1080, %v7866, 0.0
    %7899 = vadd.xlane.f32.xlu0 %v7898
    %v7900 = vpop.xlane.xlu0 %7899
    %v7901 = vsel %vm1080, %v7868, 0.0
    %7902 = vadd.xlane.f32.xlu0 %v7901
    %v7903 = vpop.xlane.xlu0 %7902
    %v7904 = vsel %vm1080, %v7870, 0.0
    %7905 = vadd.xlane.f32.xlu0 %v7904
    %v7906 = vpop.xlane.xlu0 %7905
    %v7907 = vsel %vm1080, %v7872, 0.0
    %7908 = vadd.xlane.f32.xlu0 %v7907
    %v7909 = vpop.xlane.xlu0 %7908
    %v7910 = vsel %vm1080, %v7874, 0.0
    %7911 = vadd.xlane.f32.xlu0 %v7910
    %v7912 = vpop.xlane.xlu0 %7911
    %v7913 = vsel %vm1080, %v7876, 0.0
    %7914 = vadd.xlane.f32.xlu0 %v7913
    %v7915 = vpop.xlane.xlu0 %7914
    %v7916 = vsel %vm1080, %v7878, 0.0
    %7917 = vadd.xlane.f32.xlu0 %v7916
    %v7918 = vpop.xlane.xlu0 %7917
    %v7919 = vsel %vm1080, %v7880, 0.0
    %7920 = vadd.xlane.f32.xlu0 %v7919
    %v7921 = vpop.xlane.xlu0 %7920
    %v7922 = vsel %vm1080, %v7882, 0.0
    %7923 = vadd.xlane.f32.xlu0 %v7922
    %v7924 = vpop.xlane.xlu0 %7923
    %v7925 = vsel %vm1080, %v7884, 0.0
    %7926 = vadd.xlane.f32.xlu0 %v7925
    %v7927 = vpop.xlane.xlu0 %7926
    %v7928 = vsel %vm1080, %v7886, 0.0
    %7929 = vadd.xlane.f32.xlu0 %v7928
    %v7930 = vpop.xlane.xlu0 %7929
    %v7931 = vsel %vm1080, %v7888, 0.0
    %7932 = vadd.xlane.f32.xlu0 %v7931
    %v7933 = vpop.xlane.xlu0 %7932
    %v7934 = vsel %vm1080, %v7890, 0.0
    %7935 = vadd.xlane.f32.xlu0 %v7934
    %v7936 = vpop.xlane.xlu0 %7935
    %v7937 = vsel %vm1080, %v7892, 0.0
    %7938 = vadd.xlane.f32.xlu0 %v7937
    %v7939 = vpop.xlane.xlu0 %7938
    %v7940 = vsel %vm1080, %v7894, 0.0
    %7941 = vadd.xlane.f32.xlu0 %v7940
    %v7942 = vpop.xlane.xlu0 %7941
    %v7943 = vrcp.pop %v7897
    %v7944 = vmul.f32 %v7864, %v7943
    %v7945 = vrcp.pop %v7900
    %v7946 = vmul.f32 %v7866, %v7945
    %v7947 = vrcp.pop %v7903
    %v7948 = vmul.f32 %v7868, %v7947
    %v7949 = vrcp.pop %v7906
    %v7950 = vmul.f32 %v7870, %v7949
    %v7951 = vrcp.pop %v7909
    %v7952 = vmul.f32 %v7872, %v7951
    %v7953 = vrcp.pop %v7912
    %v7954 = vmul.f32 %v7874, %v7953
    %v7955 = vrcp.pop %v7915
    %v7956 = vmul.f32 %v7876, %v7955
    %v7957 = vrcp.pop %v7918
    %v7958 = vmul.f32 %v7878, %v7957
    %v7959 = vrcp.pop %v7921
    %v7960 = vmul.f32 %v7880, %v7959
    %v7961 = vrcp.pop %v7924
    %v7962 = vmul.f32 %v7882, %v7961
    %v7963 = vrcp.pop %v7927
    %v7964 = vmul.f32 %v7884, %v7963
    %v7965 = vrcp.pop %v7930
    %v7966 = vmul.f32 %v7886, %v7965
    %v7967 = vrcp.pop %v7933
    %v7968 = vmul.f32 %v7888, %v7967
    %v7969 = vrcp.pop %v7936
    %v7970 = vmul.f32 %v7890, %v7969
    %v7971 = vrcp.pop %v7939
    %v7972 = vmul.f32 %v7892, %v7971
    %v7973 = vrcp.pop %v7942
    %v7974 = vmul.f32 %v7894, %v7973
    %v7975 = vpack.c.bf16 %v7946, %v7944
    %v7976 = vpack.c.bf16 %v7950, %v7948
    %v7977 = vpack.c.bf16 %v7954, %v7952
    %v7978 = vpack.c.bf16 %v7958, %v7956
    %v7979 = vpack.c.bf16 %v7962, %v7960
    %v7980 = vpack.c.bf16 %v7966, %v7964
    %v7981 = vpack.c.bf16 %v7970, %v7968
    %v7982 = vpack.c.bf16 %v7974, %v7972
    %7985 = vrot.lane.b32.xlu0 %v7247, 96
    %v7986 = vpop.permute.xlu0 %7985
    %7987 = vrot.lane.b32.xlu0 %v7248, 96
    %v7988 = vpop.permute.xlu0 %7987
    %v7992 = vsel %vm1080, %v7975, 0
    %v7995 = vsel %vm1080, %v7976, 0
    %7997 = vmatprep.subr.bf16.mxu0 0
    %7998 = vmatpush1.bf16.msra.mxu0 0
    %7999 = vmatprep.subr.bf16.mxu0 0
    %8000 = vmatpush1.bf16.msra.mxu0 0
    %8001 = vmatprep.subr.bf16.mxu0 0
    %8002 = vmatpush1.bf16.msra.mxu0 0
    %8003 = vmatprep.subr.bf16.mxu0 0
    %8004 = vmatpush1.bf16.msra.mxu0 0
    %8005 = vmatprep.subr.bf16.mxu0 0
    %8006 = vmatpush1.bf16.msra.mxu0 0
    %8007 = vmatprep.subr.bf16.mxu0 0
    %8008 = vmatpush1.bf16.msra.mxu0 0
    %8009 = vmatprep.subr.bf16.mxu0 0
    %8010 = vmatpush1.bf16.msra.mxu0 %v7988
    %8011 = vmatprep.subr.bf16.mxu0 0
    %8012 = vmatpush1.bf16.msra.mxu0 %v7986
    %8013 = vmatprep.subr.bf16.mxu0 0
    %8014 = vmatpush2.bf16.msra.mxu0 0
    %8015 = vmatprep.subr.bf16.mxu0 0
    %8016 = vmatpush2.bf16.msra.mxu0 0
    %8017 = vmatprep.subr.bf16.mxu0 0
    %8018 = vmatpush2.bf16.msra.mxu0 0
    %8019 = vmatprep.subr.bf16.mxu0 0
    %8020 = vmatpush2.bf16.msra.mxu0 0
    %8021 = vmatprep.subr.bf16.mxu0 0
    %8022 = vmatpush2.bf16.msra.mxu0 0
    %8023 = vmatprep.subr.bf16.mxu0 0
    %8024 = vmatpush2.bf16.msra.mxu0 0
    %8025 = vmatprep.subr.bf16.mxu0 0
    %8026 = vmatpush2.bf16.msra.mxu0 0
    %8027 = vmatprep.subr.bf16.mxu0 0
    %8028 = vmatpush2.bf16.msra.mxu0 0
    %8029 = vmatprep.mubr.bf16.mxu0 0
    %8030 = vmatmul.mubr.bf16.gmra.mxu0 %v7992
    %v8031 = vpop.f32.mrf.mxu0
    %v8032 = vadd.f32 0.0, %v8031
    %v8033 = vpop.f32.mrf.mxu0
    %v8034 = vpop.f32.mrf.mxu0
    %v8035 = vadd.f32 0.0, %v8034
    %v8036 = vpop.f32.mrf.mxu0
    %8037 = vmatprep.mubr.bf16.mxu0 0
    %8038 = vmatmul.mubr.bf16.gmra.mxu0 %v7995
    %v8039 = vpop.f32.mrf.mxu0
    %v8040 = vadd.f32 0.0, %v8039
    %v8041 = vpop.f32.mrf.mxu0
    %v8042 = vpop.f32.mrf.mxu0
    %v8043 = vadd.f32 0.0, %v8042
    %v8044 = vpop.f32.mrf.mxu0
    %8045 = vdwg.mxu0
    %8048 = vrot.lane.b32.xlu0 %v7249, 96
    %v8049 = vpop.permute.xlu0 %8048
    %8050 = vrot.lane.b32.xlu0 %v7250, 96
    %v8051 = vpop.permute.xlu0 %8050
    %v8055 = vsel %vm1080, %v7977, 0
    %v8058 = vsel %vm1080, %v7978, 0
    %8060 = vmatprep.subr.bf16.mxu0 0
    %8061 = vmatpush1.bf16.msra.mxu0 0
    %8062 = vmatprep.subr.bf16.mxu0 0
    %8063 = vmatpush1.bf16.msra.mxu0 0
    %8064 = vmatprep.subr.bf16.mxu0 0
    %8065 = vmatpush1.bf16.msra.mxu0 0
    %8066 = vmatprep.subr.bf16.mxu0 0
    %8067 = vmatpush1.bf16.msra.mxu0 0
    %8068 = vmatprep.subr.bf16.mxu0 0
    %8069 = vmatpush1.bf16.msra.mxu0 0
    %8070 = vmatprep.subr.bf16.mxu0 0
    %8071 = vmatpush1.bf16.msra.mxu0 0
    %8072 = vmatprep.subr.bf16.mxu0 0
    %8073 = vmatpush1.bf16.msra.mxu0 %v8051
    %8074 = vmatprep.subr.bf16.mxu0 0
    %8075 = vmatpush1.bf16.msra.mxu0 %v8049
    %8076 = vmatprep.subr.bf16.mxu0 0
    %8077 = vmatpush2.bf16.msra.mxu0 0
    %8078 = vmatprep.subr.bf16.mxu0 0
    %8079 = vmatpush2.bf16.msra.mxu0 0
    %8080 = vmatprep.subr.bf16.mxu0 0
    %8081 = vmatpush2.bf16.msra.mxu0 0
    %8082 = vmatprep.subr.bf16.mxu0 0
    %8083 = vmatpush2.bf16.msra.mxu0 0
    %8084 = vmatprep.subr.bf16.mxu0 0
    %8085 = vmatpush2.bf16.msra.mxu0 0
    %8086 = vmatprep.subr.bf16.mxu0 0
    %8087 = vmatpush2.bf16.msra.mxu0 0
    %8088 = vmatprep.subr.bf16.mxu0 0
    %8089 = vmatpush2.bf16.msra.mxu0 0
    %8090 = vmatprep.subr.bf16.mxu0 0
    %8091 = vmatpush2.bf16.msra.mxu0 0
    %8092 = vmatprep.mubr.bf16.mxu0 0
    %8093 = vmatmul.mubr.bf16.gmra.mxu0 %v8055
    %v8094 = vpop.f32.mrf.mxu0
    %v8095 = vadd.f32 0.0, %v8094
    %v8096 = vpop.f32.mrf.mxu0
    %v8097 = vpop.f32.mrf.mxu0
    %v8098 = vadd.f32 0.0, %v8097
    %v8099 = vpop.f32.mrf.mxu0
    %8100 = vmatprep.mubr.bf16.mxu0 0
    %8101 = vmatmul.mubr.bf16.gmra.mxu0 %v8058
    %v8102 = vpop.f32.mrf.mxu0
    %v8103 = vadd.f32 0.0, %v8102
    %v8104 = vpop.f32.mrf.mxu0
    %v8105 = vpop.f32.mrf.mxu0
    %v8106 = vadd.f32 0.0, %v8105
    %v8107 = vpop.f32.mrf.mxu0
    %8108 = vdwg.mxu0
    %8111 = vrot.lane.b32.xlu0 %v7251, 96
    %v8112 = vpop.permute.xlu0 %8111
    %8113 = vrot.lane.b32.xlu0 %v7252, 96
    %v8114 = vpop.permute.xlu0 %8113
    %v8118 = vsel %vm1080, %v7979, 0
    %v8121 = vsel %vm1080, %v7980, 0
    %8123 = vmatprep.subr.bf16.mxu0 0
    %8124 = vmatpush1.bf16.msra.mxu0 0
    %8125 = vmatprep.subr.bf16.mxu0 0
    %8126 = vmatpush1.bf16.msra.mxu0 0
    %8127 = vmatprep.subr.bf16.mxu0 0
    %8128 = vmatpush1.bf16.msra.mxu0 0
    %8129 = vmatprep.subr.bf16.mxu0 0
    %8130 = vmatpush1.bf16.msra.mxu0 0
    %8131 = vmatprep.subr.bf16.mxu0 0
    %8132 = vmatpush1.bf16.msra.mxu0 0
    %8133 = vmatprep.subr.bf16.mxu0 0
    %8134 = vmatpush1.bf16.msra.mxu0 0
    %8135 = vmatprep.subr.bf16.mxu0 0
    %8136 = vmatpush1.bf16.msra.mxu0 %v8114
    %8137 = vmatprep.subr.bf16.mxu0 0
    %8138 = vmatpush1.bf16.msra.mxu0 %v8112
    %8139 = vmatprep.subr.bf16.mxu0 0
    %8140 = vmatpush2.bf16.msra.mxu0 0
    %8141 = vmatprep.subr.bf16.mxu0 0
    %8142 = vmatpush2.bf16.msra.mxu0 0
    %8143 = vmatprep.subr.bf16.mxu0 0
    %8144 = vmatpush2.bf16.msra.mxu0 0
    %8145 = vmatprep.subr.bf16.mxu0 0
    %8146 = vmatpush2.bf16.msra.mxu0 0
    %8147 = vmatprep.subr.bf16.mxu0 0
    %8148 = vmatpush2.bf16.msra.mxu0 0
    %8149 = vmatprep.subr.bf16.mxu0 0
    %8150 = vmatpush2.bf16.msra.mxu0 0
    %8151 = vmatprep.subr.bf16.mxu0 0
    %8152 = vmatpush2.bf16.msra.mxu0 0
    %8153 = vmatprep.subr.bf16.mxu0 0
    %8154 = vmatpush2.bf16.msra.mxu0 0
    %8155 = vmatprep.mubr.bf16.mxu0 0
    %8156 = vmatmul.mubr.bf16.gmra.mxu0 %v8118
    %v8157 = vpop.f32.mrf.mxu0
    %v8158 = vadd.f32 0.0, %v8157
    %v8159 = vpop.f32.mrf.mxu0
    %v8160 = vpop.f32.mrf.mxu0
    %v8161 = vadd.f32 0.0, %v8160
    %v8162 = vpop.f32.mrf.mxu0
    %8163 = vmatprep.mubr.bf16.mxu0 0
    %8164 = vmatmul.mubr.bf16.gmra.mxu0 %v8121
    %v8165 = vpop.f32.mrf.mxu0
    %v8166 = vadd.f32 0.0, %v8165
    %v8167 = vpop.f32.mrf.mxu0
    %v8168 = vpop.f32.mrf.mxu0
    %v8169 = vadd.f32 0.0, %v8168
    %v8170 = vpop.f32.mrf.mxu0
    %8171 = vdwg.mxu0
    %8174 = vrot.lane.b32.xlu0 %v7253, 96
    %v8175 = vpop.permute.xlu0 %8174
    %8176 = vrot.lane.b32.xlu0 %v7254, 96
    %v8177 = vpop.permute.xlu0 %8176
    %v8181 = vsel %vm1080, %v7981, 0
    %v8184 = vsel %vm1080, %v7982, 0
    %8186 = vmatprep.subr.bf16.mxu0 0
    %8187 = vmatpush1.bf16.msra.mxu0 0
    %8188 = vmatprep.subr.bf16.mxu0 0
    %8189 = vmatpush1.bf16.msra.mxu0 0
    %8190 = vmatprep.subr.bf16.mxu0 0
    %8191 = vmatpush1.bf16.msra.mxu0 0
    %8192 = vmatprep.subr.bf16.mxu0 0
    %8193 = vmatpush1.bf16.msra.mxu0 0
    %8194 = vmatprep.subr.bf16.mxu0 0
    %8195 = vmatpush1.bf16.msra.mxu0 0
    %8196 = vmatprep.subr.bf16.mxu0 0
    %8197 = vmatpush1.bf16.msra.mxu0 0
    %8198 = vmatprep.subr.bf16.mxu0 0
    %8199 = vmatpush1.bf16.msra.mxu0 %v8177
    %8200 = vmatprep.subr.bf16.mxu0 0
    %8201 = vmatpush1.bf16.msra.mxu0 %v8175
    %8202 = vmatprep.subr.bf16.mxu0 0
    %8203 = vmatpush2.bf16.msra.mxu0 0
    %8204 = vmatprep.subr.bf16.mxu0 0
    %8205 = vmatpush2.bf16.msra.mxu0 0
    %8206 = vmatprep.subr.bf16.mxu0 0
    %8207 = vmatpush2.bf16.msra.mxu0 0
    %8208 = vmatprep.subr.bf16.mxu0 0
    %8209 = vmatpush2.bf16.msra.mxu0 0
    %8210 = vmatprep.subr.bf16.mxu0 0
    %8211 = vmatpush2.bf16.msra.mxu0 0
    %8212 = vmatprep.subr.bf16.mxu0 0
    %8213 = vmatpush2.bf16.msra.mxu0 0
    %8214 = vmatprep.subr.bf16.mxu0 0
    %8215 = vmatpush2.bf16.msra.mxu0 0
    %8216 = vmatprep.subr.bf16.mxu0 0
    %8217 = vmatpush2.bf16.msra.mxu0 0
    %8218 = vmatprep.mubr.bf16.mxu0 0
    %8219 = vmatmul.mubr.bf16.gmra.mxu0 %v8181
    %v8220 = vpop.f32.mrf.mxu0
    %v8221 = vadd.f32 0.0, %v8220
    %v8222 = vpop.f32.mrf.mxu0
    %v8223 = vpop.f32.mrf.mxu0
    %v8224 = vadd.f32 0.0, %v8223
    %v8225 = vpop.f32.mrf.mxu0
    %8226 = vmatprep.mubr.bf16.mxu0 0
    %8227 = vmatmul.mubr.bf16.gmra.mxu0 %v8184
    %v8228 = vpop.f32.mrf.mxu0
    %v8229 = vadd.f32 0.0, %v8228
    %v8230 = vpop.f32.mrf.mxu0
    %v8231 = vpop.f32.mrf.mxu0
    %v8232 = vadd.f32 0.0, %v8231
    %v8233 = vpop.f32.mrf.mxu0
    %8234 = vdwg.mxu0
    %8235 = vrot.lane.b32.xlu0 %v6771, 64
    %v8236 = vpop.permute.xlu0 %8235
    %8237 = vrot.lane.b32.xlu0 %v6772, 64
    %v8238 = vpop.permute.xlu0 %8237
    %8239 = vrot.lane.b32.xlu0 %v6779, 64
    %v8240 = vpop.permute.xlu0 %8239
    %8241 = vrot.lane.b32.xlu0 %v6780, 64
    %v8242 = vpop.permute.xlu0 %8241
    %v8244 = vsel %vm1080, %v8236, 0
    %v8247 = vsel %vm1080, %v8238, 0
    %v8250 = vsel %vm1080, %v8240, 0
    %v8253 = vsel %vm1080, %v8242, 0
    %8255 = vmatprep.subr.bf16.mxu0 0
    %8256 = vmatpush1.bf16.xpose.msra.mxu0 0
    %8257 = vmatprep.subr.bf16.mxu0 0
    %8258 = vmatpush1.bf16.xpose.msra.mxu0 0
    %8259 = vmatprep.subr.bf16.mxu0 0
    %8260 = vmatpush1.bf16.xpose.msra.mxu0 0
    %8261 = vmatprep.subr.bf16.mxu0 0
    %8262 = vmatpush1.bf16.xpose.msra.mxu0 0
    %8263 = vmatprep.subr.bf16.mxu0 0
    %8264 = vmatpush1.bf16.xpose.msra.mxu0 0
    %8265 = vmatprep.subr.bf16.mxu0 0
    %8266 = vmatpush1.bf16.xpose.msra.mxu0 0
    %8267 = vmatprep.subr.bf16.mxu0 0
    %8268 = vmatpush1.bf16.xpose.msra.mxu0 %v8253
    %8269 = vmatprep.subr.bf16.mxu0 0
    %8270 = vmatpush1.bf16.xpose.msra.mxu0 %v8250
    %8271 = vmatprep.subr.bf16.mxu0 0
    %8272 = vmatpush2.bf16.xpose.msra.mxu0 0
    %8273 = vmatprep.subr.bf16.mxu0 0
    %8274 = vmatpush2.bf16.xpose.msra.mxu0 0
    %8275 = vmatprep.subr.bf16.mxu0 0
    %8276 = vmatpush2.bf16.xpose.msra.mxu0 0
    %8277 = vmatprep.subr.bf16.mxu0 0
    %8278 = vmatpush2.bf16.xpose.msra.mxu0 0
    %8279 = vmatprep.subr.bf16.mxu0 0
    %8280 = vmatpush2.bf16.xpose.msra.mxu0 0
    %8281 = vmatprep.subr.bf16.mxu0 0
    %8282 = vmatpush2.bf16.xpose.msra.mxu0 0
    %8283 = vmatprep.subr.bf16.mxu0 0
    %8284 = vmatpush2.bf16.xpose.msra.mxu0 0
    %8285 = vmatprep.subr.bf16.mxu0 0
    %8286 = vmatpush2.bf16.xpose.msra.mxu0 0
    %8287 = vmatprep.mubr.bf16.mxu0 0
    %8288 = vmatmul.mubr.bf16.gmra.mxu0 %v8244
    %v8289 = vpop.f32.mrf.mxu0
    %v8290 = vadd.f32 0.0, %v8289
    %v8291 = vpop.f32.mrf.mxu0
    %v8292 = vpop.f32.mrf.mxu0
    %v8293 = vadd.f32 0.0, %v8292
    %v8294 = vpop.f32.mrf.mxu0
    %8295 = vmatprep.mubr.bf16.mxu0 0
    %8296 = vmatmul.mubr.bf16.gmra.mxu0 %v8247
    %v8297 = vpop.f32.mrf.mxu0
    %v8298 = vadd.f32 0.0, %v8297
    %v8299 = vpop.f32.mrf.mxu0
    %v8300 = vpop.f32.mrf.mxu0
    %v8301 = vadd.f32 0.0, %v8300
    %v8302 = vpop.f32.mrf.mxu0
    %8303 = vdwg.mxu0
    %8304 = vrot.lane.b32.xlu0 %v6773, 64
    %v8305 = vpop.permute.xlu0 %8304
    %8306 = vrot.lane.b32.xlu0 %v6774, 64
    %v8307 = vpop.permute.xlu0 %8306
    %8308 = vrot.lane.b32.xlu0 %v6781, 64
    %v8309 = vpop.permute.xlu0 %8308
    %8310 = vrot.lane.b32.xlu0 %v6782, 64
    %v8311 = vpop.permute.xlu0 %8310
    %v8313 = vsel %vm1080, %v8305, 0
    %v8316 = vsel %vm1080, %v8307, 0
    %v8319 = vsel %vm1080, %v8309, 0
    %v8322 = vsel %vm1080, %v8311, 0
    %8324 = vmatprep.subr.bf16.mxu0 0
    %8325 = vmatpush1.bf16.xpose.msra.mxu0 0
    %8326 = vmatprep.subr.bf16.mxu0 0
    %8327 = vmatpush1.bf16.xpose.msra.mxu0 0
    %8328 = vmatprep.subr.bf16.mxu0 0
    %8329 = vmatpush1.bf16.xpose.msra.mxu0 0
    %8330 = vmatprep.subr.bf16.mxu0 0
    %8331 = vmatpush1.bf16.xpose.msra.mxu0 0
    %8332 = vmatprep.subr.bf16.mxu0 0
    %8333 = vmatpush1.bf16.xpose.msra.mxu0 0
    %8334 = vmatprep.subr.bf16.mxu0 0
    %8335 = vmatpush1.bf16.xpose.msra.mxu0 0
    %8336 = vmatprep.subr.bf16.mxu0 0
    %8337 = vmatpush1.bf16.xpose.msra.mxu0 %v8322
    %8338 = vmatprep.subr.bf16.mxu0 0
    %8339 = vmatpush1.bf16.xpose.msra.mxu0 %v8319
    %8340 = vmatprep.subr.bf16.mxu0 0
    %8341 = vmatpush2.bf16.xpose.msra.mxu0 0
    %8342 = vmatprep.subr.bf16.mxu0 0
    %8343 = vmatpush2.bf16.xpose.msra.mxu0 0
    %8344 = vmatprep.subr.bf16.mxu0 0
    %8345 = vmatpush2.bf16.xpose.msra.mxu0 0
    %8346 = vmatprep.subr.bf16.mxu0 0
    %8347 = vmatpush2.bf16.xpose.msra.mxu0 0
    %8348 = vmatprep.subr.bf16.mxu0 0
    %8349 = vmatpush2.bf16.xpose.msra.mxu0 0
    %8350 = vmatprep.subr.bf16.mxu0 0
    %8351 = vmatpush2.bf16.xpose.msra.mxu0 0
    %8352 = vmatprep.subr.bf16.mxu0 0
    %8353 = vmatpush2.bf16.xpose.msra.mxu0 0
    %8354 = vmatprep.subr.bf16.mxu0 0
    %8355 = vmatpush2.bf16.xpose.msra.mxu0 0
    %8356 = vmatprep.mubr.bf16.mxu0 0
    %8357 = vmatmul.mubr.bf16.gmra.mxu0 %v8313
    %v8358 = vpop.f32.mrf.mxu0
    %v8359 = vadd.f32 0.0, %v8358
    %v8360 = vpop.f32.mrf.mxu0
    %v8361 = vpop.f32.mrf.mxu0
    %v8362 = vadd.f32 0.0, %v8361
    %v8363 = vpop.f32.mrf.mxu0
    %8364 = vmatprep.mubr.bf16.mxu0 0
    %8365 = vmatmul.mubr.bf16.gmra.mxu0 %v8316
    %v8366 = vpop.f32.mrf.mxu0
    %v8367 = vadd.f32 0.0, %v8366
    %v8368 = vpop.f32.mrf.mxu0
    %v8369 = vpop.f32.mrf.mxu0
    %v8370 = vadd.f32 0.0, %v8369
    %v8371 = vpop.f32.mrf.mxu0
    %8372 = vdwg.mxu0
    %8373 = vrot.lane.b32.xlu0 %v6775, 64
    %v8374 = vpop.permute.xlu0 %8373
    %8375 = vrot.lane.b32.xlu0 %v6776, 64
    %v8376 = vpop.permute.xlu0 %8375
    %8377 = vrot.lane.b32.xlu0 %v6783, 64
    %v8378 = vpop.permute.xlu0 %8377
    %8379 = vrot.lane.b32.xlu0 %v6784, 64
    %v8380 = vpop.permute.xlu0 %8379
    %v8382 = vsel %vm1080, %v8374, 0
    %v8385 = vsel %vm1080, %v8376, 0
    %v8388 = vsel %vm1080, %v8378, 0
    %v8391 = vsel %vm1080, %v8380, 0
    %8393 = vmatprep.subr.bf16.mxu0 0
    %8394 = vmatpush1.bf16.xpose.msra.mxu0 0
    %8395 = vmatprep.subr.bf16.mxu0 0
    %8396 = vmatpush1.bf16.xpose.msra.mxu0 0
    %8397 = vmatprep.subr.bf16.mxu0 0
    %8398 = vmatpush1.bf16.xpose.msra.mxu0 0
    %8399 = vmatprep.subr.bf16.mxu0 0
    %8400 = vmatpush1.bf16.xpose.msra.mxu0 0
    %8401 = vmatprep.subr.bf16.mxu0 0
    %8402 = vmatpush1.bf16.xpose.msra.mxu0 0
    %8403 = vmatprep.subr.bf16.mxu0 0
    %8404 = vmatpush1.bf16.xpose.msra.mxu0 0
    %8405 = vmatprep.subr.bf16.mxu0 0
    %8406 = vmatpush1.bf16.xpose.msra.mxu0 %v8391
    %8407 = vmatprep.subr.bf16.mxu0 0
    %8408 = vmatpush1.bf16.xpose.msra.mxu0 %v8388
    %8409 = vmatprep.subr.bf16.mxu0 0
    %8410 = vmatpush2.bf16.xpose.msra.mxu0 0
    %8411 = vmatprep.subr.bf16.mxu0 0
    %8412 = vmatpush2.bf16.xpose.msra.mxu0 0
    %8413 = vmatprep.subr.bf16.mxu0 0
    %8414 = vmatpush2.bf16.xpose.msra.mxu0 0
    %8415 = vmatprep.subr.bf16.mxu0 0
    %8416 = vmatpush2.bf16.xpose.msra.mxu0 0
    %8417 = vmatprep.subr.bf16.mxu0 0
    %8418 = vmatpush2.bf16.xpose.msra.mxu0 0
    %8419 = vmatprep.subr.bf16.mxu0 0
    %8420 = vmatpush2.bf16.xpose.msra.mxu0 0
    %8421 = vmatprep.subr.bf16.mxu0 0
    %8422 = vmatpush2.bf16.xpose.msra.mxu0 0
    %8423 = vmatprep.subr.bf16.mxu0 0
    %8424 = vmatpush2.bf16.xpose.msra.mxu0 0
    %8425 = vmatprep.mubr.bf16.mxu0 0
    %8426 = vmatmul.mubr.bf16.gmra.mxu0 %v8382
    %v8427 = vpop.f32.mrf.mxu0
    %v8428 = vadd.f32 0.0, %v8427
    %v8429 = vpop.f32.mrf.mxu0
    %v8430 = vpop.f32.mrf.mxu0
    %v8431 = vadd.f32 0.0, %v8430
    %v8432 = vpop.f32.mrf.mxu0
    %8433 = vmatprep.mubr.bf16.mxu0 0
    %8434 = vmatmul.mubr.bf16.gmra.mxu0 %v8385
    %v8435 = vpop.f32.mrf.mxu0
    %v8436 = vadd.f32 0.0, %v8435
    %v8437 = vpop.f32.mrf.mxu0
    %v8438 = vpop.f32.mrf.mxu0
    %v8439 = vadd.f32 0.0, %v8438
    %v8440 = vpop.f32.mrf.mxu0
    %8441 = vdwg.mxu0
    %8442 = vrot.lane.b32.xlu0 %v6777, 64
    %v8443 = vpop.permute.xlu0 %8442
    %8444 = vrot.lane.b32.xlu0 %v6778, 64
    %v8445 = vpop.permute.xlu0 %8444
    %8446 = vrot.lane.b32.xlu0 %v6785, 64
    %v8447 = vpop.permute.xlu0 %8446
    %8448 = vrot.lane.b32.xlu0 %v6786, 64
    %v8449 = vpop.permute.xlu0 %8448
    %v8451 = vsel %vm1080, %v8443, 0
    %v8454 = vsel %vm1080, %v8445, 0
    %v8457 = vsel %vm1080, %v8447, 0
    %v8460 = vsel %vm1080, %v8449, 0
    %8462 = vmatprep.subr.bf16.mxu0 0
    %8463 = vmatpush1.bf16.xpose.msra.mxu0 0
    %8464 = vmatprep.subr.bf16.mxu0 0
    %8465 = vmatpush1.bf16.xpose.msra.mxu0 0
    %8466 = vmatprep.subr.bf16.mxu0 0
    %8467 = vmatpush1.bf16.xpose.msra.mxu0 0
    %8468 = vmatprep.subr.bf16.mxu0 0
    %8469 = vmatpush1.bf16.xpose.msra.mxu0 0
    %8470 = vmatprep.subr.bf16.mxu0 0
    %8471 = vmatpush1.bf16.xpose.msra.mxu0 0
    %8472 = vmatprep.subr.bf16.mxu0 0
    %8473 = vmatpush1.bf16.xpose.msra.mxu0 0
    %8474 = vmatprep.subr.bf16.mxu0 0
    %8475 = vmatpush1.bf16.xpose.msra.mxu0 %v8460
    %8476 = vmatprep.subr.bf16.mxu0 0
    %8477 = vmatpush1.bf16.xpose.msra.mxu0 %v8457
    %8478 = vmatprep.subr.bf16.mxu0 0
    %8479 = vmatpush2.bf16.xpose.msra.mxu0 0
    %8480 = vmatprep.subr.bf16.mxu0 0
    %8481 = vmatpush2.bf16.xpose.msra.mxu0 0
    %8482 = vmatprep.subr.bf16.mxu0 0
    %8483 = vmatpush2.bf16.xpose.msra.mxu0 0
    %8484 = vmatprep.subr.bf16.mxu0 0
    %8485 = vmatpush2.bf16.xpose.msra.mxu0 0
    %8486 = vmatprep.subr.bf16.mxu0 0
    %8487 = vmatpush2.bf16.xpose.msra.mxu0 0
    %8488 = vmatprep.subr.bf16.mxu0 0
    %8489 = vmatpush2.bf16.xpose.msra.mxu0 0
    %8490 = vmatprep.subr.bf16.mxu0 0
    %8491 = vmatpush2.bf16.xpose.msra.mxu0 0
    %8492 = vmatprep.subr.bf16.mxu0 0
    %8493 = vmatpush2.bf16.xpose.msra.mxu0 0
    %8494 = vmatprep.mubr.bf16.mxu0 0
    %8495 = vmatmul.mubr.bf16.gmra.mxu0 %v8451
    %v8496 = vpop.f32.mrf.mxu0
    %v8497 = vadd.f32 0.0, %v8496
    %v8498 = vpop.f32.mrf.mxu0
    %v8499 = vpop.f32.mrf.mxu0
    %v8500 = vadd.f32 0.0, %v8499
    %v8501 = vpop.f32.mrf.mxu0
    %8502 = vmatprep.mubr.bf16.mxu0 0
    %8503 = vmatmul.mubr.bf16.gmra.mxu0 %v8454
    %v8504 = vpop.f32.mrf.mxu0
    %v8505 = vadd.f32 0.0, %v8504
    %v8506 = vpop.f32.mrf.mxu0
    %v8507 = vpop.f32.mrf.mxu0
    %v8508 = vadd.f32 0.0, %v8507
    %v8509 = vpop.f32.mrf.mxu0
    %8510 = vdwg.mxu0
    %v8511 = vmul.f32 %v8290, 0.17677669
    %v8512 = vmul.f32 %v8293, 0.17677669
    %v8513 = vmul.f32 %v8298, 0.17677669
    %v8514 = vmul.f32 %v8301, 0.17677669
    %v8515 = vmul.f32 %v8359, 0.17677669
    %v8516 = vmul.f32 %v8362, 0.17677669
    %v8517 = vmul.f32 %v8367, 0.17677669
    %v8518 = vmul.f32 %v8370, 0.17677669
    %v8519 = vmul.f32 %v8428, 0.17677669
    %v8520 = vmul.f32 %v8431, 0.17677669
    %v8521 = vmul.f32 %v8436, 0.17677669
    %v8522 = vmul.f32 %v8439, 0.17677669
    %v8523 = vmul.f32 %v8497, 0.17677669
    %v8524 = vmul.f32 %v8500, 0.17677669
    %v8525 = vmul.f32 %v8505, 0.17677669
    %v8526 = vmul.f32 %v8508, 0.17677669
    %v8527 = vsel %vm1342, %v8511, -1e+30
    %v8528 = vsel %vm1342, %v8512, -1e+30
    %v8529 = vsel %vm1342, %v8513, -1e+30
    %v8530 = vsel %vm1342, %v8514, -1e+30
    %v8531 = vsel %vm1342, %v8515, -1e+30
    %v8532 = vsel %vm1342, %v8516, -1e+30
    %v8533 = vsel %vm1342, %v8517, -1e+30
    %v8534 = vsel %vm1342, %v8518, -1e+30
    %v8535 = vsel %vm1342, %v8519, -1e+30
    %v8536 = vsel %vm1342, %v8520, -1e+30
    %v8537 = vsel %vm1342, %v8521, -1e+30
    %v8538 = vsel %vm1342, %v8522, -1e+30
    %v8539 = vsel %vm1342, %v8523, -1e+30
    %v8540 = vsel %vm1342, %v8524, -1e+30
    %v8541 = vsel %vm1342, %v8525, -1e+30
    %v8542 = vsel %vm1342, %v8526, -1e+30
    %v8543 = vsel %vm1080, %v8527, -inf
    %8544 = vmax.xlane.f32.xlu0 %v8543
    %v8545 = vpop.xlane.xlu0 %8544
    %v8546 = vsel %vm1080, %v8528, -inf
    %8547 = vmax.xlane.f32.xlu0 %v8546
    %v8548 = vpop.xlane.xlu0 %8547
    %v8549 = vsel %vm1080, %v8529, -inf
    %8550 = vmax.xlane.f32.xlu0 %v8549
    %v8551 = vpop.xlane.xlu0 %8550
    %v8552 = vsel %vm1080, %v8530, -inf
    %8553 = vmax.xlane.f32.xlu0 %v8552
    %v8554 = vpop.xlane.xlu0 %8553
    %v8555 = vsel %vm1080, %v8531, -inf
    %8556 = vmax.xlane.f32.xlu0 %v8555
    %v8557 = vpop.xlane.xlu0 %8556
    %v8558 = vsel %vm1080, %v8532, -inf
    %8559 = vmax.xlane.f32.xlu0 %v8558
    %v8560 = vpop.xlane.xlu0 %8559
    %v8561 = vsel %vm1080, %v8533, -inf
    %8562 = vmax.xlane.f32.xlu0 %v8561
    %v8563 = vpop.xlane.xlu0 %8562
    %v8564 = vsel %vm1080, %v8534, -inf
    %8565 = vmax.xlane.f32.xlu0 %v8564
    %v8566 = vpop.xlane.xlu0 %8565
    %v8567 = vsel %vm1080, %v8535, -inf
    %8568 = vmax.xlane.f32.xlu0 %v8567
    %v8569 = vpop.xlane.xlu0 %8568
    %v8570 = vsel %vm1080, %v8536, -inf
    %8571 = vmax.xlane.f32.xlu0 %v8570
    %v8572 = vpop.xlane.xlu0 %8571
    %v8573 = vsel %vm1080, %v8537, -inf
    %8574 = vmax.xlane.f32.xlu0 %v8573
    %v8575 = vpop.xlane.xlu0 %8574
    %v8576 = vsel %vm1080, %v8538, -inf
    %8577 = vmax.xlane.f32.xlu0 %v8576
    %v8578 = vpop.xlane.xlu0 %8577
    %v8579 = vsel %vm1080, %v8539, -inf
    %8580 = vmax.xlane.f32.xlu0 %v8579
    %v8581 = vpop.xlane.xlu0 %8580
    %v8582 = vsel %vm1080, %v8540, -inf
    %8583 = vmax.xlane.f32.xlu0 %v8582
    %v8584 = vpop.xlane.xlu0 %8583
    %v8585 = vsel %vm1080, %v8541, -inf
    %8586 = vmax.xlane.f32.xlu0 %v8585
    %v8587 = vpop.xlane.xlu0 %8586
    %v8588 = vsel %vm1080, %v8542, -inf
    %8589 = vmax.xlane.f32.xlu0 %v8588
    %v8590 = vpop.xlane.xlu0 %8589
    %v8591 = vsub.f32 %v8527, %v8545
    %v8592 = vsub.f32 %v8528, %v8548
    %v8593 = vsub.f32 %v8529, %v8551
    %v8594 = vsub.f32 %v8530, %v8554
    %v8595 = vsub.f32 %v8531, %v8557
    %v8596 = vsub.f32 %v8532, %v8560
    %v8597 = vsub.f32 %v8533, %v8563
    %v8598 = vsub.f32 %v8534, %v8566
    %v8599 = vsub.f32 %v8535, %v8569
    %v8600 = vsub.f32 %v8536, %v8572
    %v8601 = vsub.f32 %v8537, %v8575
    %v8602 = vsub.f32 %v8538, %v8578
    %v8603 = vsub.f32 %v8539, %v8581
    %v8604 = vsub.f32 %v8540, %v8584
    %v8605 = vsub.f32 %v8541, %v8587
    %v8606 = vsub.f32 %v8542, %v8590
    %v8607 = vmul.f32 %v8591, 1.442695
    %v8608 = vpow.pop %v8607
    %v8609 = vmul.f32 %v8592, 1.442695
    %v8610 = vpow.pop %v8609
    %v8611 = vmul.f32 %v8593, 1.442695
    %v8612 = vpow.pop %v8611
    %v8613 = vmul.f32 %v8594, 1.442695
    %v8614 = vpow.pop %v8613
    %v8615 = vmul.f32 %v8595, 1.442695
    %v8616 = vpow.pop %v8615
    %v8617 = vmul.f32 %v8596, 1.442695
    %v8618 = vpow.pop %v8617
    %v8619 = vmul.f32 %v8597, 1.442695
    %v8620 = vpow.pop %v8619
    %v8621 = vmul.f32 %v8598, 1.442695
    %v8622 = vpow.pop %v8621
    %v8623 = vmul.f32 %v8599, 1.442695
    %v8624 = vpow.pop %v8623
    %v8625 = vmul.f32 %v8600, 1.442695
    %v8626 = vpow.pop %v8625
    %v8627 = vmul.f32 %v8601, 1.442695
    %v8628 = vpow.pop %v8627
    %v8629 = vmul.f32 %v8602, 1.442695
    %v8630 = vpow.pop %v8629
    %v8631 = vmul.f32 %v8603, 1.442695
    %v8632 = vpow.pop %v8631
    %v8633 = vmul.f32 %v8604, 1.442695
    %v8634 = vpow.pop %v8633
    %v8635 = vmul.f32 %v8605, 1.442695
    %v8636 = vpow.pop %v8635
    %v8637 = vmul.f32 %v8606, 1.442695
    %v8638 = vpow.pop %v8637
    %v8639 = vsel %vm1080, %v8608, 0.0
    %8640 = vadd.xlane.f32.xlu0 %v8639
    %v8641 = vpop.xlane.xlu0 %8640
    %v8642 = vsel %vm1080, %v8610, 0.0
    %8643 = vadd.xlane.f32.xlu0 %v8642
    %v8644 = vpop.xlane.xlu0 %8643
    %v8645 = vsel %vm1080, %v8612, 0.0
    %8646 = vadd.xlane.f32.xlu0 %v8645
    %v8647 = vpop.xlane.xlu0 %8646
    %v8648 = vsel %vm1080, %v8614, 0.0
    %8649 = vadd.xlane.f32.xlu0 %v8648
    %v8650 = vpop.xlane.xlu0 %8649
    %v8651 = vsel %vm1080, %v8616, 0.0
    %8652 = vadd.xlane.f32.xlu0 %v8651
    %v8653 = vpop.xlane.xlu0 %8652
    %v8654 = vsel %vm1080, %v8618, 0.0
    %8655 = vadd.xlane.f32.xlu0 %v8654
    %v8656 = vpop.xlane.xlu0 %8655
    %v8657 = vsel %vm1080, %v8620, 0.0
    %8658 = vadd.xlane.f32.xlu0 %v8657
    %v8659 = vpop.xlane.xlu0 %8658
    %v8660 = vsel %vm1080, %v8622, 0.0
    %8661 = vadd.xlane.f32.xlu0 %v8660
    %v8662 = vpop.xlane.xlu0 %8661
    %v8663 = vsel %vm1080, %v8624, 0.0
    %8664 = vadd.xlane.f32.xlu0 %v8663
    %v8665 = vpop.xlane.xlu0 %8664
    %v8666 = vsel %vm1080, %v8626, 0.0
    %8667 = vadd.xlane.f32.xlu0 %v8666
    %v8668 = vpop.xlane.xlu0 %8667
    %v8669 = vsel %vm1080, %v8628, 0.0
    %8670 = vadd.xlane.f32.xlu0 %v8669
    %v8671 = vpop.xlane.xlu0 %8670
    %v8672 = vsel %vm1080, %v8630, 0.0
    %8673 = vadd.xlane.f32.xlu0 %v8672
    %v8674 = vpop.xlane.xlu0 %8673
    %v8675 = vsel %vm1080, %v8632, 0.0
    %8676 = vadd.xlane.f32.xlu0 %v8675
    %v8677 = vpop.xlane.xlu0 %8676
    %v8678 = vsel %vm1080, %v8634, 0.0
    %8679 = vadd.xlane.f32.xlu0 %v8678
    %v8680 = vpop.xlane.xlu0 %8679
    %v8681 = vsel %vm1080, %v8636, 0.0
    %8682 = vadd.xlane.f32.xlu0 %v8681
    %v8683 = vpop.xlane.xlu0 %8682
    %v8684 = vsel %vm1080, %v8638, 0.0
    %8685 = vadd.xlane.f32.xlu0 %v8684
    %v8686 = vpop.xlane.xlu0 %8685
    %v8687 = vrcp.pop %v8641
    %v8688 = vmul.f32 %v8608, %v8687
    %v8689 = vrcp.pop %v8644
    %v8690 = vmul.f32 %v8610, %v8689
    %v8691 = vrcp.pop %v8647
    %v8692 = vmul.f32 %v8612, %v8691
    %v8693 = vrcp.pop %v8650
    %v8694 = vmul.f32 %v8614, %v8693
    %v8695 = vrcp.pop %v8653
    %v8696 = vmul.f32 %v8616, %v8695
    %v8697 = vrcp.pop %v8656
    %v8698 = vmul.f32 %v8618, %v8697
    %v8699 = vrcp.pop %v8659
    %v8700 = vmul.f32 %v8620, %v8699
    %v8701 = vrcp.pop %v8662
    %v8702 = vmul.f32 %v8622, %v8701
    %v8703 = vrcp.pop %v8665
    %v8704 = vmul.f32 %v8624, %v8703
    %v8705 = vrcp.pop %v8668
    %v8706 = vmul.f32 %v8626, %v8705
    %v8707 = vrcp.pop %v8671
    %v8708 = vmul.f32 %v8628, %v8707
    %v8709 = vrcp.pop %v8674
    %v8710 = vmul.f32 %v8630, %v8709
    %v8711 = vrcp.pop %v8677
    %v8712 = vmul.f32 %v8632, %v8711
    %v8713 = vrcp.pop %v8680
    %v8714 = vmul.f32 %v8634, %v8713
    %v8715 = vrcp.pop %v8683
    %v8716 = vmul.f32 %v8636, %v8715
    %v8717 = vrcp.pop %v8686
    %v8718 = vmul.f32 %v8638, %v8717
    %v8719 = vpack.c.bf16 %v8690, %v8688
    %v8720 = vpack.c.bf16 %v8694, %v8692
    %v8721 = vpack.c.bf16 %v8698, %v8696
    %v8722 = vpack.c.bf16 %v8702, %v8700
    %v8723 = vpack.c.bf16 %v8706, %v8704
    %v8724 = vpack.c.bf16 %v8710, %v8708
    %v8725 = vpack.c.bf16 %v8714, %v8712
    %v8726 = vpack.c.bf16 %v8718, %v8716
    %8727 = vrot.lane.b32.xlu0 %v7247, 64
    %v8728 = vpop.permute.xlu0 %8727
    %8729 = vrot.lane.b32.xlu0 %v7248, 64
    %v8730 = vpop.permute.xlu0 %8729
    %v8734 = vsel %vm1080, %v8719, 0
    %v8737 = vsel %vm1080, %v8720, 0
    %8739 = vmatprep.subr.bf16.mxu0 0
    %8740 = vmatpush1.bf16.msra.mxu0 0
    %8741 = vmatprep.subr.bf16.mxu0 0
    %8742 = vmatpush1.bf16.msra.mxu0 0
    %8743 = vmatprep.subr.bf16.mxu0 0
    %8744 = vmatpush1.bf16.msra.mxu0 0
    %8745 = vmatprep.subr.bf16.mxu0 0
    %8746 = vmatpush1.bf16.msra.mxu0 0
    %8747 = vmatprep.subr.bf16.mxu0 0
    %8748 = vmatpush1.bf16.msra.mxu0 0
    %8749 = vmatprep.subr.bf16.mxu0 0
    %8750 = vmatpush1.bf16.msra.mxu0 0
    %8751 = vmatprep.subr.bf16.mxu0 0
    %8752 = vmatpush1.bf16.msra.mxu0 %v8730
    %8753 = vmatprep.subr.bf16.mxu0 0
    %8754 = vmatpush1.bf16.msra.mxu0 %v8728
    %8755 = vmatprep.subr.bf16.mxu0 0
    %8756 = vmatpush2.bf16.msra.mxu0 0
    %8757 = vmatprep.subr.bf16.mxu0 0
    %8758 = vmatpush2.bf16.msra.mxu0 0
    %8759 = vmatprep.subr.bf16.mxu0 0
    %8760 = vmatpush2.bf16.msra.mxu0 0
    %8761 = vmatprep.subr.bf16.mxu0 0
    %8762 = vmatpush2.bf16.msra.mxu0 0
    %8763 = vmatprep.subr.bf16.mxu0 0
    %8764 = vmatpush2.bf16.msra.mxu0 0
    %8765 = vmatprep.subr.bf16.mxu0 0
    %8766 = vmatpush2.bf16.msra.mxu0 0
    %8767 = vmatprep.subr.bf16.mxu0 0
    %8768 = vmatpush2.bf16.msra.mxu0 0
    %8769 = vmatprep.subr.bf16.mxu0 0
    %8770 = vmatpush2.bf16.msra.mxu0 0
    %8771 = vmatprep.mubr.bf16.mxu0 0
    %8772 = vmatmul.mubr.bf16.gmra.mxu0 %v8734
    %v8773 = vpop.f32.mrf.mxu0
    %v8774 = vadd.f32 0.0, %v8773
    %v8775 = vpop.f32.mrf.mxu0
    %v8776 = vpop.f32.mrf.mxu0
    %v8777 = vadd.f32 0.0, %v8776
    %v8778 = vpop.f32.mrf.mxu0
    %8779 = vmatprep.mubr.bf16.mxu0 0
    %8780 = vmatmul.mubr.bf16.gmra.mxu0 %v8737
    %v8781 = vpop.f32.mrf.mxu0
    %v8782 = vadd.f32 0.0, %v8781
    %v8783 = vpop.f32.mrf.mxu0
    %v8784 = vpop.f32.mrf.mxu0
    %v8785 = vadd.f32 0.0, %v8784
    %v8786 = vpop.f32.mrf.mxu0
    %8787 = vdwg.mxu0
    %8788 = vrot.lane.b32.xlu0 %v7249, 64
    %v8789 = vpop.permute.xlu0 %8788
    %8790 = vrot.lane.b32.xlu0 %v7250, 64
    %v8791 = vpop.permute.xlu0 %8790
    %v8795 = vsel %vm1080, %v8721, 0
    %v8798 = vsel %vm1080, %v8722, 0
    %8800 = vmatprep.subr.bf16.mxu0 0
    %8801 = vmatpush1.bf16.msra.mxu0 0
    %8802 = vmatprep.subr.bf16.mxu0 0
    %8803 = vmatpush1.bf16.msra.mxu0 0
    %8804 = vmatprep.subr.bf16.mxu0 0
    %8805 = vmatpush1.bf16.msra.mxu0 0
    %8806 = vmatprep.subr.bf16.mxu0 0
    %8807 = vmatpush1.bf16.msra.mxu0 0
    %8808 = vmatprep.subr.bf16.mxu0 0
    %8809 = vmatpush1.bf16.msra.mxu0 0
    %8810 = vmatprep.subr.bf16.mxu0 0
    %8811 = vmatpush1.bf16.msra.mxu0 0
    %8812 = vmatprep.subr.bf16.mxu0 0
    %8813 = vmatpush1.bf16.msra.mxu0 %v8791
    %8814 = vmatprep.subr.bf16.mxu0 0
    %8815 = vmatpush1.bf16.msra.mxu0 %v8789
    %8816 = vmatprep.subr.bf16.mxu0 0
    %8817 = vmatpush2.bf16.msra.mxu0 0
    %8818 = vmatprep.subr.bf16.mxu0 0
    %8819 = vmatpush2.bf16.msra.mxu0 0
    %8820 = vmatprep.subr.bf16.mxu0 0
    %8821 = vmatpush2.bf16.msra.mxu0 0
    %8822 = vmatprep.subr.bf16.mxu0 0
    %8823 = vmatpush2.bf16.msra.mxu0 0
    %8824 = vmatprep.subr.bf16.mxu0 0
    %8825 = vmatpush2.bf16.msra.mxu0 0
    %8826 = vmatprep.subr.bf16.mxu0 0
    %8827 = vmatpush2.bf16.msra.mxu0 0
    %8828 = vmatprep.subr.bf16.mxu0 0
    %8829 = vmatpush2.bf16.msra.mxu0 0
    %8830 = vmatprep.subr.bf16.mxu0 0
    %8831 = vmatpush2.bf16.msra.mxu0 0
    %8832 = vmatprep.mubr.bf16.mxu0 0
    %8833 = vmatmul.mubr.bf16.gmra.mxu0 %v8795
    %v8834 = vpop.f32.mrf.mxu0
    %v8835 = vadd.f32 0.0, %v8834
    %v8836 = vpop.f32.mrf.mxu0
    %v8837 = vpop.f32.mrf.mxu0
    %v8838 = vadd.f32 0.0, %v8837
    %v8839 = vpop.f32.mrf.mxu0
    %8840 = vmatprep.mubr.bf16.mxu0 0
    %8841 = vmatmul.mubr.bf16.gmra.mxu0 %v8798
    %v8842 = vpop.f32.mrf.mxu0
    %v8843 = vadd.f32 0.0, %v8842
    %v8844 = vpop.f32.mrf.mxu0
    %v8845 = vpop.f32.mrf.mxu0
    %v8846 = vadd.f32 0.0, %v8845
    %v8847 = vpop.f32.mrf.mxu0
    %8848 = vdwg.mxu0
    %8849 = vrot.lane.b32.xlu0 %v7251, 64
    %v8850 = vpop.permute.xlu0 %8849
    %8851 = vrot.lane.b32.xlu0 %v7252, 64
    %v8852 = vpop.permute.xlu0 %8851
    %v8856 = vsel %vm1080, %v8723, 0
    %v8859 = vsel %vm1080, %v8724, 0
    %8861 = vmatprep.subr.bf16.mxu0 0
    %8862 = vmatpush1.bf16.msra.mxu0 0
    %8863 = vmatprep.subr.bf16.mxu0 0
    %8864 = vmatpush1.bf16.msra.mxu0 0
    %8865 = vmatprep.subr.bf16.mxu0 0
    %8866 = vmatpush1.bf16.msra.mxu0 0
    %8867 = vmatprep.subr.bf16.mxu0 0
    %8868 = vmatpush1.bf16.msra.mxu0 0
    %8869 = vmatprep.subr.bf16.mxu0 0
    %8870 = vmatpush1.bf16.msra.mxu0 0
    %8871 = vmatprep.subr.bf16.mxu0 0
    %8872 = vmatpush1.bf16.msra.mxu0 0
    %8873 = vmatprep.subr.bf16.mxu0 0
    %8874 = vmatpush1.bf16.msra.mxu0 %v8852
    %8875 = vmatprep.subr.bf16.mxu0 0
    %8876 = vmatpush1.bf16.msra.mxu0 %v8850
    %8877 = vmatprep.subr.bf16.mxu0 0
    %8878 = vmatpush2.bf16.msra.mxu0 0
    %8879 = vmatprep.subr.bf16.mxu0 0
    %8880 = vmatpush2.bf16.msra.mxu0 0
    %8881 = vmatprep.subr.bf16.mxu0 0
    %8882 = vmatpush2.bf16.msra.mxu0 0
    %8883 = vmatprep.subr.bf16.mxu0 0
    %8884 = vmatpush2.bf16.msra.mxu0 0
    %8885 = vmatprep.subr.bf16.mxu0 0
    %8886 = vmatpush2.bf16.msra.mxu0 0
    %8887 = vmatprep.subr.bf16.mxu0 0
    %8888 = vmatpush2.bf16.msra.mxu0 0
    %8889 = vmatprep.subr.bf16.mxu0 0
    %8890 = vmatpush2.bf16.msra.mxu0 0
    %8891 = vmatprep.subr.bf16.mxu0 0
    %8892 = vmatpush2.bf16.msra.mxu0 0
    %8893 = vmatprep.mubr.bf16.mxu0 0
    %8894 = vmatmul.mubr.bf16.gmra.mxu0 %v8856
    %v8895 = vpop.f32.mrf.mxu0
    %v8896 = vadd.f32 0.0, %v8895
    %v8897 = vpop.f32.mrf.mxu0
    %v8898 = vpop.f32.mrf.mxu0
    %v8899 = vadd.f32 0.0, %v8898
    %v8900 = vpop.f32.mrf.mxu0
    %8901 = vmatprep.mubr.bf16.mxu0 0
    %8902 = vmatmul.mubr.bf16.gmra.mxu0 %v8859
    %v8903 = vpop.f32.mrf.mxu0
    %v8904 = vadd.f32 0.0, %v8903
    %v8905 = vpop.f32.mrf.mxu0
    %v8906 = vpop.f32.mrf.mxu0
    %v8907 = vadd.f32 0.0, %v8906
    %v8908 = vpop.f32.mrf.mxu0
    %8909 = vdwg.mxu0
    %8910 = vrot.lane.b32.xlu0 %v7253, 64
    %v8911 = vpop.permute.xlu0 %8910
    %8912 = vrot.lane.b32.xlu0 %v7254, 64
    %v8913 = vpop.permute.xlu0 %8912
    %v8917 = vsel %vm1080, %v8725, 0
    %v8920 = vsel %vm1080, %v8726, 0
    %8922 = vmatprep.subr.bf16.mxu0 0
    %8923 = vmatpush1.bf16.msra.mxu0 0
    %8924 = vmatprep.subr.bf16.mxu0 0
    %8925 = vmatpush1.bf16.msra.mxu0 0
    %8926 = vmatprep.subr.bf16.mxu0 0
    %8927 = vmatpush1.bf16.msra.mxu0 0
    %8928 = vmatprep.subr.bf16.mxu0 0
    %8929 = vmatpush1.bf16.msra.mxu0 0
    %8930 = vmatprep.subr.bf16.mxu0 0
    %8931 = vmatpush1.bf16.msra.mxu0 0
    %8932 = vmatprep.subr.bf16.mxu0 0
    %8933 = vmatpush1.bf16.msra.mxu0 0
    %8934 = vmatprep.subr.bf16.mxu0 0
    %8935 = vmatpush1.bf16.msra.mxu0 %v8913
    %8936 = vmatprep.subr.bf16.mxu0 0
    %8937 = vmatpush1.bf16.msra.mxu0 %v8911
    %8938 = vmatprep.subr.bf16.mxu0 0
    %8939 = vmatpush2.bf16.msra.mxu0 0
    %8940 = vmatprep.subr.bf16.mxu0 0
    %8941 = vmatpush2.bf16.msra.mxu0 0
    %8942 = vmatprep.subr.bf16.mxu0 0
    %8943 = vmatpush2.bf16.msra.mxu0 0
    %8944 = vmatprep.subr.bf16.mxu0 0
    %8945 = vmatpush2.bf16.msra.mxu0 0
    %8946 = vmatprep.subr.bf16.mxu0 0
    %8947 = vmatpush2.bf16.msra.mxu0 0
    %8948 = vmatprep.subr.bf16.mxu0 0
    %8949 = vmatpush2.bf16.msra.mxu0 0
    %8950 = vmatprep.subr.bf16.mxu0 0
    %8951 = vmatpush2.bf16.msra.mxu0 0
    %8952 = vmatprep.subr.bf16.mxu0 0
    %8953 = vmatpush2.bf16.msra.mxu0 0
    %8954 = vmatprep.mubr.bf16.mxu0 0
    %8955 = vmatmul.mubr.bf16.gmra.mxu0 %v8917
    %v8956 = vpop.f32.mrf.mxu0
    %v8957 = vadd.f32 0.0, %v8956
    %v8958 = vpop.f32.mrf.mxu0
    %v8959 = vpop.f32.mrf.mxu0
    %v8960 = vadd.f32 0.0, %v8959
    %v8961 = vpop.f32.mrf.mxu0
    %8962 = vmatprep.mubr.bf16.mxu0 0
    %8963 = vmatmul.mubr.bf16.gmra.mxu0 %v8920
    %v8964 = vpop.f32.mrf.mxu0
    %v8965 = vadd.f32 0.0, %v8964
    %v8966 = vpop.f32.mrf.mxu0
    %v8967 = vpop.f32.mrf.mxu0
    %v8968 = vadd.f32 0.0, %v8967
    %v8969 = vpop.f32.mrf.mxu0
    %8970 = vdwg.mxu0
    %8971 = vrot.lane.b32.xlu0 %v6771, 32
    %v8972 = vpop.permute.xlu0 %8971
    %8973 = vrot.lane.b32.xlu0 %v6772, 32
    %v8974 = vpop.permute.xlu0 %8973
    %8975 = vrot.lane.b32.xlu0 %v6779, 32
    %v8976 = vpop.permute.xlu0 %8975
    %8977 = vrot.lane.b32.xlu0 %v6780, 32
    %v8978 = vpop.permute.xlu0 %8977
    %v8980 = vsel %vm1080, %v8972, 0
    %v8983 = vsel %vm1080, %v8974, 0
    %v8986 = vsel %vm1080, %v8976, 0
    %v8989 = vsel %vm1080, %v8978, 0
    %8991 = vmatprep.subr.bf16.mxu0 0
    %8992 = vmatpush1.bf16.xpose.msra.mxu0 0
    %8993 = vmatprep.subr.bf16.mxu0 0
    %8994 = vmatpush1.bf16.xpose.msra.mxu0 0
    %8995 = vmatprep.subr.bf16.mxu0 0
    %8996 = vmatpush1.bf16.xpose.msra.mxu0 0
    %8997 = vmatprep.subr.bf16.mxu0 0
    %8998 = vmatpush1.bf16.xpose.msra.mxu0 0
    %8999 = vmatprep.subr.bf16.mxu0 0
    %9000 = vmatpush1.bf16.xpose.msra.mxu0 0
    %9001 = vmatprep.subr.bf16.mxu0 0
    %9002 = vmatpush1.bf16.xpose.msra.mxu0 0
    %9003 = vmatprep.subr.bf16.mxu0 0
    %9004 = vmatpush1.bf16.xpose.msra.mxu0 %v8989
    %9005 = vmatprep.subr.bf16.mxu0 0
    %9006 = vmatpush1.bf16.xpose.msra.mxu0 %v8986
    %9007 = vmatprep.subr.bf16.mxu0 0
    %9008 = vmatpush2.bf16.xpose.msra.mxu0 0
    %9009 = vmatprep.subr.bf16.mxu0 0
    %9010 = vmatpush2.bf16.xpose.msra.mxu0 0
    %9011 = vmatprep.subr.bf16.mxu0 0
    %9012 = vmatpush2.bf16.xpose.msra.mxu0 0
    %9013 = vmatprep.subr.bf16.mxu0 0
    %9014 = vmatpush2.bf16.xpose.msra.mxu0 0
    %9015 = vmatprep.subr.bf16.mxu0 0
    %9016 = vmatpush2.bf16.xpose.msra.mxu0 0
    %9017 = vmatprep.subr.bf16.mxu0 0
    %9018 = vmatpush2.bf16.xpose.msra.mxu0 0
    %9019 = vmatprep.subr.bf16.mxu0 0
    %9020 = vmatpush2.bf16.xpose.msra.mxu0 0
    %9021 = vmatprep.subr.bf16.mxu0 0
    %9022 = vmatpush2.bf16.xpose.msra.mxu0 0
    %9023 = vmatprep.mubr.bf16.mxu0 0
    %9024 = vmatmul.mubr.bf16.gmra.mxu0 %v8980
    %v9025 = vpop.f32.mrf.mxu0
    %v9026 = vadd.f32 0.0, %v9025
    %v9027 = vpop.f32.mrf.mxu0
    %v9028 = vpop.f32.mrf.mxu0
    %v9029 = vadd.f32 0.0, %v9028
    %v9030 = vpop.f32.mrf.mxu0
    %9031 = vmatprep.mubr.bf16.mxu0 0
    %9032 = vmatmul.mubr.bf16.gmra.mxu0 %v8983
    %v9033 = vpop.f32.mrf.mxu0
    %v9034 = vadd.f32 0.0, %v9033
    %v9035 = vpop.f32.mrf.mxu0
    %v9036 = vpop.f32.mrf.mxu0
    %v9037 = vadd.f32 0.0, %v9036
    %v9038 = vpop.f32.mrf.mxu0
    %9039 = vdwg.mxu0
    %9040 = vrot.lane.b32.xlu0 %v6773, 32
    %v9041 = vpop.permute.xlu0 %9040
    %9042 = vrot.lane.b32.xlu0 %v6774, 32
    %v9043 = vpop.permute.xlu0 %9042
    %9044 = vrot.lane.b32.xlu0 %v6781, 32
    %v9045 = vpop.permute.xlu0 %9044
    %9046 = vrot.lane.b32.xlu0 %v6782, 32
    %v9047 = vpop.permute.xlu0 %9046
    %v9049 = vsel %vm1080, %v9041, 0
    %v9052 = vsel %vm1080, %v9043, 0
    %v9055 = vsel %vm1080, %v9045, 0
    %v9058 = vsel %vm1080, %v9047, 0
    %9060 = vmatprep.subr.bf16.mxu0 0
    %9061 = vmatpush1.bf16.xpose.msra.mxu0 0
    %9062 = vmatprep.subr.bf16.mxu0 0
    %9063 = vmatpush1.bf16.xpose.msra.mxu0 0
    %9064 = vmatprep.subr.bf16.mxu0 0
    %9065 = vmatpush1.bf16.xpose.msra.mxu0 0
    %9066 = vmatprep.subr.bf16.mxu0 0
    %9067 = vmatpush1.bf16.xpose.msra.mxu0 0
    %9068 = vmatprep.subr.bf16.mxu0 0
    %9069 = vmatpush1.bf16.xpose.msra.mxu0 0
    %9070 = vmatprep.subr.bf16.mxu0 0
    %9071 = vmatpush1.bf16.xpose.msra.mxu0 0
    %9072 = vmatprep.subr.bf16.mxu0 0
    %9073 = vmatpush1.bf16.xpose.msra.mxu0 %v9058
    %9074 = vmatprep.subr.bf16.mxu0 0
    %9075 = vmatpush1.bf16.xpose.msra.mxu0 %v9055
    %9076 = vmatprep.subr.bf16.mxu0 0
    %9077 = vmatpush2.bf16.xpose.msra.mxu0 0
    %9078 = vmatprep.subr.bf16.mxu0 0
    %9079 = vmatpush2.bf16.xpose.msra.mxu0 0
    %9080 = vmatprep.subr.bf16.mxu0 0
    %9081 = vmatpush2.bf16.xpose.msra.mxu0 0
    %9082 = vmatprep.subr.bf16.mxu0 0
    %9083 = vmatpush2.bf16.xpose.msra.mxu0 0
    %9084 = vmatprep.subr.bf16.mxu0 0
    %9085 = vmatpush2.bf16.xpose.msra.mxu0 0
    %9086 = vmatprep.subr.bf16.mxu0 0
    %9087 = vmatpush2.bf16.xpose.msra.mxu0 0
    %9088 = vmatprep.subr.bf16.mxu0 0
    %9089 = vmatpush2.bf16.xpose.msra.mxu0 0
    %9090 = vmatprep.subr.bf16.mxu0 0
    %9091 = vmatpush2.bf16.xpose.msra.mxu0 0
    %9092 = vmatprep.mubr.bf16.mxu0 0
    %9093 = vmatmul.mubr.bf16.gmra.mxu0 %v9049
    %v9094 = vpop.f32.mrf.mxu0
    %v9095 = vadd.f32 0.0, %v9094
    %v9096 = vpop.f32.mrf.mxu0
    %v9097 = vpop.f32.mrf.mxu0
    %v9098 = vadd.f32 0.0, %v9097
    %v9099 = vpop.f32.mrf.mxu0
    %9100 = vmatprep.mubr.bf16.mxu0 0
    %9101 = vmatmul.mubr.bf16.gmra.mxu0 %v9052
    %v9102 = vpop.f32.mrf.mxu0
    %v9103 = vadd.f32 0.0, %v9102
    %v9104 = vpop.f32.mrf.mxu0
    %v9105 = vpop.f32.mrf.mxu0
    %v9106 = vadd.f32 0.0, %v9105
    %v9107 = vpop.f32.mrf.mxu0
    %9108 = vdwg.mxu0
    %9109 = vrot.lane.b32.xlu0 %v6775, 32
    %v9110 = vpop.permute.xlu0 %9109
    %9111 = vrot.lane.b32.xlu0 %v6776, 32
    %v9112 = vpop.permute.xlu0 %9111
    %9113 = vrot.lane.b32.xlu0 %v6783, 32
    %v9114 = vpop.permute.xlu0 %9113
    %9115 = vrot.lane.b32.xlu0 %v6784, 32
    %v9116 = vpop.permute.xlu0 %9115
    %v9118 = vsel %vm1080, %v9110, 0
    %v9121 = vsel %vm1080, %v9112, 0
    %v9124 = vsel %vm1080, %v9114, 0
    %v9127 = vsel %vm1080, %v9116, 0
    %9129 = vmatprep.subr.bf16.mxu0 0
    %9130 = vmatpush1.bf16.xpose.msra.mxu0 0
    %9131 = vmatprep.subr.bf16.mxu0 0
    %9132 = vmatpush1.bf16.xpose.msra.mxu0 0
    %9133 = vmatprep.subr.bf16.mxu0 0
    %9134 = vmatpush1.bf16.xpose.msra.mxu0 0
    %9135 = vmatprep.subr.bf16.mxu0 0
    %9136 = vmatpush1.bf16.xpose.msra.mxu0 0
    %9137 = vmatprep.subr.bf16.mxu0 0
    %9138 = vmatpush1.bf16.xpose.msra.mxu0 0
    %9139 = vmatprep.subr.bf16.mxu0 0
    %9140 = vmatpush1.bf16.xpose.msra.mxu0 0
    %9141 = vmatprep.subr.bf16.mxu0 0
    %9142 = vmatpush1.bf16.xpose.msra.mxu0 %v9127
    %9143 = vmatprep.subr.bf16.mxu0 0
    %9144 = vmatpush1.bf16.xpose.msra.mxu0 %v9124
    %9145 = vmatprep.subr.bf16.mxu0 0
    %9146 = vmatpush2.bf16.xpose.msra.mxu0 0
    %9147 = vmatprep.subr.bf16.mxu0 0
    %9148 = vmatpush2.bf16.xpose.msra.mxu0 0
    %9149 = vmatprep.subr.bf16.mxu0 0
    %9150 = vmatpush2.bf16.xpose.msra.mxu0 0
    %9151 = vmatprep.subr.bf16.mxu0 0
    %9152 = vmatpush2.bf16.xpose.msra.mxu0 0
    %9153 = vmatprep.subr.bf16.mxu0 0
    %9154 = vmatpush2.bf16.xpose.msra.mxu0 0
    %9155 = vmatprep.subr.bf16.mxu0 0
    %9156 = vmatpush2.bf16.xpose.msra.mxu0 0
    %9157 = vmatprep.subr.bf16.mxu0 0
    %9158 = vmatpush2.bf16.xpose.msra.mxu0 0
    %9159 = vmatprep.subr.bf16.mxu0 0
    %9160 = vmatpush2.bf16.xpose.msra.mxu0 0
    %9161 = vmatprep.mubr.bf16.mxu0 0
    %9162 = vmatmul.mubr.bf16.gmra.mxu0 %v9118
    %v9163 = vpop.f32.mrf.mxu0
    %v9164 = vadd.f32 0.0, %v9163
    %v9165 = vpop.f32.mrf.mxu0
    %v9166 = vpop.f32.mrf.mxu0
    %v9167 = vadd.f32 0.0, %v9166
    %v9168 = vpop.f32.mrf.mxu0
    %9169 = vmatprep.mubr.bf16.mxu0 0
    %9170 = vmatmul.mubr.bf16.gmra.mxu0 %v9121
    %v9171 = vpop.f32.mrf.mxu0
    %v9172 = vadd.f32 0.0, %v9171
    %v9173 = vpop.f32.mrf.mxu0
    %v9174 = vpop.f32.mrf.mxu0
    %v9175 = vadd.f32 0.0, %v9174
    %v9176 = vpop.f32.mrf.mxu0
    %9177 = vdwg.mxu0
    %9178 = vrot.lane.b32.xlu0 %v6777, 32
    %v9179 = vpop.permute.xlu0 %9178
    %9180 = vrot.lane.b32.xlu0 %v6778, 32
    %v9181 = vpop.permute.xlu0 %9180
    %9182 = vrot.lane.b32.xlu0 %v6785, 32
    %v9183 = vpop.permute.xlu0 %9182
    %9184 = vrot.lane.b32.xlu0 %v6786, 32
    %v9185 = vpop.permute.xlu0 %9184
    %v9187 = vsel %vm1080, %v9179, 0
    %v9190 = vsel %vm1080, %v9181, 0
    %v9193 = vsel %vm1080, %v9183, 0
    %v9196 = vsel %vm1080, %v9185, 0
    %9198 = vmatprep.subr.bf16.mxu0 0
    %9199 = vmatpush1.bf16.xpose.msra.mxu0 0
    %9200 = vmatprep.subr.bf16.mxu0 0
    %9201 = vmatpush1.bf16.xpose.msra.mxu0 0
    %9202 = vmatprep.subr.bf16.mxu0 0
    %9203 = vmatpush1.bf16.xpose.msra.mxu0 0
    %9204 = vmatprep.subr.bf16.mxu0 0
    %9205 = vmatpush1.bf16.xpose.msra.mxu0 0
    %9206 = vmatprep.subr.bf16.mxu0 0
    %9207 = vmatpush1.bf16.xpose.msra.mxu0 0
    %9208 = vmatprep.subr.bf16.mxu0 0
    %9209 = vmatpush1.bf16.xpose.msra.mxu0 0
    %9210 = vmatprep.subr.bf16.mxu0 0
    %9211 = vmatpush1.bf16.xpose.msra.mxu0 %v9196
    %9212 = vmatprep.subr.bf16.mxu0 0
    %9213 = vmatpush1.bf16.xpose.msra.mxu0 %v9193
    %9214 = vmatprep.subr.bf16.mxu0 0
    %9215 = vmatpush2.bf16.xpose.msra.mxu0 0
    %9216 = vmatprep.subr.bf16.mxu0 0
    %9217 = vmatpush2.bf16.xpose.msra.mxu0 0
    %9218 = vmatprep.subr.bf16.mxu0 0
    %9219 = vmatpush2.bf16.xpose.msra.mxu0 0
    %9220 = vmatprep.subr.bf16.mxu0 0
    %9221 = vmatpush2.bf16.xpose.msra.mxu0 0
    %9222 = vmatprep.subr.bf16.mxu0 0
    %9223 = vmatpush2.bf16.xpose.msra.mxu0 0
    %9224 = vmatprep.subr.bf16.mxu0 0
    %9225 = vmatpush2.bf16.xpose.msra.mxu0 0
    %9226 = vmatprep.subr.bf16.mxu0 0
    %9227 = vmatpush2.bf16.xpose.msra.mxu0 0
    %9228 = vmatprep.subr.bf16.mxu0 0
    %9229 = vmatpush2.bf16.xpose.msra.mxu0 0
    %9230 = vmatprep.mubr.bf16.mxu0 0
    %9231 = vmatmul.mubr.bf16.gmra.mxu0 %v9187
    %v9232 = vpop.f32.mrf.mxu0
    %v9233 = vadd.f32 0.0, %v9232
    %v9234 = vpop.f32.mrf.mxu0
    %v9235 = vpop.f32.mrf.mxu0
    %v9236 = vadd.f32 0.0, %v9235
    %v9237 = vpop.f32.mrf.mxu0
    %9238 = vmatprep.mubr.bf16.mxu0 0
    %9239 = vmatmul.mubr.bf16.gmra.mxu0 %v9190
    %v9240 = vpop.f32.mrf.mxu0
    %v9241 = vadd.f32 0.0, %v9240
    %v9242 = vpop.f32.mrf.mxu0
    %v9243 = vpop.f32.mrf.mxu0
    %v9244 = vadd.f32 0.0, %v9243
    %v9245 = vpop.f32.mrf.mxu0
    %9246 = vdwg.mxu0
    %v9247 = vmul.f32 %v9026, 0.17677669
    %v9248 = vmul.f32 %v9029, 0.17677669
    %v9249 = vmul.f32 %v9034, 0.17677669
    %v9250 = vmul.f32 %v9037, 0.17677669
    %v9251 = vmul.f32 %v9095, 0.17677669
    %v9252 = vmul.f32 %v9098, 0.17677669
    %v9253 = vmul.f32 %v9103, 0.17677669
    %v9254 = vmul.f32 %v9106, 0.17677669
    %v9255 = vmul.f32 %v9164, 0.17677669
    %v9256 = vmul.f32 %v9167, 0.17677669
    %v9257 = vmul.f32 %v9172, 0.17677669
    %v9258 = vmul.f32 %v9175, 0.17677669
    %v9259 = vmul.f32 %v9233, 0.17677669
    %v9260 = vmul.f32 %v9236, 0.17677669
    %v9261 = vmul.f32 %v9241, 0.17677669
    %v9262 = vmul.f32 %v9244, 0.17677669
    %v9263 = vsel %vm1342, %v9247, -1e+30
    %v9264 = vsel %vm1342, %v9248, -1e+30
    %v9265 = vsel %vm1342, %v9249, -1e+30
    %v9266 = vsel %vm1342, %v9250, -1e+30
    %v9267 = vsel %vm1342, %v9251, -1e+30
    %v9268 = vsel %vm1342, %v9252, -1e+30
    %v9269 = vsel %vm1342, %v9253, -1e+30
    %v9270 = vsel %vm1342, %v9254, -1e+30
    %v9271 = vsel %vm1342, %v9255, -1e+30
    %v9272 = vsel %vm1342, %v9256, -1e+30
    %v9273 = vsel %vm1342, %v9257, -1e+30
    %v9274 = vsel %vm1342, %v9258, -1e+30
    %v9275 = vsel %vm1342, %v9259, -1e+30
    %v9276 = vsel %vm1342, %v9260, -1e+30
    %v9277 = vsel %vm1342, %v9261, -1e+30
    %v9278 = vsel %vm1342, %v9262, -1e+30
    %v9279 = vsel %vm1080, %v9263, -inf
    %9280 = vmax.xlane.f32.xlu0 %v9279
    %v9281 = vpop.xlane.xlu0 %9280
    %v9282 = vsel %vm1080, %v9264, -inf
    %9283 = vmax.xlane.f32.xlu0 %v9282
    %v9284 = vpop.xlane.xlu0 %9283
    %v9285 = vsel %vm1080, %v9265, -inf
    %9286 = vmax.xlane.f32.xlu0 %v9285
    %v9287 = vpop.xlane.xlu0 %9286
    %v9288 = vsel %vm1080, %v9266, -inf
    %9289 = vmax.xlane.f32.xlu0 %v9288
    %v9290 = vpop.xlane.xlu0 %9289
    %v9291 = vsel %vm1080, %v9267, -inf
    %9292 = vmax.xlane.f32.xlu0 %v9291
    %v9293 = vpop.xlane.xlu0 %9292
    %v9294 = vsel %vm1080, %v9268, -inf
    %9295 = vmax.xlane.f32.xlu0 %v9294
    %v9296 = vpop.xlane.xlu0 %9295
    %v9297 = vsel %vm1080, %v9269, -inf
    %9298 = vmax.xlane.f32.xlu0 %v9297
    %v9299 = vpop.xlane.xlu0 %9298
    %v9300 = vsel %vm1080, %v9270, -inf
    %9301 = vmax.xlane.f32.xlu0 %v9300
    %v9302 = vpop.xlane.xlu0 %9301
    %v9303 = vsel %vm1080, %v9271, -inf
    %9304 = vmax.xlane.f32.xlu0 %v9303
    %v9305 = vpop.xlane.xlu0 %9304
    %v9306 = vsel %vm1080, %v9272, -inf
    %9307 = vmax.xlane.f32.xlu0 %v9306
    %v9308 = vpop.xlane.xlu0 %9307
    %v9309 = vsel %vm1080, %v9273, -inf
    %9310 = vmax.xlane.f32.xlu0 %v9309
    %v9311 = vpop.xlane.xlu0 %9310
    %v9312 = vsel %vm1080, %v9274, -inf
    %9313 = vmax.xlane.f32.xlu0 %v9312
    %v9314 = vpop.xlane.xlu0 %9313
    %v9315 = vsel %vm1080, %v9275, -inf
    %9316 = vmax.xlane.f32.xlu0 %v9315
    %v9317 = vpop.xlane.xlu0 %9316
    %v9318 = vsel %vm1080, %v9276, -inf
    %9319 = vmax.xlane.f32.xlu0 %v9318
    %v9320 = vpop.xlane.xlu0 %9319
    %v9321 = vsel %vm1080, %v9277, -inf
    %9322 = vmax.xlane.f32.xlu0 %v9321
    %v9323 = vpop.xlane.xlu0 %9322
    %v9324 = vsel %vm1080, %v9278, -inf
    %9325 = vmax.xlane.f32.xlu0 %v9324
    %v9326 = vpop.xlane.xlu0 %9325
    %v9327 = vsub.f32 %v9263, %v9281
    %v9328 = vsub.f32 %v9264, %v9284
    %v9329 = vsub.f32 %v9265, %v9287
    %v9330 = vsub.f32 %v9266, %v9290
    %v9331 = vsub.f32 %v9267, %v9293
    %v9332 = vsub.f32 %v9268, %v9296
    %v9333 = vsub.f32 %v9269, %v9299
    %v9334 = vsub.f32 %v9270, %v9302
    %v9335 = vsub.f32 %v9271, %v9305
    %v9336 = vsub.f32 %v9272, %v9308
    %v9337 = vsub.f32 %v9273, %v9311
    %v9338 = vsub.f32 %v9274, %v9314
    %v9339 = vsub.f32 %v9275, %v9317
    %v9340 = vsub.f32 %v9276, %v9320
    %v9341 = vsub.f32 %v9277, %v9323
    %v9342 = vsub.f32 %v9278, %v9326
    %v9343 = vmul.f32 %v9327, 1.442695
    %v9344 = vpow.pop %v9343
    %v9345 = vmul.f32 %v9328, 1.442695
    %v9346 = vpow.pop %v9345
    %v9347 = vmul.f32 %v9329, 1.442695
    %v9348 = vpow.pop %v9347
    %v9349 = vmul.f32 %v9330, 1.442695
    %v9350 = vpow.pop %v9349
    %v9351 = vmul.f32 %v9331, 1.442695
    %v9352 = vpow.pop %v9351
    %v9353 = vmul.f32 %v9332, 1.442695
    %v9354 = vpow.pop %v9353
    %v9355 = vmul.f32 %v9333, 1.442695
    %v9356 = vpow.pop %v9355
    %v9357 = vmul.f32 %v9334, 1.442695
    %v9358 = vpow.pop %v9357
    %v9359 = vmul.f32 %v9335, 1.442695
    %v9360 = vpow.pop %v9359
    %v9361 = vmul.f32 %v9336, 1.442695
    %v9362 = vpow.pop %v9361
    %v9363 = vmul.f32 %v9337, 1.442695
    %v9364 = vpow.pop %v9363
    %v9365 = vmul.f32 %v9338, 1.442695
    %v9366 = vpow.pop %v9365
    %v9367 = vmul.f32 %v9339, 1.442695
    %v9368 = vpow.pop %v9367
    %v9369 = vmul.f32 %v9340, 1.442695
    %v9370 = vpow.pop %v9369
    %v9371 = vmul.f32 %v9341, 1.442695
    %v9372 = vpow.pop %v9371
    %v9373 = vmul.f32 %v9342, 1.442695
    %v9374 = vpow.pop %v9373
    %v9375 = vsel %vm1080, %v9344, 0.0
    %9376 = vadd.xlane.f32.xlu0 %v9375
    %v9377 = vpop.xlane.xlu0 %9376
    %v9378 = vsel %vm1080, %v9346, 0.0
    %9379 = vadd.xlane.f32.xlu0 %v9378
    %v9380 = vpop.xlane.xlu0 %9379
    %v9381 = vsel %vm1080, %v9348, 0.0
    %9382 = vadd.xlane.f32.xlu0 %v9381
    %v9383 = vpop.xlane.xlu0 %9382
    %v9384 = vsel %vm1080, %v9350, 0.0
    %9385 = vadd.xlane.f32.xlu0 %v9384
    %v9386 = vpop.xlane.xlu0 %9385
    %v9387 = vsel %vm1080, %v9352, 0.0
    %9388 = vadd.xlane.f32.xlu0 %v9387
    %v9389 = vpop.xlane.xlu0 %9388
    %v9390 = vsel %vm1080, %v9354, 0.0
    %9391 = vadd.xlane.f32.xlu0 %v9390
    %v9392 = vpop.xlane.xlu0 %9391
    %v9393 = vsel %vm1080, %v9356, 0.0
    %9394 = vadd.xlane.f32.xlu0 %v9393
    %v9395 = vpop.xlane.xlu0 %9394
    %v9396 = vsel %vm1080, %v9358, 0.0
    %9397 = vadd.xlane.f32.xlu0 %v9396
    %v9398 = vpop.xlane.xlu0 %9397
    %v9399 = vsel %vm1080, %v9360, 0.0
    %9400 = vadd.xlane.f32.xlu0 %v9399
    %v9401 = vpop.xlane.xlu0 %9400
    %v9402 = vsel %vm1080, %v9362, 0.0
    %9403 = vadd.xlane.f32.xlu0 %v9402
    %v9404 = vpop.xlane.xlu0 %9403
    %v9405 = vsel %vm1080, %v9364, 0.0
    %9406 = vadd.xlane.f32.xlu0 %v9405
    %v9407 = vpop.xlane.xlu0 %9406
    %v9408 = vsel %vm1080, %v9366, 0.0
    %9409 = vadd.xlane.f32.xlu0 %v9408
    %v9410 = vpop.xlane.xlu0 %9409
    %v9411 = vsel %vm1080, %v9368, 0.0
    %9412 = vadd.xlane.f32.xlu0 %v9411
    %v9413 = vpop.xlane.xlu0 %9412
    %v9414 = vsel %vm1080, %v9370, 0.0
    %9415 = vadd.xlane.f32.xlu0 %v9414
    %v9416 = vpop.xlane.xlu0 %9415
    %v9417 = vsel %vm1080, %v9372, 0.0
    %9418 = vadd.xlane.f32.xlu0 %v9417
    %v9419 = vpop.xlane.xlu0 %9418
    %v9420 = vsel %vm1080, %v9374, 0.0
    %9421 = vadd.xlane.f32.xlu0 %v9420
    %v9422 = vpop.xlane.xlu0 %9421
    %v9423 = vrcp.pop %v9377
    %v9424 = vmul.f32 %v9344, %v9423
    %v9425 = vrcp.pop %v9380
    %v9426 = vmul.f32 %v9346, %v9425
    %v9427 = vrcp.pop %v9383
    %v9428 = vmul.f32 %v9348, %v9427
    %v9429 = vrcp.pop %v9386
    %v9430 = vmul.f32 %v9350, %v9429
    %v9431 = vrcp.pop %v9389
    %v9432 = vmul.f32 %v9352, %v9431
    %v9433 = vrcp.pop %v9392
    %v9434 = vmul.f32 %v9354, %v9433
    %v9435 = vrcp.pop %v9395
    %v9436 = vmul.f32 %v9356, %v9435
    %v9437 = vrcp.pop %v9398
    %v9438 = vmul.f32 %v9358, %v9437
    %v9439 = vrcp.pop %v9401
    %v9440 = vmul.f32 %v9360, %v9439
    %v9441 = vrcp.pop %v9404
    %v9442 = vmul.f32 %v9362, %v9441
    %v9443 = vrcp.pop %v9407
    %v9444 = vmul.f32 %v9364, %v9443
    %v9445 = vrcp.pop %v9410
    %v9446 = vmul.f32 %v9366, %v9445
    %v9447 = vrcp.pop %v9413
    %v9448 = vmul.f32 %v9368, %v9447
    %v9449 = vrcp.pop %v9416
    %v9450 = vmul.f32 %v9370, %v9449
    %v9451 = vrcp.pop %v9419
    %v9452 = vmul.f32 %v9372, %v9451
    %v9453 = vrcp.pop %v9422
    %v9454 = vmul.f32 %v9374, %v9453
    %v9455 = vpack.c.bf16 %v9426, %v9424
    %v9456 = vpack.c.bf16 %v9430, %v9428
    %v9457 = vpack.c.bf16 %v9434, %v9432
    %v9458 = vpack.c.bf16 %v9438, %v9436
    %v9459 = vpack.c.bf16 %v9442, %v9440
    %v9460 = vpack.c.bf16 %v9446, %v9444
    %v9461 = vpack.c.bf16 %v9450, %v9448
    %v9462 = vpack.c.bf16 %v9454, %v9452
    %9463 = vrot.lane.b32.xlu0 %v7247, 32
    %v9464 = vpop.permute.xlu0 %9463
    %9465 = vrot.lane.b32.xlu0 %v7248, 32
    %v9466 = vpop.permute.xlu0 %9465
    %v9470 = vsel %vm1080, %v9455, 0
    %v9473 = vsel %vm1080, %v9456, 0
    %9475 = vmatprep.subr.bf16.mxu0 0
    %9476 = vmatpush1.bf16.msra.mxu0 0
    %9477 = vmatprep.subr.bf16.mxu0 0
    %9478 = vmatpush1.bf16.msra.mxu0 0
    %9479 = vmatprep.subr.bf16.mxu0 0
    %9480 = vmatpush1.bf16.msra.mxu0 0
    %9481 = vmatprep.subr.bf16.mxu0 0
    %9482 = vmatpush1.bf16.msra.mxu0 0
    %9483 = vmatprep.subr.bf16.mxu0 0
    %9484 = vmatpush1.bf16.msra.mxu0 0
    %9485 = vmatprep.subr.bf16.mxu0 0
    %9486 = vmatpush1.bf16.msra.mxu0 0
    %9487 = vmatprep.subr.bf16.mxu0 0
    %9488 = vmatpush1.bf16.msra.mxu0 %v9466
    %9489 = vmatprep.subr.bf16.mxu0 0
    %9490 = vmatpush1.bf16.msra.mxu0 %v9464
    %9491 = vmatprep.subr.bf16.mxu0 0
    %9492 = vmatpush2.bf16.msra.mxu0 0
    %9493 = vmatprep.subr.bf16.mxu0 0
    %9494 = vmatpush2.bf16.msra.mxu0 0
    %9495 = vmatprep.subr.bf16.mxu0 0
    %9496 = vmatpush2.bf16.msra.mxu0 0
    %9497 = vmatprep.subr.bf16.mxu0 0
    %9498 = vmatpush2.bf16.msra.mxu0 0
    %9499 = vmatprep.subr.bf16.mxu0 0
    %9500 = vmatpush2.bf16.msra.mxu0 0
    %9501 = vmatprep.subr.bf16.mxu0 0
    %9502 = vmatpush2.bf16.msra.mxu0 0
    %9503 = vmatprep.subr.bf16.mxu0 0
    %9504 = vmatpush2.bf16.msra.mxu0 0
    %9505 = vmatprep.subr.bf16.mxu0 0
    %9506 = vmatpush2.bf16.msra.mxu0 0
    %9507 = vmatprep.mubr.bf16.mxu0 0
    %9508 = vmatmul.mubr.bf16.gmra.mxu0 %v9470
    %v9509 = vpop.f32.mrf.mxu0
    %v9510 = vadd.f32 0.0, %v9509
    %v9511 = vpop.f32.mrf.mxu0
    %v9512 = vpop.f32.mrf.mxu0
    %v9513 = vadd.f32 0.0, %v9512
    %v9514 = vpop.f32.mrf.mxu0
    %9515 = vmatprep.mubr.bf16.mxu0 0
    %9516 = vmatmul.mubr.bf16.gmra.mxu0 %v9473
    %v9517 = vpop.f32.mrf.mxu0
    %v9518 = vadd.f32 0.0, %v9517
    %v9519 = vpop.f32.mrf.mxu0
    %v9520 = vpop.f32.mrf.mxu0
    %v9521 = vadd.f32 0.0, %v9520
    %v9522 = vpop.f32.mrf.mxu0
    %9523 = vdwg.mxu0
    %9524 = vrot.lane.b32.xlu0 %v7249, 32
    %v9525 = vpop.permute.xlu0 %9524
    %9526 = vrot.lane.b32.xlu0 %v7250, 32
    %v9527 = vpop.permute.xlu0 %9526
    %v9531 = vsel %vm1080, %v9457, 0
    %v9534 = vsel %vm1080, %v9458, 0
    %9536 = vmatprep.subr.bf16.mxu0 0
    %9537 = vmatpush1.bf16.msra.mxu0 0
    %9538 = vmatprep.subr.bf16.mxu0 0
    %9539 = vmatpush1.bf16.msra.mxu0 0
    %9540 = vmatprep.subr.bf16.mxu0 0
    %9541 = vmatpush1.bf16.msra.mxu0 0
    %9542 = vmatprep.subr.bf16.mxu0 0
    %9543 = vmatpush1.bf16.msra.mxu0 0
    %9544 = vmatprep.subr.bf16.mxu0 0
    %9545 = vmatpush1.bf16.msra.mxu0 0
    %9546 = vmatprep.subr.bf16.mxu0 0
    %9547 = vmatpush1.bf16.msra.mxu0 0
    %9548 = vmatprep.subr.bf16.mxu0 0
    %9549 = vmatpush1.bf16.msra.mxu0 %v9527
    %9550 = vmatprep.subr.bf16.mxu0 0
    %9551 = vmatpush1.bf16.msra.mxu0 %v9525
    %9552 = vmatprep.subr.bf16.mxu0 0
    %9553 = vmatpush2.bf16.msra.mxu0 0
    %9554 = vmatprep.subr.bf16.mxu0 0
    %9555 = vmatpush2.bf16.msra.mxu0 0
    %9556 = vmatprep.subr.bf16.mxu0 0
    %9557 = vmatpush2.bf16.msra.mxu0 0
    %9558 = vmatprep.subr.bf16.mxu0 0
    %9559 = vmatpush2.bf16.msra.mxu0 0
    %9560 = vmatprep.subr.bf16.mxu0 0
    %9561 = vmatpush2.bf16.msra.mxu0 0
    %9562 = vmatprep.subr.bf16.mxu0 0
    %9563 = vmatpush2.bf16.msra.mxu0 0
    %9564 = vmatprep.subr.bf16.mxu0 0
    %9565 = vmatpush2.bf16.msra.mxu0 0
    %9566 = vmatprep.subr.bf16.mxu0 0
    %9567 = vmatpush2.bf16.msra.mxu0 0
    %9568 = vmatprep.mubr.bf16.mxu0 0
    %9569 = vmatmul.mubr.bf16.gmra.mxu0 %v9531
    %v9570 = vpop.f32.mrf.mxu0
    %v9571 = vadd.f32 0.0, %v9570
    %v9572 = vpop.f32.mrf.mxu0
    %v9573 = vpop.f32.mrf.mxu0
    %v9574 = vadd.f32 0.0, %v9573
    %v9575 = vpop.f32.mrf.mxu0
    %9576 = vmatprep.mubr.bf16.mxu0 0
    %9577 = vmatmul.mubr.bf16.gmra.mxu0 %v9534
    %v9578 = vpop.f32.mrf.mxu0
    %v9579 = vadd.f32 0.0, %v9578
    %v9580 = vpop.f32.mrf.mxu0
    %v9581 = vpop.f32.mrf.mxu0
    %v9582 = vadd.f32 0.0, %v9581
    %v9583 = vpop.f32.mrf.mxu0
    %9584 = vdwg.mxu0
    %9585 = vrot.lane.b32.xlu0 %v7251, 32
    %v9586 = vpop.permute.xlu0 %9585
    %9587 = vrot.lane.b32.xlu0 %v7252, 32
    %v9588 = vpop.permute.xlu0 %9587
    %v9592 = vsel %vm1080, %v9459, 0
    %v9595 = vsel %vm1080, %v9460, 0
    %9597 = vmatprep.subr.bf16.mxu0 0
    %9598 = vmatpush1.bf16.msra.mxu0 0
    %9599 = vmatprep.subr.bf16.mxu0 0
    %9600 = vmatpush1.bf16.msra.mxu0 0
    %9601 = vmatprep.subr.bf16.mxu0 0
    %9602 = vmatpush1.bf16.msra.mxu0 0
    %9603 = vmatprep.subr.bf16.mxu0 0
    %9604 = vmatpush1.bf16.msra.mxu0 0
    %9605 = vmatprep.subr.bf16.mxu0 0
    %9606 = vmatpush1.bf16.msra.mxu0 0
    %9607 = vmatprep.subr.bf16.mxu0 0
    %9608 = vmatpush1.bf16.msra.mxu0 0
    %9609 = vmatprep.subr.bf16.mxu0 0
    %9610 = vmatpush1.bf16.msra.mxu0 %v9588
    %9611 = vmatprep.subr.bf16.mxu0 0
    %9612 = vmatpush1.bf16.msra.mxu0 %v9586
    %9613 = vmatprep.subr.bf16.mxu0 0
    %9614 = vmatpush2.bf16.msra.mxu0 0
    %9615 = vmatprep.subr.bf16.mxu0 0
    %9616 = vmatpush2.bf16.msra.mxu0 0
    %9617 = vmatprep.subr.bf16.mxu0 0
    %9618 = vmatpush2.bf16.msra.mxu0 0
    %9619 = vmatprep.subr.bf16.mxu0 0
    %9620 = vmatpush2.bf16.msra.mxu0 0
    %9621 = vmatprep.subr.bf16.mxu0 0
    %9622 = vmatpush2.bf16.msra.mxu0 0
    %9623 = vmatprep.subr.bf16.mxu0 0
    %9624 = vmatpush2.bf16.msra.mxu0 0
    %9625 = vmatprep.subr.bf16.mxu0 0
    %9626 = vmatpush2.bf16.msra.mxu0 0
    %9627 = vmatprep.subr.bf16.mxu0 0
    %9628 = vmatpush2.bf16.msra.mxu0 0
    %9629 = vmatprep.mubr.bf16.mxu0 0
    %9630 = vmatmul.mubr.bf16.gmra.mxu0 %v9592
    %v9631 = vpop.f32.mrf.mxu0
    %v9632 = vadd.f32 0.0, %v9631
    %v9633 = vpop.f32.mrf.mxu0
    %v9634 = vpop.f32.mrf.mxu0
    %v9635 = vadd.f32 0.0, %v9634
    %v9636 = vpop.f32.mrf.mxu0
    %9637 = vmatprep.mubr.bf16.mxu0 0
    %9638 = vmatmul.mubr.bf16.gmra.mxu0 %v9595
    %v9639 = vpop.f32.mrf.mxu0
    %v9640 = vadd.f32 0.0, %v9639
    %v9641 = vpop.f32.mrf.mxu0
    %v9642 = vpop.f32.mrf.mxu0
    %v9643 = vadd.f32 0.0, %v9642
    %v9644 = vpop.f32.mrf.mxu0
    %9645 = vdwg.mxu0
    %9646 = vrot.lane.b32.xlu0 %v7253, 32
    %v9647 = vpop.permute.xlu0 %9646
    %9648 = vrot.lane.b32.xlu0 %v7254, 32
    %v9649 = vpop.permute.xlu0 %9648
    %v9653 = vsel %vm1080, %v9461, 0
    %v9656 = vsel %vm1080, %v9462, 0
    %9658 = vmatprep.subr.bf16.mxu0 0
    %9659 = vmatpush1.bf16.msra.mxu0 0
    %9660 = vmatprep.subr.bf16.mxu0 0
    %9661 = vmatpush1.bf16.msra.mxu0 0
    %9662 = vmatprep.subr.bf16.mxu0 0
    %9663 = vmatpush1.bf16.msra.mxu0 0
    %9664 = vmatprep.subr.bf16.mxu0 0
    %9665 = vmatpush1.bf16.msra.mxu0 0
    %9666 = vmatprep.subr.bf16.mxu0 0
    %9667 = vmatpush1.bf16.msra.mxu0 0
    %9668 = vmatprep.subr.bf16.mxu0 0
    %9669 = vmatpush1.bf16.msra.mxu0 0
    %9670 = vmatprep.subr.bf16.mxu0 0
    %9671 = vmatpush1.bf16.msra.mxu0 %v9649
    %9672 = vmatprep.subr.bf16.mxu0 0
    %9673 = vmatpush1.bf16.msra.mxu0 %v9647
    %9674 = vmatprep.subr.bf16.mxu0 0
    %9675 = vmatpush2.bf16.msra.mxu0 0
    %9676 = vmatprep.subr.bf16.mxu0 0
    %9677 = vmatpush2.bf16.msra.mxu0 0
    %9678 = vmatprep.subr.bf16.mxu0 0
    %9679 = vmatpush2.bf16.msra.mxu0 0
    %9680 = vmatprep.subr.bf16.mxu0 0
    %9681 = vmatpush2.bf16.msra.mxu0 0
    %9682 = vmatprep.subr.bf16.mxu0 0
    %9683 = vmatpush2.bf16.msra.mxu0 0
    %9684 = vmatprep.subr.bf16.mxu0 0
    %9685 = vmatpush2.bf16.msra.mxu0 0
    %9686 = vmatprep.subr.bf16.mxu0 0
    %9687 = vmatpush2.bf16.msra.mxu0 0
    %9688 = vmatprep.subr.bf16.mxu0 0
    %9689 = vmatpush2.bf16.msra.mxu0 0
    %9690 = vmatprep.mubr.bf16.mxu0 0
    %9691 = vmatmul.mubr.bf16.gmra.mxu0 %v9653
    %v9692 = vpop.f32.mrf.mxu0
    %v9693 = vadd.f32 0.0, %v9692
    %v9694 = vpop.f32.mrf.mxu0
    %v9695 = vpop.f32.mrf.mxu0
    %v9696 = vadd.f32 0.0, %v9695
    %v9697 = vpop.f32.mrf.mxu0
    %9698 = vmatprep.mubr.bf16.mxu0 0
    %9699 = vmatmul.mubr.bf16.gmra.mxu0 %v9656
    %v9700 = vpop.f32.mrf.mxu0
    %v9701 = vadd.f32 0.0, %v9700
    %v9702 = vpop.f32.mrf.mxu0
    %v9703 = vpop.f32.mrf.mxu0
    %v9704 = vadd.f32 0.0, %v9703
    %v9705 = vpop.f32.mrf.mxu0
    %9706 = vdwg.mxu0
    %9723 = vrot.lane.b32.xlu0 %v8032, 32
    %v9724 = vpop.permute.xlu0 %9723
    %9725 = vrot.lane.b32.xlu0 %v8035, 32
    %v9726 = vpop.permute.xlu0 %9725
    %9727 = vrot.lane.b32.xlu0 %v8040, 32
    %v9728 = vpop.permute.xlu0 %9727
    %9729 = vrot.lane.b32.xlu0 %v8043, 32
    %v9730 = vpop.permute.xlu0 %9729
    %9731 = vrot.lane.b32.xlu0 %v8095, 32
    %v9732 = vpop.permute.xlu0 %9731
    %9733 = vrot.lane.b32.xlu0 %v8098, 32
    %v9734 = vpop.permute.xlu0 %9733
    %9735 = vrot.lane.b32.xlu0 %v8103, 32
    %v9736 = vpop.permute.xlu0 %9735
    %9737 = vrot.lane.b32.xlu0 %v8106, 32
    %v9738 = vpop.permute.xlu0 %9737
    %9739 = vrot.lane.b32.xlu0 %v8158, 32
    %v9740 = vpop.permute.xlu0 %9739
    %9741 = vrot.lane.b32.xlu0 %v8161, 32
    %v9742 = vpop.permute.xlu0 %9741
    %9743 = vrot.lane.b32.xlu0 %v8166, 32
    %v9744 = vpop.permute.xlu0 %9743
    %9745 = vrot.lane.b32.xlu0 %v8169, 32
    %v9746 = vpop.permute.xlu0 %9745
    %9747 = vrot.lane.b32.xlu0 %v8221, 32
    %v9748 = vpop.permute.xlu0 %9747
    %9749 = vrot.lane.b32.xlu0 %v8224, 32
    %v9750 = vpop.permute.xlu0 %9749
    %9751 = vrot.lane.b32.xlu0 %v8229, 32
    %v9752 = vpop.permute.xlu0 %9751
    %9753 = vrot.lane.b32.xlu0 %v8232, 32
    %v9754 = vpop.permute.xlu0 %9753
    %9787 = vrot.lane.b32.xlu0 %v8774, 64
    %v9788 = vpop.permute.xlu0 %9787
    %9789 = vrot.lane.b32.xlu0 %v8777, 64
    %v9790 = vpop.permute.xlu0 %9789
    %9791 = vrot.lane.b32.xlu0 %v8782, 64
    %v9792 = vpop.permute.xlu0 %9791
    %9793 = vrot.lane.b32.xlu0 %v8785, 64
    %v9794 = vpop.permute.xlu0 %9793
    %9795 = vrot.lane.b32.xlu0 %v8835, 64
    %v9796 = vpop.permute.xlu0 %9795
    %9797 = vrot.lane.b32.xlu0 %v8838, 64
    %v9798 = vpop.permute.xlu0 %9797
    %9799 = vrot.lane.b32.xlu0 %v8843, 64
    %v9800 = vpop.permute.xlu0 %9799
    %9801 = vrot.lane.b32.xlu0 %v8846, 64
    %v9802 = vpop.permute.xlu0 %9801
    %9803 = vrot.lane.b32.xlu0 %v8896, 64
    %v9804 = vpop.permute.xlu0 %9803
    %9805 = vrot.lane.b32.xlu0 %v8899, 64
    %v9806 = vpop.permute.xlu0 %9805
    %9807 = vrot.lane.b32.xlu0 %v8904, 64
    %v9808 = vpop.permute.xlu0 %9807
    %9809 = vrot.lane.b32.xlu0 %v8907, 64
    %v9810 = vpop.permute.xlu0 %9809
    %9811 = vrot.lane.b32.xlu0 %v8957, 64
    %v9812 = vpop.permute.xlu0 %9811
    %9813 = vrot.lane.b32.xlu0 %v8960, 64
    %v9814 = vpop.permute.xlu0 %9813
    %9815 = vrot.lane.b32.xlu0 %v8965, 64
    %v9816 = vpop.permute.xlu0 %9815
    %9817 = vrot.lane.b32.xlu0 %v8968, 64
    %v9818 = vpop.permute.xlu0 %9817
    %9851 = vrot.lane.b32.xlu0 %v9510, 96
    %v9852 = vpop.permute.xlu0 %9851
    %9853 = vrot.lane.b32.xlu0 %v9513, 96
    %v9854 = vpop.permute.xlu0 %9853
    %9855 = vrot.lane.b32.xlu0 %v9518, 96
    %v9856 = vpop.permute.xlu0 %9855
    %9857 = vrot.lane.b32.xlu0 %v9521, 96
    %v9858 = vpop.permute.xlu0 %9857
    %9859 = vrot.lane.b32.xlu0 %v9571, 96
    %v9860 = vpop.permute.xlu0 %9859
    %9861 = vrot.lane.b32.xlu0 %v9574, 96
    %v9862 = vpop.permute.xlu0 %9861
    %9863 = vrot.lane.b32.xlu0 %v9579, 96
    %v9864 = vpop.permute.xlu0 %9863
    %9865 = vrot.lane.b32.xlu0 %v9582, 96
    %v9866 = vpop.permute.xlu0 %9865
    %9867 = vrot.lane.b32.xlu0 %v9632, 96
    %v9868 = vpop.permute.xlu0 %9867
    %9869 = vrot.lane.b32.xlu0 %v9635, 96
    %v9870 = vpop.permute.xlu0 %9869
    %9871 = vrot.lane.b32.xlu0 %v9640, 96
    %v9872 = vpop.permute.xlu0 %9871
    %9873 = vrot.lane.b32.xlu0 %v9643, 96
    %v9874 = vpop.permute.xlu0 %9873
    %9875 = vrot.lane.b32.xlu0 %v9693, 96
    %v9876 = vpop.permute.xlu0 %9875
    %9877 = vrot.lane.b32.xlu0 %v9696, 96
    %v9878 = vpop.permute.xlu0 %9877
    %9879 = vrot.lane.b32.xlu0 %v9701, 96
    %v9880 = vpop.permute.xlu0 %9879
    %9881 = vrot.lane.b32.xlu0 %v9704, 96
    %v9882 = vpop.permute.xlu0 %9881
    %v9899 = vsel %vm1080, %v7296, %v9724
    %v9900 = vsel %vm1080, %v7299, %v9726
    %v9901 = vsel %vm1080, %v7304, %v9728
    %v9902 = vsel %vm1080, %v7307, %v9730
    %v9903 = vsel %vm1080, %v7351, %v9732
    %v9904 = vsel %vm1080, %v7354, %v9734
    %v9905 = vsel %vm1080, %v7359, %v9736
    %v9906 = vsel %vm1080, %v7362, %v9738
    %v9907 = vsel %vm1080, %v7406, %v9740
    %v9908 = vsel %vm1080, %v7409, %v9742
    %v9909 = vsel %vm1080, %v7414, %v9744
    %v9910 = vsel %vm1080, %v7417, %v9746
    %v9911 = vsel %vm1080, %v7461, %v9748
    %v9912 = vsel %vm1080, %v7464, %v9750
    %v9913 = vsel %vm1080, %v7469, %v9752
    %v9914 = vsel %vm1080, %v7472, %v9754
    %v9915 = vsel %vm4211, %v9899, %v9788
    %v9916 = vsel %vm4211, %v9900, %v9790
    %v9917 = vsel %vm4211, %v9901, %v9792
    %v9918 = vsel %vm4211, %v9902, %v9794
    %v9919 = vsel %vm4211, %v9903, %v9796
    %v9920 = vsel %vm4211, %v9904, %v9798
    %v9921 = vsel %vm4211, %v9905, %v9800
    %v9922 = vsel %vm4211, %v9906, %v9802
    %v9923 = vsel %vm4211, %v9907, %v9804
    %v9924 = vsel %vm4211, %v9908, %v9806
    %v9925 = vsel %vm4211, %v9909, %v9808
    %v9926 = vsel %vm4211, %v9910, %v9810
    %v9927 = vsel %vm4211, %v9911, %v9812
    %v9928 = vsel %vm4211, %v9912, %v9814
    %v9929 = vsel %vm4211, %v9913, %v9816
    %v9930 = vsel %vm4211, %v9914, %v9818
    %v9931 = vsel %vm4228, %v9915, %v9852
    %v9932 = vsel %vm4228, %v9916, %v9854
    %v9933 = vsel %vm4228, %v9917, %v9856
    %v9934 = vsel %vm4228, %v9918, %v9858
    %v9935 = vsel %vm4228, %v9919, %v9860
    %v9936 = vsel %vm4228, %v9920, %v9862
    %v9937 = vsel %vm4228, %v9921, %v9864
    %v9938 = vsel %vm4228, %v9922, %v9866
    %v9939 = vsel %vm4228, %v9923, %v9868
    %v9940 = vsel %vm4228, %v9924, %v9870
    %v9941 = vsel %vm4228, %v9925, %v9872
    %v9942 = vsel %vm4228, %v9926, %v9874
    %v9943 = vsel %vm4228, %v9927, %v9876
    %v9944 = vsel %vm4228, %v9928, %v9878
    %v9945 = vsel %vm4228, %v9929, %v9880
    %v9946 = vsel %vm4228, %v9930, %v9882
    %v9947 = vpack.c.bf16 %v9932, %v9931
    %v9948 = vpack.c.bf16 %v9934, %v9933
    %v9949 = vpack.c.bf16 %v9936, %v9935
    %v9950 = vpack.c.bf16 %v9938, %v9937
    %v9951 = vpack.c.bf16 %v9940, %v9939
    %v9952 = vpack.c.bf16 %v9942, %v9941
    %v9953 = vpack.c.bf16 %v9944, %v9943
    %v9954 = vpack.c.bf16 %v9946, %v9945
    %v9971 = vunpack.c.l.b16 %v6079
    %v9972 = vunpack.c.l.b16 %v6080
    %v9973 = vunpack.c.l.b16 %v6081
    %v9974 = vunpack.c.l.b16 %v6082
    %v9975 = vunpack.c.l.b16 %v6083
    %v9976 = vunpack.c.l.b16 %v6084
    %v9977 = vunpack.c.l.b16 %v6085
    %v9978 = vunpack.c.l.b16 %v6086
    %v9979 = vunpack.c.l.b16 %v6087
    %v9980 = vunpack.c.l.b16 %v6088
    %v9981 = vunpack.c.l.b16 %v6089
    %v9982 = vunpack.c.l.b16 %v6090
    %v9983 = vunpack.c.l.b16 %v6091
    %v9984 = vunpack.c.l.b16 %v6092
    %v9985 = vunpack.c.l.b16 %v6093
    %v9986 = vunpack.c.l.b16 %v6094
    %v9987 = vpack.c.b16 %v9972, %v9971
    %v9988 = vpack.c.b16 %v9974, %v9973
    %v9989 = vpack.c.b16 %v9976, %v9975
    %v9990 = vpack.c.b16 %v9978, %v9977
    %v9991 = vpack.c.b16 %v9980, %v9979
    %v9992 = vpack.c.b16 %v9982, %v9981
    %v9993 = vpack.c.b16 %v9984, %v9983
    %v9994 = vpack.c.b16 %v9986, %v9985
    %10003 = vmatprep.subr.bf16.mxu0 0
    %10004 = vmatpush1.bf16.msra.mxu0 %v9994
    %10005 = vmatprep.subr.bf16.mxu0 0
    %10006 = vmatpush1.bf16.msra.mxu0 %v9993
    %10007 = vmatprep.subr.bf16.mxu0 0
    %10008 = vmatpush1.bf16.msra.mxu0 %v9992
    %10009 = vmatprep.subr.bf16.mxu0 0
    %10010 = vmatpush1.bf16.msra.mxu0 %v9991
    %10011 = vmatprep.subr.bf16.mxu0 0
    %10012 = vmatpush1.bf16.msra.mxu0 %v9990
    %10013 = vmatprep.subr.bf16.mxu0 0
    %10014 = vmatpush1.bf16.msra.mxu0 %v9989
    %10015 = vmatprep.subr.bf16.mxu0 0
    %10016 = vmatpush1.bf16.msra.mxu0 %v9988
    %10017 = vmatprep.subr.bf16.mxu0 0
    %10018 = vmatpush1.bf16.msra.mxu0 %v9987
    %10019 = vmatprep.subr.bf16.mxu0 0
    %10020 = vmatpush2.bf16.msra.mxu0 0
    %10021 = vmatprep.subr.bf16.mxu0 0
    %10022 = vmatpush2.bf16.msra.mxu0 0
    %10023 = vmatprep.subr.bf16.mxu0 0
    %10024 = vmatpush2.bf16.msra.mxu0 0
    %10025 = vmatprep.subr.bf16.mxu0 0
    %10026 = vmatpush2.bf16.msra.mxu0 0
    %10027 = vmatprep.subr.bf16.mxu0 0
    %10028 = vmatpush2.bf16.msra.mxu0 0
    %10029 = vmatprep.subr.bf16.mxu0 0
    %10030 = vmatpush2.bf16.msra.mxu0 0
    %10031 = vmatprep.subr.bf16.mxu0 0
    %10032 = vmatpush2.bf16.msra.mxu0 0
    %10033 = vmatprep.subr.bf16.mxu0 0
    %10034 = vmatpush2.bf16.msra.mxu0 0
    %10035 = vmatprep.mubr.bf16.mxu0 0
    %10036 = vmatmul.mubr.bf16.gmra.mxu0 %v9947
    %v10037 = vpop.f32.mrf.mxu0
    %v10038 = vadd.f32 %v6195, %v10037
    %v10039 = vpop.f32.mrf.mxu0
    %v10040 = vpop.f32.mrf.mxu0
    %v10041 = vadd.f32 %v6195, %v10040
    %v10042 = vpop.f32.mrf.mxu0
    %10043 = vmatprep.mubr.bf16.mxu0 0
    %10044 = vmatmul.mubr.bf16.gmra.mxu0 %v9948
    %v10045 = vpop.f32.mrf.mxu0
    %v10046 = vadd.f32 %v6195, %v10045
    %v10047 = vpop.f32.mrf.mxu0
    %v10048 = vpop.f32.mrf.mxu0
    %v10049 = vadd.f32 %v6195, %v10048
    %v10050 = vpop.f32.mrf.mxu0
    %10051 = vmatprep.mubr.bf16.mxu0 0
    %10052 = vmatmul.mubr.bf16.gmra.mxu0 %v9949
    %v10053 = vpop.f32.mrf.mxu0
    %v10054 = vadd.f32 %v6195, %v10053
    %v10055 = vpop.f32.mrf.mxu0
    %v10056 = vpop.f32.mrf.mxu0
    %v10057 = vadd.f32 %v6195, %v10056
    %v10058 = vpop.f32.mrf.mxu0
    %10059 = vmatprep.mubr.bf16.mxu0 0
    %10060 = vmatmul.mubr.bf16.gmra.mxu0 %v9950
    %v10061 = vpop.f32.mrf.mxu0
    %v10062 = vadd.f32 %v6195, %v10061
    %v10063 = vpop.f32.mrf.mxu0
    %v10064 = vpop.f32.mrf.mxu0
    %v10065 = vadd.f32 %v6195, %v10064
    %v10066 = vpop.f32.mrf.mxu0
    %10067 = vmatprep.mubr.bf16.mxu0 0
    %10068 = vmatmul.mubr.bf16.gmra.mxu0 %v9951
    %v10069 = vpop.f32.mrf.mxu0
    %v10070 = vadd.f32 %v6195, %v10069
    %v10071 = vpop.f32.mrf.mxu0
    %v10072 = vpop.f32.mrf.mxu0
    %v10073 = vadd.f32 %v6195, %v10072
    %v10074 = vpop.f32.mrf.mxu0
    %10075 = vmatprep.mubr.bf16.mxu0 0
    %10076 = vmatmul.mubr.bf16.gmra.mxu0 %v9952
    %v10077 = vpop.f32.mrf.mxu0
    %v10078 = vadd.f32 %v6195, %v10077
    %v10079 = vpop.f32.mrf.mxu0
    %v10080 = vpop.f32.mrf.mxu0
    %v10081 = vadd.f32 %v6195, %v10080
    %v10082 = vpop.f32.mrf.mxu0
    %10083 = vmatprep.mubr.bf16.mxu0 0
    %10084 = vmatmul.mubr.bf16.gmra.mxu0 %v9953
    %v10085 = vpop.f32.mrf.mxu0
    %v10086 = vadd.f32 %v6195, %v10085
    %v10087 = vpop.f32.mrf.mxu0
    %v10088 = vpop.f32.mrf.mxu0
    %v10089 = vadd.f32 %v6195, %v10088
    %v10090 = vpop.f32.mrf.mxu0
    %10091 = vmatprep.mubr.bf16.mxu0 0
    %10092 = vmatmul.mubr.bf16.gmra.mxu0 %v9954
    %v10093 = vpop.f32.mrf.mxu0
    %v10094 = vadd.f32 %v6195, %v10093
    %v10095 = vpop.f32.mrf.mxu0
    %v10096 = vpop.f32.mrf.mxu0
    %v10097 = vadd.f32 %v6195, %v10096
    %v10098 = vpop.f32.mrf.mxu0
    %10099 = vdwg.mxu0
    %v10100 = vadd.f32 %v6031, %v10038
    %v10101 = vadd.f32 %v6032, %v10041
    %v10102 = vadd.f32 %v6033, %v10046
    %v10103 = vadd.f32 %v6034, %v10049
    %v10104 = vadd.f32 %v6035, %v10054
    %v10105 = vadd.f32 %v6036, %v10057
    %v10106 = vadd.f32 %v6037, %v10062
    %v10107 = vadd.f32 %v6038, %v10065
    %v10108 = vadd.f32 %v6039, %v10070
    %v10109 = vadd.f32 %v6040, %v10073
    %v10110 = vadd.f32 %v6041, %v10078
    %v10111 = vadd.f32 %v6042, %v10081
    %v10112 = vadd.f32 %v6043, %v10086
    %v10113 = vadd.f32 %v6044, %v10089
    %v10114 = vadd.f32 %v6045, %v10094
    %v10115 = vadd.f32 %v6046, %v10097
    %10116 = vadd.xlane.f32.xlu0 %v10100
    %v10117 = vpop.xlane.xlu0 %10116
    %10118 = vadd.xlane.f32.xlu0 %v10101
    %v10119 = vpop.xlane.xlu0 %10118
    %10120 = vadd.xlane.f32.xlu0 %v10102
    %v10121 = vpop.xlane.xlu0 %10120
    %10122 = vadd.xlane.f32.xlu0 %v10103
    %v10123 = vpop.xlane.xlu0 %10122
    %10124 = vadd.xlane.f32.xlu0 %v10104
    %v10125 = vpop.xlane.xlu0 %10124
    %10126 = vadd.xlane.f32.xlu0 %v10105
    %v10127 = vpop.xlane.xlu0 %10126
    %10128 = vadd.xlane.f32.xlu0 %v10106
    %v10129 = vpop.xlane.xlu0 %10128
    %10130 = vadd.xlane.f32.xlu0 %v10107
    %v10131 = vpop.xlane.xlu0 %10130
    %10132 = vadd.xlane.f32.xlu0 %v10108
    %v10133 = vpop.xlane.xlu0 %10132
    %10134 = vadd.xlane.f32.xlu0 %v10109
    %v10135 = vpop.xlane.xlu0 %10134
    %10136 = vadd.xlane.f32.xlu0 %v10110
    %v10137 = vpop.xlane.xlu0 %10136
    %10138 = vadd.xlane.f32.xlu0 %v10111
    %v10139 = vpop.xlane.xlu0 %10138
    %10140 = vadd.xlane.f32.xlu0 %v10112
    %v10141 = vpop.xlane.xlu0 %10140
    %10142 = vadd.xlane.f32.xlu0 %v10113
    %v10143 = vpop.xlane.xlu0 %10142
    %10144 = vadd.xlane.f32.xlu0 %v10114
    %v10145 = vpop.xlane.xlu0 %10144
    %10146 = vadd.xlane.f32.xlu0 %v10115
    %v10147 = vpop.xlane.xlu0 %10146
    %v10148 = vmul.f32 %v10117, %v525
    %v10149 = vmul.f32 %v10119, %v525
    %v10150 = vmul.f32 %v10121, %v525
    %v10151 = vmul.f32 %v10123, %v525
    %v10152 = vmul.f32 %v10125, %v525
    %v10153 = vmul.f32 %v10127, %v525
    %v10154 = vmul.f32 %v10129, %v525
    %v10155 = vmul.f32 %v10131, %v525
    %v10156 = vmul.f32 %v10133, %v525
    %v10157 = vmul.f32 %v10135, %v525
    %v10158 = vmul.f32 %v10137, %v525
    %v10159 = vmul.f32 %v10139, %v525
    %v10160 = vmul.f32 %v10141, %v525
    %v10161 = vmul.f32 %v10143, %v525
    %v10162 = vmul.f32 %v10145, %v525
    %v10163 = vmul.f32 %v10147, %v525
    %v10164 = vsub.f32 %v10100, %v10148
    %v10165 = vsub.f32 %v10101, %v10149
    %v10166 = vsub.f32 %v10102, %v10150
    %v10167 = vsub.f32 %v10103, %v10151
    %v10168 = vsub.f32 %v10104, %v10152
    %v10169 = vsub.f32 %v10105, %v10153
    %v10170 = vsub.f32 %v10106, %v10154
    %v10171 = vsub.f32 %v10107, %v10155
    %v10172 = vsub.f32 %v10108, %v10156
    %v10173 = vsub.f32 %v10109, %v10157
    %v10174 = vsub.f32 %v10110, %v10158
    %v10175 = vsub.f32 %v10111, %v10159
    %v10176 = vsub.f32 %v10112, %v10160
    %v10177 = vsub.f32 %v10113, %v10161
    %v10178 = vsub.f32 %v10114, %v10162
    %v10179 = vsub.f32 %v10115, %v10163
    %v10180 = vmul.f32 %v10164, %v10164
    %v10181 = vmul.f32 %v10165, %v10165
    %v10182 = vmul.f32 %v10166, %v10166
    %v10183 = vmul.f32 %v10167, %v10167
    %v10184 = vmul.f32 %v10168, %v10168
    %v10185 = vmul.f32 %v10169, %v10169
    %v10186 = vmul.f32 %v10170, %v10170
    %v10187 = vmul.f32 %v10171, %v10171
    %v10188 = vmul.f32 %v10172, %v10172
    %v10189 = vmul.f32 %v10173, %v10173
    %v10190 = vmul.f32 %v10174, %v10174
    %v10191 = vmul.f32 %v10175, %v10175
    %v10192 = vmul.f32 %v10176, %v10176
    %v10193 = vmul.f32 %v10177, %v10177
    %v10194 = vmul.f32 %v10178, %v10178
    %v10195 = vmul.f32 %v10179, %v10179
    %10196 = vadd.xlane.f32.xlu0 %v10180
    %v10197 = vpop.xlane.xlu0 %10196
    %10198 = vadd.xlane.f32.xlu0 %v10181
    %v10199 = vpop.xlane.xlu0 %10198
    %10200 = vadd.xlane.f32.xlu0 %v10182
    %v10201 = vpop.xlane.xlu0 %10200
    %10202 = vadd.xlane.f32.xlu0 %v10183
    %v10203 = vpop.xlane.xlu0 %10202
    %10204 = vadd.xlane.f32.xlu0 %v10184
    %v10205 = vpop.xlane.xlu0 %10204
    %10206 = vadd.xlane.f32.xlu0 %v10185
    %v10207 = vpop.xlane.xlu0 %10206
    %10208 = vadd.xlane.f32.xlu0 %v10186
    %v10209 = vpop.xlane.xlu0 %10208
    %10210 = vadd.xlane.f32.xlu0 %v10187
    %v10211 = vpop.xlane.xlu0 %10210
    %10212 = vadd.xlane.f32.xlu0 %v10188
    %v10213 = vpop.xlane.xlu0 %10212
    %10214 = vadd.xlane.f32.xlu0 %v10189
    %v10215 = vpop.xlane.xlu0 %10214
    %10216 = vadd.xlane.f32.xlu0 %v10190
    %v10217 = vpop.xlane.xlu0 %10216
    %10218 = vadd.xlane.f32.xlu0 %v10191
    %v10219 = vpop.xlane.xlu0 %10218
    %10220 = vadd.xlane.f32.xlu0 %v10192
    %v10221 = vpop.xlane.xlu0 %10220
    %10222 = vadd.xlane.f32.xlu0 %v10193
    %v10223 = vpop.xlane.xlu0 %10222
    %10224 = vadd.xlane.f32.xlu0 %v10194
    %v10225 = vpop.xlane.xlu0 %10224
    %10226 = vadd.xlane.f32.xlu0 %v10195
    %v10227 = vpop.xlane.xlu0 %10226
    %v10228 = vmul.f32 %v10197, %v525
    %v10229 = vmul.f32 %v10199, %v525
    %v10230 = vmul.f32 %v10201, %v525
    %v10231 = vmul.f32 %v10203, %v525
    %v10232 = vmul.f32 %v10205, %v525
    %v10233 = vmul.f32 %v10207, %v525
    %v10234 = vmul.f32 %v10209, %v525
    %v10235 = vmul.f32 %v10211, %v525
    %v10236 = vmul.f32 %v10213, %v525
    %v10237 = vmul.f32 %v10215, %v525
    %v10238 = vmul.f32 %v10217, %v525
    %v10239 = vmul.f32 %v10219, %v525
    %v10240 = vmul.f32 %v10221, %v525
    %v10241 = vmul.f32 %v10223, %v525
    %v10242 = vmul.f32 %v10225, %v525
    %v10243 = vmul.f32 %v10227, %v525
    %v10244 = vadd.f32 %v10228, 1e-06
    %v10245 = vadd.f32 %v10229, 1e-06
    %v10246 = vadd.f32 %v10230, 1e-06
    %v10247 = vadd.f32 %v10231, 1e-06
    %v10248 = vadd.f32 %v10232, 1e-06
    %v10249 = vadd.f32 %v10233, 1e-06
    %v10250 = vadd.f32 %v10234, 1e-06
    %v10251 = vadd.f32 %v10235, 1e-06
    %v10252 = vadd.f32 %v10236, 1e-06
    %v10253 = vadd.f32 %v10237, 1e-06
    %v10254 = vadd.f32 %v10238, 1e-06
    %v10255 = vadd.f32 %v10239, 1e-06
    %v10256 = vadd.f32 %v10240, 1e-06
    %v10257 = vadd.f32 %v10241, 1e-06
    %v10258 = vadd.f32 %v10242, 1e-06
    %v10259 = vadd.f32 %v10243, 1e-06
    %v10260 = vrsqrt.pop %v10244
    %v10261 = vrsqrt.pop %v10245
    %v10262 = vrsqrt.pop %v10246
    %v10263 = vrsqrt.pop %v10247
    %v10264 = vrsqrt.pop %v10248
    %v10265 = vrsqrt.pop %v10249
    %v10266 = vrsqrt.pop %v10250
    %v10267 = vrsqrt.pop %v10251
    %v10268 = vrsqrt.pop %v10252
    %v10269 = vrsqrt.pop %v10253
    %v10270 = vrsqrt.pop %v10254
    %v10271 = vrsqrt.pop %v10255
    %v10272 = vrsqrt.pop %v10256
    %v10273 = vrsqrt.pop %v10257
    %v10274 = vrsqrt.pop %v10258
    %v10275 = vrsqrt.pop %v10259
    %v10276 = vmul.f32 %v10164, %v10260
    %v10277 = vmul.f32 %v10165, %v10261
    %v10278 = vmul.f32 %v10166, %v10262
    %v10279 = vmul.f32 %v10167, %v10263
    %v10280 = vmul.f32 %v10168, %v10264
    %v10281 = vmul.f32 %v10169, %v10265
    %v10282 = vmul.f32 %v10170, %v10266
    %v10283 = vmul.f32 %v10171, %v10267
    %v10284 = vmul.f32 %v10172, %v10268
    %v10285 = vmul.f32 %v10173, %v10269
    %v10286 = vmul.f32 %v10174, %v10270
    %v10287 = vmul.f32 %v10175, %v10271
    %v10288 = vmul.f32 %v10176, %v10272
    %v10289 = vmul.f32 %v10177, %v10273
    %v10290 = vmul.f32 %v10178, %v10274
    %v10291 = vmul.f32 %v10179, %v10275
    %v10292 = vmul.f32 %v10276, %v6196
    %v10293 = vmul.f32 %v10277, %v6196
    %v10294 = vmul.f32 %v10278, %v6196
    %v10295 = vmul.f32 %v10279, %v6196
    %v10296 = vmul.f32 %v10280, %v6196
    %v10297 = vmul.f32 %v10281, %v6196
    %v10298 = vmul.f32 %v10282, %v6196
    %v10299 = vmul.f32 %v10283, %v6196
    %v10300 = vmul.f32 %v10284, %v6196
    %v10301 = vmul.f32 %v10285, %v6196
    %v10302 = vmul.f32 %v10286, %v6196
    %v10303 = vmul.f32 %v10287, %v6196
    %v10304 = vmul.f32 %v10288, %v6196
    %v10305 = vmul.f32 %v10289, %v6196
    %v10306 = vmul.f32 %v10290, %v6196
    %v10307 = vmul.f32 %v10291, %v6196
    %v10308 = vadd.f32 %v10292, %v6197
    %v10309 = vadd.f32 %v10293, %v6197
    %v10310 = vadd.f32 %v10294, %v6197
    %v10311 = vadd.f32 %v10295, %v6197
    %v10312 = vadd.f32 %v10296, %v6197
    %v10313 = vadd.f32 %v10297, %v6197
    %v10314 = vadd.f32 %v10298, %v6197
    %v10315 = vadd.f32 %v10299, %v6197
    %v10316 = vadd.f32 %v10300, %v6197
    %v10317 = vadd.f32 %v10301, %v6197
    %v10318 = vadd.f32 %v10302, %v6197
    %v10319 = vadd.f32 %v10303, %v6197
    %v10320 = vadd.f32 %v10304, %v6197
    %v10321 = vadd.f32 %v10305, %v6197
    %v10322 = vadd.f32 %v10306, %v6197
    %v10323 = vadd.f32 %v10307, %v6197
    %v10324 = vpack.c.bf16 %v10309, %v10308
    %v10325 = vpack.c.bf16 %v10311, %v10310
    %v10326 = vpack.c.bf16 %v10313, %v10312
    %v10327 = vpack.c.bf16 %v10315, %v10314
    %v10328 = vpack.c.bf16 %v10317, %v10316
    %v10329 = vpack.c.bf16 %v10319, %v10318
    %v10330 = vpack.c.bf16 %v10321, %v10320
    %v10331 = vpack.c.bf16 %v10323, %v10322
    %v10333 = vlaneseq
    %v10334 = vshrl.u32 %v10333, 7
    %v10335 = vsub.s32 0, %v10334
    %v10336 = vrot.slane %v6199, %v10335
    %v10337 = vlaneseq
    %v10338 = vshrl.u32 %v10337, 7
    %v10339 = vsub.s32 1, %v10338
    %v10340 = vrot.slane %v6199, %v10339
    %v10341 = vlaneseq
    %v10342 = vshrl.u32 %v10341, 7
    %v10343 = vsub.s32 2, %v10342
    %v10344 = vrot.slane %v6199, %v10343
    %v10345 = vlaneseq
    %v10346 = vshrl.u32 %v10345, 7
    %v10347 = vsub.s32 3, %v10346
    %v10348 = vrot.slane %v6199, %v10347
    %v10385 = vunpack.c.l.b16 %v6095
    %v10386 = vunpack.c.h.b16 %v6095
    %v10387 = vunpack.c.l.b16 %v6096
    %v10388 = vunpack.c.h.b16 %v6096
    %v10389 = vunpack.c.l.b16 %v6097
    %v10390 = vunpack.c.h.b16 %v6097
    %v10391 = vunpack.c.l.b16 %v6098
    %v10392 = vunpack.c.h.b16 %v6098
    %v10393 = vunpack.c.l.b16 %v6099
    %v10394 = vunpack.c.h.b16 %v6099
    %v10395 = vunpack.c.l.b16 %v6100
    %v10396 = vunpack.c.h.b16 %v6100
    %v10397 = vunpack.c.l.b16 %v6101
    %v10398 = vunpack.c.h.b16 %v6101
    %v10399 = vunpack.c.l.b16 %v6102
    %v10400 = vunpack.c.h.b16 %v6102
    %v10401 = vunpack.c.l.b16 %v6103
    %v10402 = vunpack.c.h.b16 %v6103
    %v10403 = vunpack.c.l.b16 %v6104
    %v10404 = vunpack.c.h.b16 %v6104
    %v10405 = vunpack.c.l.b16 %v6105
    %v10406 = vunpack.c.h.b16 %v6105
    %v10407 = vunpack.c.l.b16 %v6106
    %v10408 = vunpack.c.h.b16 %v6106
    %v10409 = vunpack.c.l.b16 %v6107
    %v10410 = vunpack.c.h.b16 %v6107
    %v10411 = vunpack.c.l.b16 %v6108
    %v10412 = vunpack.c.h.b16 %v6108
    %v10413 = vunpack.c.l.b16 %v6109
    %v10414 = vunpack.c.h.b16 %v6109
    %v10415 = vunpack.c.l.b16 %v6110
    %v10416 = vunpack.c.h.b16 %v6110
    %v10417 = vunpack.c.l.b16 %v6111
    %v10418 = vunpack.c.h.b16 %v6111
    %v10419 = vunpack.c.l.b16 %v6112
    %v10420 = vunpack.c.h.b16 %v6112
    %v10421 = vunpack.c.l.b16 %v6113
    %v10422 = vunpack.c.h.b16 %v6113
    %v10423 = vunpack.c.l.b16 %v6114
    %v10424 = vunpack.c.h.b16 %v6114
    %v10425 = vunpack.c.l.b16 %v6115
    %v10426 = vunpack.c.h.b16 %v6115
    %v10427 = vunpack.c.l.b16 %v6116
    %v10428 = vunpack.c.h.b16 %v6116
    %v10429 = vunpack.c.l.b16 %v6117
    %v10430 = vunpack.c.h.b16 %v6117
    %v10431 = vunpack.c.l.b16 %v6118
    %v10432 = vunpack.c.h.b16 %v6118
    %v10433 = vunpack.c.l.b16 %v6119
    %v10434 = vunpack.c.h.b16 %v6119
    %v10435 = vunpack.c.l.b16 %v6120
    %v10436 = vunpack.c.h.b16 %v6120
    %v10437 = vunpack.c.l.b16 %v6121
    %v10438 = vunpack.c.h.b16 %v6121
    %v10439 = vunpack.c.l.b16 %v6122
    %v10440 = vunpack.c.h.b16 %v6122
    %v10441 = vunpack.c.l.b16 %v6123
    %v10442 = vunpack.c.h.b16 %v6123
    %v10443 = vunpack.c.l.b16 %v6124
    %v10444 = vunpack.c.h.b16 %v6124
    %v10445 = vunpack.c.l.b16 %v6125
    %v10446 = vunpack.c.h.b16 %v6125
    %v10447 = vunpack.c.l.b16 %v6126
    %v10448 = vunpack.c.h.b16 %v6126
    %v10449 = vpack.c.b16 %v10389, %v10385
    %v10450 = vpack.c.b16 %v10390, %v10386
    %v10451 = vpack.c.b16 %v10391, %v10387
    %v10452 = vpack.c.b16 %v10392, %v10388
    %v10453 = vpack.c.b16 %v10397, %v10393
    %v10454 = vpack.c.b16 %v10398, %v10394
    %v10455 = vpack.c.b16 %v10399, %v10395
    %v10456 = vpack.c.b16 %v10400, %v10396
    %v10457 = vpack.c.b16 %v10405, %v10401
    %v10458 = vpack.c.b16 %v10406, %v10402
    %v10459 = vpack.c.b16 %v10407, %v10403
    %v10460 = vpack.c.b16 %v10408, %v10404
    %v10461 = vpack.c.b16 %v10413, %v10409
    %v10462 = vpack.c.b16 %v10414, %v10410
    %v10463 = vpack.c.b16 %v10415, %v10411
    %v10464 = vpack.c.b16 %v10416, %v10412
    %v10465 = vpack.c.b16 %v10421, %v10417
    %v10466 = vpack.c.b16 %v10422, %v10418
    %v10467 = vpack.c.b16 %v10423, %v10419
    %v10468 = vpack.c.b16 %v10424, %v10420
    %v10469 = vpack.c.b16 %v10429, %v10425
    %v10470 = vpack.c.b16 %v10430, %v10426
    %v10471 = vpack.c.b16 %v10431, %v10427
    %v10472 = vpack.c.b16 %v10432, %v10428
    %v10473 = vpack.c.b16 %v10437, %v10433
    %v10474 = vpack.c.b16 %v10438, %v10434
    %v10475 = vpack.c.b16 %v10439, %v10435
    %v10476 = vpack.c.b16 %v10440, %v10436
    %v10477 = vpack.c.b16 %v10445, %v10441
    %v10478 = vpack.c.b16 %v10446, %v10442
    %v10479 = vpack.c.b16 %v10447, %v10443
    %v10480 = vpack.c.b16 %v10448, %v10444
    %10513 = vmatprep.subr.bf16.mxu0 %v10478
    %10514 = vmatpush1.bf16.msra.mxu0 %v10477
    %10515 = vmatprep.subr.bf16.mxu0 %v10474
    %10516 = vmatpush1.bf16.msra.mxu0 %v10473
    %10517 = vmatprep.subr.bf16.mxu0 %v10470
    %10518 = vmatpush1.bf16.msra.mxu0 %v10469
    %10519 = vmatprep.subr.bf16.mxu0 %v10466
    %10520 = vmatpush1.bf16.msra.mxu0 %v10465
    %10521 = vmatprep.subr.bf16.mxu0 %v10462
    %10522 = vmatpush1.bf16.msra.mxu0 %v10461
    %10523 = vmatprep.subr.bf16.mxu0 %v10458
    %10524 = vmatpush1.bf16.msra.mxu0 %v10457
    %10525 = vmatprep.subr.bf16.mxu0 %v10454
    %10526 = vmatpush1.bf16.msra.mxu0 %v10453
    %10527 = vmatprep.subr.bf16.mxu0 %v10450
    %10528 = vmatpush1.bf16.msra.mxu0 %v10449
    %10529 = vmatprep.subr.bf16.mxu0 0
    %10530 = vmatpush2.bf16.msra.mxu0 0
    %10531 = vmatprep.subr.bf16.mxu0 0
    %10532 = vmatpush2.bf16.msra.mxu0 0
    %10533 = vmatprep.subr.bf16.mxu0 0
    %10534 = vmatpush2.bf16.msra.mxu0 0
    %10535 = vmatprep.subr.bf16.mxu0 0
    %10536 = vmatpush2.bf16.msra.mxu0 0
    %10537 = vmatprep.subr.bf16.mxu0 0
    %10538 = vmatpush2.bf16.msra.mxu0 0
    %10539 = vmatprep.subr.bf16.mxu0 0
    %10540 = vmatpush2.bf16.msra.mxu0 0
    %10541 = vmatprep.subr.bf16.mxu0 0
    %10542 = vmatpush2.bf16.msra.mxu0 0
    %10543 = vmatprep.subr.bf16.mxu0 0
    %10544 = vmatpush2.bf16.msra.mxu0 0
    %10545 = vmatprep.mubr.bf16.mxu0 0
    %10546 = vmatmul.mubr.bf16.gmra.mxu0 %v10324
    %v10547 = vpop.f32.mrf.mxu0
    %v10548 = vadd.f32 %v10336, %v10547
    %v10549 = vpop.f32.mrf.mxu0
    %v10550 = vadd.f32 %v10340, %v10549
    %v10551 = vpop.f32.mrf.mxu0
    %v10552 = vadd.f32 %v10336, %v10551
    %v10553 = vpop.f32.mrf.mxu0
    %v10554 = vadd.f32 %v10340, %v10553
    %10555 = vmatprep.mubr.bf16.mxu0 0
    %10556 = vmatmul.mubr.bf16.gmra.mxu0 %v10325
    %v10557 = vpop.f32.mrf.mxu0
    %v10558 = vadd.f32 %v10336, %v10557
    %v10559 = vpop.f32.mrf.mxu0
    %v10560 = vadd.f32 %v10340, %v10559
    %v10561 = vpop.f32.mrf.mxu0
    %v10562 = vadd.f32 %v10336, %v10561
    %v10563 = vpop.f32.mrf.mxu0
    %v10564 = vadd.f32 %v10340, %v10563
    %10565 = vmatprep.mubr.bf16.mxu0 0
    %10566 = vmatmul.mubr.bf16.gmra.mxu0 %v10326
    %v10567 = vpop.f32.mrf.mxu0
    %v10568 = vadd.f32 %v10336, %v10567
    %v10569 = vpop.f32.mrf.mxu0
    %v10570 = vadd.f32 %v10340, %v10569
    %v10571 = vpop.f32.mrf.mxu0
    %v10572 = vadd.f32 %v10336, %v10571
    %v10573 = vpop.f32.mrf.mxu0
    %v10574 = vadd.f32 %v10340, %v10573
    %10575 = vmatprep.mubr.bf16.mxu0 0
    %10576 = vmatmul.mubr.bf16.gmra.mxu0 %v10327
    %v10577 = vpop.f32.mrf.mxu0
    %v10578 = vadd.f32 %v10336, %v10577
    %v10579 = vpop.f32.mrf.mxu0
    %v10580 = vadd.f32 %v10340, %v10579
    %v10581 = vpop.f32.mrf.mxu0
    %v10582 = vadd.f32 %v10336, %v10581
    %v10583 = vpop.f32.mrf.mxu0
    %v10584 = vadd.f32 %v10340, %v10583
    %10585 = vmatprep.mubr.bf16.mxu0 0
    %10586 = vmatmul.mubr.bf16.gmra.mxu0 %v10328
    %v10587 = vpop.f32.mrf.mxu0
    %v10588 = vadd.f32 %v10336, %v10587
    %v10589 = vpop.f32.mrf.mxu0
    %v10590 = vadd.f32 %v10340, %v10589
    %v10591 = vpop.f32.mrf.mxu0
    %v10592 = vadd.f32 %v10336, %v10591
    %v10593 = vpop.f32.mrf.mxu0
    %v10594 = vadd.f32 %v10340, %v10593
    %10595 = vmatprep.mubr.bf16.mxu0 0
    %10596 = vmatmul.mubr.bf16.gmra.mxu0 %v10329
    %v10597 = vpop.f32.mrf.mxu0
    %v10598 = vadd.f32 %v10336, %v10597
    %v10599 = vpop.f32.mrf.mxu0
    %v10600 = vadd.f32 %v10340, %v10599
    %v10601 = vpop.f32.mrf.mxu0
    %v10602 = vadd.f32 %v10336, %v10601
    %v10603 = vpop.f32.mrf.mxu0
    %v10604 = vadd.f32 %v10340, %v10603
    %10605 = vmatprep.mubr.bf16.mxu0 0
    %10606 = vmatmul.mubr.bf16.gmra.mxu0 %v10330
    %v10607 = vpop.f32.mrf.mxu0
    %v10608 = vadd.f32 %v10336, %v10607
    %v10609 = vpop.f32.mrf.mxu0
    %v10610 = vadd.f32 %v10340, %v10609
    %v10611 = vpop.f32.mrf.mxu0
    %v10612 = vadd.f32 %v10336, %v10611
    %v10613 = vpop.f32.mrf.mxu0
    %v10614 = vadd.f32 %v10340, %v10613
    %10615 = vmatprep.mubr.bf16.mxu0 0
    %10616 = vmatmul.mubr.bf16.gmra.mxu0 %v10331
    %v10617 = vpop.f32.mrf.mxu0
    %v10618 = vadd.f32 %v10336, %v10617
    %v10619 = vpop.f32.mrf.mxu0
    %v10620 = vadd.f32 %v10340, %v10619
    %v10621 = vpop.f32.mrf.mxu0
    %v10622 = vadd.f32 %v10336, %v10621
    %v10623 = vpop.f32.mrf.mxu0
    %v10624 = vadd.f32 %v10340, %v10623
    %10625 = vdwg.mxu0
    %10626 = vmatprep.subr.bf16.mxu0 %v10480
    %10627 = vmatpush1.bf16.msra.mxu0 %v10479
    %10628 = vmatprep.subr.bf16.mxu0 %v10476
    %10629 = vmatpush1.bf16.msra.mxu0 %v10475
    %10630 = vmatprep.subr.bf16.mxu0 %v10472
    %10631 = vmatpush1.bf16.msra.mxu0 %v10471
    %10632 = vmatprep.subr.bf16.mxu0 %v10468
    %10633 = vmatpush1.bf16.msra.mxu0 %v10467
    %10634 = vmatprep.subr.bf16.mxu0 %v10464
    %10635 = vmatpush1.bf16.msra.mxu0 %v10463
    %10636 = vmatprep.subr.bf16.mxu0 %v10460
    %10637 = vmatpush1.bf16.msra.mxu0 %v10459
    %10638 = vmatprep.subr.bf16.mxu0 %v10456
    %10639 = vmatpush1.bf16.msra.mxu0 %v10455
    %10640 = vmatprep.subr.bf16.mxu0 %v10452
    %10641 = vmatpush1.bf16.msra.mxu0 %v10451
    %10642 = vmatprep.subr.bf16.mxu0 0
    %10643 = vmatpush2.bf16.msra.mxu0 0
    %10644 = vmatprep.subr.bf16.mxu0 0
    %10645 = vmatpush2.bf16.msra.mxu0 0
    %10646 = vmatprep.subr.bf16.mxu0 0
    %10647 = vmatpush2.bf16.msra.mxu0 0
    %10648 = vmatprep.subr.bf16.mxu0 0
    %10649 = vmatpush2.bf16.msra.mxu0 0
    %10650 = vmatprep.subr.bf16.mxu0 0
    %10651 = vmatpush2.bf16.msra.mxu0 0
    %10652 = vmatprep.subr.bf16.mxu0 0
    %10653 = vmatpush2.bf16.msra.mxu0 0
    %10654 = vmatprep.subr.bf16.mxu0 0
    %10655 = vmatpush2.bf16.msra.mxu0 0
    %10656 = vmatprep.subr.bf16.mxu0 0
    %10657 = vmatpush2.bf16.msra.mxu0 0
    %10658 = vmatprep.mubr.bf16.mxu0 0
    %10659 = vmatmul.mubr.bf16.gmra.mxu0 %v10324
    %v10660 = vpop.f32.mrf.mxu0
    %v10661 = vadd.f32 %v10344, %v10660
    %v10662 = vpop.f32.mrf.mxu0
    %v10663 = vadd.f32 %v10348, %v10662
    %v10664 = vpop.f32.mrf.mxu0
    %v10665 = vadd.f32 %v10344, %v10664
    %v10666 = vpop.f32.mrf.mxu0
    %v10667 = vadd.f32 %v10348, %v10666
    %10668 = vmatprep.mubr.bf16.mxu0 0
    %10669 = vmatmul.mubr.bf16.gmra.mxu0 %v10325
    %v10670 = vpop.f32.mrf.mxu0
    %v10671 = vadd.f32 %v10344, %v10670
    %v10672 = vpop.f32.mrf.mxu0
    %v10673 = vadd.f32 %v10348, %v10672
    %v10674 = vpop.f32.mrf.mxu0
    %v10675 = vadd.f32 %v10344, %v10674
    %v10676 = vpop.f32.mrf.mxu0
    %v10677 = vadd.f32 %v10348, %v10676
    %10678 = vmatprep.mubr.bf16.mxu0 0
    %10679 = vmatmul.mubr.bf16.gmra.mxu0 %v10326
    %v10680 = vpop.f32.mrf.mxu0
    %v10681 = vadd.f32 %v10344, %v10680
    %v10682 = vpop.f32.mrf.mxu0
    %v10683 = vadd.f32 %v10348, %v10682
    %v10684 = vpop.f32.mrf.mxu0
    %v10685 = vadd.f32 %v10344, %v10684
    %v10686 = vpop.f32.mrf.mxu0
    %v10687 = vadd.f32 %v10348, %v10686
    %10688 = vmatprep.mubr.bf16.mxu0 0
    %10689 = vmatmul.mubr.bf16.gmra.mxu0 %v10327
    %v10690 = vpop.f32.mrf.mxu0
    %v10691 = vadd.f32 %v10344, %v10690
    %v10692 = vpop.f32.mrf.mxu0
    %v10693 = vadd.f32 %v10348, %v10692
    %v10694 = vpop.f32.mrf.mxu0
    %v10695 = vadd.f32 %v10344, %v10694
    %v10696 = vpop.f32.mrf.mxu0
    %v10697 = vadd.f32 %v10348, %v10696
    %10698 = vmatprep.mubr.bf16.mxu0 0
    %10699 = vmatmul.mubr.bf16.gmra.mxu0 %v10328
    %v10700 = vpop.f32.mrf.mxu0
    %v10701 = vadd.f32 %v10344, %v10700
    %v10702 = vpop.f32.mrf.mxu0
    %v10703 = vadd.f32 %v10348, %v10702
    %v10704 = vpop.f32.mrf.mxu0
    %v10705 = vadd.f32 %v10344, %v10704
    %v10706 = vpop.f32.mrf.mxu0
    %v10707 = vadd.f32 %v10348, %v10706
    %10708 = vmatprep.mubr.bf16.mxu0 0
    %10709 = vmatmul.mubr.bf16.gmra.mxu0 %v10329
    %v10710 = vpop.f32.mrf.mxu0
    %v10711 = vadd.f32 %v10344, %v10710
    %v10712 = vpop.f32.mrf.mxu0
    %v10713 = vadd.f32 %v10348, %v10712
    %v10714 = vpop.f32.mrf.mxu0
    %v10715 = vadd.f32 %v10344, %v10714
    %v10716 = vpop.f32.mrf.mxu0
    %v10717 = vadd.f32 %v10348, %v10716
    %10718 = vmatprep.mubr.bf16.mxu0 0
    %10719 = vmatmul.mubr.bf16.gmra.mxu0 %v10330
    %v10720 = vpop.f32.mrf.mxu0
    %v10721 = vadd.f32 %v10344, %v10720
    %v10722 = vpop.f32.mrf.mxu0
    %v10723 = vadd.f32 %v10348, %v10722
    %v10724 = vpop.f32.mrf.mxu0
    %v10725 = vadd.f32 %v10344, %v10724
    %v10726 = vpop.f32.mrf.mxu0
    %v10727 = vadd.f32 %v10348, %v10726
    %10728 = vmatprep.mubr.bf16.mxu0 0
    %10729 = vmatmul.mubr.bf16.gmra.mxu0 %v10331
    %v10730 = vpop.f32.mrf.mxu0
    %v10731 = vadd.f32 %v10344, %v10730
    %v10732 = vpop.f32.mrf.mxu0
    %v10733 = vadd.f32 %v10348, %v10732
    %v10734 = vpop.f32.mrf.mxu0
    %v10735 = vadd.f32 %v10344, %v10734
    %v10736 = vpop.f32.mrf.mxu0
    %v10737 = vadd.f32 %v10348, %v10736
    %10738 = vdwg.mxu0
    %v10739 = vmul.f32 %v10548, %v10548
    %v10740 = vmul.f32 %v10550, %v10550
    %v10741 = vmul.f32 %v10661, %v10661
    %v10742 = vmul.f32 %v10663, %v10663
    %v10743 = vmul.f32 %v10552, %v10552
    %v10744 = vmul.f32 %v10554, %v10554
    %v10745 = vmul.f32 %v10665, %v10665
    %v10746 = vmul.f32 %v10667, %v10667
    %v10747 = vmul.f32 %v10558, %v10558
    %v10748 = vmul.f32 %v10560, %v10560
    %v10749 = vmul.f32 %v10671, %v10671
    %v10750 = vmul.f32 %v10673, %v10673
    %v10751 = vmul.f32 %v10562, %v10562
    %v10752 = vmul.f32 %v10564, %v10564
    %v10753 = vmul.f32 %v10675, %v10675
    %v10754 = vmul.f32 %v10677, %v10677
    %v10755 = vmul.f32 %v10568, %v10568
    %v10756 = vmul.f32 %v10570, %v10570
    %v10757 = vmul.f32 %v10681, %v10681
    %v10758 = vmul.f32 %v10683, %v10683
    %v10759 = vmul.f32 %v10572, %v10572
    %v10760 = vmul.f32 %v10574, %v10574
    %v10761 = vmul.f32 %v10685, %v10685
    %v10762 = vmul.f32 %v10687, %v10687
    %v10763 = vmul.f32 %v10578, %v10578
    %v10764 = vmul.f32 %v10580, %v10580
    %v10765 = vmul.f32 %v10691, %v10691
    %v10766 = vmul.f32 %v10693, %v10693
    %v10767 = vmul.f32 %v10582, %v10582
    %v10768 = vmul.f32 %v10584, %v10584
    %v10769 = vmul.f32 %v10695, %v10695
    %v10770 = vmul.f32 %v10697, %v10697
    %v10771 = vmul.f32 %v10588, %v10588
    %v10772 = vmul.f32 %v10590, %v10590
    %v10773 = vmul.f32 %v10701, %v10701
    %v10774 = vmul.f32 %v10703, %v10703
    %v10775 = vmul.f32 %v10592, %v10592
    %v10776 = vmul.f32 %v10594, %v10594
    %v10777 = vmul.f32 %v10705, %v10705
    %v10778 = vmul.f32 %v10707, %v10707
    %v10779 = vmul.f32 %v10598, %v10598
    %v10780 = vmul.f32 %v10600, %v10600
    %v10781 = vmul.f32 %v10711, %v10711
    %v10782 = vmul.f32 %v10713, %v10713
    %v10783 = vmul.f32 %v10602, %v10602
    %v10784 = vmul.f32 %v10604, %v10604
    %v10785 = vmul.f32 %v10715, %v10715
    %v10786 = vmul.f32 %v10717, %v10717
    %v10787 = vmul.f32 %v10608, %v10608
    %v10788 = vmul.f32 %v10610, %v10610
    %v10789 = vmul.f32 %v10721, %v10721
    %v10790 = vmul.f32 %v10723, %v10723
    %v10791 = vmul.f32 %v10612, %v10612
    %v10792 = vmul.f32 %v10614, %v10614
    %v10793 = vmul.f32 %v10725, %v10725
    %v10794 = vmul.f32 %v10727, %v10727
    %v10795 = vmul.f32 %v10618, %v10618
    %v10796 = vmul.f32 %v10620, %v10620
    %v10797 = vmul.f32 %v10731, %v10731
    %v10798 = vmul.f32 %v10733, %v10733
    %v10799 = vmul.f32 %v10622, %v10622
    %v10800 = vmul.f32 %v10624, %v10624
    %v10801 = vmul.f32 %v10735, %v10735
    %v10802 = vmul.f32 %v10737, %v10737
    %v10803 = vmul.f32 %v10548, %v10739
    %v10804 = vmul.f32 %v10550, %v10740
    %v10805 = vmul.f32 %v10661, %v10741
    %v10806 = vmul.f32 %v10663, %v10742
    %v10807 = vmul.f32 %v10552, %v10743
    %v10808 = vmul.f32 %v10554, %v10744
    %v10809 = vmul.f32 %v10665, %v10745
    %v10810 = vmul.f32 %v10667, %v10746
    %v10811 = vmul.f32 %v10558, %v10747
    %v10812 = vmul.f32 %v10560, %v10748
    %v10813 = vmul.f32 %v10671, %v10749
    %v10814 = vmul.f32 %v10673, %v10750
    %v10815 = vmul.f32 %v10562, %v10751
    %v10816 = vmul.f32 %v10564, %v10752
    %v10817 = vmul.f32 %v10675, %v10753
    %v10818 = vmul.f32 %v10677, %v10754
    %v10819 = vmul.f32 %v10568, %v10755
    %v10820 = vmul.f32 %v10570, %v10756
    %v10821 = vmul.f32 %v10681, %v10757
    %v10822 = vmul.f32 %v10683, %v10758
    %v10823 = vmul.f32 %v10572, %v10759
    %v10824 = vmul.f32 %v10574, %v10760
    %v10825 = vmul.f32 %v10685, %v10761
    %v10826 = vmul.f32 %v10687, %v10762
    %v10827 = vmul.f32 %v10578, %v10763
    %v10828 = vmul.f32 %v10580, %v10764
    %v10829 = vmul.f32 %v10691, %v10765
    %v10830 = vmul.f32 %v10693, %v10766
    %v10831 = vmul.f32 %v10582, %v10767
    %v10832 = vmul.f32 %v10584, %v10768
    %v10833 = vmul.f32 %v10695, %v10769
    %v10834 = vmul.f32 %v10697, %v10770
    %v10835 = vmul.f32 %v10588, %v10771
    %v10836 = vmul.f32 %v10590, %v10772
    %v10837 = vmul.f32 %v10701, %v10773
    %v10838 = vmul.f32 %v10703, %v10774
    %v10839 = vmul.f32 %v10592, %v10775
    %v10840 = vmul.f32 %v10594, %v10776
    %v10841 = vmul.f32 %v10705, %v10777
    %v10842 = vmul.f32 %v10707, %v10778
    %v10843 = vmul.f32 %v10598, %v10779
    %v10844 = vmul.f32 %v10600, %v10780
    %v10845 = vmul.f32 %v10711, %v10781
    %v10846 = vmul.f32 %v10713, %v10782
    %v10847 = vmul.f32 %v10602, %v10783
    %v10848 = vmul.f32 %v10604, %v10784
    %v10849 = vmul.f32 %v10715, %v10785
    %v10850 = vmul.f32 %v10717, %v10786
    %v10851 = vmul.f32 %v10608, %v10787
    %v10852 = vmul.f32 %v10610, %v10788
    %v10853 = vmul.f32 %v10721, %v10789
    %v10854 = vmul.f32 %v10723, %v10790
    %v10855 = vmul.f32 %v10612, %v10791
    %v10856 = vmul.f32 %v10614, %v10792
    %v10857 = vmul.f32 %v10725, %v10793
    %v10858 = vmul.f32 %v10727, %v10794
    %v10859 = vmul.f32 %v10618, %v10795
    %v10860 = vmul.f32 %v10620, %v10796
    %v10861 = vmul.f32 %v10731, %v10797
    %v10862 = vmul.f32 %v10733, %v10798
    %v10863 = vmul.f32 %v10622, %v10799
    %v10864 = vmul.f32 %v10624, %v10800
    %v10865 = vmul.f32 %v10735, %v10801
    %v10866 = vmul.f32 %v10737, %v10802
    %v10867 = vmul.f32 %v10803, 0.044715
    %v10868 = vmul.f32 %v10804, 0.044715
    %v10869 = vmul.f32 %v10805, 0.044715
    %v10870 = vmul.f32 %v10806, 0.044715
    %v10871 = vmul.f32 %v10807, 0.044715
    %v10872 = vmul.f32 %v10808, 0.044715
    %v10873 = vmul.f32 %v10809, 0.044715
    %v10874 = vmul.f32 %v10810, 0.044715
    %v10875 = vmul.f32 %v10811, 0.044715
    %v10876 = vmul.f32 %v10812, 0.044715
    %v10877 = vmul.f32 %v10813, 0.044715
    %v10878 = vmul.f32 %v10814, 0.044715
    %v10879 = vmul.f32 %v10815, 0.044715
    %v10880 = vmul.f32 %v10816, 0.044715
    %v10881 = vmul.f32 %v10817, 0.044715
    %v10882 = vmul.f32 %v10818, 0.044715
    %v10883 = vmul.f32 %v10819, 0.044715
    %v10884 = vmul.f32 %v10820, 0.044715
    %v10885 = vmul.f32 %v10821, 0.044715
    %v10886 = vmul.f32 %v10822, 0.044715
    %v10887 = vmul.f32 %v10823, 0.044715
    %v10888 = vmul.f32 %v10824, 0.044715
    %v10889 = vmul.f32 %v10825, 0.044715
    %v10890 = vmul.f32 %v10826, 0.044715
    %v10891 = vmul.f32 %v10827, 0.044715
    %v10892 = vmul.f32 %v10828, 0.044715
    %v10893 = vmul.f32 %v10829, 0.044715
    %v10894 = vmul.f32 %v10830, 0.044715
    %v10895 = vmul.f32 %v10831, 0.044715
    %v10896 = vmul.f32 %v10832, 0.044715
    %v10897 = vmul.f32 %v10833, 0.044715
    %v10898 = vmul.f32 %v10834, 0.044715
    %v10899 = vmul.f32 %v10835, 0.044715
    %v10900 = vmul.f32 %v10836, 0.044715
    %v10901 = vmul.f32 %v10837, 0.044715
    %v10902 = vmul.f32 %v10838, 0.044715
    %v10903 = vmul.f32 %v10839, 0.044715
    %v10904 = vmul.f32 %v10840, 0.044715
    %v10905 = vmul.f32 %v10841, 0.044715
    %v10906 = vmul.f32 %v10842, 0.044715
    %v10907 = vmul.f32 %v10843, 0.044715
    %v10908 = vmul.f32 %v10844, 0.044715
    %v10909 = vmul.f32 %v10845, 0.044715
    %v10910 = vmul.f32 %v10846, 0.044715
    %v10911 = vmul.f32 %v10847, 0.044715
    %v10912 = vmul.f32 %v10848, 0.044715
    %v10913 = vmul.f32 %v10849, 0.044715
    %v10914 = vmul.f32 %v10850, 0.044715
    %v10915 = vmul.f32 %v10851, 0.044715
    %v10916 = vmul.f32 %v10852, 0.044715
    %v10917 = vmul.f32 %v10853, 0.044715
    %v10918 = vmul.f32 %v10854, 0.044715
    %v10919 = vmul.f32 %v10855, 0.044715
    %v10920 = vmul.f32 %v10856, 0.044715
    %v10921 = vmul.f32 %v10857, 0.044715
    %v10922 = vmul.f32 %v10858, 0.044715
    %v10923 = vmul.f32 %v10859, 0.044715
    %v10924 = vmul.f32 %v10860, 0.044715
    %v10925 = vmul.f32 %v10861, 0.044715
    %v10926 = vmul.f32 %v10862, 0.044715
    %v10927 = vmul.f32 %v10863, 0.044715
    %v10928 = vmul.f32 %v10864, 0.044715
    %v10929 = vmul.f32 %v10865, 0.044715
    %v10930 = vmul.f32 %v10866, 0.044715
    %v10931 = vadd.f32 %v10548, %v10867
    %v10932 = vadd.f32 %v10550, %v10868
    %v10933 = vadd.f32 %v10661, %v10869
    %v10934 = vadd.f32 %v10663, %v10870
    %v10935 = vadd.f32 %v10552, %v10871
    %v10936 = vadd.f32 %v10554, %v10872
    %v10937 = vadd.f32 %v10665, %v10873
    %v10938 = vadd.f32 %v10667, %v10874
    %v10939 = vadd.f32 %v10558, %v10875
    %v10940 = vadd.f32 %v10560, %v10876
    %v10941 = vadd.f32 %v10671, %v10877
    %v10942 = vadd.f32 %v10673, %v10878
    %v10943 = vadd.f32 %v10562, %v10879
    %v10944 = vadd.f32 %v10564, %v10880
    %v10945 = vadd.f32 %v10675, %v10881
    %v10946 = vadd.f32 %v10677, %v10882
    %v10947 = vadd.f32 %v10568, %v10883
    %v10948 = vadd.f32 %v10570, %v10884
    %v10949 = vadd.f32 %v10681, %v10885
    %v10950 = vadd.f32 %v10683, %v10886
    %v10951 = vadd.f32 %v10572, %v10887
    %v10952 = vadd.f32 %v10574, %v10888
    %v10953 = vadd.f32 %v10685, %v10889
    %v10954 = vadd.f32 %v10687, %v10890
    %v10955 = vadd.f32 %v10578, %v10891
    %v10956 = vadd.f32 %v10580, %v10892
    %v10957 = vadd.f32 %v10691, %v10893
    %v10958 = vadd.f32 %v10693, %v10894
    %v10959 = vadd.f32 %v10582, %v10895
    %v10960 = vadd.f32 %v10584, %v10896
    %v10961 = vadd.f32 %v10695, %v10897
    %v10962 = vadd.f32 %v10697, %v10898
    %v10963 = vadd.f32 %v10588, %v10899
    %v10964 = vadd.f32 %v10590, %v10900
    %v10965 = vadd.f32 %v10701, %v10901
    %v10966 = vadd.f32 %v10703, %v10902
    %v10967 = vadd.f32 %v10592, %v10903
    %v10968 = vadd.f32 %v10594, %v10904
    %v10969 = vadd.f32 %v10705, %v10905
    %v10970 = vadd.f32 %v10707, %v10906
    %v10971 = vadd.f32 %v10598, %v10907
    %v10972 = vadd.f32 %v10600, %v10908
    %v10973 = vadd.f32 %v10711, %v10909
    %v10974 = vadd.f32 %v10713, %v10910
    %v10975 = vadd.f32 %v10602, %v10911
    %v10976 = vadd.f32 %v10604, %v10912
    %v10977 = vadd.f32 %v10715, %v10913
    %v10978 = vadd.f32 %v10717, %v10914
    %v10979 = vadd.f32 %v10608, %v10915
    %v10980 = vadd.f32 %v10610, %v10916
    %v10981 = vadd.f32 %v10721, %v10917
    %v10982 = vadd.f32 %v10723, %v10918
    %v10983 = vadd.f32 %v10612, %v10919
    %v10984 = vadd.f32 %v10614, %v10920
    %v10985 = vadd.f32 %v10725, %v10921
    %v10986 = vadd.f32 %v10727, %v10922
    %v10987 = vadd.f32 %v10618, %v10923
    %v10988 = vadd.f32 %v10620, %v10924
    %v10989 = vadd.f32 %v10731, %v10925
    %v10990 = vadd.f32 %v10733, %v10926
    %v10991 = vadd.f32 %v10622, %v10927
    %v10992 = vadd.f32 %v10624, %v10928
    %v10993 = vadd.f32 %v10735, %v10929
    %v10994 = vadd.f32 %v10737, %v10930
    %v10995 = vmul.f32 %v10931, 0.7978846
    %v10996 = vmul.f32 %v10932, 0.7978846
    %v10997 = vmul.f32 %v10933, 0.7978846
    %v10998 = vmul.f32 %v10934, 0.7978846
    %v10999 = vmul.f32 %v10935, 0.7978846
    %v11000 = vmul.f32 %v10936, 0.7978846
    %v11001 = vmul.f32 %v10937, 0.7978846
    %v11002 = vmul.f32 %v10938, 0.7978846
    %v11003 = vmul.f32 %v10939, 0.7978846
    %v11004 = vmul.f32 %v10940, 0.7978846
    %v11005 = vmul.f32 %v10941, 0.7978846
    %v11006 = vmul.f32 %v10942, 0.7978846
    %v11007 = vmul.f32 %v10943, 0.7978846
    %v11008 = vmul.f32 %v10944, 0.7978846
    %v11009 = vmul.f32 %v10945, 0.7978846
    %v11010 = vmul.f32 %v10946, 0.7978846
    %v11011 = vmul.f32 %v10947, 0.7978846
    %v11012 = vmul.f32 %v10948, 0.7978846
    %v11013 = vmul.f32 %v10949, 0.7978846
    %v11014 = vmul.f32 %v10950, 0.7978846
    %v11015 = vmul.f32 %v10951, 0.7978846
    %v11016 = vmul.f32 %v10952, 0.7978846
    %v11017 = vmul.f32 %v10953, 0.7978846
    %v11018 = vmul.f32 %v10954, 0.7978846
    %v11019 = vmul.f32 %v10955, 0.7978846
    %v11020 = vmul.f32 %v10956, 0.7978846
    %v11021 = vmul.f32 %v10957, 0.7978846
    %v11022 = vmul.f32 %v10958, 0.7978846
    %v11023 = vmul.f32 %v10959, 0.7978846
    %v11024 = vmul.f32 %v10960, 0.7978846
    %v11025 = vmul.f32 %v10961, 0.7978846
    %v11026 = vmul.f32 %v10962, 0.7978846
    %v11027 = vmul.f32 %v10963, 0.7978846
    %v11028 = vmul.f32 %v10964, 0.7978846
    %v11029 = vmul.f32 %v10965, 0.7978846
    %v11030 = vmul.f32 %v10966, 0.7978846
    %v11031 = vmul.f32 %v10967, 0.7978846
    %v11032 = vmul.f32 %v10968, 0.7978846
    %v11033 = vmul.f32 %v10969, 0.7978846
    %v11034 = vmul.f32 %v10970, 0.7978846
    %v11035 = vmul.f32 %v10971, 0.7978846
    %v11036 = vmul.f32 %v10972, 0.7978846
    %v11037 = vmul.f32 %v10973, 0.7978846
    %v11038 = vmul.f32 %v10974, 0.7978846
    %v11039 = vmul.f32 %v10975, 0.7978846
    %v11040 = vmul.f32 %v10976, 0.7978846
    %v11041 = vmul.f32 %v10977, 0.7978846
    %v11042 = vmul.f32 %v10978, 0.7978846
    %v11043 = vmul.f32 %v10979, 0.7978846
    %v11044 = vmul.f32 %v10980, 0.7978846
    %v11045 = vmul.f32 %v10981, 0.7978846
    %v11046 = vmul.f32 %v10982, 0.7978846
    %v11047 = vmul.f32 %v10983, 0.7978846
    %v11048 = vmul.f32 %v10984, 0.7978846
    %v11049 = vmul.f32 %v10985, 0.7978846
    %v11050 = vmul.f32 %v10986, 0.7978846
    %v11051 = vmul.f32 %v10987, 0.7978846
    %v11052 = vmul.f32 %v10988, 0.7978846
    %v11053 = vmul.f32 %v10989, 0.7978846
    %v11054 = vmul.f32 %v10990, 0.7978846
    %v11055 = vmul.f32 %v10991, 0.7978846
    %v11056 = vmul.f32 %v10992, 0.7978846
    %v11057 = vmul.f32 %v10993, 0.7978846
    %v11058 = vmul.f32 %v10994, 0.7978846
    %v11059 = vtanh.pop %v10995
    %v11060 = vtanh.pop %v10996
    %v11061 = vtanh.pop %v10997
    %v11062 = vtanh.pop %v10998
    %v11063 = vtanh.pop %v10999
    %v11064 = vtanh.pop %v11000
    %v11065 = vtanh.pop %v11001
    %v11066 = vtanh.pop %v11002
    %v11067 = vtanh.pop %v11003
    %v11068 = vtanh.pop %v11004
    %v11069 = vtanh.pop %v11005
    %v11070 = vtanh.pop %v11006
    %v11071 = vtanh.pop %v11007
    %v11072 = vtanh.pop %v11008
    %v11073 = vtanh.pop %v11009
    %v11074 = vtanh.pop %v11010
    %v11075 = vtanh.pop %v11011
    %v11076 = vtanh.pop %v11012
    %v11077 = vtanh.pop %v11013
    %v11078 = vtanh.pop %v11014
    %v11079 = vtanh.pop %v11015
    %v11080 = vtanh.pop %v11016
    %v11081 = vtanh.pop %v11017
    %v11082 = vtanh.pop %v11018
    %v11083 = vtanh.pop %v11019
    %v11084 = vtanh.pop %v11020
    %v11085 = vtanh.pop %v11021
    %v11086 = vtanh.pop %v11022
    %v11087 = vtanh.pop %v11023
    %v11088 = vtanh.pop %v11024
    %v11089 = vtanh.pop %v11025
    %v11090 = vtanh.pop %v11026
    %v11091 = vtanh.pop %v11027
    %v11092 = vtanh.pop %v11028
    %v11093 = vtanh.pop %v11029
    %v11094 = vtanh.pop %v11030
    %v11095 = vtanh.pop %v11031
    %v11096 = vtanh.pop %v11032
    %v11097 = vtanh.pop %v11033
    %v11098 = vtanh.pop %v11034
    %v11099 = vtanh.pop %v11035
    %v11100 = vtanh.pop %v11036
    %v11101 = vtanh.pop %v11037
    %v11102 = vtanh.pop %v11038
    %v11103 = vtanh.pop %v11039
    %v11104 = vtanh.pop %v11040
    %v11105 = vtanh.pop %v11041
    %v11106 = vtanh.pop %v11042
    %v11107 = vtanh.pop %v11043
    %v11108 = vtanh.pop %v11044
    %v11109 = vtanh.pop %v11045
    %v11110 = vtanh.pop %v11046
    %v11111 = vtanh.pop %v11047
    %v11112 = vtanh.pop %v11048
    %v11113 = vtanh.pop %v11049
    %v11114 = vtanh.pop %v11050
    %v11115 = vtanh.pop %v11051
    %v11116 = vtanh.pop %v11052
    %v11117 = vtanh.pop %v11053
    %v11118 = vtanh.pop %v11054
    %v11119 = vtanh.pop %v11055
    %v11120 = vtanh.pop %v11056
    %v11121 = vtanh.pop %v11057
    %v11122 = vtanh.pop %v11058
    %v11123 = vadd.f32 %v11059, 1.0
    %v11124 = vadd.f32 %v11060, 1.0
    %v11125 = vadd.f32 %v11061, 1.0
    %v11126 = vadd.f32 %v11062, 1.0
    %v11127 = vadd.f32 %v11063, 1.0
    %v11128 = vadd.f32 %v11064, 1.0
    %v11129 = vadd.f32 %v11065, 1.0
    %v11130 = vadd.f32 %v11066, 1.0
    %v11131 = vadd.f32 %v11067, 1.0
    %v11132 = vadd.f32 %v11068, 1.0
    %v11133 = vadd.f32 %v11069, 1.0
    %v11134 = vadd.f32 %v11070, 1.0
    %v11135 = vadd.f32 %v11071, 1.0
    %v11136 = vadd.f32 %v11072, 1.0
    %v11137 = vadd.f32 %v11073, 1.0
    %v11138 = vadd.f32 %v11074, 1.0
    %v11139 = vadd.f32 %v11075, 1.0
    %v11140 = vadd.f32 %v11076, 1.0
    %v11141 = vadd.f32 %v11077, 1.0
    %v11142 = vadd.f32 %v11078, 1.0
    %v11143 = vadd.f32 %v11079, 1.0
    %v11144 = vadd.f32 %v11080, 1.0
    %v11145 = vadd.f32 %v11081, 1.0
    %v11146 = vadd.f32 %v11082, 1.0
    %v11147 = vadd.f32 %v11083, 1.0
    %v11148 = vadd.f32 %v11084, 1.0
    %v11149 = vadd.f32 %v11085, 1.0
    %v11150 = vadd.f32 %v11086, 1.0
    %v11151 = vadd.f32 %v11087, 1.0
    %v11152 = vadd.f32 %v11088, 1.0
    %v11153 = vadd.f32 %v11089, 1.0
    %v11154 = vadd.f32 %v11090, 1.0
    %v11155 = vadd.f32 %v11091, 1.0
    %v11156 = vadd.f32 %v11092, 1.0
    %v11157 = vadd.f32 %v11093, 1.0
    %v11158 = vadd.f32 %v11094, 1.0
    %v11159 = vadd.f32 %v11095, 1.0
    %v11160 = vadd.f32 %v11096, 1.0
    %v11161 = vadd.f32 %v11097, 1.0
    %v11162 = vadd.f32 %v11098, 1.0
    %v11163 = vadd.f32 %v11099, 1.0
    %v11164 = vadd.f32 %v11100, 1.0
    %v11165 = vadd.f32 %v11101, 1.0
    %v11166 = vadd.f32 %v11102, 1.0
    %v11167 = vadd.f32 %v11103, 1.0
    %v11168 = vadd.f32 %v11104, 1.0
    %v11169 = vadd.f32 %v11105, 1.0
    %v11170 = vadd.f32 %v11106, 1.0
    %v11171 = vadd.f32 %v11107, 1.0
    %v11172 = vadd.f32 %v11108, 1.0
    %v11173 = vadd.f32 %v11109, 1.0
    %v11174 = vadd.f32 %v11110, 1.0
    %v11175 = vadd.f32 %v11111, 1.0
    %v11176 = vadd.f32 %v11112, 1.0
    %v11177 = vadd.f32 %v11113, 1.0
    %v11178 = vadd.f32 %v11114, 1.0
    %v11179 = vadd.f32 %v11115, 1.0
    %v11180 = vadd.f32 %v11116, 1.0
    %v11181 = vadd.f32 %v11117, 1.0
    %v11182 = vadd.f32 %v11118, 1.0
    %v11183 = vadd.f32 %v11119, 1.0
    %v11184 = vadd.f32 %v11120, 1.0
    %v11185 = vadd.f32 %v11121, 1.0
    %v11186 = vadd.f32 %v11122, 1.0
    %v11187 = vmul.f32 %v11123, 0.5
    %v11188 = vmul.f32 %v11124, 0.5
    %v11189 = vmul.f32 %v11125, 0.5
    %v11190 = vmul.f32 %v11126, 0.5
    %v11191 = vmul.f32 %v11127, 0.5
    %v11192 = vmul.f32 %v11128, 0.5
    %v11193 = vmul.f32 %v11129, 0.5
    %v11194 = vmul.f32 %v11130, 0.5
    %v11195 = vmul.f32 %v11131, 0.5
    %v11196 = vmul.f32 %v11132, 0.5
    %v11197 = vmul.f32 %v11133, 0.5
    %v11198 = vmul.f32 %v11134, 0.5
    %v11199 = vmul.f32 %v11135, 0.5
    %v11200 = vmul.f32 %v11136, 0.5
    %v11201 = vmul.f32 %v11137, 0.5
    %v11202 = vmul.f32 %v11138, 0.5
    %v11203 = vmul.f32 %v11139, 0.5
    %v11204 = vmul.f32 %v11140, 0.5
    %v11205 = vmul.f32 %v11141, 0.5
    %v11206 = vmul.f32 %v11142, 0.5
    %v11207 = vmul.f32 %v11143, 0.5
    %v11208 = vmul.f32 %v11144, 0.5
    %v11209 = vmul.f32 %v11145, 0.5
    %v11210 = vmul.f32 %v11146, 0.5
    %v11211 = vmul.f32 %v11147, 0.5
    %v11212 = vmul.f32 %v11148, 0.5
    %v11213 = vmul.f32 %v11149, 0.5
    %v11214 = vmul.f32 %v11150, 0.5
    %v11215 = vmul.f32 %v11151, 0.5
    %v11216 = vmul.f32 %v11152, 0.5
    %v11217 = vmul.f32 %v11153, 0.5
    %v11218 = vmul.f32 %v11154, 0.5
    %v11219 = vmul.f32 %v11155, 0.5
    %v11220 = vmul.f32 %v11156, 0.5
    %v11221 = vmul.f32 %v11157, 0.5
    %v11222 = vmul.f32 %v11158, 0.5
    %v11223 = vmul.f32 %v11159, 0.5
    %v11224 = vmul.f32 %v11160, 0.5
    %v11225 = vmul.f32 %v11161, 0.5
    %v11226 = vmul.f32 %v11162, 0.5
    %v11227 = vmul.f32 %v11163, 0.5
    %v11228 = vmul.f32 %v11164, 0.5
    %v11229 = vmul.f32 %v11165, 0.5
    %v11230 = vmul.f32 %v11166, 0.5
    %v11231 = vmul.f32 %v11167, 0.5
    %v11232 = vmul.f32 %v11168, 0.5
    %v11233 = vmul.f32 %v11169, 0.5
    %v11234 = vmul.f32 %v11170, 0.5
    %v11235 = vmul.f32 %v11171, 0.5
    %v11236 = vmul.f32 %v11172, 0.5
    %v11237 = vmul.f32 %v11173, 0.5
    %v11238 = vmul.f32 %v11174, 0.5
    %v11239 = vmul.f32 %v11175, 0.5
    %v11240 = vmul.f32 %v11176, 0.5
    %v11241 = vmul.f32 %v11177, 0.5
    %v11242 = vmul.f32 %v11178, 0.5
    %v11243 = vmul.f32 %v11179, 0.5
    %v11244 = vmul.f32 %v11180, 0.5
    %v11245 = vmul.f32 %v11181, 0.5
    %v11246 = vmul.f32 %v11182, 0.5
    %v11247 = vmul.f32 %v11183, 0.5
    %v11248 = vmul.f32 %v11184, 0.5
    %v11249 = vmul.f32 %v11185, 0.5
    %v11250 = vmul.f32 %v11186, 0.5
    %v11251 = vmul.f32 %v10548, %v11187
    %v11252 = vmul.f32 %v10550, %v11188
    %v11253 = vmul.f32 %v10661, %v11189
    %v11254 = vmul.f32 %v10663, %v11190
    %v11255 = vmul.f32 %v10552, %v11191
    %v11256 = vmul.f32 %v10554, %v11192
    %v11257 = vmul.f32 %v10665, %v11193
    %v11258 = vmul.f32 %v10667, %v11194
    %v11259 = vmul.f32 %v10558, %v11195
    %v11260 = vmul.f32 %v10560, %v11196
    %v11261 = vmul.f32 %v10671, %v11197
    %v11262 = vmul.f32 %v10673, %v11198
    %v11263 = vmul.f32 %v10562, %v11199
    %v11264 = vmul.f32 %v10564, %v11200
    %v11265 = vmul.f32 %v10675, %v11201
    %v11266 = vmul.f32 %v10677, %v11202
    %v11267 = vmul.f32 %v10568, %v11203
    %v11268 = vmul.f32 %v10570, %v11204
    %v11269 = vmul.f32 %v10681, %v11205
    %v11270 = vmul.f32 %v10683, %v11206
    %v11271 = vmul.f32 %v10572, %v11207
    %v11272 = vmul.f32 %v10574, %v11208
    %v11273 = vmul.f32 %v10685, %v11209
    %v11274 = vmul.f32 %v10687, %v11210
    %v11275 = vmul.f32 %v10578, %v11211
    %v11276 = vmul.f32 %v10580, %v11212
    %v11277 = vmul.f32 %v10691, %v11213
    %v11278 = vmul.f32 %v10693, %v11214
    %v11279 = vmul.f32 %v10582, %v11215
    %v11280 = vmul.f32 %v10584, %v11216
    %v11281 = vmul.f32 %v10695, %v11217
    %v11282 = vmul.f32 %v10697, %v11218
    %v11283 = vmul.f32 %v10588, %v11219
    %v11284 = vmul.f32 %v10590, %v11220
    %v11285 = vmul.f32 %v10701, %v11221
    %v11286 = vmul.f32 %v10703, %v11222
    %v11287 = vmul.f32 %v10592, %v11223
    %v11288 = vmul.f32 %v10594, %v11224
    %v11289 = vmul.f32 %v10705, %v11225
    %v11290 = vmul.f32 %v10707, %v11226
    %v11291 = vmul.f32 %v10598, %v11227
    %v11292 = vmul.f32 %v10600, %v11228
    %v11293 = vmul.f32 %v10711, %v11229
    %v11294 = vmul.f32 %v10713, %v11230
    %v11295 = vmul.f32 %v10602, %v11231
    %v11296 = vmul.f32 %v10604, %v11232
    %v11297 = vmul.f32 %v10715, %v11233
    %v11298 = vmul.f32 %v10717, %v11234
    %v11299 = vmul.f32 %v10608, %v11235
    %v11300 = vmul.f32 %v10610, %v11236
    %v11301 = vmul.f32 %v10721, %v11237
    %v11302 = vmul.f32 %v10723, %v11238
    %v11303 = vmul.f32 %v10612, %v11239
    %v11304 = vmul.f32 %v10614, %v11240
    %v11305 = vmul.f32 %v10725, %v11241
    %v11306 = vmul.f32 %v10727, %v11242
    %v11307 = vmul.f32 %v10618, %v11243
    %v11308 = vmul.f32 %v10620, %v11244
    %v11309 = vmul.f32 %v10731, %v11245
    %v11310 = vmul.f32 %v10733, %v11246
    %v11311 = vmul.f32 %v10622, %v11247
    %v11312 = vmul.f32 %v10624, %v11248
    %v11313 = vmul.f32 %v10735, %v11249
    %v11314 = vmul.f32 %v10737, %v11250
    %v11315 = vpack.c.bf16 %v11255, %v11251
    %v11316 = vpack.c.bf16 %v11256, %v11252
    %v11317 = vpack.c.bf16 %v11257, %v11253
    %v11318 = vpack.c.bf16 %v11258, %v11254
    %v11319 = vpack.c.bf16 %v11263, %v11259
    %v11320 = vpack.c.bf16 %v11264, %v11260
    %v11321 = vpack.c.bf16 %v11265, %v11261
    %v11322 = vpack.c.bf16 %v11266, %v11262
    %v11323 = vpack.c.bf16 %v11271, %v11267
    %v11324 = vpack.c.bf16 %v11272, %v11268
    %v11325 = vpack.c.bf16 %v11273, %v11269
    %v11326 = vpack.c.bf16 %v11274, %v11270
    %v11327 = vpack.c.bf16 %v11279, %v11275
    %v11328 = vpack.c.bf16 %v11280, %v11276
    %v11329 = vpack.c.bf16 %v11281, %v11277
    %v11330 = vpack.c.bf16 %v11282, %v11278
    %v11331 = vpack.c.bf16 %v11287, %v11283
    %v11332 = vpack.c.bf16 %v11288, %v11284
    %v11333 = vpack.c.bf16 %v11289, %v11285
    %v11334 = vpack.c.bf16 %v11290, %v11286
    %v11335 = vpack.c.bf16 %v11295, %v11291
    %v11336 = vpack.c.bf16 %v11296, %v11292
    %v11337 = vpack.c.bf16 %v11297, %v11293
    %v11338 = vpack.c.bf16 %v11298, %v11294
    %v11339 = vpack.c.bf16 %v11303, %v11299
    %v11340 = vpack.c.bf16 %v11304, %v11300
    %v11341 = vpack.c.bf16 %v11305, %v11301
    %v11342 = vpack.c.bf16 %v11306, %v11302
    %v11343 = vpack.c.bf16 %v11311, %v11307
    %v11344 = vpack.c.bf16 %v11312, %v11308
    %v11345 = vpack.c.bf16 %v11313, %v11309
    %v11346 = vpack.c.bf16 %v11314, %v11310
    %v11411 = vunpack.c.l.b16 %v6127
    %v11412 = vunpack.c.l.b16 %v6128
    %v11413 = vunpack.c.l.b16 %v6129
    %v11414 = vunpack.c.l.b16 %v6130
    %v11415 = vunpack.c.l.b16 %v6131
    %v11416 = vunpack.c.l.b16 %v6132
    %v11417 = vunpack.c.l.b16 %v6133
    %v11418 = vunpack.c.l.b16 %v6134
    %v11419 = vunpack.c.l.b16 %v6135
    %v11420 = vunpack.c.l.b16 %v6136
    %v11421 = vunpack.c.l.b16 %v6137
    %v11422 = vunpack.c.l.b16 %v6138
    %v11423 = vunpack.c.l.b16 %v6139
    %v11424 = vunpack.c.l.b16 %v6140
    %v11425 = vunpack.c.l.b16 %v6141
    %v11426 = vunpack.c.l.b16 %v6142
    %v11427 = vunpack.c.l.b16 %v6143
    %v11428 = vunpack.c.l.b16 %v6144
    %v11429 = vunpack.c.l.b16 %v6145
    %v11430 = vunpack.c.l.b16 %v6146
    %v11431 = vunpack.c.l.b16 %v6147
    %v11432 = vunpack.c.l.b16 %v6148
    %v11433 = vunpack.c.l.b16 %v6149
    %v11434 = vunpack.c.l.b16 %v6150
    %v11435 = vunpack.c.l.b16 %v6151
    %v11436 = vunpack.c.l.b16 %v6152
    %v11437 = vunpack.c.l.b16 %v6153
    %v11438 = vunpack.c.l.b16 %v6154
    %v11439 = vunpack.c.l.b16 %v6155
    %v11440 = vunpack.c.l.b16 %v6156
    %v11441 = vunpack.c.l.b16 %v6157
    %v11442 = vunpack.c.l.b16 %v6158
    %v11443 = vunpack.c.l.b16 %v6159
    %v11444 = vunpack.c.l.b16 %v6160
    %v11445 = vunpack.c.l.b16 %v6161
    %v11446 = vunpack.c.l.b16 %v6162
    %v11447 = vunpack.c.l.b16 %v6163
    %v11448 = vunpack.c.l.b16 %v6164
    %v11449 = vunpack.c.l.b16 %v6165
    %v11450 = vunpack.c.l.b16 %v6166
    %v11451 = vunpack.c.l.b16 %v6167
    %v11452 = vunpack.c.l.b16 %v6168
    %v11453 = vunpack.c.l.b16 %v6169
    %v11454 = vunpack.c.l.b16 %v6170
    %v11455 = vunpack.c.l.b16 %v6171
    %v11456 = vunpack.c.l.b16 %v6172
    %v11457 = vunpack.c.l.b16 %v6173
    %v11458 = vunpack.c.l.b16 %v6174
    %v11459 = vunpack.c.l.b16 %v6175
    %v11460 = vunpack.c.l.b16 %v6176
    %v11461 = vunpack.c.l.b16 %v6177
    %v11462 = vunpack.c.l.b16 %v6178
    %v11463 = vunpack.c.l.b16 %v6179
    %v11464 = vunpack.c.l.b16 %v6180
    %v11465 = vunpack.c.l.b16 %v6181
    %v11466 = vunpack.c.l.b16 %v6182
    %v11467 = vunpack.c.l.b16 %v6183
    %v11468 = vunpack.c.l.b16 %v6184
    %v11469 = vunpack.c.l.b16 %v6185
    %v11470 = vunpack.c.l.b16 %v6186
    %v11471 = vunpack.c.l.b16 %v6187
    %v11472 = vunpack.c.l.b16 %v6188
    %v11473 = vunpack.c.l.b16 %v6189
    %v11474 = vunpack.c.l.b16 %v6190
    %v11475 = vpack.c.b16 %v11412, %v11411
    %v11476 = vpack.c.b16 %v11414, %v11413
    %v11477 = vpack.c.b16 %v11416, %v11415
    %v11478 = vpack.c.b16 %v11418, %v11417
    %v11479 = vpack.c.b16 %v11420, %v11419
    %v11480 = vpack.c.b16 %v11422, %v11421
    %v11481 = vpack.c.b16 %v11424, %v11423
    %v11482 = vpack.c.b16 %v11426, %v11425
    %v11483 = vpack.c.b16 %v11428, %v11427
    %v11484 = vpack.c.b16 %v11430, %v11429
    %v11485 = vpack.c.b16 %v11432, %v11431
    %v11486 = vpack.c.b16 %v11434, %v11433
    %v11487 = vpack.c.b16 %v11436, %v11435
    %v11488 = vpack.c.b16 %v11438, %v11437
    %v11489 = vpack.c.b16 %v11440, %v11439
    %v11490 = vpack.c.b16 %v11442, %v11441
    %v11491 = vpack.c.b16 %v11444, %v11443
    %v11492 = vpack.c.b16 %v11446, %v11445
    %v11493 = vpack.c.b16 %v11448, %v11447
    %v11494 = vpack.c.b16 %v11450, %v11449
    %v11495 = vpack.c.b16 %v11452, %v11451
    %v11496 = vpack.c.b16 %v11454, %v11453
    %v11497 = vpack.c.b16 %v11456, %v11455
    %v11498 = vpack.c.b16 %v11458, %v11457
    %v11499 = vpack.c.b16 %v11460, %v11459
    %v11500 = vpack.c.b16 %v11462, %v11461
    %v11501 = vpack.c.b16 %v11464, %v11463
    %v11502 = vpack.c.b16 %v11466, %v11465
    %v11503 = vpack.c.b16 %v11468, %v11467
    %v11504 = vpack.c.b16 %v11470, %v11469
    %v11505 = vpack.c.b16 %v11472, %v11471
    %v11506 = vpack.c.b16 %v11474, %v11473
    %11539 = vmatprep.subr.bf16.mxu0 0
    %11540 = vmatpush1.bf16.msra.mxu0 %v11482
    %11541 = vmatprep.subr.bf16.mxu0 0
    %11542 = vmatpush1.bf16.msra.mxu0 %v11481
    %11543 = vmatprep.subr.bf16.mxu0 0
    %11544 = vmatpush1.bf16.msra.mxu0 %v11480
    %11545 = vmatprep.subr.bf16.mxu0 0
    %11546 = vmatpush1.bf16.msra.mxu0 %v11479
    %11547 = vmatprep.subr.bf16.mxu0 0
    %11548 = vmatpush1.bf16.msra.mxu0 %v11478
    %11549 = vmatprep.subr.bf16.mxu0 0
    %11550 = vmatpush1.bf16.msra.mxu0 %v11477
    %11551 = vmatprep.subr.bf16.mxu0 0
    %11552 = vmatpush1.bf16.msra.mxu0 %v11476
    %11553 = vmatprep.subr.bf16.mxu0 0
    %11554 = vmatpush1.bf16.msra.mxu0 %v11475
    %11555 = vmatprep.subr.bf16.mxu0 0
    %11556 = vmatpush2.bf16.msra.mxu0 %v11490
    %11557 = vmatprep.subr.bf16.mxu0 0
    %11558 = vmatpush2.bf16.msra.mxu0 %v11489
    %11559 = vmatprep.subr.bf16.mxu0 0
    %11560 = vmatpush2.bf16.msra.mxu0 %v11488
    %11561 = vmatprep.subr.bf16.mxu0 0
    %11562 = vmatpush2.bf16.msra.mxu0 %v11487
    %11563 = vmatprep.subr.bf16.mxu0 0
    %11564 = vmatpush2.bf16.msra.mxu0 %v11486
    %11565 = vmatprep.subr.bf16.mxu0 0
    %11566 = vmatpush2.bf16.msra.mxu0 %v11485
    %11567 = vmatprep.subr.bf16.mxu0 0
    %11568 = vmatpush2.bf16.msra.mxu0 %v11484
    %11569 = vmatprep.subr.bf16.mxu0 0
    %11570 = vmatpush2.bf16.msra.mxu0 %v11483
    %11571 = vmatprep.mubr.bf16.mxu0 %v11316
    %11572 = vmatmul.mubr.bf16.gmra.mxu0 %v11315
    %v11573 = vpop.f32.mrf.mxu0
    %v11574 = vadd.f32 %v6200, %v11573
    %v11575 = vpop.f32.mrf.mxu0
    %v11576 = vpop.f32.mrf.mxu0
    %v11577 = vpop.f32.mrf.mxu0
    %11578 = vmatprep.mubr.bf16.mxu0 %v11320
    %11579 = vmatmul.mubr.bf16.gmra.mxu0 %v11319
    %v11580 = vpop.f32.mrf.mxu0
    %v11581 = vpop.f32.mrf.mxu0
    %v11582 = vpop.f32.mrf.mxu0
    %v11583 = vpop.f32.mrf.mxu0
    %11584 = vmatprep.mubr.bf16.mxu0 %v11324
    %11585 = vmatmul.mubr.bf16.gmra.mxu0 %v11323
    %v11586 = vpop.f32.mrf.mxu0
    %v11587 = vadd.f32 %v6200, %v11586
    %v11588 = vpop.f32.mrf.mxu0
    %v11589 = vpop.f32.mrf.mxu0
    %v11590 = vpop.f32.mrf.mxu0
    %11591 = vmatprep.mubr.bf16.mxu0 %v11328
    %11592 = vmatmul.mubr.bf16.gmra.mxu0 %v11327
    %v11593 = vpop.f32.mrf.mxu0
    %v11594 = vpop.f32.mrf.mxu0
    %v11595 = vpop.f32.mrf.mxu0
    %v11596 = vpop.f32.mrf.mxu0
    %11597 = vmatprep.mubr.bf16.mxu0 %v11332
    %11598 = vmatmul.mubr.bf16.gmra.mxu0 %v11331
    %v11599 = vpop.f32.mrf.mxu0
    %v11600 = vadd.f32 %v6200, %v11599
    %v11601 = vpop.f32.mrf.mxu0
    %v11602 = vpop.f32.mrf.mxu0
    %v11603 = vpop.f32.mrf.mxu0
    %11604 = vmatprep.mubr.bf16.mxu0 %v11336
    %11605 = vmatmul.mubr.bf16.gmra.mxu0 %v11335
    %v11606 = vpop.f32.mrf.mxu0
    %v11607 = vpop.f32.mrf.mxu0
    %v11608 = vpop.f32.mrf.mxu0
    %v11609 = vpop.f32.mrf.mxu0
    %11610 = vmatprep.mubr.bf16.mxu0 %v11340
    %11611 = vmatmul.mubr.bf16.gmra.mxu0 %v11339
    %v11612 = vpop.f32.mrf.mxu0
    %v11613 = vadd.f32 %v6200, %v11612
    %v11614 = vpop.f32.mrf.mxu0
    %v11615 = vpop.f32.mrf.mxu0
    %v11616 = vpop.f32.mrf.mxu0
    %11617 = vmatprep.mubr.bf16.mxu0 %v11344
    %11618 = vmatmul.mubr.bf16.gmra.mxu0 %v11343
    %v11619 = vpop.f32.mrf.mxu0
    %v11620 = vpop.f32.mrf.mxu0
    %v11621 = vpop.f32.mrf.mxu0
    %v11622 = vpop.f32.mrf.mxu0
    %11623 = vdwg.mxu0
    %11624 = vmatprep.subr.bf16.mxu0 0
    %11625 = vmatpush1.bf16.msra.mxu0 %v11498
    %11626 = vmatprep.subr.bf16.mxu0 0
    %11627 = vmatpush1.bf16.msra.mxu0 %v11497
    %11628 = vmatprep.subr.bf16.mxu0 0
    %11629 = vmatpush1.bf16.msra.mxu0 %v11496
    %11630 = vmatprep.subr.bf16.mxu0 0
    %11631 = vmatpush1.bf16.msra.mxu0 %v11495
    %11632 = vmatprep.subr.bf16.mxu0 0
    %11633 = vmatpush1.bf16.msra.mxu0 %v11494
    %11634 = vmatprep.subr.bf16.mxu0 0
    %11635 = vmatpush1.bf16.msra.mxu0 %v11493
    %11636 = vmatprep.subr.bf16.mxu0 0
    %11637 = vmatpush1.bf16.msra.mxu0 %v11492
    %11638 = vmatprep.subr.bf16.mxu0 0
    %11639 = vmatpush1.bf16.msra.mxu0 %v11491
    %11640 = vmatprep.subr.bf16.mxu0 0
    %11641 = vmatpush2.bf16.msra.mxu0 %v11506
    %11642 = vmatprep.subr.bf16.mxu0 0
    %11643 = vmatpush2.bf16.msra.mxu0 %v11505
    %11644 = vmatprep.subr.bf16.mxu0 0
    %11645 = vmatpush2.bf16.msra.mxu0 %v11504
    %11646 = vmatprep.subr.bf16.mxu0 0
    %11647 = vmatpush2.bf16.msra.mxu0 %v11503
    %11648 = vmatprep.subr.bf16.mxu0 0
    %11649 = vmatpush2.bf16.msra.mxu0 %v11502
    %11650 = vmatprep.subr.bf16.mxu0 0
    %11651 = vmatpush2.bf16.msra.mxu0 %v11501
    %11652 = vmatprep.subr.bf16.mxu0 0
    %11653 = vmatpush2.bf16.msra.mxu0 %v11500
    %11654 = vmatprep.subr.bf16.mxu0 0
    %11655 = vmatpush2.bf16.msra.mxu0 %v11499
    %11656 = vmatprep.mubr.bf16.mxu0 %v11318
    %11657 = vmatmul.mubr.bf16.gmra.mxu0 %v11317
    %v11658 = vpop.f32.mrf.mxu0
    %v11659 = vadd.f32 %v11574, %v11658
    %v11660 = vpop.f32.mrf.mxu0
    %v11661 = vpop.f32.mrf.mxu0
    %v11662 = vpop.f32.mrf.mxu0
    %11663 = vmatprep.mubr.bf16.mxu0 %v11322
    %11664 = vmatmul.mubr.bf16.gmra.mxu0 %v11321
    %v11665 = vpop.f32.mrf.mxu0
    %v11666 = vpop.f32.mrf.mxu0
    %v11667 = vpop.f32.mrf.mxu0
    %v11668 = vpop.f32.mrf.mxu0
    %11669 = vmatprep.mubr.bf16.mxu0 %v11326
    %11670 = vmatmul.mubr.bf16.gmra.mxu0 %v11325
    %v11671 = vpop.f32.mrf.mxu0
    %v11672 = vadd.f32 %v11587, %v11671
    %v11673 = vpop.f32.mrf.mxu0
    %v11674 = vpop.f32.mrf.mxu0
    %v11675 = vpop.f32.mrf.mxu0
    %11676 = vmatprep.mubr.bf16.mxu0 %v11330
    %11677 = vmatmul.mubr.bf16.gmra.mxu0 %v11329
    %v11678 = vpop.f32.mrf.mxu0
    %v11679 = vpop.f32.mrf.mxu0
    %v11680 = vpop.f32.mrf.mxu0
    %v11681 = vpop.f32.mrf.mxu0
    %11682 = vmatprep.mubr.bf16.mxu0 %v11334
    %11683 = vmatmul.mubr.bf16.gmra.mxu0 %v11333
    %v11684 = vpop.f32.mrf.mxu0
    %v11685 = vadd.f32 %v11600, %v11684
    %v11686 = vpop.f32.mrf.mxu0
    %v11687 = vpop.f32.mrf.mxu0
    %v11688 = vpop.f32.mrf.mxu0
    %11689 = vmatprep.mubr.bf16.mxu0 %v11338
    %11690 = vmatmul.mubr.bf16.gmra.mxu0 %v11337
    %v11691 = vpop.f32.mrf.mxu0
    %v11692 = vpop.f32.mrf.mxu0
    %v11693 = vpop.f32.mrf.mxu0
    %v11694 = vpop.f32.mrf.mxu0
    %11695 = vmatprep.mubr.bf16.mxu0 %v11342
    %11696 = vmatmul.mubr.bf16.gmra.mxu0 %v11341
    %v11697 = vpop.f32.mrf.mxu0
    %v11698 = vadd.f32 %v11613, %v11697
    %v11699 = vpop.f32.mrf.mxu0
    %v11700 = vpop.f32.mrf.mxu0
    %v11701 = vpop.f32.mrf.mxu0
    %11702 = vmatprep.mubr.bf16.mxu0 %v11346
    %11703 = vmatmul.mubr.bf16.gmra.mxu0 %v11345
    %v11704 = vpop.f32.mrf.mxu0
    %v11705 = vpop.f32.mrf.mxu0
    %v11706 = vpop.f32.mrf.mxu0
    %v11707 = vpop.f32.mrf.mxu0
    %11708 = vdwg.mxu0
    %v11709 = vadd.f32 %v10100, %v11659
    %v11710 = vadd.f32 %v10104, %v11672
    %v11711 = vadd.f32 %v10108, %v11685
    %v11712 = vadd.f32 %v10112, %v11698
    %v11713 = vld [vmem:[#allocation4 + $0x80] ss:$0 sm:$0xff]
    %v11714 = vld [vmem:[#allocation4 + $0x81] ss:$0 sm:$0xff]
    %v11715 = vld [vmem:[#allocation2 + $0x200] sm:$0xf]
    %v11716 = vld [vmem:[#allocation2 + $0x210] sm:$0xf]
    %v11717 = vld [vmem:[#allocation2 + $0x220] sm:$0xf]
    %v11718 = vld [vmem:[#allocation2 + $0x230] sm:$0xf]
    %v11719 = vld [vmem:[#allocation2 + $0x240] sm:$0xf]
    %v11720 = vld [vmem:[#allocation2 + $0x250] sm:$0xf]
    %v11721 = vld [vmem:[#allocation2 + $0x260] sm:$0xf]
    %v11722 = vld [vmem:[#allocation2 + $0x270] sm:$0xf]
    %v11723 = vld [vmem:[#allocation2 + $0x280] sm:$0xf]
    %v11724 = vld [vmem:[#allocation2 + $0x290] sm:$0xf]
    %v11725 = vld [vmem:[#allocation2 + $0x2a0] sm:$0xf]
    %v11726 = vld [vmem:[#allocation2 + $0x2b0] sm:$0xf]
    %v11727 = vld [vmem:[#allocation2 + $0x2c0] sm:$0xf]
    %v11728 = vld [vmem:[#allocation2 + $0x2d0] sm:$0xf]
    %v11729 = vld [vmem:[#allocation2 + $0x2e0] sm:$0xf]
    %v11730 = vld [vmem:[#allocation2 + $0x2f0] sm:$0xf]
    %v11731 = vld [vmem:[#allocation4 + $0x82] ss:$0 sm:$0xff]
    %v11736 = vrot.slane %v11710, 7
    %vm11737 = vcmask 1041409
    %v11738 = vsel %vm11737, %v11736, %v11709
    %v11739 = vrot.slane %v11711, 6
    %vm11740 = vcmask 1042434
    %v11741 = vsel %vm11740, %v11739, %v11738
    %v11742 = vrot.slane %v11712, 5
    %vm11743 = vcmask 1043459
    %v11744 = vsel %vm11743, %v11742, %v11741
    %vm11746 = vcmask 1043456
    %v11747 = vsel %vm11746, %v11744, 0.0
    %11748 = vadd.xlane.f32.xlu0 %v11747
    %v11749 = vpop.xlane.xlu0 %11748
    %v11750 = vmul.f32 %v11749, %v525
    %v11752 = vrot.slane %v11750, 1
    %v11753 = vrot.slane %v11750, 2
    %v11754 = vrot.slane %v11750, 3
    %v11759 = vsub.f32 %v11709, %v11750
    %v11760 = vsub.f32 %v11710, %v11752
    %v11761 = vsub.f32 %v11711, %v11753
    %v11762 = vsub.f32 %v11712, %v11754
    %v11763 = vmul.f32 %v11759, %v11759
    %v11764 = vmul.f32 %v11760, %v11760
    %v11765 = vmul.f32 %v11761, %v11761
    %v11766 = vmul.f32 %v11762, %v11762
    %v11771 = vrot.slane %v11764, 7
    %v11772 = vsel %vm11737, %v11771, %v11763
    %v11773 = vrot.slane %v11765, 6
    %v11774 = vsel %vm11740, %v11773, %v11772
    %v11775 = vrot.slane %v11766, 5
    %v11776 = vsel %vm11743, %v11775, %v11774
    %v11778 = vsel %vm11746, %v11776, 0.0
    %11779 = vadd.xlane.f32.xlu0 %v11778
    %v11780 = vpop.xlane.xlu0 %11779
    %v11781 = vmul.f32 %v11780, %v525
    %v11782 = vadd.f32 %v11781, 1e-06
    %v11783 = vrsqrt.pop %v11782
    %v11785 = vrot.slane %v11783, 1
    %v11786 = vrot.slane %v11783, 2
    %v11787 = vrot.slane %v11783, 3
    %v11792 = vmul.f32 %v11759, %v11783
    %v11793 = vmul.f32 %v11760, %v11785
    %v11794 = vmul.f32 %v11761, %v11786
    %v11795 = vmul.f32 %v11762, %v11787
    %v11796 = vmul.f32 %v11792, %v11713
    %v11797 = vmul.f32 %v11793, %v11713
    %v11798 = vmul.f32 %v11794, %v11713
    %v11799 = vmul.f32 %v11795, %v11713
    %v11800 = vadd.f32 %v11796, %v11714
    %v11801 = vadd.f32 %v11797, %v11714
    %v11802 = vadd.f32 %v11798, %v11714
    %v11803 = vadd.f32 %v11799, %v11714
    %v11804 = vpack.c.bf16 %v11800, %v11800
    %v11805 = vpack.c.bf16 %v11801, %v11801
    %v11806 = vpack.c.bf16 %v11802, %v11802
    %v11807 = vpack.c.bf16 %v11803, %v11803
    %v11812 = vunpack.c.l.b16 %v11804
    %v11813 = vunpack.c.l.b16 %v11805
    %v11814 = vunpack.c.l.b16 %v11806
    %v11815 = vunpack.c.l.b16 %v11807
    %v11816 = vrot.slane %v11813, 7
    %v11817 = vsel %vm11737, %v11816, %v11812
    %v11818 = vrot.slane %v11814, 6
    %v11819 = vsel %vm11740, %v11818, %v11817
    %v11820 = vrot.slane %v11815, 5
    %v11821 = vsel %vm11743, %v11820, %v11819
    %v11822 = vpack.c.b16 %v11821, %v11821
    %v11840 = vunpack.c.l.b16 %v11715
    %v11841 = vunpack.c.l.b16 %v11716
    %v11842 = vunpack.c.l.b16 %v11717
    %v11843 = vunpack.c.l.b16 %v11718
    %v11844 = vunpack.c.l.b16 %v11719
    %v11845 = vunpack.c.l.b16 %v11720
    %v11846 = vunpack.c.l.b16 %v11721
    %v11847 = vunpack.c.l.b16 %v11722
    %v11848 = vunpack.c.l.b16 %v11723
    %v11849 = vunpack.c.l.b16 %v11724
    %v11850 = vunpack.c.l.b16 %v11725
    %v11851 = vunpack.c.l.b16 %v11726
    %v11852 = vunpack.c.l.b16 %v11727
    %v11853 = vunpack.c.l.b16 %v11728
    %v11854 = vunpack.c.l.b16 %v11729
    %v11855 = vunpack.c.l.b16 %v11730
    %v11856 = vpack.c.b16 %v11841, %v11840
    %v11857 = vpack.c.b16 %v11843, %v11842
    %v11858 = vpack.c.b16 %v11845, %v11844
    %v11859 = vpack.c.b16 %v11847, %v11846
    %v11860 = vpack.c.b16 %v11849, %v11848
    %v11861 = vpack.c.b16 %v11851, %v11850
    %v11862 = vpack.c.b16 %v11853, %v11852
    %v11863 = vpack.c.b16 %v11855, %v11854
    %11872 = vmatprep.subr.bf16.mxu0 0
    %11873 = vmatpush1.bf16.msra.mxu0 %v11863
    %11874 = vmatprep.subr.bf16.mxu0 0
    %11875 = vmatpush1.bf16.msra.mxu0 %v11862
    %11876 = vmatprep.subr.bf16.mxu0 0
    %11877 = vmatpush1.bf16.msra.mxu0 %v11861
    %11878 = vmatprep.subr.bf16.mxu0 0
    %11879 = vmatpush1.bf16.msra.mxu0 %v11860
    %11880 = vmatprep.subr.bf16.mxu0 0
    %11881 = vmatpush1.bf16.msra.mxu0 %v11859
    %11882 = vmatprep.subr.bf16.mxu0 0
    %11883 = vmatpush1.bf16.msra.mxu0 %v11858
    %11884 = vmatprep.subr.bf16.mxu0 0
    %11885 = vmatpush1.bf16.msra.mxu0 %v11857
    %11886 = vmatprep.subr.bf16.mxu0 0
    %11887 = vmatpush1.bf16.msra.mxu0 %v11856
    %11888 = vmatprep.subr.bf16.mxu0 0
    %11889 = vmatpush2.bf16.msra.mxu0 0
    %11890 = vmatprep.subr.bf16.mxu0 0
    %11891 = vmatpush2.bf16.msra.mxu0 0
    %11892 = vmatprep.subr.bf16.mxu0 0
    %11893 = vmatpush2.bf16.msra.mxu0 0
    %11894 = vmatprep.subr.bf16.mxu0 0
    %11895 = vmatpush2.bf16.msra.mxu0 0
    %11896 = vmatprep.subr.bf16.mxu0 0
    %11897 = vmatpush2.bf16.msra.mxu0 0
    %11898 = vmatprep.subr.bf16.mxu0 0
    %11899 = vmatpush2.bf16.msra.mxu0 0
    %11900 = vmatprep.subr.bf16.mxu0 0
    %11901 = vmatpush2.bf16.msra.mxu0 0
    %11902 = vmatprep.subr.bf16.mxu0 0
    %11903 = vmatpush2.bf16.msra.mxu0 0
    %11904 = vmatprep.mubr.bf16.mxu0 0
    %11905 = vmatmul.mubr.bf16.gmra.mxu0 %v11822
    %v11906 = vpop.f32.mrf.mxu0
    %v11907 = vadd.f32 %v11731, %v11906
    %v11908 = vpop.f32.mrf.mxu0
    %v11909 = vpop.f32.mrf.mxu0
    %v11910 = vpop.f32.mrf.mxu0
    %11911 = vdwg.mxu0
    %v11914 = vunpack.c.l.s4 1966171168
    %v11915 = vunpack.c.0.s8 %v11914
    %v11916 = vlaneseq
    %v11917 = vshrl.u32 %v11916, 7
    %v11918 = vsub.s32 %v11915, %v11917
    %v11919 = vrot.slane %v11907, %v11918
    %v11920 = vcombine.high %v11919, %v11919
    %v11922 = vunpack.c.l.s4 1966171168
    %v11923 = vunpack.c.0.s8 %v11922
    %v11924 = vlaneseq
    %v11925 = vshrl.u32 %v11924, 7
    %v11926 = vsub.s32 %v11923, %v11925
    %v11927 = vrot.slane %v11919, %v11926
    %v11929 = vunpack.c.l.s4 1966171168
    %v11930 = vunpack.c.0.s8 %v11929
    %v11931 = vlaneseq
    %v11932 = vshrl.u32 %v11931, 7
    %v11933 = vsub.s32 %v11930, %v11932
    %v11934 = vrot.slane %v11920, %v11933
    %v11935 = vcombine.high %v11927, %v11927
    %v11936 = vcombine.high %v11934, %v11934
    %11941 = vst [vmem:[%s3] sm:$0x1] %v11927
    %11942 = vst [vmem:[%s3 + $0x1] sm:$0x1] %v11934
    %11943 = vst [vmem:[%s3 + $0x2] sm:$0x1] %v11935
    %11944 = vst [vmem:[%s3 + $0x3] sm:$0x1] %v11936
    // Predicated region
    $region22: #{vit_contrastive_forward.1} parent=1 // pred_check
      _
    $region23: #{vit_contrastive_forward.1} parent=1 // pred_check_branch
      %11946 = sbr.rel (0) target = $region25
    $region24: #{vit_contrastive_forward.1} parent=1 // pred_region
      _
    $region25: #{vit_contrastive_forward.1} parent=1 // pred_fallthru
      _
    // Predicated region
    $region26: #{vit_contrastive_forward.1} parent=1 // pred_check
      _
    $region27: #{vit_contrastive_forward.1} parent=1 // pred_check_branch
      %11948 = sbr.rel (0) target = $region29
    $region28: #{vit_contrastive_forward.1} parent=1 // pred_region
      _
    $region29: #{vit_contrastive_forward.1} parent=1 // pred_fallthru
      _
    %11949 = vsyncpa [#allocation3], 1
    %11950 = vsyncpa [#allocation5], 1

</llo_original>
